<compile_context>
chip_gen: v5e
topology: v5e:2x2
jax: 0.10.0
libtpu: 0.0.40
codegen_flags: <defaults>
</compile_context>

<pallas_src>
import numpy as np
import jax
import jax.numpy as jnp
from jax import lax
from jax.experimental import pallas as pl
from jax.experimental.pallas import tpu as pltpu

_VMEM_LIMIT = 32 * 1024 * 1024  # fits v5e/v6e (128 MiB) and v7x (64 MiB physical)


# ----------------------------------------------------------------------------
# Host-side weight packing: banded "row" matrices, interleave & upsample mats
# ----------------------------------------------------------------------------
def _deconv_banded(w, w_in):
    """ConvTranspose2d(k=4,s=2,p=1) weight (Cin,Cout,4,4) -> banded row mats.

    Returns (4, w_in*Cin, 2*w_in*Cout); index a*2+r maps input row (i+a+r-1)
    to output rows 2i+a.  Lanes are (w, channel) pairs; the W-phase interleave
    and the W zero-padding are folded into the matrix.
    """
    w = np.asarray(w, np.float32)
    cin, cout = w.shape[0], w.shape[1]
    d = np.zeros((2, 2, w_in * cin, 2 * w_in * cout), np.float32)
    for a in range(2):
        for r in range(2):
            for j in range(w_in):
                for b in range(2):
                    v = 2 * j + b
                    for c in range(2):
                        jj = j + b + c - 1
                        if 0 <= jj < w_in:
                            tap = w[:, :, 3 - a - 2 * r, 3 - b - 2 * c]
                            d[a, r, jj * cin:(jj + 1) * cin,
                              v * cout:(v + 1) * cout] += tap
    return d.reshape(4, w_in * cin, 2 * w_in * cout)


def _conv3x3_banded(w, w_in):
    """Conv2d(3x3,p=1) weight (Cout,Cin,3,3) -> (3, w_in*Cin, w_in*Cout)."""
    w = np.asarray(w, np.float32)
    cout, cin = w.shape[0], w.shape[1]
    m = np.zeros((3, w_in * cin, w_in * cout), np.float32)
    for kh in range(3):
        for v in range(w_in):
            for kw in range(3):
                jj = v + kw - 1
                if 0 <= jj < w_in:
                    m[kh, jj * cin:(jj + 1) * cin,
                      v * cout:(v + 1) * cout] += w[:, :, kh, kw].T
    return m


def _row_interleave(h_in):
    """(2, 2*h_in, h_in) 0/1 scatter matrices: R[a] @ Y_a puts Y_a[i] at 2i+a."""
    r = np.zeros((2, 2 * h_in, h_in), np.float32)
    idx = np.arange(h_in)
    for a in range(2):
        r[a, 2 * idx + a, idx] = 1.0
    return r


def _bilinear_matrix(n_in, scale=2):
    """torch Upsample(x2, bilinear, align_corners=False) as a row matrix."""
    n_out = n_in * scale
    o = np.arange(n_out)
    coord = (o + 0.5) / scale - 0.5
    i0 = np.floor(coord).astype(np.int64)
    frac = (coord - i0).astype(np.float32)
    i0c = np.clip(i0, 0, n_in - 1)
    i1c = np.clip(i0 + 1, 0, n_in - 1)
    a = np.zeros((n_out, n_in), np.float32)
    a[o, i0c] += (1.0 - frac)
    a[o, i1c] += frac
    return a


def _up4_matrix(n):
    # two successive x2 bilinear upsamples are linear: compose (numpy constant).
    return _bilinear_matrix(2 * n) @ _bilinear_matrix(n)          # (4n, n)


def _w_upsample_matrix(bw4, cout):
    """Per-channel W-upsample: columns ordered (channel, out_w) so that the
    kernel can slice 128-aligned per-channel blocks for NCHW stores."""
    w4, w3 = bw4.shape
    g = np.zeros((w3 * cout, cout * w4), np.float32)
    idx = np.arange(w3)
    for c in range(cout):
        g[idx * cout + c, c * w4:(c + 1) * w4] = bw4.T
    return g


def _bn_fold(gamma, beta, mean, var, bias=None, eps=1e-5):
    scale = gamma / jnp.sqrt(var + eps)
    shift = beta - mean * scale if bias is None else beta + (bias - mean) * scale
    return (scale.reshape(1, -1).astype(jnp.float32),
            shift.reshape(1, -1).astype(jnp.float32))


def _tile_lane(vec, reps):
    return jnp.asarray(np.tile(np.asarray(vec).reshape(-1), reps)
                       ).reshape(1, -1).astype(jnp.float32)


# ----------------------------------------------------------------------------
# Fused decoder forward: one pallas_call over the batch
# ----------------------------------------------------------------------------
@jax.jit
def decoder_forward(x_nchw, params):
    N, cin, H, W = x_nchw.shape
    dec = params["deconv"]
    n_dec = len(dec)
    conv = params["conv"]
    bh, g = params["bh"], params["g"]

    w3 = W * (2 ** n_dec)
    h3 = H * (2 ** n_dec)
    c3 = conv["m"].shape[2] // w3
    h4, w4 = 4 * h3, 4 * w3

    # tiny input: NCHW -> row layout (N, H, W*Cin); lanes are (w, ci) pairs.
    x_rows = jnp.transpose(x_nchw, (0, 2, 3, 1)).reshape(N, H, W * cin)

    def kernel(*refs):
        i = 0
        x_ref = refs[i]; i += 1
        dec_refs = []
        for _ in range(n_dec):
            dec_refs.append(refs[i:i + 4]); i += 4
        m_ref, cs_ref, cb_ref, bh_ref, g_ref = refs[i:i + 5]; i += 5
        o_ref = refs[i]; i += 1
        pad_refs = refs[i:i + n_dec + 1]

        def pad_rows(xp, val, nrows):
            zero = jnp.zeros((1, xp.shape[1]), xp.dtype)
            xp[0:1, :] = zero
            xp[nrows + 1:nrows + 2, :] = zero
            xp[1:nrows + 1, :] = val

        act = x_ref[0]                                     # (H, W*Cin) f32
        rows = H
        for l in range(n_dec):
            d_ref, s_ref, b_ref, r_ref = dec_refs[l]
            xp = pad_refs[l]
            pad_rows(xp, act, rows)
            outw = d_ref.shape[2]
            ys = []
            for a in range(2):                             # output-row phase
                acc = jnp.zeros((rows, outw), jnp.float32)
                for r in range(2):                         # row tap
                    slab = xp[a + r:a + r + rows, :].astype(jnp.bfloat16)
                    acc = acc + jnp.dot(slab, d_ref[2 * a + r],
                                        preferred_element_type=jnp.float32)
                ys.append(jnp.maximum(acc * s_ref[...] + b_ref[...], 0.0))
            # H interleave (rows 2i+a <- ys[a][i]) via 0/1 scatter matmuls.
            act = (jnp.dot(r_ref[0], ys[0], preferred_element_type=jnp.float32)
                   + jnp.dot(r_ref[1], ys[1], preferred_element_type=jnp.float32))
            rows *= 2

        # 3x3 conv + BN + ReLU
        xp = pad_refs[n_dec]
        pad_rows(xp, act, rows)
        acc = jnp.zeros((rows, m_ref.shape[2]), jnp.float32)
        for kh in range(3):
            slab = xp[kh:kh + rows, :].astype(jnp.bfloat16)
            acc = acc + jnp.dot(slab, m_ref[kh],
                                preferred_element_type=jnp.float32)
        act = jnp.maximum(acc * cs_ref[...] + cb_ref[...], 0.0)   # (h3, w3*c3)

        # fused double bilinear x2 upsample (=> x4), written as NCHW planes.
        u1 = jnp.dot(bh_ref[...], act, preferred_element_type=jnp.float32)
        for c in range(c3):
            o_ref[0, c, :, :] = jnp.dot(
                u1, g_ref[:, c * w4:(c + 1) * w4],
                preferred_element_type=jnp.float32)

    inputs = [x_rows]
    in_specs = [pl.BlockSpec((1, H, W * cin), lambda n: (n, 0, 0))]

    def full_spec(a):
        nd = a.ndim
        return pl.BlockSpec(a.shape, lambda n, _nd=nd: (0,) * _nd)

    for p in dec:
        for name in ("d", "s", "b", "r"):
            inputs.append(p[name]); in_specs.append(full_spec(p[name]))
    for name in ("m", "s", "b"):
        inputs.append(conv[name]); in_specs.append(full_spec(conv[name]))
    inputs += [bh, g]
    in_specs += [full_spec(bh), full_spec(g)]

    # row-padded (halo=1) activation scratch per conv-ish layer, all in VMEM
    scratch = []
    rows, width = H, W * cin
    for p in dec:
        scratch.append(pltpu.VMEM((rows + 2, width), jnp.float32))
        rows, width = rows * 2, p["d"].shape[2]
    scratch.append(pltpu.VMEM((rows + 2, width), jnp.float32))

    return pl.pallas_call(
        kernel,
        out_shape=jax.ShapeDtypeStruct((N, c3, h4, w4), jnp.float32),
        grid=(N,),
        in_specs=in_specs,
        out_specs=pl.BlockSpec((1, c3, h4, w4), lambda n: (n, 0, 0, 0)),
        scratch_shapes=scratch,
        compiler_params=pltpu.CompilerParams(
            dimension_semantics=("parallel",), vmem_limit_bytes=_VMEM_LIMIT),
    )(*inputs)


# ----------------------------------------------------------------------------
# Pure-JAX (lax.conv) reference for correctness checking (matching bf16 inputs)
# ----------------------------------------------------------------------------
def _ref_forward(x_nchw, raw_params):
    x = x_nchw
    dn = ("NCHW", "OIHW", "NCHW")
    hp = jax.lax.Precision.HIGHEST
    for p in raw_params["deconv"]:
        # ConvTranspose2d(k=4, s=2, p=1, op=0) as a lhs-dilated regular conv.
        w = jnp.transpose(jnp.flip(p["w"], axis=(2, 3)), (1, 0, 2, 3))
        y = lax.conv_general_dilated(
            x.astype(jnp.bfloat16), w.astype(jnp.bfloat16),
            window_strides=(1, 1), padding=[(2, 2), (2, 2)],
            lhs_dilation=(2, 2), dimension_numbers=dn,
            preferred_element_type=jnp.float32)
        y = y * p["scale"].reshape(1, -1, 1, 1) + p["shift"].reshape(1, -1, 1, 1)
        x = jnp.maximum(y, 0.0)
    cp = raw_params["conv"]
    y = lax.conv_general_dilated(
        x.astype(jnp.bfloat16), cp["w"].astype(jnp.bfloat16),
        window_strides=(1, 1), padding=[(1, 1), (1, 1)],
        dimension_numbers=dn, preferred_element_type=jnp.float32)
    y = y * cp["scale"].reshape(1, -1, 1, 1) + cp["shift"].reshape(1, -1, 1, 1)
    x = jnp.maximum(y, 0.0)
    N, C, H, W = x.shape
    BH = jnp.asarray(_up4_matrix(H))
    BW = jnp.asarray(_up4_matrix(W))
    x = jnp.einsum("ah,nchw->ncaw", BH, x, precision=hp)
    x = jnp.einsum("bw,ncaw->ncab", BW, x, precision=hp)
    return x


# ----------------------------------------------------------------------------
# Deterministic parameter construction + run
# ----------------------------------------------------------------------------
if __name__ == "__main__":
    # glp_config: num_deconv=2, num_filters=[16, 16], deconv_kernels=[4, 4]
    N, IN_C, H, W = 2, 8, 8, 8
    OUT_C = 8
    num_filters = [16, 16]

    key = jax.random.PRNGKey(0)
    keys = iter(jax.random.split(key, 32))

    raw = {"deconv": [], "conv": {}}
    params = {"deconv": [], "conv": {}}

    in_planes, w_cur, h_cur = IN_C, W, H
    for planes in num_filters:
        w = 0.1 * jax.random.normal(next(keys), (in_planes, planes, 4, 4), jnp.float32)
        gamma = 1.0 + 0.1 * jax.random.normal(next(keys), (planes,), jnp.float32)
        beta = 0.1 * jax.random.normal(next(keys), (planes,), jnp.float32)
        mean = 0.1 * jax.random.normal(next(keys), (planes,), jnp.float32)
        var = 1.0 + 0.1 * jax.random.uniform(next(keys), (planes,), jnp.float32)
        scale, shift = _bn_fold(gamma, beta, mean, var)
        raw["deconv"].append(dict(w=w, scale=scale, shift=shift))
        params["deconv"].append(dict(
            d=jnp.asarray(_deconv_banded(w, w_cur), jnp.bfloat16),
            s=_tile_lane(scale, 2 * w_cur),
            b=_tile_lane(shift, 2 * w_cur),
            r=jnp.asarray(_row_interleave(h_cur), jnp.float32),
        ))
        in_planes, w_cur, h_cur = planes, 2 * w_cur, 2 * h_cur

    wc = 0.1 * jax.random.normal(next(keys), (OUT_C, in_planes, 3, 3), jnp.float32)
    bias = 0.1 * jax.random.normal(next(keys), (OUT_C,), jnp.float32)
    gamma = 1.0 + 0.1 * jax.random.normal(next(keys), (OUT_C,), jnp.float32)
    beta = 0.1 * jax.random.normal(next(keys), (OUT_C,), jnp.float32)
    mean = 0.1 * jax.random.normal(next(keys), (OUT_C,), jnp.float32)
    var = 1.0 + 0.1 * jax.random.uniform(next(keys), (OUT_C,), jnp.float32)
    scale, shift = _bn_fold(gamma, beta, mean, var, bias=bias)
    raw["conv"] = dict(w=wc, scale=scale, shift=shift)
    params["conv"] = dict(
        m=jnp.asarray(_conv3x3_banded(wc, w_cur), jnp.bfloat16),
        s=_tile_lane(scale, w_cur),
        b=_tile_lane(shift, w_cur),
    )

    params["bh"] = jnp.asarray(_up4_matrix(h_cur), jnp.float32)      # (4*h3, h3)
    bw4 = _up4_matrix(w_cur)                                         # (4*w3, w3)
    params["g"] = jnp.asarray(_w_upsample_matrix(bw4, OUT_C), jnp.float32)

    x = jax.random.normal(next(keys), (N, IN_C, H, W), jnp.float32)

    out = jax.block_until_ready(decoder_forward(x, params))
    assert out.shape == (N, OUT_C, 4 * h_cur, 4 * w_cur), out.shape

    ref = jax.block_until_ready(_ref_forward(x, raw))
    np.testing.assert_allclose(np.asarray(out), np.asarray(ref),
                               rtol=1e-2, atol=2e-3)

    print("KERNEL_OK")
</pallas_src>

<mosaic_0001>
module attributes {stable_mosaic.version = 11 : i64} {
  func.func @kernel(%arg0: i32, %arg1: memref<1x8x64xf32, #tpu.memory_space<vmem>>, %arg2: memref<4x64x256xbf16, #tpu.memory_space<vmem>>, %arg3: memref<1x256xf32, #tpu.memory_space<vmem>>, %arg4: memref<1x256xf32, #tpu.memory_space<vmem>>, %arg5: memref<2x16x8xf32, #tpu.memory_space<vmem>>, %arg6: memref<4x256x512xbf16, #tpu.memory_space<vmem>>, %arg7: memref<1x512xf32, #tpu.memory_space<vmem>>, %arg8: memref<1x512xf32, #tpu.memory_space<vmem>>, %arg9: memref<2x32x16xf32, #tpu.memory_space<vmem>>, %arg10: memref<3x512x256xbf16, #tpu.memory_space<vmem>>, %arg11: memref<1x256xf32, #tpu.memory_space<vmem>>, %arg12: memref<1x256xf32, #tpu.memory_space<vmem>>, %arg13: memref<128x32xf32, #tpu.memory_space<vmem>>, %arg14: memref<256x1024xf32, #tpu.memory_space<vmem>>, %arg15: memref<1x8x128x128xf32, #tpu.memory_space<vmem>>, %arg16: memref<10x64xf32, #tpu.memory_space<vmem>>, %arg17: memref<18x256xf32, #tpu.memory_space<vmem>>, %arg18: memref<34x512xf32, #tpu.memory_space<vmem>>) attributes {dimension_semantics = [#tpu.dimension_semantics<parallel>], iteration_bounds = array<i64: 2>, scalar_prefetch = 0 : i64, scratch_operands = 3 : i64, tpu.core_type = #tpu.core_type<tc>, window_params = [{transform_indices = @transform_0, window_bounds = array<i64: 1, 8, 64>}, {pipeline_mode = #tpu.pipeline_mode<synchronous>, transform_indices = @transform_1, window_bounds = array<i64: 4, 64, 256>}, {pipeline_mode = #tpu.pipeline_mode<synchronous>, transform_indices = @transform_2, window_bounds = array<i64: 1, 256>}, {pipeline_mode = #tpu.pipeline_mode<synchronous>, transform_indices = @transform_3, window_bounds = array<i64: 1, 256>}, {pipeline_mode = #tpu.pipeline_mode<synchronous>, transform_indices = @transform_4, window_bounds = array<i64: 2, 16, 8>}, {pipeline_mode = #tpu.pipeline_mode<synchronous>, transform_indices = @transform_5, window_bounds = array<i64: 4, 256, 512>}, {pipeline_mode = #tpu.pipeline_mode<synchronous>, transform_indices = @transform_6, window_bounds = array<i64: 1, 512>}, {pipeline_mode = #tpu.pipeline_mode<synchronous>, transform_indices = @transform_7, window_bounds = array<i64: 1, 512>}, {pipeline_mode = #tpu.pipeline_mode<synchronous>, transform_indices = @transform_8, window_bounds = array<i64: 2, 32, 16>}, {pipeline_mode = #tpu.pipeline_mode<synchronous>, transform_indices = @transform_9, window_bounds = array<i64: 3, 512, 256>}, {pipeline_mode = #tpu.pipeline_mode<synchronous>, transform_indices = @transform_10, window_bounds = array<i64: 1, 256>}, {pipeline_mode = #tpu.pipeline_mode<synchronous>, transform_indices = @transform_11, window_bounds = array<i64: 1, 256>}, {pipeline_mode = #tpu.pipeline_mode<synchronous>, transform_indices = @transform_12, window_bounds = array<i64: 128, 32>}, {pipeline_mode = #tpu.pipeline_mode<synchronous>, transform_indices = @transform_13, window_bounds = array<i64: 256, 1024>}, {transform_indices = @transform_14, window_bounds = array<i64: 1, 8, 128, 128>}]} {
    %c0 = arith.constant 0 : index
    %c0_0 = arith.constant 0 : index
    %c0_1 = arith.constant 0 : index
    %0 = vector.load %arg1[%c0, %c0_0, %c0_1] : memref<1x8x64xf32, #tpu.memory_space<vmem>>, vector<1x8x64xf32>
    %1 = vector.shape_cast %0 : vector<1x8x64xf32> to vector<8x64xf32>
    %cst = arith.constant 0.000000e+00 : f32
    %2 = vector.broadcast %cst : f32 to vector<1x64xf32>
    %c0_2 = arith.constant 0 : index
    %c0_3 = arith.constant 0 : index
    %3 = vector.load %arg16[%c0_2, %c0_3] : memref<10x64xf32, #tpu.memory_space<vmem>>, vector<1x64xf32>
    tpu.vector_store %arg16[%c0_2, %c0_3], %2 {strides = array<i32>} : memref<10x64xf32, #tpu.memory_space<vmem>>, vector<1x64xf32>,
    %c9 = arith.constant 9 : index
    %c0_4 = arith.constant 0 : index
    %4 = vector.load %arg16[%c9, %c0_4] : memref<10x64xf32, #tpu.memory_space<vmem>>, vector<1x64xf32>
    tpu.vector_store %arg16[%c9, %c0_4], %2 {strides = array<i32>} : memref<10x64xf32, #tpu.memory_space<vmem>>, vector<1x64xf32>,
    %c1 = arith.constant 1 : index
    %c0_5 = arith.constant 0 : index
    %5 = vector.load %arg16[%c1, %c0_5] : memref<10x64xf32, #tpu.memory_space<vmem>>, vector<8x64xf32>
    tpu.vector_store %arg16[%c1, %c0_5], %1 {strides = array<i32>} : memref<10x64xf32, #tpu.memory_space<vmem>>, vector<8x64xf32>,
    %cst_6 = arith.constant 0.000000e+00 : f32
    %6 = vector.broadcast %cst_6 : f32 to vector<8x256xf32>
    %c0_7 = arith.constant 0 : index
    %c0_8 = arith.constant 0 : index
    %7 = vector.load %arg16[%c0_7, %c0_8] : memref<10x64xf32, #tpu.memory_space<vmem>>, vector<8x64xf32>
    %8 = arith.truncf %7 : vector<8x64xf32> to vector<8x64xbf16>
    %c0_9 = arith.constant 0 : index
    %c0_10 = arith.constant 0 : index
    %c0_11 = arith.constant 0 : index
    %9 = vector.load %arg2[%c0_9, %c0_10, %c0_11] : memref<4x64x256xbf16, #tpu.memory_space<vmem>>, vector<1x64x256xbf16>
    %10 = vector.shape_cast %9 : vector<1x64x256xbf16> to vector<64x256xbf16>
    %cst_12 = arith.constant dense<0.000000e+00> : vector<8x256xf32>
    %11 = tpu.matmul %8, %10, %cst_12 {dimension_numbers = #tpu.dot_dimension_numbers<[1], [0], [0], [1], [0, 0, 1, 1], [], []>} : vector<8x64xbf16>, vector<64x256xbf16>, vector<8x256xf32> -> vector<8x256xf32>
    %12 = arith.addf %6, %11 : vector<8x256xf32>
    %c1_13 = arith.constant 1 : index
    %c0_14 = arith.constant 0 : index
    %13 = vector.load %arg16[%c1_13, %c0_14] : memref<10x64xf32, #tpu.memory_space<vmem>>, vector<8x64xf32>
    %14 = arith.truncf %13 : vector<8x64xf32> to vector<8x64xbf16>
    %c1_15 = arith.constant 1 : index
    %c0_16 = arith.constant 0 : index
    %c0_17 = arith.constant 0 : index
    %15 = vector.load %arg2[%c1_15, %c0_16, %c0_17] : memref<4x64x256xbf16, #tpu.memory_space<vmem>>, vector<1x64x256xbf16>
    %16 = vector.shape_cast %15 : vector<1x64x256xbf16> to vector<64x256xbf16>
    %cst_18 = arith.constant dense<0.000000e+00> : vector<8x256xf32>
    %17 = tpu.matmul %14, %16, %cst_18 {dimension_numbers = #tpu.dot_dimension_numbers<[1], [0], [0], [1], [0, 0, 1, 1], [], []>} : vector<8x64xbf16>, vector<64x256xbf16>, vector<8x256xf32> -> vector<8x256xf32>
    %18 = arith.addf %12, %17 : vector<8x256xf32>
    %c0_19 = arith.constant 0 : index
    %c0_20 = arith.constant 0 : index
    %19 = vector.load %arg3[%c0_19, %c0_20] : memref<1x256xf32, #tpu.memory_space<vmem>>, vector<1x256xf32>
    %20 = vector.broadcast %19 : vector<1x256xf32> to vector<8x256xf32>
    %21 = arith.mulf %18, %20 : vector<8x256xf32>
    %c0_21 = arith.constant 0 : index
    %c0_22 = arith.constant 0 : index
    %22 = vector.load %arg4[%c0_21, %c0_22] : memref<1x256xf32, #tpu.memory_space<vmem>>, vector<1x256xf32>
    %23 = vector.broadcast %22 : vector<1x256xf32> to vector<8x256xf32>
    %24 = arith.addf %21, %23 : vector<8x256xf32>
    %cst_23 = arith.constant 0.000000e+00 : f32
    %25 = vector.broadcast %cst_23 : f32 to vector<8x256xf32>
    %26 = arith.maximumf %24, %25 : vector<8x256xf32>
    %cst_24 = arith.constant 0.000000e+00 : f32
    %27 = vector.broadcast %cst_24 : f32 to vector<8x256xf32>
    %c1_25 = arith.constant 1 : index
    %c0_26 = arith.constant 0 : index
    %28 = vector.load %arg16[%c1_25, %c0_26] : memref<10x64xf32, #tpu.memory_space<vmem>>, vector<8x64xf32>
    %29 = arith.truncf %28 : vector<8x64xf32> to vector<8x64xbf16>
    %c2 = arith.constant 2 : index
    %c0_27 = arith.constant 0 : index
    %c0_28 = arith.constant 0 : index
    %30 = vector.load %arg2[%c2, %c0_27, %c0_28] : memref<4x64x256xbf16, #tpu.memory_space<vmem>>, vector<1x64x256xbf16>
    %31 = vector.shape_cast %30 : vector<1x64x256xbf16> to vector<64x256xbf16>
    %cst_29 = arith.constant dense<0.000000e+00> : vector<8x256xf32>
    %32 = tpu.matmul %29, %31, %cst_29 {dimension_numbers = #tpu.dot_dimension_numbers<[1], [0], [0], [1], [0, 0, 1, 1], [], []>} : vector<8x64xbf16>, vector<64x256xbf16>, vector<8x256xf32> -> vector<8x256xf32>
    %33 = arith.addf %27, %32 : vector<8x256xf32>
    %c2_30 = arith.constant 2 : index
    %c0_31 = arith.constant 0 : index
    %34 = vector.load %arg16[%c2_30, %c0_31] : memref<10x64xf32, #tpu.memory_space<vmem>>, vector<8x64xf32>
    %35 = arith.truncf %34 : vector<8x64xf32> to vector<8x64xbf16>
    %c3 = arith.constant 3 : index
    %c0_32 = arith.constant 0 : index
    %c0_33 = arith.constant 0 : index
    %36 = vector.load %arg2[%c3, %c0_32, %c0_33] : memref<4x64x256xbf16, #tpu.memory_space<vmem>>, vector<1x64x256xbf16>
    %37 = vector.shape_cast %36 : vector<1x64x256xbf16> to vector<64x256xbf16>
    %cst_34 = arith.constant dense<0.000000e+00> : vector<8x256xf32>
    %38 = tpu.matmul %35, %37, %cst_34 {dimension_numbers = #tpu.dot_dimension_numbers<[1], [0], [0], [1], [0, 0, 1, 1], [], []>} : vector<8x64xbf16>, vector<64x256xbf16>, vector<8x256xf32> -> vector<8x256xf32>
    %39 = arith.addf %33, %38 : vector<8x256xf32>
    %c0_35 = arith.constant 0 : index
    %c0_36 = arith.constant 0 : index
    %40 = vector.load %arg3[%c0_35, %c0_36] : memref<1x256xf32, #tpu.memory_space<vmem>>, vector<1x256xf32>
    %41 = vector.broadcast %40 : vector<1x256xf32> to vector<8x256xf32>
    %42 = arith.mulf %39, %41 : vector<8x256xf32>
    %c0_37 = arith.constant 0 : index
    %c0_38 = arith.constant 0 : index
    %43 = vector.load %arg4[%c0_37, %c0_38] : memref<1x256xf32, #tpu.memory_space<vmem>>, vector<1x256xf32>
    %44 = vector.broadcast %43 : vector<1x256xf32> to vector<8x256xf32>
    %45 = arith.addf %42, %44 : vector<8x256xf32>
    %cst_39 = arith.constant 0.000000e+00 : f32
    %46 = vector.broadcast %cst_39 : f32 to vector<8x256xf32>
    %47 = arith.maximumf %45, %46 : vector<8x256xf32>
    %c0_40 = arith.constant 0 : index
    %c0_41 = arith.constant 0 : index
    %c0_42 = arith.constant 0 : index
    %48 = vector.load %arg5[%c0_40, %c0_41, %c0_42] : memref<2x16x8xf32, #tpu.memory_space<vmem>>, vector<1x16x8xf32>
    %49 = vector.shape_cast %48 : vector<1x16x8xf32> to vector<16x8xf32>
    %cst_43 = arith.constant dense<0.000000e+00> : vector<16x256xf32>
    %50 = tpu.matmul %49, %26, %cst_43 {dimension_numbers = #tpu.dot_dimension_numbers<[1], [0], [0], [1], [0, 0, 1, 1], [], []>} : vector<16x8xf32>, vector<8x256xf32>, vector<16x256xf32> -> vector<16x256xf32>
    %c1_44 = arith.constant 1 : index
    %c0_45 = arith.constant 0 : index
    %c0_46 = arith.constant 0 : index
    %51 = vector.load %arg5[%c1_44, %c0_45, %c0_46] : memref<2x16x8xf32, #tpu.memory_space<vmem>>, vector<1x16x8xf32>
    %52 = vector.shape_cast %51 : vector<1x16x8xf32> to vector<16x8xf32>
    %cst_47 = arith.constant dense<0.000000e+00> : vector<16x256xf32>
    %53 = tpu.matmul %52, %47, %cst_47 {dimension_numbers = #tpu.dot_dimension_numbers<[1], [0], [0], [1], [0, 0, 1, 1], [], []>} : vector<16x8xf32>, vector<8x256xf32>, vector<16x256xf32> -> vector<16x256xf32>
    %54 = arith.addf %50, %53 : vector<16x256xf32>
    %cst_48 = arith.constant 0.000000e+00 : f32
    %55 = vector.broadcast %cst_48 : f32 to vector<1x256xf32>
    %c0_49 = arith.constant 0 : index
    %c0_50 = arith.constant 0 : index
    %56 = vector.load %arg17[%c0_49, %c0_50] : memref<18x256xf32, #tpu.memory_space<vmem>>, vector<1x256xf32>
    tpu.vector_store %arg17[%c0_49, %c0_50], %55 {strides = array<i32>} : memref<18x256xf32, #tpu.memory_space<vmem>>, vector<1x256xf32>,
    %c17 = arith.constant 17 : index
    %c0_51 = arith.constant 0 : index
    %57 = vector.load %arg17[%c17, %c0_51] : memref<18x256xf32, #tpu.memory_space<vmem>>, vector<1x256xf32>
    tpu.vector_store %arg17[%c17, %c0_51], %55 {strides = array<i32>} : memref<18x256xf32, #tpu.memory_space<vmem>>, vector<1x256xf32>,
    %c1_52 = arith.constant 1 : index
    %c0_53 = arith.constant 0 : index
    %58 = vector.load %arg17[%c1_52, %c0_53] : memref<18x256xf32, #tpu.memory_space<vmem>>, vector<16x256xf32>
    tpu.vector_store %arg17[%c1_52, %c0_53], %54 {strides = array<i32>} : memref<18x256xf32, #tpu.memory_space<vmem>>, vector<16x256xf32>,
    %cst_54 = arith.constant 0.000000e+00 : f32
    %59 = vector.broadcast %cst_54 : f32 to vector<16x512xf32>
    %c0_55 = arith.constant 0 : index
    %c0_56 = arith.constant 0 : index
    %60 = vector.load %arg17[%c0_55, %c0_56] : memref<18x256xf32, #tpu.memory_space<vmem>>, vector<16x256xf32>
    %61 = arith.truncf %60 : vector<16x256xf32> to vector<16x256xbf16>
    %c0_57 = arith.constant 0 : index
    %c0_58 = arith.constant 0 : index
    %c0_59 = arith.constant 0 : index
    %62 = vector.load %arg6[%c0_57, %c0_58, %c0_59] : memref<4x256x512xbf16, #tpu.memory_space<vmem>>, vector<1x256x512xbf16>
    %63 = vector.shape_cast %62 : vector<1x256x512xbf16> to vector<256x512xbf16>
    %cst_60 = arith.constant dense<0.000000e+00> : vector<16x512xf32>
    %64 = tpu.matmul %61, %63, %cst_60 {dimension_numbers = #tpu.dot_dimension_numbers<[1], [0], [0], [1], [0, 0, 1, 1], [], []>} : vector<16x256xbf16>, vector<256x512xbf16>, vector<16x512xf32> -> vector<16x512xf32>
    %65 = arith.addf %59, %64 : vector<16x512xf32>
    %c1_61 = arith.constant 1 : index
    %c0_62 = arith.constant 0 : index
    %66 = vector.load %arg17[%c1_61, %c0_62] : memref<18x256xf32, #tpu.memory_space<vmem>>, vector<16x256xf32>
    %67 = arith.truncf %66 : vector<16x256xf32> to vector<16x256xbf16>
    %c1_63 = arith.constant 1 : index
    %c0_64 = arith.constant 0 : index
    %c0_65 = arith.constant 0 : index
    %68 = vector.load %arg6[%c1_63, %c0_64, %c0_65] : memref<4x256x512xbf16, #tpu.memory_space<vmem>>, vector<1x256x512xbf16>
    %69 = vector.shape_cast %68 : vector<1x256x512xbf16> to vector<256x512xbf16>
    %cst_66 = arith.constant dense<0.000000e+00> : vector<16x512xf32>
    %70 = tpu.matmul %67, %69, %cst_66 {dimension_numbers = #tpu.dot_dimension_numbers<[1], [0], [0], [1], [0, 0, 1, 1], [], []>} : vector<16x256xbf16>, vector<256x512xbf16>, vector<16x512xf32> -> vector<16x512xf32>
    %71 = arith.addf %65, %70 : vector<16x512xf32>
    %c0_67 = arith.constant 0 : index
    %c0_68 = arith.constant 0 : index
    %72 = vector.load %arg7[%c0_67, %c0_68] : memref<1x512xf32, #tpu.memory_space<vmem>>, vector<1x512xf32>
    %73 = vector.broadcast %72 : vector<1x512xf32> to vector<16x512xf32>
    %74 = arith.mulf %71, %73 : vector<16x512xf32>
    %c0_69 = arith.constant 0 : index
    %c0_70 = arith.constant 0 : index
    %75 = vector.load %arg8[%c0_69, %c0_70] : memref<1x512xf32, #tpu.memory_space<vmem>>, vector<1x512xf32>
    %76 = vector.broadcast %75 : vector<1x512xf32> to vector<16x512xf32>
    %77 = arith.addf %74, %76 : vector<16x512xf32>
    %cst_71 = arith.constant 0.000000e+00 : f32
    %78 = vector.broadcast %cst_71 : f32 to vector<16x512xf32>
    %79 = arith.maximumf %77, %78 : vector<16x512xf32>
    %cst_72 = arith.constant 0.000000e+00 : f32
    %80 = vector.broadcast %cst_72 : f32 to vector<16x512xf32>
    %c1_73 = arith.constant 1 : index
    %c0_74 = arith.constant 0 : index
    %81 = vector.load %arg17[%c1_73, %c0_74] : memref<18x256xf32, #tpu.memory_space<vmem>>, vector<16x256xf32>
    %82 = arith.truncf %81 : vector<16x256xf32> to vector<16x256xbf16>
    %c2_75 = arith.constant 2 : index
    %c0_76 = arith.constant 0 : index
    %c0_77 = arith.constant 0 : index
    %83 = vector.load %arg6[%c2_75, %c0_76, %c0_77] : memref<4x256x512xbf16, #tpu.memory_space<vmem>>, vector<1x256x512xbf16>
    %84 = vector.shape_cast %83 : vector<1x256x512xbf16> to vector<256x512xbf16>
    %cst_78 = arith.constant dense<0.000000e+00> : vector<16x512xf32>
    %85 = tpu.matmul %82, %84, %cst_78 {dimension_numbers = #tpu.dot_dimension_numbers<[1], [0], [0], [1], [0, 0, 1, 1], [], []>} : vector<16x256xbf16>, vector<256x512xbf16>, vector<16x512xf32> -> vector<16x512xf32>
    %86 = arith.addf %80, %85 : vector<16x512xf32>
    %c2_79 = arith.constant 2 : index
    %c0_80 = arith.constant 0 : index
    %87 = vector.load %arg17[%c2_79, %c0_80] : memref<18x256xf32, #tpu.memory_space<vmem>>, vector<16x256xf32>
    %88 = arith.truncf %87 : vector<16x256xf32> to vector<16x256xbf16>
    %c3_81 = arith.constant 3 : index
    %c0_82 = arith.constant 0 : index
    %c0_83 = arith.constant 0 : index
    %89 = vector.load %arg6[%c3_81, %c0_82, %c0_83] : memref<4x256x512xbf16, #tpu.memory_space<vmem>>, vector<1x256x512xbf16>
    %90 = vector.shape_cast %89 : vector<1x256x512xbf16> to vector<256x512xbf16>
    %cst_84 = arith.constant dense<0.000000e+00> : vector<16x512xf32>
    %91 = tpu.matmul %88, %90, %cst_84 {dimension_numbers = #tpu.dot_dimension_numbers<[1], [0], [0], [1], [0, 0, 1, 1], [], []>} : vector<16x256xbf16>, vector<256x512xbf16>, vector<16x512xf32> -> vector<16x512xf32>
    %92 = arith.addf %86, %91 : vector<16x512xf32>
    %c0_85 = arith.constant 0 : index
    %c0_86 = arith.constant 0 : index
    %93 = vector.load %arg7[%c0_85, %c0_86] : memref<1x512xf32, #tpu.memory_space<vmem>>, vector<1x512xf32>
    %94 = vector.broadcast %93 : vector<1x512xf32> to vector<16x512xf32>
    %95 = arith.mulf %92, %94 : vector<16x512xf32>
    %c0_87 = arith.constant 0 : index
    %c0_88 = arith.constant 0 : index
    %96 = vector.load %arg8[%c0_87, %c0_88] : memref<1x512xf32, #tpu.memory_space<vmem>>, vector<1x512xf32>
    %97 = vector.broadcast %96 : vector<1x512xf32> to vector<16x512xf32>
    %98 = arith.addf %95, %97 : vector<16x512xf32>
    %cst_89 = arith.constant 0.000000e+00 : f32
    %99 = vector.broadcast %cst_89 : f32 to vector<16x512xf32>
    %100 = arith.maximumf %98, %99 : vector<16x512xf32>
    %c0_90 = arith.constant 0 : index
    %c0_91 = arith.constant 0 : index
    %c0_92 = arith.constant 0 : index
    %101 = vector.load %arg9[%c0_90, %c0_91, %c0_92] : memref<2x32x16xf32, #tpu.memory_space<vmem>>, vector<1x32x16xf32>
    %102 = vector.shape_cast %101 : vector<1x32x16xf32> to vector<32x16xf32>
    %cst_93 = arith.constant dense<0.000000e+00> : vector<32x512xf32>
    %103 = tpu.matmul %102, %79, %cst_93 {dimension_numbers = #tpu.dot_dimension_numbers<[1], [0], [0], [1], [0, 0, 1, 1], [], []>} : vector<32x16xf32>, vector<16x512xf32>, vector<32x512xf32> -> vector<32x512xf32>
    %c1_94 = arith.constant 1 : index
    %c0_95 = arith.constant 0 : index
    %c0_96 = arith.constant 0 : index
    %104 = vector.load %arg9[%c1_94, %c0_95, %c0_96] : memref<2x32x16xf32, #tpu.memory_space<vmem>>, vector<1x32x16xf32>
    %105 = vector.shape_cast %104 : vector<1x32x16xf32> to vector<32x16xf32>
    %cst_97 = arith.constant dense<0.000000e+00> : vector<32x512xf32>
    %106 = tpu.matmul %105, %100, %cst_97 {dimension_numbers = #tpu.dot_dimension_numbers<[1], [0], [0], [1], [0, 0, 1, 1], [], []>} : vector<32x16xf32>, vector<16x512xf32>, vector<32x512xf32> -> vector<32x512xf32>
    %107 = arith.addf %103, %106 : vector<32x512xf32>
    %cst_98 = arith.constant 0.000000e+00 : f32
    %108 = vector.broadcast %cst_98 : f32 to vector<1x512xf32>
    %c0_99 = arith.constant 0 : index
    %c0_100 = arith.constant 0 : index
    %109 = vector.load %arg18[%c0_99, %c0_100] : memref<34x512xf32, #tpu.memory_space<vmem>>, vector<1x512xf32>
    tpu.vector_store %arg18[%c0_99, %c0_100], %108 {strides = array<i32>} : memref<34x512xf32, #tpu.memory_space<vmem>>, vector<1x512xf32>,
    %c33 = arith.constant 33 : index
    %c0_101 = arith.constant 0 : index
    %110 = vector.load %arg18[%c33, %c0_101] : memref<34x512xf32, #tpu.memory_space<vmem>>, vector<1x512xf32>
    tpu.vector_store %arg18[%c33, %c0_101], %108 {strides = array<i32>} : memref<34x512xf32, #tpu.memory_space<vmem>>, vector<1x512xf32>,
    %c1_102 = arith.constant 1 : index
    %c0_103 = arith.constant 0 : index
    %111 = vector.load %arg18[%c1_102, %c0_103] : memref<34x512xf32, #tpu.memory_space<vmem>>, vector<32x512xf32>
    tpu.vector_store %arg18[%c1_102, %c0_103], %107 {strides = array<i32>} : memref<34x512xf32, #tpu.memory_space<vmem>>, vector<32x512xf32>,
    %cst_104 = arith.constant 0.000000e+00 : f32
    %112 = vector.broadcast %cst_104 : f32 to vector<32x256xf32>
    %c0_105 = arith.constant 0 : index
    %c0_106 = arith.constant 0 : index
    %113 = vector.load %arg18[%c0_105, %c0_106] : memref<34x512xf32, #tpu.memory_space<vmem>>, vector<32x512xf32>
    %114 = arith.truncf %113 : vector<32x512xf32> to vector<32x512xbf16>
    %c0_107 = arith.constant 0 : index
    %c0_108 = arith.constant 0 : index
    %c0_109 = arith.constant 0 : index
    %115 = vector.load %arg10[%c0_107, %c0_108, %c0_109] : memref<3x512x256xbf16, #tpu.memory_space<vmem>>, vector<1x512x256xbf16>
    %116 = vector.shape_cast %115 : vector<1x512x256xbf16> to vector<512x256xbf16>
    %cst_110 = arith.constant dense<0.000000e+00> : vector<32x256xf32>
    %117 = tpu.matmul %114, %116, %cst_110 {dimension_numbers = #tpu.dot_dimension_numbers<[1], [0], [0], [1], [0, 0, 1, 1], [], []>} : vector<32x512xbf16>, vector<512x256xbf16>, vector<32x256xf32> -> vector<32x256xf32>
    %118 = arith.addf %112, %117 : vector<32x256xf32>
    %c1_111 = arith.constant 1 : index
    %c0_112 = arith.constant 0 : index
    %119 = vector.load %arg18[%c1_111, %c0_112] : memref<34x512xf32, #tpu.memory_space<vmem>>, vector<32x512xf32>
    %120 = arith.truncf %119 : vector<32x512xf32> to vector<32x512xbf16>
    %c1_113 = arith.constant 1 : index
    %c0_114 = arith.constant 0 : index
    %c0_115 = arith.constant 0 : index
    %121 = vector.load %arg10[%c1_113, %c0_114, %c0_115] : memref<3x512x256xbf16, #tpu.memory_space<vmem>>, vector<1x512x256xbf16>
    %122 = vector.shape_cast %121 : vector<1x512x256xbf16> to vector<512x256xbf16>
    %cst_116 = arith.constant dense<0.000000e+00> : vector<32x256xf32>
    %123 = tpu.matmul %120, %122, %cst_116 {dimension_numbers = #tpu.dot_dimension_numbers<[1], [0], [0], [1], [0, 0, 1, 1], [], []>} : vector<32x512xbf16>, vector<512x256xbf16>, vector<32x256xf32> -> vector<32x256xf32>
    %124 = arith.addf %118, %123 : vector<32x256xf32>
    %c2_117 = arith.constant 2 : index
    %c0_118 = arith.constant 0 : index
    %125 = vector.load %arg18[%c2_117, %c0_118] : memref<34x512xf32, #tpu.memory_space<vmem>>, vector<32x512xf32>
    %126 = arith.truncf %125 : vector<32x512xf32> to vector<32x512xbf16>
    %c2_119 = arith.constant 2 : index
    %c0_120 = arith.constant 0 : index
    %c0_121 = arith.constant 0 : index
    %127 = vector.load %arg10[%c2_119, %c0_120, %c0_121] : memref<3x512x256xbf16, #tpu.memory_space<vmem>>, vector<1x512x256xbf16>
    %128 = vector.shape_cast %127 : vector<1x512x256xbf16> to vector<512x256xbf16>
    %cst_122 = arith.constant dense<0.000000e+00> : vector<32x256xf32>
    %129 = tpu.matmul %126, %128, %cst_122 {dimension_numbers = #tpu.dot_dimension_numbers<[1], [0], [0], [1], [0, 0, 1, 1], [], []>} : vector<32x512xbf16>, vector<512x256xbf16>, vector<32x256xf32> -> vector<32x256xf32>
    %130 = arith.addf %124, %129 : vector<32x256xf32>
    %c0_123 = arith.constant 0 : index
    %c0_124 = arith.constant 0 : index
    %131 = vector.load %arg11[%c0_123, %c0_124] : memref<1x256xf32, #tpu.memory_space<vmem>>, vector<1x256xf32>
    %132 = vector.broadcast %131 : vector<1x256xf32> to vector<32x256xf32>
    %133 = arith.mulf %130, %132 : vector<32x256xf32>
    %c0_125 = arith.constant 0 : index
    %c0_126 = arith.constant 0 : index
    %134 = vector.load %arg12[%c0_125, %c0_126] : memref<1x256xf32, #tpu.memory_space<vmem>>, vector<1x256xf32>
    %135 = vector.broadcast %134 : vector<1x256xf32> to vector<32x256xf32>
    %136 = arith.addf %133, %135 : vector<32x256xf32>
    %cst_127 = arith.constant 0.000000e+00 : f32
    %137 = vector.broadcast %cst_127 : f32 to vector<32x256xf32>
    %138 = arith.maximumf %136, %137 : vector<32x256xf32>
    %c0_128 = arith.constant 0 : index
    %c0_129 = arith.constant 0 : index
    %139 = vector.load %arg13[%c0_128, %c0_129] : memref<128x32xf32, #tpu.memory_space<vmem>>, vector<128x32xf32>
    %cst_130 = arith.constant dense<0.000000e+00> : vector<128x256xf32>
    %140 = tpu.matmul %139, %138, %cst_130 {dimension_numbers = #tpu.dot_dimension_numbers<[1], [0], [0], [1], [0, 0, 1, 1], [], []>} : vector<128x32xf32>, vector<32x256xf32>, vector<128x256xf32> -> vector<128x256xf32>
    %c0_131 = arith.constant 0 : index
    %c0_132 = arith.constant 0 : index
    %141 = vector.load %arg14[%c0_131, %c0_132] : memref<256x1024xf32, #tpu.memory_space<vmem>>, vector<256x128xf32>
    %cst_133 = arith.constant dense<0.000000e+00> : vector<128x128xf32>
    %142 = tpu.matmul %140, %141, %cst_133 {dimension_numbers = #tpu.dot_dimension_numbers<[1], [0], [0], [1], [0, 0, 1, 1], [], []>} : vector<128x256xf32>, vector<256x128xf32>, vector<128x128xf32> -> vector<128x128xf32>
    %c0_134 = arith.constant 0 : index
    %c0_135 = arith.constant 0 : index
    %c0_136 = arith.constant 0 : index
    %c0_137 = arith.constant 0 : index
    %143 = vector.load %arg15[%c0_134, %c0_135, %c0_136, %c0_137] : memref<1x8x128x128xf32, #tpu.memory_space<vmem>>, vector<1x1x128x128xf32>
    %144 = vector.shape_cast %143 : vector<1x1x128x128xf32> to vector<128x128xf32>
    %145 = vector.shape_cast %142 : vector<128x128xf32> to vector<1x1x128x128xf32>
    tpu.vector_store %arg15[%c0_134, %c0_135, %c0_136, %c0_137], %145 {strides = array<i32>} : memref<1x8x128x128xf32, #tpu.memory_space<vmem>>, vector<1x1x128x128xf32>,
    %c0_138 = arith.constant 0 : index
    %c128 = arith.constant 128 : index
    %146 = vector.load %arg14[%c0_138, %c128] : memref<256x1024xf32, #tpu.memory_space<vmem>>, vector<256x128xf32>
    %cst_139 = arith.constant dense<0.000000e+00> : vector<128x128xf32>
    %147 = tpu.matmul %140, %146, %cst_139 {dimension_numbers = #tpu.dot_dimension_numbers<[1], [0], [0], [1], [0, 0, 1, 1], [], []>} : vector<128x256xf32>, vector<256x128xf32>, vector<128x128xf32> -> vector<128x128xf32>
    %c0_140 = arith.constant 0 : index
    %c1_141 = arith.constant 1 : index
    %c0_142 = arith.constant 0 : index
    %c0_143 = arith.constant 0 : index
    %148 = vector.load %arg15[%c0_140, %c1_141, %c0_142, %c0_143] : memref<1x8x128x128xf32, #tpu.memory_space<vmem>>, vector<1x1x128x128xf32>
    %149 = vector.shape_cast %148 : vector<1x1x128x128xf32> to vector<128x128xf32>
    %150 = vector.shape_cast %147 : vector<128x128xf32> to vector<1x1x128x128xf32>
    tpu.vector_store %arg15[%c0_140, %c1_141, %c0_142, %c0_143], %150 {strides = array<i32>} : memref<1x8x128x128xf32, #tpu.memory_space<vmem>>, vector<1x1x128x128xf32>,
    %c0_144 = arith.constant 0 : index
    %c256 = arith.constant 256 : index
    %151 = vector.load %arg14[%c0_144, %c256] : memref<256x1024xf32, #tpu.memory_space<vmem>>, vector<256x128xf32>
    %cst_145 = arith.constant dense<0.000000e+00> : vector<128x128xf32>
    %152 = tpu.matmul %140, %151, %cst_145 {dimension_numbers = #tpu.dot_dimension_numbers<[1], [0], [0], [1], [0, 0, 1, 1], [], []>} : vector<128x256xf32>, vector<256x128xf32>, vector<128x128xf32> -> vector<128x128xf32>
    %c0_146 = arith.constant 0 : index
    %c2_147 = arith.constant 2 : index
    %c0_148 = arith.constant 0 : index
    %c0_149 = arith.constant 0 : index
    %153 = vector.load %arg15[%c0_146, %c2_147, %c0_148, %c0_149] : memref<1x8x128x128xf32, #tpu.memory_space<vmem>>, vector<1x1x128x128xf32>
    %154 = vector.shape_cast %153 : vector<1x1x128x128xf32> to vector<128x128xf32>
    %155 = vector.shape_cast %152 : vector<128x128xf32> to vector<1x1x128x128xf32>
    tpu.vector_store %arg15[%c0_146, %c2_147, %c0_148, %c0_149], %155 {strides = array<i32>} : memref<1x8x128x128xf32, #tpu.memory_space<vmem>>, vector<1x1x128x128xf32>,
    %c0_150 = arith.constant 0 : index
    %c384 = arith.constant 384 : index
    %156 = vector.load %arg14[%c0_150, %c384] : memref<256x1024xf32, #tpu.memory_space<vmem>>, vector<256x128xf32>
    %cst_151 = arith.constant dense<0.000000e+00> : vector<128x128xf32>
    %157 = tpu.matmul %140, %156, %cst_151 {dimension_numbers = #tpu.dot_dimension_numbers<[1], [0], [0], [1], [0, 0, 1, 1], [], []>} : vector<128x256xf32>, vector<256x128xf32>, vector<128x128xf32> -> vector<128x128xf32>
    %c0_152 = arith.constant 0 : index
    %c3_153 = arith.constant 3 : index
    %c0_154 = arith.constant 0 : index
    %c0_155 = arith.constant 0 : index
    %158 = vector.load %arg15[%c0_152, %c3_153, %c0_154, %c0_155] : memref<1x8x128x128xf32, #tpu.memory_space<vmem>>, vector<1x1x128x128xf32>
    %159 = vector.shape_cast %158 : vector<1x1x128x128xf32> to vector<128x128xf32>
    %160 = vector.shape_cast %157 : vector<128x128xf32> to vector<1x1x128x128xf32>
    tpu.vector_store %arg15[%c0_152, %c3_153, %c0_154, %c0_155], %160 {strides = array<i32>} : memref<1x8x128x128xf32, #tpu.memory_space<vmem>>, vector<1x1x128x128xf32>,
    %c0_156 = arith.constant 0 : index
    %c512 = arith.constant 512 : index
    %161 = vector.load %arg14[%c0_156, %c512] : memref<256x1024xf32, #tpu.memory_space<vmem>>, vector<256x128xf32>
    %cst_157 = arith.constant dense<0.000000e+00> : vector<128x128xf32>
    %162 = tpu.matmul %140, %161, %cst_157 {dimension_numbers = #tpu.dot_dimension_numbers<[1], [0], [0], [1], [0, 0, 1, 1], [], []>} : vector<128x256xf32>, vector<256x128xf32>, vector<128x128xf32> -> vector<128x128xf32>
    %c0_158 = arith.constant 0 : index
    %c4 = arith.constant 4 : index
    %c0_159 = arith.constant 0 : index
    %c0_160 = arith.constant 0 : index
    %163 = vector.load %arg15[%c0_158, %c4, %c0_159, %c0_160] : memref<1x8x128x128xf32, #tpu.memory_space<vmem>>, vector<1x1x128x128xf32>
    %164 = vector.shape_cast %163 : vector<1x1x128x128xf32> to vector<128x128xf32>
    %165 = vector.shape_cast %162 : vector<128x128xf32> to vector<1x1x128x128xf32>
    tpu.vector_store %arg15[%c0_158, %c4, %c0_159, %c0_160], %165 {strides = array<i32>} : memref<1x8x128x128xf32, #tpu.memory_space<vmem>>, vector<1x1x128x128xf32>,
    %c0_161 = arith.constant 0 : index
    %c640 = arith.constant 640 : index
    %166 = vector.load %arg14[%c0_161, %c640] : memref<256x1024xf32, #tpu.memory_space<vmem>>, vector<256x128xf32>
    %cst_162 = arith.constant dense<0.000000e+00> : vector<128x128xf32>
    %167 = tpu.matmul %140, %166, %cst_162 {dimension_numbers = #tpu.dot_dimension_numbers<[1], [0], [0], [1], [0, 0, 1, 1], [], []>} : vector<128x256xf32>, vector<256x128xf32>, vector<128x128xf32> -> vector<128x128xf32>
    %c0_163 = arith.constant 0 : index
    %c5 = arith.constant 5 : index
    %c0_164 = arith.constant 0 : index
    %c0_165 = arith.constant 0 : index
    %168 = vector.load %arg15[%c0_163, %c5, %c0_164, %c0_165] : memref<1x8x128x128xf32, #tpu.memory_space<vmem>>, vector<1x1x128x128xf32>
    %169 = vector.shape_cast %168 : vector<1x1x128x128xf32> to vector<128x128xf32>
    %170 = vector.shape_cast %167 : vector<128x128xf32> to vector<1x1x128x128xf32>
    tpu.vector_store %arg15[%c0_163, %c5, %c0_164, %c0_165], %170 {strides = array<i32>} : memref<1x8x128x128xf32, #tpu.memory_space<vmem>>, vector<1x1x128x128xf32>,
    %c0_166 = arith.constant 0 : index
    %c768 = arith.constant 768 : index
    %171 = vector.load %arg14[%c0_166, %c768] : memref<256x1024xf32, #tpu.memory_space<vmem>>, vector<256x128xf32>
    %cst_167 = arith.constant dense<0.000000e+00> : vector<128x128xf32>
    %172 = tpu.matmul %140, %171, %cst_167 {dimension_numbers = #tpu.dot_dimension_numbers<[1], [0], [0], [1], [0, 0, 1, 1], [], []>} : vector<128x256xf32>, vector<256x128xf32>, vector<128x128xf32> -> vector<128x128xf32>
    %c0_168 = arith.constant 0 : index
    %c6 = arith.constant 6 : index
    %c0_169 = arith.constant 0 : index
    %c0_170 = arith.constant 0 : index
    %173 = vector.load %arg15[%c0_168, %c6, %c0_169, %c0_170] : memref<1x8x128x128xf32, #tpu.memory_space<vmem>>, vector<1x1x128x128xf32>
    %174 = vector.shape_cast %173 : vector<1x1x128x128xf32> to vector<128x128xf32>
    %175 = vector.shape_cast %172 : vector<128x128xf32> to vector<1x1x128x128xf32>
    tpu.vector_store %arg15[%c0_168, %c6, %c0_169, %c0_170], %175 {strides = array<i32>} : memref<1x8x128x128xf32, #tpu.memory_space<vmem>>, vector<1x1x128x128xf32>,
    %c0_171 = arith.constant 0 : index
    %c896 = arith.constant 896 : index
    %176 = vector.load %arg14[%c0_171, %c896] : memref<256x1024xf32, #tpu.memory_space<vmem>>, vector<256x128xf32>
    %cst_172 = arith.constant dense<0.000000e+00> : vector<128x128xf32>
    %177 = tpu.matmul %140, %176, %cst_172 {dimension_numbers = #tpu.dot_dimension_numbers<[1], [0], [0], [1], [0, 0, 1, 1], [], []>} : vector<128x256xf32>, vector<256x128xf32>, vector<128x128xf32> -> vector<128x128xf32>
    %c0_173 = arith.constant 0 : index
    %c7 = arith.constant 7 : index
    %c0_174 = arith.constant 0 : index
    %c0_175 = arith.constant 0 : index
    %178 = vector.load %arg15[%c0_173, %c7, %c0_174, %c0_175] : memref<1x8x128x128xf32, #tpu.memory_space<vmem>>, vector<1x1x128x128xf32>
    %179 = vector.shape_cast %178 : vector<1x1x128x128xf32> to vector<128x128xf32>
    %180 = vector.shape_cast %177 : vector<128x128xf32> to vector<1x1x128x128xf32>
    tpu.vector_store %arg15[%c0_173, %c7, %c0_174, %c0_175], %180 {strides = array<i32>} : memref<1x8x128x128xf32, #tpu.memory_space<vmem>>, vector<1x1x128x128xf32>,
    return
  }
  func.func @transform_0(%arg0: i32) -> (i32, i32, i32) {
    %c0_i32 = arith.constant 0 : i32
    %c0_i32_0 = arith.constant 0 : i32
    %c0_i32_1 = arith.constant 0 : i32
    return %arg0, %c0_i32, %c0_i32_0 : i32, i32, i32
  }
  func.func @transform_1(%arg0: i32) -> (i32, i32, i32) {
    %c0_i32 = arith.constant 0 : i32
    %c0_i32_0 = arith.constant 0 : i32
    %c0_i32_1 = arith.constant 0 : i32
    %c0_i32_2 = arith.constant 0 : i32
    return %c0_i32, %c0_i32_0, %c0_i32_1 : i32, i32, i32
  }
  func.func @transform_2(%arg0: i32) -> (i32, i32) {
    %c0_i32 = arith.constant 0 : i32
    %c0_i32_0 = arith.constant 0 : i32
    %c0_i32_1 = arith.constant 0 : i32
    return %c0_i32, %c0_i32_0 : i32, i32
  }
  func.func @transform_3(%arg0: i32) -> (i32, i32) {
    %c0_i32 = arith.constant 0 : i32
    %c0_i32_0 = arith.constant 0 : i32
    %c0_i32_1 = arith.constant 0 : i32
    return %c0_i32, %c0_i32_0 : i32, i32
  }
  func.func @transform_4(%arg0: i32) -> (i32, i32, i32) {
    %c0_i32 = arith.constant 0 : i32
    %c0_i32_0 = arith.constant 0 : i32
    %c0_i32_1 = arith.constant 0 : i32
    %c0_i32_2 = arith.constant 0 : i32
    return %c0_i32, %c0_i32_0, %c0_i32_1 : i32, i32, i32
  }
  func.func @transform_5(%arg0: i32) -> (i32, i32, i32) {
    %c0_i32 = arith.constant 0 : i32
    %c0_i32_0 = arith.constant 0 : i32
    %c0_i32_1 = arith.constant 0 : i32
    %c0_i32_2 = arith.constant 0 : i32
    return %c0_i32, %c0_i32_0, %c0_i32_1 : i32, i32, i32
  }
  func.func @transform_6(%arg0: i32) -> (i32, i32) {
    %c0_i32 = arith.constant 0 : i32
    %c0_i32_0 = arith.constant 0 : i32
    %c0_i32_1 = arith.constant 0 : i32
    return %c0_i32, %c0_i32_0 : i32, i32
  }
  func.func @transform_7(%arg0: i32) -> (i32, i32) {
    %c0_i32 = arith.constant 0 : i32
    %c0_i32_0 = arith.constant 0 : i32
    %c0_i32_1 = arith.constant 0 : i32
    return %c0_i32, %c0_i32_0 : i32, i32
  }
  func.func @transform_8(%arg0: i32) -> (i32, i32, i32) {
    %c0_i32 = arith.constant 0 : i32
    %c0_i32_0 = arith.constant 0 : i32
    %c0_i32_1 = arith.constant 0 : i32
    %c0_i32_2 = arith.constant 0 : i32
    return %c0_i32, %c0_i32_0, %c0_i32_1 : i32, i32, i32
  }
  func.func @transform_9(%arg0: i32) -> (i32, i32, i32) {
    %c0_i32 = arith.constant 0 : i32
    %c0_i32_0 = arith.constant 0 : i32
    %c0_i32_1 = arith.constant 0 : i32
    %c0_i32_2 = arith.constant 0 : i32
    return %c0_i32, %c0_i32_0, %c0_i32_1 : i32, i32, i32
  }
  func.func @transform_10(%arg0: i32) -> (i32, i32) {
    %c0_i32 = arith.constant 0 : i32
    %c0_i32_0 = arith.constant 0 : i32
    %c0_i32_1 = arith.constant 0 : i32
    return %c0_i32, %c0_i32_0 : i32, i32
  }
  func.func @transform_11(%arg0: i32) -> (i32, i32) {
    %c0_i32 = arith.constant 0 : i32
    %c0_i32_0 = arith.constant 0 : i32
    %c0_i32_1 = arith.constant 0 : i32
    return %c0_i32, %c0_i32_0 : i32, i32
  }
  func.func @transform_12(%arg0: i32) -> (i32, i32) {
    %c0_i32 = arith.constant 0 : i32
    %c0_i32_0 = arith.constant 0 : i32
    %c0_i32_1 = arith.constant 0 : i32
    return %c0_i32, %c0_i32_0 : i32, i32
  }
  func.func @transform_13(%arg0: i32) -> (i32, i32) {
    %c0_i32 = arith.constant 0 : i32
    %c0_i32_0 = arith.constant 0 : i32
    %c0_i32_1 = arith.constant 0 : i32
    return %c0_i32, %c0_i32_0 : i32, i32
  }
  func.func @transform_14(%arg0: i32) -> (i32, i32, i32, i32) {
    %c0_i32 = arith.constant 0 : i32
    %c0_i32_0 = arith.constant 0 : i32
    %c0_i32_1 = arith.constant 0 : i32
    %c0_i32_2 = arith.constant 0 : i32
    return %arg0, %c0_i32, %c0_i32_0, %c0_i32_1 : i32, i32, i32, i32
  }
}

</mosaic_0001>

<llo_original>
// kernel: decoder_forward.1
$region0: #{decoder_forward.1}
  #allocation0 [shape = 'u32[]', space=smem, size = 0x4, offset = 0x4, fixed_abs, tag = 'smem constant byte address 0x4 - core index']
  #allocation1 [shape = 'u32[72,128]{1,0:T(1,128)}', space=vmem, size = 0x9000, scoped, tag = 'internal scratch']
  #allocation2 [shape = 'f32[10,64]{1,0:T(8,128)}', space=vmem, size = 0x2000, scoped, tag = 'scratch operand']
  #allocation3 [shape = 'f32[18,256]{1,0:T(8,128)}', space=vmem, size = 0x6000, scoped, tag = 'scratch operand']
  #allocation4 [shape = 'f32[34,512]{1,0:T(8,128)}', space=vmem, size = 0x14000, scoped, tag = 'scratch operand']
  %s0 = inlined_call_operand.vmem [shape: f32[2,8,64], index: 0, kind: input, shape index: {}]
  %s1 = inlined_call_operand.vmem [shape: bf16[4,64,256], index: 1, kind: input, shape index: {}]
  %s2 = inlined_call_operand.vmem [shape: f32[1,256], index: 2, kind: input, shape index: {}]
  %s3 = inlined_call_operand.vmem [shape: f32[1,256], index: 3, kind: input, shape index: {}]
  %s4 = inlined_call_operand.vmem [shape: f32[2,16,8], index: 4, kind: input, shape index: {}]
  %s5 = inlined_call_operand.hbm [shape: bf16[4,256,512], index: 5, kind: input, shape index: {}]
  %s6 = inlined_call_operand.vmem [shape: f32[1,512], index: 6, kind: input, shape index: {}]
  %s7 = inlined_call_operand.vmem [shape: f32[1,512], index: 7, kind: input, shape index: {}]
  %s8 = inlined_call_operand.vmem [shape: f32[2,32,16], index: 8, kind: input, shape index: {}]
  %s9 = inlined_call_operand.hbm [shape: bf16[3,512,256], index: 9, kind: input, shape index: {}]
  %s10 = inlined_call_operand.vmem [shape: f32[1,256], index: 10, kind: input, shape index: {}]
  %s11 = inlined_call_operand.vmem [shape: f32[1,256], index: 11, kind: input, shape index: {}]
  %s12 = inlined_call_operand.vmem [shape: f32[128,32], index: 12, kind: input, shape index: {}]
  %s13 = inlined_call_operand.hbm [shape: f32[256,1024], index: 13, kind: input, shape index: {}]
  %s14 = inlined_call_operand.hbm [shape: f32[2,8,128,128], index: 14, kind: output, shape index: {}]
  %s15 = sld [smem:[#allocation0]]
  $region101: #{decoder_forward.1} parent=0
    _
  %s17 = ssub.s32 1, %s15
  %s18 = scalar_select 0, %s17, %s15
  $region1: #{decoder_forward.1} parent=0
    #allocation5 [shape = 'u8[1048576]{0}', space=vmem, size = 0x100000, scoped, tag = 'input window, operand 5, single buffered']
    #allocation6 [shape = 's32[2]{0}', space=sflag, size = 0x8, scoped, tag = 'scoped memory for decoder_forward.1']
    #allocation7 [shape = 's32[2]{0}', space=sflag, size = 0x8, scoped, tag = 'scoped memory for decoder_forward.1']
    #allocation8 [shape = 'u8[786432]{0}', space=vmem, size = 0xc0000, scoped, tag = 'input window, operand 9, single buffered']
    #allocation9 [shape = 's32[1]{0}', space=sflag, size = 0x4, scoped, tag = 'scoped memory for decoder_forward.1']
    #allocation10 [shape = 'u8[1048576]{0}', space=vmem, size = 0x100000, scoped, tag = 'input window, operand 13, single buffered']
    #allocation11 [shape = 'u8[1048576]{0}', space=vmem, size = 0x100000, scoped, tag = 'output window, operand 0']
    %19 = vsyncpa [#allocation6], 0
    %20 = vsyncpa [#allocation9], 0
    %21 = vsyncpa [#allocation7], 0
    %s22 = scalar_lea.sflag [#allocation7], 1
    %23 = vsyncpa %s22, 0
    loop: start=0, step=1, limit=4
    $region2: #{decoder_forward.1} parent=1 // loop_pre_header
      _
    $region3: #{decoder_forward.1} parent=1 // loop_header
      %s25 = sphi 0, %s29
      %p26 = scmp.ge.s32.totalorder %s25, 4
      %s35 = sphi 0, %s37
      %s38 = sphi 0, %s35
      %s39 = sphi 0, %s38
      %s55 = sphi 0, %s39
      %s59 = sphi 0, %s59
      %s61 = sphi 0, %s59
      %s62 = sphi 0, %s61
      %s76 = sphi 0, %s62
      %s80 = sphi 0, %s80
      %s82 = sphi 0, %s80
      %s83 = sphi 0, %s82
      %s97 = sphi 0, %s83
      %s101 = sphi 0, %s101
      %s103 = sphi 0, %s101
      %s104 = sphi 0, %s103
      %s118 = sphi 0, %s104
      %s122 = sphi 0, %s122
      %s124 = sphi 0, %s122
      %s125 = sphi 0, %s124
      %s139 = sphi 0, %s125
      %s143 = sphi 0, %s143
      %s145 = sphi 0, %s143
      %s146 = sphi 0, %s145
      %s160 = sphi 0, %s146
      %s164 = sphi 0, %s164
      %s166 = sphi 0, %s164
      %s167 = sphi 0, %s166
      %s181 = sphi 0, %s167
      %s185 = sphi 0, %s185
      %s187 = sphi 0, %s185
      %s188 = sphi 0, %s187
      %s202 = sphi 0, %s188
      %s206 = sphi 0, %s206
      %s208 = sphi 0, %s206
      %s209 = sphi 0, %s208
      %s223 = sphi 0, %s209
      %s227 = sphi 0, %s227
      %s229 = sphi 0, %s227
      %s230 = sphi 0, %s229
      %s244 = sphi 0, %s230
      %s248 = sphi 0, %s248
      %s250 = sphi 0, %s248
      %s251 = sphi 0, %s250
      %s265 = sphi 0, %s251
      %s269 = sphi 0, %s269
      %s271 = sphi 0, %s269
      %s272 = sphi 0, %s271
      %s286 = sphi 0, %s272
      %s290 = sphi 0, %s290
      %s292 = sphi 0, %s290
      %s293 = sphi 0, %s292
      %s307 = sphi 0, %s293
      %s311 = sphi 0, %s311
      %s313 = sphi 0, %s311
      %s314 = sphi 0, %s313
      %s328 = sphi 0, %s314
      %s334 = sphi 0, %s336
      %s337 = sphi 0, %s334
      %s338 = sphi 0, %s337
      %s354 = sphi 0, %s338
    $region4: #{decoder_forward.1} parent=1 // loop_header_branch
      %28 = sbr.rel (%p26) target = $region8
    $region5: #{decoder_forward.1} parent=1 // loop_body
      %s30 = ssub.s32 %s25, 1
      %s31 = ssub.s32 %s25, 2
      %s32 = sadd.s32 %s25, 1
      %s33 = ssub.s32 %s25, %s32
      %p34 = scmp.eq.s32.totalorder %s33, 0
      %s36 = sadd.s32 %s35, 1
      %s37 = scalar_select %p34, %s35, %s36
      %p40 = pneg %p34
      %p41 = scmp.eq.s32.totalorder %s25, 1
      %p42 = por %p40, %p41
      %p43 = scmp.ne.s32.totalorder %s35, %s38
      %p44 = scmp.eq.s32.totalorder %s25, 0
      %p45 = por %p43, %p44
      %p46 = scmp.ne.s32.totalorder %s35, %s38
      %p47 = scmp.eq.s32.totalorder %s30, 1
      %p48 = por %p46, %p47
      %p49 = scmp.ne.s32.totalorder %s38, %s39
      %p50 = scmp.eq.s32.totalorder %s30, 0
      %p51 = por %p49, %p50
      %p52 = scmp.ne.s32.totalorder %s38, %s39
      %p53 = scmp.eq.s32.totalorder %s31, 1
      %p54 = por %p52, %p53
      %p56 = scmp.ne.s32.totalorder %s39, %s55
      %p57 = scmp.eq.s32.totalorder %s31, 0
      %p58 = por %p56, %p57
      %s60 = sadd.s32 %s59, 1
      %p63 = scmp.eq.s32.totalorder %s25, 1
      %p64 = scmp.ne.s32.totalorder %s59, %s61
      %p65 = scmp.eq.s32.totalorder %s25, 0
      %p66 = por %p64, %p65
      %p67 = scmp.ne.s32.totalorder %s59, %s61
      %p68 = scmp.eq.s32.totalorder %s30, 1
      %p69 = por %p67, %p68
      %p70 = scmp.ne.s32.totalorder %s61, %s62
      %p71 = scmp.eq.s32.totalorder %s30, 0
      %p72 = por %p70, %p71
      %p73 = scmp.ne.s32.totalorder %s61, %s62
      %p74 = scmp.eq.s32.totalorder %s31, 1
      %p75 = por %p73, %p74
      %p77 = scmp.ne.s32.totalorder %s62, %s76
      %p78 = scmp.eq.s32.totalorder %s31, 0
      %p79 = por %p77, %p78
      %s81 = sadd.s32 %s80, 1
      %p84 = scmp.eq.s32.totalorder %s25, 1
      %p85 = scmp.ne.s32.totalorder %s80, %s82
      %p86 = scmp.eq.s32.totalorder %s25, 0
      %p87 = por %p85, %p86
      %p88 = scmp.ne.s32.totalorder %s80, %s82
      %p89 = scmp.eq.s32.totalorder %s30, 1
      %p90 = por %p88, %p89
      %p91 = scmp.ne.s32.totalorder %s82, %s83
      %p92 = scmp.eq.s32.totalorder %s30, 0
      %p93 = por %p91, %p92
      %p94 = scmp.ne.s32.totalorder %s82, %s83
      %p95 = scmp.eq.s32.totalorder %s31, 1
      %p96 = por %p94, %p95
      %p98 = scmp.ne.s32.totalorder %s83, %s97
      %p99 = scmp.eq.s32.totalorder %s31, 0
      %p100 = por %p98, %p99
      %s102 = sadd.s32 %s101, 1
      %p105 = scmp.eq.s32.totalorder %s25, 1
      %p106 = scmp.ne.s32.totalorder %s101, %s103
      %p107 = scmp.eq.s32.totalorder %s25, 0
      %p108 = por %p106, %p107
      %p109 = scmp.ne.s32.totalorder %s101, %s103
      %p110 = scmp.eq.s32.totalorder %s30, 1
      %p111 = por %p109, %p110
      %p112 = scmp.ne.s32.totalorder %s103, %s104
      %p113 = scmp.eq.s32.totalorder %s30, 0
      %p114 = por %p112, %p113
      %p115 = scmp.ne.s32.totalorder %s103, %s104
      %p116 = scmp.eq.s32.totalorder %s31, 1
      %p117 = por %p115, %p116
      %p119 = scmp.ne.s32.totalorder %s104, %s118
      %p120 = scmp.eq.s32.totalorder %s31, 0
      %p121 = por %p119, %p120
      %s123 = sadd.s32 %s122, 1
      %p126 = scmp.eq.s32.totalorder %s25, 1
      %p127 = scmp.ne.s32.totalorder %s122, %s124
      %p128 = scmp.eq.s32.totalorder %s25, 0
      %p129 = por %p127, %p128
      %p130 = scmp.ne.s32.totalorder %s122, %s124
      %p131 = scmp.eq.s32.totalorder %s30, 1
      %p132 = por %p130, %p131
      %p133 = scmp.ne.s32.totalorder %s124, %s125
      %p134 = scmp.eq.s32.totalorder %s30, 0
      %p135 = por %p133, %p134
      %p136 = scmp.ne.s32.totalorder %s124, %s125
      %p137 = scmp.eq.s32.totalorder %s31, 1
      %p138 = por %p136, %p137
      %p140 = scmp.ne.s32.totalorder %s125, %s139
      %p141 = scmp.eq.s32.totalorder %s31, 0
      %p142 = por %p140, %p141
      %s144 = sadd.s32 %s143, 1
      %p147 = scmp.eq.s32.totalorder %s25, 1
      %p148 = scmp.ne.s32.totalorder %s143, %s145
      %p149 = scmp.eq.s32.totalorder %s25, 0
      %p150 = por %p148, %p149
      %p151 = scmp.ne.s32.totalorder %s143, %s145
      %p152 = scmp.eq.s32.totalorder %s30, 1
      %p153 = por %p151, %p152
      %p154 = scmp.ne.s32.totalorder %s145, %s146
      %p155 = scmp.eq.s32.totalorder %s30, 0
      %p156 = por %p154, %p155
      %p157 = scmp.ne.s32.totalorder %s145, %s146
      %p158 = scmp.eq.s32.totalorder %s31, 1
      %p159 = por %p157, %p158
      %p161 = scmp.ne.s32.totalorder %s146, %s160
      %p162 = scmp.eq.s32.totalorder %s31, 0
      %p163 = por %p161, %p162
      %s165 = sadd.s32 %s164, 1
      %p168 = scmp.eq.s32.totalorder %s25, 1
      %p169 = scmp.ne.s32.totalorder %s164, %s166
      %p170 = scmp.eq.s32.totalorder %s25, 0
      %p171 = por %p169, %p170
      %p172 = scmp.ne.s32.totalorder %s164, %s166
      %p173 = scmp.eq.s32.totalorder %s30, 1
      %p174 = por %p172, %p173
      %p175 = scmp.ne.s32.totalorder %s166, %s167
      %p176 = scmp.eq.s32.totalorder %s30, 0
      %p177 = por %p175, %p176
      %p178 = scmp.ne.s32.totalorder %s166, %s167
      %p179 = scmp.eq.s32.totalorder %s31, 1
      %p180 = por %p178, %p179
      %p182 = scmp.ne.s32.totalorder %s167, %s181
      %p183 = scmp.eq.s32.totalorder %s31, 0
      %p184 = por %p182, %p183
      %s186 = sadd.s32 %s185, 1
      %p189 = scmp.eq.s32.totalorder %s25, 1
      %p190 = scmp.ne.s32.totalorder %s185, %s187
      %p191 = scmp.eq.s32.totalorder %s25, 0
      %p192 = por %p190, %p191
      %p193 = scmp.ne.s32.totalorder %s185, %s187
      %p194 = scmp.eq.s32.totalorder %s30, 1
      %p195 = por %p193, %p194
      %p196 = scmp.ne.s32.totalorder %s187, %s188
      %p197 = scmp.eq.s32.totalorder %s30, 0
      %p198 = por %p196, %p197
      %p199 = scmp.ne.s32.totalorder %s187, %s188
      %p200 = scmp.eq.s32.totalorder %s31, 1
      %p201 = por %p199, %p200
      %p203 = scmp.ne.s32.totalorder %s188, %s202
      %p204 = scmp.eq.s32.totalorder %s31, 0
      %p205 = por %p203, %p204
      %s207 = sadd.s32 %s206, 1
      %p210 = scmp.eq.s32.totalorder %s25, 1
      %p211 = scmp.ne.s32.totalorder %s206, %s208
      %p212 = scmp.eq.s32.totalorder %s25, 0
      %p213 = por %p211, %p212
      %p214 = scmp.ne.s32.totalorder %s206, %s208
      %p215 = scmp.eq.s32.totalorder %s30, 1
      %p216 = por %p214, %p215
      %p217 = scmp.ne.s32.totalorder %s208, %s209
      %p218 = scmp.eq.s32.totalorder %s30, 0
      %p219 = por %p217, %p218
      %p220 = scmp.ne.s32.totalorder %s208, %s209
      %p221 = scmp.eq.s32.totalorder %s31, 1
      %p222 = por %p220, %p221
      %p224 = scmp.ne.s32.totalorder %s209, %s223
      %p225 = scmp.eq.s32.totalorder %s31, 0
      %p226 = por %p224, %p225
      %s228 = sadd.s32 %s227, 1
      %p231 = scmp.eq.s32.totalorder %s25, 1
      %p232 = scmp.ne.s32.totalorder %s227, %s229
      %p233 = scmp.eq.s32.totalorder %s25, 0
      %p234 = por %p232, %p233
      %p235 = scmp.ne.s32.totalorder %s227, %s229
      %p236 = scmp.eq.s32.totalorder %s30, 1
      %p237 = por %p235, %p236
      %p238 = scmp.ne.s32.totalorder %s229, %s230
      %p239 = scmp.eq.s32.totalorder %s30, 0
      %p240 = por %p238, %p239
      %p241 = scmp.ne.s32.totalorder %s229, %s230
      %p242 = scmp.eq.s32.totalorder %s31, 1
      %p243 = por %p241, %p242
      %p245 = scmp.ne.s32.totalorder %s230, %s244
      %p246 = scmp.eq.s32.totalorder %s31, 0
      %p247 = por %p245, %p246
      %s249 = sadd.s32 %s248, 1
      %p252 = scmp.eq.s32.totalorder %s25, 1
      %p253 = scmp.ne.s32.totalorder %s248, %s250
      %p254 = scmp.eq.s32.totalorder %s25, 0
      %p255 = por %p253, %p254
      %p256 = scmp.ne.s32.totalorder %s248, %s250
      %p257 = scmp.eq.s32.totalorder %s30, 1
      %p258 = por %p256, %p257
      %p259 = scmp.ne.s32.totalorder %s250, %s251
      %p260 = scmp.eq.s32.totalorder %s30, 0
      %p261 = por %p259, %p260
      %p262 = scmp.ne.s32.totalorder %s250, %s251
      %p263 = scmp.eq.s32.totalorder %s31, 1
      %p264 = por %p262, %p263
      %p266 = scmp.ne.s32.totalorder %s251, %s265
      %p267 = scmp.eq.s32.totalorder %s31, 0
      %p268 = por %p266, %p267
      %s270 = sadd.s32 %s269, 1
      %p273 = scmp.eq.s32.totalorder %s25, 1
      %p274 = scmp.ne.s32.totalorder %s269, %s271
      %p275 = scmp.eq.s32.totalorder %s25, 0
      %p276 = por %p274, %p275
      %p277 = scmp.ne.s32.totalorder %s269, %s271
      %p278 = scmp.eq.s32.totalorder %s30, 1
      %p279 = por %p277, %p278
      %p280 = scmp.ne.s32.totalorder %s271, %s272
      %p281 = scmp.eq.s32.totalorder %s30, 0
      %p282 = por %p280, %p281
      %p283 = scmp.ne.s32.totalorder %s271, %s272
      %p284 = scmp.eq.s32.totalorder %s31, 1
      %p285 = por %p283, %p284
      %p287 = scmp.ne.s32.totalorder %s272, %s286
      %p288 = scmp.eq.s32.totalorder %s31, 0
      %p289 = por %p287, %p288
      %s291 = sadd.s32 %s290, 1
      %p294 = scmp.eq.s32.totalorder %s25, 1
      %p295 = scmp.ne.s32.totalorder %s290, %s292
      %p296 = scmp.eq.s32.totalorder %s25, 0
      %p297 = por %p295, %p296
      %p298 = scmp.ne.s32.totalorder %s290, %s292
      %p299 = scmp.eq.s32.totalorder %s30, 1
      %p300 = por %p298, %p299
      %p301 = scmp.ne.s32.totalorder %s292, %s293
      %p302 = scmp.eq.s32.totalorder %s30, 0
      %p303 = por %p301, %p302
      %p304 = scmp.ne.s32.totalorder %s292, %s293
      %p305 = scmp.eq.s32.totalorder %s31, 1
      %p306 = por %p304, %p305
      %p308 = scmp.ne.s32.totalorder %s293, %s307
      %p309 = scmp.eq.s32.totalorder %s31, 0
      %p310 = por %p308, %p309
      %s312 = sadd.s32 %s311, 1
      %p315 = scmp.eq.s32.totalorder %s25, 1
      %p316 = scmp.ne.s32.totalorder %s311, %s313
      %p317 = scmp.eq.s32.totalorder %s25, 0
      %p318 = por %p316, %p317
      %p319 = scmp.ne.s32.totalorder %s311, %s313
      %p320 = scmp.eq.s32.totalorder %s30, 1
      %p321 = por %p319, %p320
      %p322 = scmp.ne.s32.totalorder %s313, %s314
      %p323 = scmp.eq.s32.totalorder %s30, 0
      %p324 = por %p322, %p323
      %p325 = scmp.ne.s32.totalorder %s313, %s314
      %p326 = scmp.eq.s32.totalorder %s31, 1
      %p327 = por %p325, %p326
      %p329 = scmp.ne.s32.totalorder %s314, %s328
      %p330 = scmp.eq.s32.totalorder %s31, 0
      %p331 = por %p329, %p330
      %s332 = ssub.s32 %s25, %s32
      %p333 = scmp.eq.s32.totalorder %s332, 0
      %s335 = sadd.s32 %s334, 1
      %s336 = scalar_select %p333, %s334, %s335
      %p339 = pneg %p333
      %p340 = scmp.eq.s32.totalorder %s25, 1
      %p341 = por %p339, %p340
      %p342 = scmp.ne.s32.totalorder %s334, %s337
      %p343 = scmp.eq.s32.totalorder %s25, 0
      %p344 = por %p342, %p343
      %p345 = scmp.ne.s32.totalorder %s334, %s337
      %p346 = scmp.eq.s32.totalorder %s30, 1
      %p347 = por %p345, %p346
      %p348 = scmp.ne.s32.totalorder %s337, %s338
      %p349 = scmp.eq.s32.totalorder %s30, 0
      %p350 = por %p348, %p349
      %p351 = scmp.ne.s32.totalorder %s337, %s338
      %p352 = scmp.eq.s32.totalorder %s31, 1
      %p353 = por %p351, %p352
      %p355 = scmp.ne.s32.totalorder %s338, %s354
      %p356 = scmp.eq.s32.totalorder %s31, 0
      %p357 = por %p355, %p356
      %p358 = scmp.le.s32.totalorder 1, %s25
      %p359 = scmp.lt.s32.totalorder %s25, 3
      %p360 = pnand %p358, %p359
      %p361 = pneg %p360
      // Predicated region
      $region9: #{decoder_forward.1} parent=5 // pred_check
        _
      $region10: #{decoder_forward.1} parent=5 // pred_check_branch
        %363 = sbr.rel (%p360) target = $region12
      $region11: #{decoder_forward.1} parent=5 // pred_region
        %s364 = ssub.s32 %s25, 1
        // Predicated region
        $region13: #{decoder_forward.1} parent=11 // pred_check
          %p365 = pneg %p72
        $region14: #{decoder_forward.1} parent=11 // pred_check_branch
          %367 = sbr.rel (%p365) target = $region16
        $region15: #{decoder_forward.1} parent=11 // pred_region
          _
        $region16: #{decoder_forward.1} parent=11 // pred_fallthru
          _
        // Predicated region
        $region17: #{decoder_forward.1} parent=11 // pred_check
          %p368 = pneg %p93
        $region18: #{decoder_forward.1} parent=11 // pred_check_branch
          %370 = sbr.rel (%p368) target = $region20
        $region19: #{decoder_forward.1} parent=11 // pred_region
          _
        $region20: #{decoder_forward.1} parent=11 // pred_fallthru
          _
        // Predicated region
        $region21: #{decoder_forward.1} parent=11 // pred_check
          %p371 = pneg %p114
        $region22: #{decoder_forward.1} parent=11 // pred_check_branch
          %373 = sbr.rel (%p371) target = $region24
        $region23: #{decoder_forward.1} parent=11 // pred_region
          _
        $region24: #{decoder_forward.1} parent=11 // pred_fallthru
          _
        // Predicated region
        $region25: #{decoder_forward.1} parent=11 // pred_check
          %p374 = pneg %p135
        $region26: #{decoder_forward.1} parent=11 // pred_check_branch
          %376 = sbr.rel (%p374) target = $region28
        $region27: #{decoder_forward.1} parent=11 // pred_region
          _
        $region28: #{decoder_forward.1} parent=11 // pred_fallthru
          _
        // Predicated region
        $region29: #{decoder_forward.1} parent=11 // pred_check
          %p377 = pneg %p156
        $region30: #{decoder_forward.1} parent=11 // pred_check_branch
          %379 = sbr.rel (%p377) target = $region32
        $region31: #{decoder_forward.1} parent=11 // pred_region
          %381 = vsyncadd [#allocation6], 0
          %s382 = sshll.u32 %s5, 4
          %s383 = int_to_ptr.hbm [resolvable:$true] %s382
          %s384 = sshll.u32 [#allocation5], 4
          %s385 = int_to_ptr.vmem [resolvable:$true] %s384
          %390 = dma.hbm_to_vmem [thread:$0]  %s383, 32768, %s385, [#allocation6], 256, 256, 16
        $region32: #{decoder_forward.1} parent=11 // pred_fallthru
          _
        // Predicated region
        $region33: #{decoder_forward.1} parent=11 // pred_check
          %p391 = pneg %p177
        $region34: #{decoder_forward.1} parent=11 // pred_check_branch
          %393 = sbr.rel (%p391) target = $region36
        $region35: #{decoder_forward.1} parent=11 // pred_region
          _
        $region36: #{decoder_forward.1} parent=11 // pred_fallthru
          _
        // Predicated region
        $region37: #{decoder_forward.1} parent=11 // pred_check
          %p394 = pneg %p198
        $region38: #{decoder_forward.1} parent=11 // pred_check_branch
          %396 = sbr.rel (%p394) target = $region40
        $region39: #{decoder_forward.1} parent=11 // pred_region
          _
        $region40: #{decoder_forward.1} parent=11 // pred_fallthru
          _
        // Predicated region
        $region41: #{decoder_forward.1} parent=11 // pred_check
          %p397 = pneg %p219
        $region42: #{decoder_forward.1} parent=11 // pred_check_branch
          %399 = sbr.rel (%p397) target = $region44
        $region43: #{decoder_forward.1} parent=11 // pred_region
          _
        $region44: #{decoder_forward.1} parent=11 // pred_fallthru
          _
        // Predicated region
        $region45: #{decoder_forward.1} parent=11 // pred_check
          %p400 = pneg %p240
        $region46: #{decoder_forward.1} parent=11 // pred_check_branch
          %402 = sbr.rel (%p400) target = $region48
        $region47: #{decoder_forward.1} parent=11 // pred_region
          %404 = vsyncadd [#allocation9], 0
          %s405 = sshll.u32 %s9, 4
          %s406 = int_to_ptr.hbm [resolvable:$true] %s405
          %s407 = sshll.u32 [#allocation8], 4
          %s408 = int_to_ptr.vmem [resolvable:$true] %s407
          %413 = dma.hbm_to_vmem [thread:$0]  %s406, 24576, %s408, [#allocation9], 128, 128, 8
        $region48: #{decoder_forward.1} parent=11 // pred_fallthru
          _
        // Predicated region
        $region49: #{decoder_forward.1} parent=11 // pred_check
          %p414 = pneg %p261
        $region50: #{decoder_forward.1} parent=11 // pred_check_branch
          %416 = sbr.rel (%p414) target = $region52
        $region51: #{decoder_forward.1} parent=11 // pred_region
          _
        $region52: #{decoder_forward.1} parent=11 // pred_fallthru
          _
        // Predicated region
        $region53: #{decoder_forward.1} parent=11 // pred_check
          %p417 = pneg %p282
        $region54: #{decoder_forward.1} parent=11 // pred_check_branch
          %419 = sbr.rel (%p417) target = $region56
        $region55: #{decoder_forward.1} parent=11 // pred_region
          _
        $region56: #{decoder_forward.1} parent=11 // pred_fallthru
          _
        // Predicated region
        $region57: #{decoder_forward.1} parent=11 // pred_check
          %p420 = pneg %p303
        $region58: #{decoder_forward.1} parent=11 // pred_check_branch
          %422 = sbr.rel (%p420) target = $region60
        $region59: #{decoder_forward.1} parent=11 // pred_region
          _
        $region60: #{decoder_forward.1} parent=11 // pred_fallthru
          _
        // Predicated region
        $region61: #{decoder_forward.1} parent=11 // pred_check
          %p423 = pneg %p324
        $region62: #{decoder_forward.1} parent=11 // pred_check_branch
          %425 = sbr.rel (%p423) target = $region64
        $region63: #{decoder_forward.1} parent=11 // pred_region
          %427 = vsyncadd [#allocation9], 0
          %s428 = sshll.u32 %s13, 4
          %s429 = int_to_ptr.hbm [resolvable:$true] %s428
          %s430 = sshll.u32 [#allocation10], 4
          %s431 = int_to_ptr.vmem [resolvable:$true] %s430
          %436 = dma.hbm_to_vmem [thread:$0]  %s429, 32768, %s431, [#allocation9], 1024, 1024, 64
        $region64: #{decoder_forward.1} parent=11 // pred_fallthru
          _
      $region12: #{decoder_forward.1} parent=5 // pred_fallthru
        _
      %p437 = scmp.lt.s32.totalorder %s25, 2
      // Predicated region
      $region65: #{decoder_forward.1} parent=5 // pred_check
        %p438 = pneg %p437
      $region66: #{decoder_forward.1} parent=5 // pred_check_branch
        %440 = sbr.rel (%p438) target = $region68
      $region67: #{decoder_forward.1} parent=5 // pred_region
        // Predicated region
        $region69: #{decoder_forward.1} parent=67 // pred_check
          %p441 = pneg %p45
        $region70: #{decoder_forward.1} parent=67 // pred_check_branch
          %443 = sbr.rel (%p441) target = $region72
        $region71: #{decoder_forward.1} parent=67 // pred_region
          %p444 = scmp.lt.s32.totalorder %s25, 1
          %s445 = scalar_select %p444, %s25, 1
          %s446 = smul.addr %s445, 8
          %s447 = scalar_lea.vmem %s0, %s446
        $region72: #{decoder_forward.1} parent=67 // pred_fallthru
          _
      $region68: #{decoder_forward.1} parent=5 // pred_fallthru
        _
      %p448 = scmp.le.s32.totalorder 1, %s25
      %p449 = scmp.lt.s32.totalorder %s25, 3
      %p450 = pnand %p448, %p449
      %p451 = pneg %p450
      // Predicated region
      $region73: #{decoder_forward.1} parent=5 // pred_check
        _
      $region74: #{decoder_forward.1} parent=5 // pred_check_branch
        %453 = sbr.rel (%p450) target = $region76
      $region75: #{decoder_forward.1} parent=5 // pred_region
        %s454 = ssub.s32 %s25, 1
        // Predicated region
        $region77: #{decoder_forward.1} parent=75 // pred_check
          %p455 = pneg %p156
        $region78: #{decoder_forward.1} parent=75 // pred_check_branch
          %457 = sbr.rel (%p455) target = $region80
        $region79: #{decoder_forward.1} parent=75 // pred_region
          %459 = dma.done [#allocation6], 32768
        $region80: #{decoder_forward.1} parent=75 // pred_fallthru
          _
        // Predicated region
        $region81: #{decoder_forward.1} parent=75 // pred_check
          %p460 = pneg %p240
        $region82: #{decoder_forward.1} parent=75 // pred_check_branch
          %462 = sbr.rel (%p460) target = $region84
        $region83: #{decoder_forward.1} parent=75 // pred_region
          %464 = dma.done [#allocation9], 24576
        $region84: #{decoder_forward.1} parent=75 // pred_fallthru
          _
        // Predicated region
        $region85: #{decoder_forward.1} parent=75 // pred_check
          %p465 = pneg %p324
        $region86: #{decoder_forward.1} parent=75 // pred_check_branch
          %467 = sbr.rel (%p465) target = $region88
        $region87: #{decoder_forward.1} parent=75 // pred_region
          %469 = dma.done [#allocation9], 32768
        $region88: #{decoder_forward.1} parent=75 // pred_fallthru
          _
        %p470 = scmp.lt.s32.totalorder %s30, 1
        %s471 = scalar_select %p470, %s30, 1
        %s472 = smul.addr %s471, 8
        %s473 = scalar_lea.vmem %s0, %s472
        %p474 = pneg %p51
        %p475 = pneg %p48
        %p476 = pneg %p72
        %p477 = pneg %p69
        %p478 = pneg %p93
        %p479 = pneg %p90
        %p480 = pneg %p114
        %p481 = pneg %p111
        %p482 = pneg %p135
        %p483 = pneg %p132
        %p484 = pneg %p156
        %p485 = pneg %p153
        %p486 = pneg %p177
        %p487 = pneg %p174
        %p488 = pneg %p198
        %p489 = pneg %p195
        %p490 = pneg %p219
        %p491 = pneg %p216
        %p492 = pneg %p240
        %p493 = pneg %p237
        %p494 = pneg %p261
        %p495 = pneg %p258
        %p496 = pneg %p282
        %p497 = pneg %p279
        %p498 = pneg %p303
        %p499 = pneg %p300
        %p500 = pneg %p324
        %p501 = pneg %p321
        %p502 = pneg %p350
        %p503 = pneg %p347
        %s504 = sand.u32 %s337, 1
        %s505 = scalar_lea.sflag [#allocation7], %s504
        %s506 = sand.u32 %s337, 1
        %s507 = smul.addr %s506, 1024
        %s508 = scalar_lea.vmem [#allocation11], %s507
        %p509 = scmp.lt.s32.totalorder %s30, 1
        %s510 = scalar_select %p509, %s30, 1
        %s511 = smul.addr %s510, 8
        %s512 = scalar_lea.vmem %s0, %s511
        %v514 = vld [vmem:[%s512] sm:$0xff]
        %vm515 = vcmask 516096
        %516 = vst.msk [vmem:[#allocation2] sm:$0x1] %vm515, 0.0
        %517 = vst.msk [vmem:[#allocation2 + $0x9] sm:$0x1] %vm515, 0.0
        %vm518 = vcmask 523264
        %519 = vst.msk [vmem:[#allocation2 + $0x1] sm:$0xff] %vm518, %v514
        %v520 = vld [vmem:[#allocation2] sm:$0xff]
        %v521 = vpack.c.bf16 %v520, %v520
        %v522 = vld [vmem:[%s1] sm:$0xff]
        %v523 = vld [vmem:[%s1 + $0x8] sm:$0xff]
        %v524 = vld [vmem:[%s1 + $0x10] sm:$0xff]
        %v525 = vld [vmem:[%s1 + $0x18] sm:$0xff]
        %v526 = vld [vmem:[%s1 + $0x20] sm:$0xff]
        %v527 = vld [vmem:[%s1 + $0x28] sm:$0xff]
        %v528 = vld [vmem:[%s1 + $0x30] sm:$0xff]
        %v529 = vld [vmem:[%s1 + $0x38] sm:$0xff]
        %v530 = vld [vmem:[#allocation2 + $0x1] sm:$0xff]
        %v531 = vpack.c.bf16 %v530, %v530
        %s532 = scalar_lea.vmem %s1, 64
        %v533 = vld [vmem:[%s532] sm:$0xff]
        %v534 = vld [vmem:[%s532 + $0x8] sm:$0xff]
        %v535 = vld [vmem:[%s532 + $0x10] sm:$0xff]
        %v536 = vld [vmem:[%s532 + $0x18] sm:$0xff]
        %v537 = vld [vmem:[%s532 + $0x20] sm:$0xff]
        %v538 = vld [vmem:[%s532 + $0x28] sm:$0xff]
        %v539 = vld [vmem:[%s532 + $0x30] sm:$0xff]
        %v540 = vld [vmem:[%s532 + $0x38] sm:$0xff]
        %v549 = vunpack.c.l.b16 %v533
        %v550 = vunpack.c.h.b16 %v533
        %v551 = vunpack.c.l.b16 %v534
        %v552 = vunpack.c.h.b16 %v534
        %v553 = vunpack.c.l.b16 %v535
        %v554 = vunpack.c.h.b16 %v535
        %v555 = vunpack.c.l.b16 %v536
        %v556 = vunpack.c.h.b16 %v536
        %v557 = vunpack.c.l.b16 %v537
        %v558 = vunpack.c.h.b16 %v537
        %v559 = vunpack.c.l.b16 %v538
        %v560 = vunpack.c.h.b16 %v538
        %v561 = vunpack.c.l.b16 %v539
        %v562 = vunpack.c.h.b16 %v539
        %v563 = vunpack.c.l.b16 %v540
        %v564 = vunpack.c.h.b16 %v540
        %v565 = vpack.c.b16 %v551, %v549
        %v566 = vpack.c.b16 %v552, %v550
        %v567 = vpack.c.b16 %v555, %v553
        %v568 = vpack.c.b16 %v556, %v554
        %v569 = vpack.c.b16 %v559, %v557
        %v570 = vpack.c.b16 %v560, %v558
        %v571 = vpack.c.b16 %v563, %v561
        %v572 = vpack.c.b16 %v564, %v562
        %v582 = vsel %vm518, %v531, 0
        %584 = vmatpush.bf16.msra.mxu0 0
        %585 = vmatpush.bf16.msra.mxu0 0
        %586 = vmatpush.bf16.msra.mxu0 0
        %587 = vmatpush.bf16.msra.mxu0 0
        %588 = vmatpush.bf16.msra.mxu0 %v571
        %589 = vmatpush.bf16.msra.mxu0 %v569
        %590 = vmatpush.bf16.msra.mxu0 %v567
        %591 = vmatpush.bf16.msra.mxu0 %v565
        %592 = vmatmul.bf16.gmra.mxu0 %v582
        %v593 = vpop.f32.mrf.mxu0
        %v594 = vadd.f32 0.0, %v593
        %v595 = vpop.f32.mrf.mxu0
        %596 = vdwg.mxu0
        %597 = vmatpush.bf16.msra.mxu0 0
        %598 = vmatpush.bf16.msra.mxu0 0
        %599 = vmatpush.bf16.msra.mxu0 0
        %600 = vmatpush.bf16.msra.mxu0 0
        %601 = vmatpush.bf16.msra.mxu0 %v572
        %602 = vmatpush.bf16.msra.mxu0 %v570
        %603 = vmatpush.bf16.msra.mxu0 %v568
        %604 = vmatpush.bf16.msra.mxu0 %v566
        %605 = vmatmul.bf16.gmra.mxu0 %v582
        %v606 = vpop.f32.mrf.mxu0
        %v607 = vadd.f32 0.0, %v606
        %v608 = vpop.f32.mrf.mxu0
        %609 = vdwg.mxu0
        %v618 = vunpack.c.l.b16 %v522
        %v619 = vunpack.c.h.b16 %v522
        %v620 = vunpack.c.l.b16 %v523
        %v621 = vunpack.c.h.b16 %v523
        %v622 = vunpack.c.l.b16 %v524
        %v623 = vunpack.c.h.b16 %v524
        %v624 = vunpack.c.l.b16 %v525
        %v625 = vunpack.c.h.b16 %v525
        %v626 = vunpack.c.l.b16 %v526
        %v627 = vunpack.c.h.b16 %v526
        %v628 = vunpack.c.l.b16 %v527
        %v629 = vunpack.c.h.b16 %v527
        %v630 = vunpack.c.l.b16 %v528
        %v631 = vunpack.c.h.b16 %v528
        %v632 = vunpack.c.l.b16 %v529
        %v633 = vunpack.c.h.b16 %v529
        %v634 = vpack.c.b16 %v620, %v618
        %v635 = vpack.c.b16 %v621, %v619
        %v636 = vpack.c.b16 %v624, %v622
        %v637 = vpack.c.b16 %v625, %v623
        %v638 = vpack.c.b16 %v628, %v626
        %v639 = vpack.c.b16 %v629, %v627
        %v640 = vpack.c.b16 %v632, %v630
        %v641 = vpack.c.b16 %v633, %v631
        %v651 = vsel %vm518, %v521, 0
        %653 = vmatpush.bf16.msra.mxu0 0
        %654 = vmatpush.bf16.msra.mxu0 0
        %655 = vmatpush.bf16.msra.mxu0 0
        %656 = vmatpush.bf16.msra.mxu0 0
        %657 = vmatpush.bf16.msra.mxu0 %v640
        %658 = vmatpush.bf16.msra.mxu0 %v638
        %659 = vmatpush.bf16.msra.mxu0 %v636
        %660 = vmatpush.bf16.msra.mxu0 %v634
        %661 = vmatmul.bf16.gmra.mxu0 %v651
        %v662 = vpop.f32.mrf.mxu0
        %v663 = vadd.f32 %v594, %v662
        %v664 = vpop.f32.mrf.mxu0
        %665 = vdwg.mxu0
        %666 = vmatpush.bf16.msra.mxu0 0
        %667 = vmatpush.bf16.msra.mxu0 0
        %668 = vmatpush.bf16.msra.mxu0 0
        %669 = vmatpush.bf16.msra.mxu0 0
        %670 = vmatpush.bf16.msra.mxu0 %v641
        %671 = vmatpush.bf16.msra.mxu0 %v639
        %672 = vmatpush.bf16.msra.mxu0 %v637
        %673 = vmatpush.bf16.msra.mxu0 %v635
        %674 = vmatmul.bf16.gmra.mxu0 %v651
        %v675 = vpop.f32.mrf.mxu0
        %v676 = vadd.f32 %v607, %v675
        %v677 = vpop.f32.mrf.mxu0
        %678 = vdwg.mxu0
        %v679 = vld [vmem:[%s2] sm:$0x3]
        %v681 = vperm.slane %v679, 0
        %v682 = vperm.slane %v679, 1
        %v685 = vmul.f32 %v663, %v681
        %v686 = vmul.f32 %v676, %v682
        %v687 = vld [vmem:[%s3] sm:$0x3]
        %v689 = vperm.slane %v687, 0
        %v690 = vperm.slane %v687, 1
        %v693 = vadd.f32 %v685, %v689
        %v694 = vadd.f32 %v686, %v690
        %v695 = vmax.f32 %v693, 0.0
        %v696 = vmax.f32 %v694, 0.0
        %s697 = scalar_lea.vmem %s1, 128
        %v698 = vld [vmem:[%s697] sm:$0xff]
        %v699 = vld [vmem:[%s697 + $0x8] sm:$0xff]
        %v700 = vld [vmem:[%s697 + $0x10] sm:$0xff]
        %v701 = vld [vmem:[%s697 + $0x18] sm:$0xff]
        %v702 = vld [vmem:[%s697 + $0x20] sm:$0xff]
        %v703 = vld [vmem:[%s697 + $0x28] sm:$0xff]
        %v704 = vld [vmem:[%s697 + $0x30] sm:$0xff]
        %v705 = vld [vmem:[%s697 + $0x38] sm:$0xff]
        %v706 = vld [vmem:[#allocation2 + $0x2] sm:$0xff]
        %v707 = vpack.c.bf16 %v706, %v706
        %s708 = scalar_lea.vmem %s1, 192
        %v709 = vld [vmem:[%s708] sm:$0xff]
        %v710 = vld [vmem:[%s708 + $0x8] sm:$0xff]
        %v711 = vld [vmem:[%s708 + $0x10] sm:$0xff]
        %v712 = vld [vmem:[%s708 + $0x18] sm:$0xff]
        %v713 = vld [vmem:[%s708 + $0x20] sm:$0xff]
        %v714 = vld [vmem:[%s708 + $0x28] sm:$0xff]
        %v715 = vld [vmem:[%s708 + $0x30] sm:$0xff]
        %v716 = vld [vmem:[%s708 + $0x38] sm:$0xff]
        %v725 = vunpack.c.l.b16 %v709
        %v726 = vunpack.c.h.b16 %v709
        %v727 = vunpack.c.l.b16 %v710
        %v728 = vunpack.c.h.b16 %v710
        %v729 = vunpack.c.l.b16 %v711
        %v730 = vunpack.c.h.b16 %v711
        %v731 = vunpack.c.l.b16 %v712
        %v732 = vunpack.c.h.b16 %v712
        %v733 = vunpack.c.l.b16 %v713
        %v734 = vunpack.c.h.b16 %v713
        %v735 = vunpack.c.l.b16 %v714
        %v736 = vunpack.c.h.b16 %v714
        %v737 = vunpack.c.l.b16 %v715
        %v738 = vunpack.c.h.b16 %v715
        %v739 = vunpack.c.l.b16 %v716
        %v740 = vunpack.c.h.b16 %v716
        %v741 = vpack.c.b16 %v727, %v725
        %v742 = vpack.c.b16 %v728, %v726
        %v743 = vpack.c.b16 %v731, %v729
        %v744 = vpack.c.b16 %v732, %v730
        %v745 = vpack.c.b16 %v735, %v733
        %v746 = vpack.c.b16 %v736, %v734
        %v747 = vpack.c.b16 %v739, %v737
        %v748 = vpack.c.b16 %v740, %v738
        %v758 = vsel %vm518, %v707, 0
        %760 = vmatpush.bf16.msra.mxu0 0
        %761 = vmatpush.bf16.msra.mxu0 0
        %762 = vmatpush.bf16.msra.mxu0 0
        %763 = vmatpush.bf16.msra.mxu0 0
        %764 = vmatpush.bf16.msra.mxu0 %v747
        %765 = vmatpush.bf16.msra.mxu0 %v745
        %766 = vmatpush.bf16.msra.mxu0 %v743
        %767 = vmatpush.bf16.msra.mxu0 %v741
        %768 = vmatmul.bf16.gmra.mxu0 %v758
        %v769 = vpop.f32.mrf.mxu0
        %v770 = vadd.f32 0.0, %v769
        %v771 = vpop.f32.mrf.mxu0
        %772 = vdwg.mxu0
        %773 = vmatpush.bf16.msra.mxu0 0
        %774 = vmatpush.bf16.msra.mxu0 0
        %775 = vmatpush.bf16.msra.mxu0 0
        %776 = vmatpush.bf16.msra.mxu0 0
        %777 = vmatpush.bf16.msra.mxu0 %v748
        %778 = vmatpush.bf16.msra.mxu0 %v746
        %779 = vmatpush.bf16.msra.mxu0 %v744
        %780 = vmatpush.bf16.msra.mxu0 %v742
        %781 = vmatmul.bf16.gmra.mxu0 %v758
        %v782 = vpop.f32.mrf.mxu0
        %v783 = vadd.f32 0.0, %v782
        %v784 = vpop.f32.mrf.mxu0
        %785 = vdwg.mxu0
        %v794 = vunpack.c.l.b16 %v698
        %v795 = vunpack.c.h.b16 %v698
        %v796 = vunpack.c.l.b16 %v699
        %v797 = vunpack.c.h.b16 %v699
        %v798 = vunpack.c.l.b16 %v700
        %v799 = vunpack.c.h.b16 %v700
        %v800 = vunpack.c.l.b16 %v701
        %v801 = vunpack.c.h.b16 %v701
        %v802 = vunpack.c.l.b16 %v702
        %v803 = vunpack.c.h.b16 %v702
        %v804 = vunpack.c.l.b16 %v703
        %v805 = vunpack.c.h.b16 %v703
        %v806 = vunpack.c.l.b16 %v704
        %v807 = vunpack.c.h.b16 %v704
        %v808 = vunpack.c.l.b16 %v705
        %v809 = vunpack.c.h.b16 %v705
        %v810 = vpack.c.b16 %v796, %v794
        %v811 = vpack.c.b16 %v797, %v795
        %v812 = vpack.c.b16 %v800, %v798
        %v813 = vpack.c.b16 %v801, %v799
        %v814 = vpack.c.b16 %v804, %v802
        %v815 = vpack.c.b16 %v805, %v803
        %v816 = vpack.c.b16 %v808, %v806
        %v817 = vpack.c.b16 %v809, %v807
        %826 = vmatpush.bf16.msra.mxu0 0
        %827 = vmatpush.bf16.msra.mxu0 0
        %828 = vmatpush.bf16.msra.mxu0 0
        %829 = vmatpush.bf16.msra.mxu0 0
        %830 = vmatpush.bf16.msra.mxu0 %v816
        %831 = vmatpush.bf16.msra.mxu0 %v814
        %832 = vmatpush.bf16.msra.mxu0 %v812
        %833 = vmatpush.bf16.msra.mxu0 %v810
        %834 = vmatmul.bf16.gmra.mxu0 %v582
        %v835 = vpop.f32.mrf.mxu0
        %v836 = vadd.f32 %v770, %v835
        %v837 = vpop.f32.mrf.mxu0
        %838 = vdwg.mxu0
        %839 = vmatpush.bf16.msra.mxu0 0
        %840 = vmatpush.bf16.msra.mxu0 0
        %841 = vmatpush.bf16.msra.mxu0 0
        %842 = vmatpush.bf16.msra.mxu0 0
        %843 = vmatpush.bf16.msra.mxu0 %v817
        %844 = vmatpush.bf16.msra.mxu0 %v815
        %845 = vmatpush.bf16.msra.mxu0 %v813
        %846 = vmatpush.bf16.msra.mxu0 %v811
        %847 = vmatmul.bf16.gmra.mxu0 %v582
        %v848 = vpop.f32.mrf.mxu0
        %v849 = vadd.f32 %v783, %v848
        %v850 = vpop.f32.mrf.mxu0
        %851 = vdwg.mxu0
        %v852 = vmul.f32 %v836, %v681
        %v853 = vmul.f32 %v849, %v682
        %v854 = vadd.f32 %v852, %v689
        %v855 = vadd.f32 %v853, %v690
        %v856 = vmax.f32 %v854, 0.0
        %v857 = vmax.f32 %v855, 0.0
        %v858 = vld [vmem:[%s4] sm:$0xff]
        %v859 = vld [vmem:[%s4 + $0x8] sm:$0xff]
        %s860 = scalar_lea.vmem %s4, 16
        %v861 = vld [vmem:[%s860] sm:$0xff]
        %v862 = vld [vmem:[%s860 + $0x8] sm:$0xff]
        %vm863 = vcmask 64512
        %v865 = vsel %vm863, %v861, 0
        %v868 = vsel %vm863, %v862, 0
        %870 = vmatpush.msra.mxu0 0.0
        %871 = vmatpush.msra.mxu0 0.0
        %872 = vmatpush.msra.mxu0 0.0
        %873 = vmatpush.msra.mxu0 0.0
        %874 = vmatpush.msra.mxu0 0.0
        %875 = vmatpush.msra.mxu0 0.0
        %876 = vmatpush.msra.mxu0 0.0
        %877 = vmatpush.msra.mxu0 0.0
        %878 = vmatpush.msra.mxu0 0.0
        %879 = vmatpush.msra.mxu0 0.0
        %880 = vmatpush.msra.mxu0 0.0
        %881 = vmatpush.msra.mxu0 0.0
        %882 = vmatpush.msra.mxu0 0.0
        %883 = vmatpush.msra.mxu0 0.0
        %884 = vmatpush.msra.mxu0 0.0
        %885 = vmatpush.msra.mxu0 %v856
        %886 = vmatmul.f32.gmra.mxu0 %v865
        %v887 = vpop.f32.mrf.mxu0
        %v888 = vadd.f32 0.0, %v887
        %889 = vmatmul.f32.gmra.mxu0 %v868
        %v890 = vpop.f32.mrf.mxu0
        %v891 = vadd.f32 0.0, %v890
        %892 = vdwg.mxu0
        %893 = vmatpush.msra.mxu0 0.0
        %894 = vmatpush.msra.mxu0 0.0
        %895 = vmatpush.msra.mxu0 0.0
        %896 = vmatpush.msra.mxu0 0.0
        %897 = vmatpush.msra.mxu0 0.0
        %898 = vmatpush.msra.mxu0 0.0
        %899 = vmatpush.msra.mxu0 0.0
        %900 = vmatpush.msra.mxu0 0.0
        %901 = vmatpush.msra.mxu0 0.0
        %902 = vmatpush.msra.mxu0 0.0
        %903 = vmatpush.msra.mxu0 0.0
        %904 = vmatpush.msra.mxu0 0.0
        %905 = vmatpush.msra.mxu0 0.0
        %906 = vmatpush.msra.mxu0 0.0
        %907 = vmatpush.msra.mxu0 0.0
        %908 = vmatpush.msra.mxu0 %v857
        %909 = vmatmul.f32.gmra.mxu0 %v865
        %v910 = vpop.f32.mrf.mxu0
        %v911 = vadd.f32 0.0, %v910
        %912 = vmatmul.f32.gmra.mxu0 %v868
        %v913 = vpop.f32.mrf.mxu0
        %v914 = vadd.f32 0.0, %v913
        %915 = vdwg.mxu0
        %v917 = vsel %vm863, %v858, 0
        %v920 = vsel %vm863, %v859, 0
        %922 = vmatpush.msra.mxu0 0.0
        %923 = vmatpush.msra.mxu0 0.0
        %924 = vmatpush.msra.mxu0 0.0
        %925 = vmatpush.msra.mxu0 0.0
        %926 = vmatpush.msra.mxu0 0.0
        %927 = vmatpush.msra.mxu0 0.0
        %928 = vmatpush.msra.mxu0 0.0
        %929 = vmatpush.msra.mxu0 0.0
        %930 = vmatpush.msra.mxu0 0.0
        %931 = vmatpush.msra.mxu0 0.0
        %932 = vmatpush.msra.mxu0 0.0
        %933 = vmatpush.msra.mxu0 0.0
        %934 = vmatpush.msra.mxu0 0.0
        %935 = vmatpush.msra.mxu0 0.0
        %936 = vmatpush.msra.mxu0 0.0
        %937 = vmatpush.msra.mxu0 %v695
        %938 = vmatmul.f32.gmra.mxu0 %v917
        %v939 = vpop.f32.mrf.mxu0
        %v940 = vadd.f32 %v888, %v939
        %941 = vmatmul.f32.gmra.mxu0 %v920
        %v942 = vpop.f32.mrf.mxu0
        %v943 = vadd.f32 %v891, %v942
        %944 = vdwg.mxu0
        %945 = vmatpush.msra.mxu0 0.0
        %946 = vmatpush.msra.mxu0 0.0
        %947 = vmatpush.msra.mxu0 0.0
        %948 = vmatpush.msra.mxu0 0.0
        %949 = vmatpush.msra.mxu0 0.0
        %950 = vmatpush.msra.mxu0 0.0
        %951 = vmatpush.msra.mxu0 0.0
        %952 = vmatpush.msra.mxu0 0.0
        %953 = vmatpush.msra.mxu0 0.0
        %954 = vmatpush.msra.mxu0 0.0
        %955 = vmatpush.msra.mxu0 0.0
        %956 = vmatpush.msra.mxu0 0.0
        %957 = vmatpush.msra.mxu0 0.0
        %958 = vmatpush.msra.mxu0 0.0
        %959 = vmatpush.msra.mxu0 0.0
        %960 = vmatpush.msra.mxu0 %v696
        %961 = vmatmul.f32.gmra.mxu0 %v917
        %v962 = vpop.f32.mrf.mxu0
        %v963 = vadd.f32 %v911, %v962
        %964 = vmatmul.f32.gmra.mxu0 %v920
        %v965 = vpop.f32.mrf.mxu0
        %v966 = vadd.f32 %v914, %v965
        %967 = vdwg.mxu0
        %v968 = vlaneseq
        %vm969 = vcmp.ge.s32.totalorder %v968, 0
        %vm970 = vcmp.lt.s32.totalorder %v968, 256
        %vm971 = vmand %vm969, %vm970
        %972 = vst.msk [vmem:[#allocation3] ss:$8 sm:$0x3] %vm971, 0.0
        %973 = vst.msk [vmem:[#allocation3] ss:$8 sm:$0x0] %vm971, 0.0
        %s974 = scalar_lea.vmem [#allocation3], 33
        %975 = vst.msk [vmem:[%s974] ss:$8 sm:$0x3] %vm971, 0.0
        %976 = vst.msk [vmem:[%s974] ss:$8 sm:$0x0] %vm971, 0.0
        %vm981 = vcmask 1040384
        %v982 = vrot.slane %v940, 7
        %v983 = vrot.slane %v963, 7
        %v984 = vrot.slane %v943, 7
        %v985 = vsel %vm981, %v982, %v984
        %v986 = vrot.slane %v966, 7
        %v987 = vsel %vm981, %v983, %v986
        %994 = vst [vmem:[#allocation3] sm:$0xfe] %v982
        %995 = vst [vmem:[#allocation3 + $0x8] sm:$0xfe] %v983
        %996 = vst [vmem:[#allocation3 + $0x10] sm:$0xff] %v985
        %997 = vst [vmem:[#allocation3 + $0x18] sm:$0xff] %v987
        %998 = vst [vmem:[#allocation3 + $0x20] sm:$0x1] %v984
        %999 = vst [vmem:[#allocation3 + $0x28] sm:$0x1] %v986
        %v1000 = vld [vmem:[#allocation3] sm:$0xff]
        %v1001 = vld [vmem:[#allocation3 + $0x8] sm:$0xff]
        %v1002 = vld [vmem:[#allocation3 + $0x10] sm:$0xff]
        %v1003 = vld [vmem:[#allocation3 + $0x18] sm:$0xff]
        %v1004 = vpack.c.bf16 %v1002, %v1000
        %v1005 = vpack.c.bf16 %v1003, %v1001
        %v1006 = vld [vmem:[#allocation5] sm:$0xff]
        %v1007 = vld [vmem:[#allocation5 + $0x8] sm:$0xff]
        %v1008 = vld [vmem:[#allocation5 + $0x10] sm:$0xff]
        %v1009 = vld [vmem:[#allocation5 + $0x18] sm:$0xff]
        %v1010 = vld [vmem:[#allocation5 + $0x20] sm:$0xff]
        %v1011 = vld [vmem:[#allocation5 + $0x28] sm:$0xff]
        %v1012 = vld [vmem:[#allocation5 + $0x30] sm:$0xff]
        %v1013 = vld [vmem:[#allocation5 + $0x38] sm:$0xff]
        %v1014 = vld [vmem:[#allocation5 + $0x40] sm:$0xff]
        %v1015 = vld [vmem:[#allocation5 + $0x48] sm:$0xff]
        %v1016 = vld [vmem:[#allocation5 + $0x50] sm:$0xff]
        %v1017 = vld [vmem:[#allocation5 + $0x58] sm:$0xff]
        %v1018 = vld [vmem:[#allocation5 + $0x60] sm:$0xff]
        %v1019 = vld [vmem:[#allocation5 + $0x68] sm:$0xff]
        %v1020 = vld [vmem:[#allocation5 + $0x70] sm:$0xff]
        %v1021 = vld [vmem:[#allocation5 + $0x78] sm:$0xff]
        %v1022 = vld [vmem:[#allocation5 + $0x80] sm:$0xff]
        %v1023 = vld [vmem:[#allocation5 + $0x88] sm:$0xff]
        %v1024 = vld [vmem:[#allocation5 + $0x90] sm:$0xff]
        %v1025 = vld [vmem:[#allocation5 + $0x98] sm:$0xff]
        %v1026 = vld [vmem:[#allocation5 + $0xa0] sm:$0xff]
        %v1027 = vld [vmem:[#allocation5 + $0xa8] sm:$0xff]
        %v1028 = vld [vmem:[#allocation5 + $0xb0] sm:$0xff]
        %v1029 = vld [vmem:[#allocation5 + $0xb8] sm:$0xff]
        %v1030 = vld [vmem:[#allocation5 + $0xc0] sm:$0xff]
        %v1031 = vld [vmem:[#allocation5 + $0xc8] sm:$0xff]
        %v1032 = vld [vmem:[#allocation5 + $0xd0] sm:$0xff]
        %v1033 = vld [vmem:[#allocation5 + $0xd8] sm:$0xff]
        %v1034 = vld [vmem:[#allocation5 + $0xe0] sm:$0xff]
        %v1035 = vld [vmem:[#allocation5 + $0xe8] sm:$0xff]
        %v1036 = vld [vmem:[#allocation5 + $0xf0] sm:$0xff]
        %v1037 = vld [vmem:[#allocation5 + $0xf8] sm:$0xff]
        %v1038 = vld [vmem:[#allocation5 + $0x100] sm:$0xff]
        %v1039 = vld [vmem:[#allocation5 + $0x108] sm:$0xff]
        %v1040 = vld [vmem:[#allocation5 + $0x110] sm:$0xff]
        %v1041 = vld [vmem:[#allocation5 + $0x118] sm:$0xff]
        %v1042 = vld [vmem:[#allocation5 + $0x120] sm:$0xff]
        %v1043 = vld [vmem:[#allocation5 + $0x128] sm:$0xff]
        %v1044 = vld [vmem:[#allocation5 + $0x130] sm:$0xff]
        %v1045 = vld [vmem:[#allocation5 + $0x138] sm:$0xff]
        %v1046 = vld [vmem:[#allocation5 + $0x140] sm:$0xff]
        %v1047 = vld [vmem:[#allocation5 + $0x148] sm:$0xff]
        %v1048 = vld [vmem:[#allocation5 + $0x150] sm:$0xff]
        %v1049 = vld [vmem:[#allocation5 + $0x158] sm:$0xff]
        %v1050 = vld [vmem:[#allocation5 + $0x160] sm:$0xff]
        %v1051 = vld [vmem:[#allocation5 + $0x168] sm:$0xff]
        %v1052 = vld [vmem:[#allocation5 + $0x170] sm:$0xff]
        %v1053 = vld [vmem:[#allocation5 + $0x178] sm:$0xff]
        %v1054 = vld [vmem:[#allocation5 + $0x180] sm:$0xff]
        %v1055 = vld [vmem:[#allocation5 + $0x188] sm:$0xff]
        %v1056 = vld [vmem:[#allocation5 + $0x190] sm:$0xff]
        %v1057 = vld [vmem:[#allocation5 + $0x198] sm:$0xff]
        %v1058 = vld [vmem:[#allocation5 + $0x1a0] sm:$0xff]
        %v1059 = vld [vmem:[#allocation5 + $0x1a8] sm:$0xff]
        %v1060 = vld [vmem:[#allocation5 + $0x1b0] sm:$0xff]
        %v1061 = vld [vmem:[#allocation5 + $0x1b8] sm:$0xff]
        %v1062 = vld [vmem:[#allocation5 + $0x1c0] sm:$0xff]
        %v1063 = vld [vmem:[#allocation5 + $0x1c8] sm:$0xff]
        %v1064 = vld [vmem:[#allocation5 + $0x1d0] sm:$0xff]
        %v1065 = vld [vmem:[#allocation5 + $0x1d8] sm:$0xff]
        %v1066 = vld [vmem:[#allocation5 + $0x1e0] sm:$0xff]
        %v1067 = vld [vmem:[#allocation5 + $0x1e8] sm:$0xff]
        %v1068 = vld [vmem:[#allocation5 + $0x1f0] sm:$0xff]
        %v1069 = vld [vmem:[#allocation5 + $0x1f8] sm:$0xff]
        %v1070 = vld [vmem:[#allocation3] sm:$0xfe]
        %v1071 = vld [vmem:[#allocation3 + $0x8] sm:$0xfe]
        %v1072 = vld [vmem:[#allocation3 + $0x20] sm:$0x1]
        %v1073 = vld [vmem:[#allocation3 + $0x28] sm:$0x1]
        %v1074 = vpack.c.bf16 %v1002, %v1070
        %v1075 = vpack.c.bf16 %v1003, %v1071
        %v1076 = vpack.c.bf16 %v1072, %v1072
        %v1077 = vpack.c.bf16 %v1073, %v1073
        %s1078 = scalar_lea.vmem [#allocation5], 512
        %v1079 = vld [vmem:[%s1078] sm:$0xff]
        %v1080 = vld [vmem:[%s1078 + $0x8] sm:$0xff]
        %v1081 = vld [vmem:[%s1078 + $0x10] sm:$0xff]
        %v1082 = vld [vmem:[%s1078 + $0x18] sm:$0xff]
        %v1083 = vld [vmem:[%s1078 + $0x20] sm:$0xff]
        %v1084 = vld [vmem:[%s1078 + $0x28] sm:$0xff]
        %v1085 = vld [vmem:[%s1078 + $0x30] sm:$0xff]
        %v1086 = vld [vmem:[%s1078 + $0x38] sm:$0xff]
        %v1087 = vld [vmem:[%s1078 + $0x40] sm:$0xff]
        %v1088 = vld [vmem:[%s1078 + $0x48] sm:$0xff]
        %v1089 = vld [vmem:[%s1078 + $0x50] sm:$0xff]
        %v1090 = vld [vmem:[%s1078 + $0x58] sm:$0xff]
        %v1091 = vld [vmem:[%s1078 + $0x60] sm:$0xff]
        %v1092 = vld [vmem:[%s1078 + $0x68] sm:$0xff]
        %v1093 = vld [vmem:[%s1078 + $0x70] sm:$0xff]
        %v1094 = vld [vmem:[%s1078 + $0x78] sm:$0xff]
        %v1095 = vld [vmem:[%s1078 + $0x80] sm:$0xff]
        %v1096 = vld [vmem:[%s1078 + $0x88] sm:$0xff]
        %v1097 = vld [vmem:[%s1078 + $0x90] sm:$0xff]
        %v1098 = vld [vmem:[%s1078 + $0x98] sm:$0xff]
        %v1099 = vld [vmem:[%s1078 + $0xa0] sm:$0xff]
        %v1100 = vld [vmem:[%s1078 + $0xa8] sm:$0xff]
        %v1101 = vld [vmem:[%s1078 + $0xb0] sm:$0xff]
        %v1102 = vld [vmem:[%s1078 + $0xb8] sm:$0xff]
        %v1103 = vld [vmem:[%s1078 + $0xc0] sm:$0xff]
        %v1104 = vld [vmem:[%s1078 + $0xc8] sm:$0xff]
        %v1105 = vld [vmem:[%s1078 + $0xd0] sm:$0xff]
        %v1106 = vld [vmem:[%s1078 + $0xd8] sm:$0xff]
        %v1107 = vld [vmem:[%s1078 + $0xe0] sm:$0xff]
        %v1108 = vld [vmem:[%s1078 + $0xe8] sm:$0xff]
        %v1109 = vld [vmem:[%s1078 + $0xf0] sm:$0xff]
        %v1110 = vld [vmem:[%s1078 + $0xf8] sm:$0xff]
        %v1111 = vld [vmem:[%s1078 + $0x100] sm:$0xff]
        %v1112 = vld [vmem:[%s1078 + $0x108] sm:$0xff]
        %v1113 = vld [vmem:[%s1078 + $0x110] sm:$0xff]
        %v1114 = vld [vmem:[%s1078 + $0x118] sm:$0xff]
        %v1115 = vld [vmem:[%s1078 + $0x120] sm:$0xff]
        %v1116 = vld [vmem:[%s1078 + $0x128] sm:$0xff]
        %v1117 = vld [vmem:[%s1078 + $0x130] sm:$0xff]
        %v1118 = vld [vmem:[%s1078 + $0x138] sm:$0xff]
        %v1119 = vld [vmem:[%s1078 + $0x140] sm:$0xff]
        %v1120 = vld [vmem:[%s1078 + $0x148] sm:$0xff]
        %v1121 = vld [vmem:[%s1078 + $0x150] sm:$0xff]
        %v1122 = vld [vmem:[%s1078 + $0x158] sm:$0xff]
        %v1123 = vld [vmem:[%s1078 + $0x160] sm:$0xff]
        %v1124 = vld [vmem:[%s1078 + $0x168] sm:$0xff]
        %v1125 = vld [vmem:[%s1078 + $0x170] sm:$0xff]
        %v1126 = vld [vmem:[%s1078 + $0x178] sm:$0xff]
        %v1127 = vld [vmem:[%s1078 + $0x180] sm:$0xff]
        %v1128 = vld [vmem:[%s1078 + $0x188] sm:$0xff]
        %v1129 = vld [vmem:[%s1078 + $0x190] sm:$0xff]
        %v1130 = vld [vmem:[%s1078 + $0x198] sm:$0xff]
        %v1131 = vld [vmem:[%s1078 + $0x1a0] sm:$0xff]
        %v1132 = vld [vmem:[%s1078 + $0x1a8] sm:$0xff]
        %v1133 = vld [vmem:[%s1078 + $0x1b0] sm:$0xff]
        %v1134 = vld [vmem:[%s1078 + $0x1b8] sm:$0xff]
        %v1135 = vld [vmem:[%s1078 + $0x1c0] sm:$0xff]
        %v1136 = vld [vmem:[%s1078 + $0x1c8] sm:$0xff]
        %v1137 = vld [vmem:[%s1078 + $0x1d0] sm:$0xff]
        %v1138 = vld [vmem:[%s1078 + $0x1d8] sm:$0xff]
        %v1139 = vld [vmem:[%s1078 + $0x1e0] sm:$0xff]
        %v1140 = vld [vmem:[%s1078 + $0x1e8] sm:$0xff]
        %v1141 = vld [vmem:[%s1078 + $0x1f0] sm:$0xff]
        %v1142 = vld [vmem:[%s1078 + $0x1f8] sm:$0xff]
        %vm1143 = vsmask.f32 7424
        %v1145 = vshrl.u32 %v1074, 16
        %v1147 = vshll.u32 %v1074, 16
        %v1149 = vrot.slane %v1147, 1
        %v1150 = vor.u32 %v1145, %v1149
        %v1152 = vshll.u32 %v1076, 16
        %v1154 = vrot.slane %v1152, 1
        %v1155 = vsel %vm1143, %v1150, %v1154
        %v1157 = vshrl.u32 %v1075, 16
        %v1159 = vshll.u32 %v1075, 16
        %v1161 = vrot.slane %v1159, 1
        %v1162 = vor.u32 %v1157, %v1161
        %v1164 = vshll.u32 %v1077, 16
        %v1166 = vrot.slane %v1164, 1
        %v1167 = vsel %vm1143, %v1162, %v1166
        %v1234 = vunpack.c.l.b16 %v1079
        %v1235 = vunpack.c.h.b16 %v1079
        %v1236 = vunpack.c.l.b16 %v1080
        %v1237 = vunpack.c.h.b16 %v1080
        %v1238 = vunpack.c.l.b16 %v1081
        %v1239 = vunpack.c.h.b16 %v1081
        %v1240 = vunpack.c.l.b16 %v1082
        %v1241 = vunpack.c.h.b16 %v1082
        %v1242 = vunpack.c.l.b16 %v1083
        %v1243 = vunpack.c.h.b16 %v1083
        %v1244 = vunpack.c.l.b16 %v1084
        %v1245 = vunpack.c.h.b16 %v1084
        %v1246 = vunpack.c.l.b16 %v1085
        %v1247 = vunpack.c.h.b16 %v1085
        %v1248 = vunpack.c.l.b16 %v1086
        %v1249 = vunpack.c.h.b16 %v1086
        %v1250 = vunpack.c.l.b16 %v1087
        %v1251 = vunpack.c.h.b16 %v1087
        %v1252 = vunpack.c.l.b16 %v1088
        %v1253 = vunpack.c.h.b16 %v1088
        %v1254 = vunpack.c.l.b16 %v1089
        %v1255 = vunpack.c.h.b16 %v1089
        %v1256 = vunpack.c.l.b16 %v1090
        %v1257 = vunpack.c.h.b16 %v1090
        %v1258 = vunpack.c.l.b16 %v1091
        %v1259 = vunpack.c.h.b16 %v1091
        %v1260 = vunpack.c.l.b16 %v1092
        %v1261 = vunpack.c.h.b16 %v1092
        %v1262 = vunpack.c.l.b16 %v1093
        %v1263 = vunpack.c.h.b16 %v1093
        %v1264 = vunpack.c.l.b16 %v1094
        %v1265 = vunpack.c.h.b16 %v1094
        %v1266 = vunpack.c.l.b16 %v1095
        %v1267 = vunpack.c.h.b16 %v1095
        %v1268 = vunpack.c.l.b16 %v1096
        %v1269 = vunpack.c.h.b16 %v1096
        %v1270 = vunpack.c.l.b16 %v1097
        %v1271 = vunpack.c.h.b16 %v1097
        %v1272 = vunpack.c.l.b16 %v1098
        %v1273 = vunpack.c.h.b16 %v1098
        %v1274 = vunpack.c.l.b16 %v1099
        %v1275 = vunpack.c.h.b16 %v1099
        %v1276 = vunpack.c.l.b16 %v1100
        %v1277 = vunpack.c.h.b16 %v1100
        %v1278 = vunpack.c.l.b16 %v1101
        %v1279 = vunpack.c.h.b16 %v1101
        %v1280 = vunpack.c.l.b16 %v1102
        %v1281 = vunpack.c.h.b16 %v1102
        %v1282 = vunpack.c.l.b16 %v1103
        %v1283 = vunpack.c.h.b16 %v1103
        %v1284 = vunpack.c.l.b16 %v1104
        %v1285 = vunpack.c.h.b16 %v1104
        %v1286 = vunpack.c.l.b16 %v1105
        %v1287 = vunpack.c.h.b16 %v1105
        %v1288 = vunpack.c.l.b16 %v1106
        %v1289 = vunpack.c.h.b16 %v1106
        %v1290 = vunpack.c.l.b16 %v1107
        %v1291 = vunpack.c.h.b16 %v1107
        %v1292 = vunpack.c.l.b16 %v1108
        %v1293 = vunpack.c.h.b16 %v1108
        %v1294 = vunpack.c.l.b16 %v1109
        %v1295 = vunpack.c.h.b16 %v1109
        %v1296 = vunpack.c.l.b16 %v1110
        %v1297 = vunpack.c.h.b16 %v1110
        %v1298 = vunpack.c.l.b16 %v1111
        %v1299 = vunpack.c.h.b16 %v1111
        %v1300 = vunpack.c.l.b16 %v1112
        %v1301 = vunpack.c.h.b16 %v1112
        %v1302 = vunpack.c.l.b16 %v1113
        %v1303 = vunpack.c.h.b16 %v1113
        %v1304 = vunpack.c.l.b16 %v1114
        %v1305 = vunpack.c.h.b16 %v1114
        %v1306 = vunpack.c.l.b16 %v1115
        %v1307 = vunpack.c.h.b16 %v1115
        %v1308 = vunpack.c.l.b16 %v1116
        %v1309 = vunpack.c.h.b16 %v1116
        %v1310 = vunpack.c.l.b16 %v1117
        %v1311 = vunpack.c.h.b16 %v1117
        %v1312 = vunpack.c.l.b16 %v1118
        %v1313 = vunpack.c.h.b16 %v1118
        %v1314 = vunpack.c.l.b16 %v1119
        %v1315 = vunpack.c.h.b16 %v1119
        %v1316 = vunpack.c.l.b16 %v1120
        %v1317 = vunpack.c.h.b16 %v1120
        %v1318 = vunpack.c.l.b16 %v1121
        %v1319 = vunpack.c.h.b16 %v1121
        %v1320 = vunpack.c.l.b16 %v1122
        %v1321 = vunpack.c.h.b16 %v1122
        %v1322 = vunpack.c.l.b16 %v1123
        %v1323 = vunpack.c.h.b16 %v1123
        %v1324 = vunpack.c.l.b16 %v1124
        %v1325 = vunpack.c.h.b16 %v1124
        %v1326 = vunpack.c.l.b16 %v1125
        %v1327 = vunpack.c.h.b16 %v1125
        %v1328 = vunpack.c.l.b16 %v1126
        %v1329 = vunpack.c.h.b16 %v1126
        %v1330 = vunpack.c.l.b16 %v1127
        %v1331 = vunpack.c.h.b16 %v1127
        %v1332 = vunpack.c.l.b16 %v1128
        %v1333 = vunpack.c.h.b16 %v1128
        %v1334 = vunpack.c.l.b16 %v1129
        %v1335 = vunpack.c.h.b16 %v1129
        %v1336 = vunpack.c.l.b16 %v1130
        %v1337 = vunpack.c.h.b16 %v1130
        %v1338 = vunpack.c.l.b16 %v1131
        %v1339 = vunpack.c.h.b16 %v1131
        %v1340 = vunpack.c.l.b16 %v1132
        %v1341 = vunpack.c.h.b16 %v1132
        %v1342 = vunpack.c.l.b16 %v1133
        %v1343 = vunpack.c.h.b16 %v1133
        %v1344 = vunpack.c.l.b16 %v1134
        %v1345 = vunpack.c.h.b16 %v1134
        %v1346 = vunpack.c.l.b16 %v1135
        %v1347 = vunpack.c.h.b16 %v1135
        %v1348 = vunpack.c.l.b16 %v1136
        %v1349 = vunpack.c.h.b16 %v1136
        %v1350 = vunpack.c.l.b16 %v1137
        %v1351 = vunpack.c.h.b16 %v1137
        %v1352 = vunpack.c.l.b16 %v1138
        %v1353 = vunpack.c.h.b16 %v1138
        %v1354 = vunpack.c.l.b16 %v1139
        %v1355 = vunpack.c.h.b16 %v1139
        %v1356 = vunpack.c.l.b16 %v1140
        %v1357 = vunpack.c.h.b16 %v1140
        %v1358 = vunpack.c.l.b16 %v1141
        %v1359 = vunpack.c.h.b16 %v1141
        %v1360 = vunpack.c.l.b16 %v1142
        %v1361 = vunpack.c.h.b16 %v1142
        %v1362 = vpack.c.b16 %v1238, %v1234
        %v1363 = vpack.c.b16 %v1239, %v1235
        %v1364 = vpack.c.b16 %v1240, %v1236
        %v1365 = vpack.c.b16 %v1241, %v1237
        %v1366 = vpack.c.b16 %v1246, %v1242
        %v1367 = vpack.c.b16 %v1247, %v1243
        %v1368 = vpack.c.b16 %v1248, %v1244
        %v1369 = vpack.c.b16 %v1249, %v1245
        %v1370 = vpack.c.b16 %v1254, %v1250
        %v1371 = vpack.c.b16 %v1255, %v1251
        %v1372 = vpack.c.b16 %v1256, %v1252
        %v1373 = vpack.c.b16 %v1257, %v1253
        %v1374 = vpack.c.b16 %v1262, %v1258
        %v1375 = vpack.c.b16 %v1263, %v1259
        %v1376 = vpack.c.b16 %v1264, %v1260
        %v1377 = vpack.c.b16 %v1265, %v1261
        %v1378 = vpack.c.b16 %v1270, %v1266
        %v1379 = vpack.c.b16 %v1271, %v1267
        %v1380 = vpack.c.b16 %v1272, %v1268
        %v1381 = vpack.c.b16 %v1273, %v1269
        %v1382 = vpack.c.b16 %v1278, %v1274
        %v1383 = vpack.c.b16 %v1279, %v1275
        %v1384 = vpack.c.b16 %v1280, %v1276
        %v1385 = vpack.c.b16 %v1281, %v1277
        %v1386 = vpack.c.b16 %v1286, %v1282
        %v1387 = vpack.c.b16 %v1287, %v1283
        %v1388 = vpack.c.b16 %v1288, %v1284
        %v1389 = vpack.c.b16 %v1289, %v1285
        %v1390 = vpack.c.b16 %v1294, %v1290
        %v1391 = vpack.c.b16 %v1295, %v1291
        %v1392 = vpack.c.b16 %v1296, %v1292
        %v1393 = vpack.c.b16 %v1297, %v1293
        %v1394 = vpack.c.b16 %v1302, %v1298
        %v1395 = vpack.c.b16 %v1303, %v1299
        %v1396 = vpack.c.b16 %v1304, %v1300
        %v1397 = vpack.c.b16 %v1305, %v1301
        %v1398 = vpack.c.b16 %v1310, %v1306
        %v1399 = vpack.c.b16 %v1311, %v1307
        %v1400 = vpack.c.b16 %v1312, %v1308
        %v1401 = vpack.c.b16 %v1313, %v1309
        %v1402 = vpack.c.b16 %v1318, %v1314
        %v1403 = vpack.c.b16 %v1319, %v1315
        %v1404 = vpack.c.b16 %v1320, %v1316
        %v1405 = vpack.c.b16 %v1321, %v1317
        %v1406 = vpack.c.b16 %v1326, %v1322
        %v1407 = vpack.c.b16 %v1327, %v1323
        %v1408 = vpack.c.b16 %v1328, %v1324
        %v1409 = vpack.c.b16 %v1329, %v1325
        %v1410 = vpack.c.b16 %v1334, %v1330
        %v1411 = vpack.c.b16 %v1335, %v1331
        %v1412 = vpack.c.b16 %v1336, %v1332
        %v1413 = vpack.c.b16 %v1337, %v1333
        %v1414 = vpack.c.b16 %v1342, %v1338
        %v1415 = vpack.c.b16 %v1343, %v1339
        %v1416 = vpack.c.b16 %v1344, %v1340
        %v1417 = vpack.c.b16 %v1345, %v1341
        %v1418 = vpack.c.b16 %v1350, %v1346
        %v1419 = vpack.c.b16 %v1351, %v1347
        %v1420 = vpack.c.b16 %v1352, %v1348
        %v1421 = vpack.c.b16 %v1353, %v1349
        %v1422 = vpack.c.b16 %v1358, %v1354
        %v1423 = vpack.c.b16 %v1359, %v1355
        %v1424 = vpack.c.b16 %v1360, %v1356
        %v1425 = vpack.c.b16 %v1361, %v1357
        %1490 = vmatpush.bf16.msra.mxu0 %v1390
        %1491 = vmatpush.bf16.msra.mxu0 %v1386
        %1492 = vmatpush.bf16.msra.mxu0 %v1382
        %1493 = vmatpush.bf16.msra.mxu0 %v1378
        %1494 = vmatpush.bf16.msra.mxu0 %v1374
        %1495 = vmatpush.bf16.msra.mxu0 %v1370
        %1496 = vmatpush.bf16.msra.mxu0 %v1366
        %1497 = vmatpush.bf16.msra.mxu0 %v1362
        %1498 = vmatmul.bf16.gmra.mxu0 %v1155
        %v1499 = vpop.f32.mrf.mxu0
        %v1500 = vadd.f32 0.0, %v1499
        %v1501 = vpop.f32.mrf.mxu0
        %v1502 = vadd.f32 0.0, %v1501
        %1503 = vdwg.mxu0
        %1504 = vmatpush.bf16.msra.mxu0 %v1422
        %1505 = vmatpush.bf16.msra.mxu0 %v1418
        %1506 = vmatpush.bf16.msra.mxu0 %v1414
        %1507 = vmatpush.bf16.msra.mxu0 %v1410
        %1508 = vmatpush.bf16.msra.mxu0 %v1406
        %1509 = vmatpush.bf16.msra.mxu0 %v1402
        %1510 = vmatpush.bf16.msra.mxu0 %v1398
        %1511 = vmatpush.bf16.msra.mxu0 %v1394
        %1512 = vmatmul.bf16.gmra.mxu0 %v1167
        %v1513 = vpop.f32.mrf.mxu0
        %v1514 = vadd.f32 %v1500, %v1513
        %v1515 = vpop.f32.mrf.mxu0
        %v1516 = vadd.f32 %v1502, %v1515
        %1517 = vdwg.mxu0
        %1518 = vmatpush.bf16.msra.mxu0 %v1391
        %1519 = vmatpush.bf16.msra.mxu0 %v1387
        %1520 = vmatpush.bf16.msra.mxu0 %v1383
        %1521 = vmatpush.bf16.msra.mxu0 %v1379
        %1522 = vmatpush.bf16.msra.mxu0 %v1375
        %1523 = vmatpush.bf16.msra.mxu0 %v1371
        %1524 = vmatpush.bf16.msra.mxu0 %v1367
        %1525 = vmatpush.bf16.msra.mxu0 %v1363
        %1526 = vmatmul.bf16.gmra.mxu0 %v1155
        %v1527 = vpop.f32.mrf.mxu0
        %v1528 = vadd.f32 0.0, %v1527
        %v1529 = vpop.f32.mrf.mxu0
        %v1530 = vadd.f32 0.0, %v1529
        %1531 = vdwg.mxu0
        %1532 = vmatpush.bf16.msra.mxu0 %v1423
        %1533 = vmatpush.bf16.msra.mxu0 %v1419
        %1534 = vmatpush.bf16.msra.mxu0 %v1415
        %1535 = vmatpush.bf16.msra.mxu0 %v1411
        %1536 = vmatpush.bf16.msra.mxu0 %v1407
        %1537 = vmatpush.bf16.msra.mxu0 %v1403
        %1538 = vmatpush.bf16.msra.mxu0 %v1399
        %1539 = vmatpush.bf16.msra.mxu0 %v1395
        %1540 = vmatmul.bf16.gmra.mxu0 %v1167
        %v1541 = vpop.f32.mrf.mxu0
        %v1542 = vadd.f32 %v1528, %v1541
        %v1543 = vpop.f32.mrf.mxu0
        %v1544 = vadd.f32 %v1530, %v1543
        %1545 = vdwg.mxu0
        %1546 = vmatpush.bf16.msra.mxu0 %v1392
        %1547 = vmatpush.bf16.msra.mxu0 %v1388
        %1548 = vmatpush.bf16.msra.mxu0 %v1384
        %1549 = vmatpush.bf16.msra.mxu0 %v1380
        %1550 = vmatpush.bf16.msra.mxu0 %v1376
        %1551 = vmatpush.bf16.msra.mxu0 %v1372
        %1552 = vmatpush.bf16.msra.mxu0 %v1368
        %1553 = vmatpush.bf16.msra.mxu0 %v1364
        %1554 = vmatmul.bf16.gmra.mxu0 %v1155
        %v1555 = vpop.f32.mrf.mxu0
        %v1556 = vadd.f32 0.0, %v1555
        %v1557 = vpop.f32.mrf.mxu0
        %v1558 = vadd.f32 0.0, %v1557
        %1559 = vdwg.mxu0
        %1560 = vmatpush.bf16.msra.mxu0 %v1424
        %1561 = vmatpush.bf16.msra.mxu0 %v1420
        %1562 = vmatpush.bf16.msra.mxu0 %v1416
        %1563 = vmatpush.bf16.msra.mxu0 %v1412
        %1564 = vmatpush.bf16.msra.mxu0 %v1408
        %1565 = vmatpush.bf16.msra.mxu0 %v1404
        %1566 = vmatpush.bf16.msra.mxu0 %v1400
        %1567 = vmatpush.bf16.msra.mxu0 %v1396
        %1568 = vmatmul.bf16.gmra.mxu0 %v1167
        %v1569 = vpop.f32.mrf.mxu0
        %v1570 = vadd.f32 %v1556, %v1569
        %v1571 = vpop.f32.mrf.mxu0
        %v1572 = vadd.f32 %v1558, %v1571
        %1573 = vdwg.mxu0
        %1574 = vmatpush.bf16.msra.mxu0 %v1393
        %1575 = vmatpush.bf16.msra.mxu0 %v1389
        %1576 = vmatpush.bf16.msra.mxu0 %v1385
        %1577 = vmatpush.bf16.msra.mxu0 %v1381
        %1578 = vmatpush.bf16.msra.mxu0 %v1377
        %1579 = vmatpush.bf16.msra.mxu0 %v1373
        %1580 = vmatpush.bf16.msra.mxu0 %v1369
        %1581 = vmatpush.bf16.msra.mxu0 %v1365
        %1582 = vmatmul.bf16.gmra.mxu0 %v1155
        %v1583 = vpop.f32.mrf.mxu0
        %v1584 = vadd.f32 0.0, %v1583
        %v1585 = vpop.f32.mrf.mxu0
        %v1586 = vadd.f32 0.0, %v1585
        %1587 = vdwg.mxu0
        %1588 = vmatpush.bf16.msra.mxu0 %v1425
        %1589 = vmatpush.bf16.msra.mxu0 %v1421
        %1590 = vmatpush.bf16.msra.mxu0 %v1417
        %1591 = vmatpush.bf16.msra.mxu0 %v1413
        %1592 = vmatpush.bf16.msra.mxu0 %v1409
        %1593 = vmatpush.bf16.msra.mxu0 %v1405
        %1594 = vmatpush.bf16.msra.mxu0 %v1401
        %1595 = vmatpush.bf16.msra.mxu0 %v1397
        %1596 = vmatmul.bf16.gmra.mxu0 %v1167
        %v1597 = vpop.f32.mrf.mxu0
        %v1598 = vadd.f32 %v1584, %v1597
        %v1599 = vpop.f32.mrf.mxu0
        %v1600 = vadd.f32 %v1586, %v1599
        %1601 = vdwg.mxu0
        %v1666 = vunpack.c.l.b16 %v1006
        %v1667 = vunpack.c.h.b16 %v1006
        %v1668 = vunpack.c.l.b16 %v1007
        %v1669 = vunpack.c.h.b16 %v1007
        %v1670 = vunpack.c.l.b16 %v1008
        %v1671 = vunpack.c.h.b16 %v1008
        %v1672 = vunpack.c.l.b16 %v1009
        %v1673 = vunpack.c.h.b16 %v1009
        %v1674 = vunpack.c.l.b16 %v1010
        %v1675 = vunpack.c.h.b16 %v1010
        %v1676 = vunpack.c.l.b16 %v1011
        %v1677 = vunpack.c.h.b16 %v1011
        %v1678 = vunpack.c.l.b16 %v1012
        %v1679 = vunpack.c.h.b16 %v1012
        %v1680 = vunpack.c.l.b16 %v1013
        %v1681 = vunpack.c.h.b16 %v1013
        %v1682 = vunpack.c.l.b16 %v1014
        %v1683 = vunpack.c.h.b16 %v1014
        %v1684 = vunpack.c.l.b16 %v1015
        %v1685 = vunpack.c.h.b16 %v1015
        %v1686 = vunpack.c.l.b16 %v1016
        %v1687 = vunpack.c.h.b16 %v1016
        %v1688 = vunpack.c.l.b16 %v1017
        %v1689 = vunpack.c.h.b16 %v1017
        %v1690 = vunpack.c.l.b16 %v1018
        %v1691 = vunpack.c.h.b16 %v1018
        %v1692 = vunpack.c.l.b16 %v1019
        %v1693 = vunpack.c.h.b16 %v1019
        %v1694 = vunpack.c.l.b16 %v1020
        %v1695 = vunpack.c.h.b16 %v1020
        %v1696 = vunpack.c.l.b16 %v1021
        %v1697 = vunpack.c.h.b16 %v1021
        %v1698 = vunpack.c.l.b16 %v1022
        %v1699 = vunpack.c.h.b16 %v1022
        %v1700 = vunpack.c.l.b16 %v1023
        %v1701 = vunpack.c.h.b16 %v1023
        %v1702 = vunpack.c.l.b16 %v1024
        %v1703 = vunpack.c.h.b16 %v1024
        %v1704 = vunpack.c.l.b16 %v1025
        %v1705 = vunpack.c.h.b16 %v1025
        %v1706 = vunpack.c.l.b16 %v1026
        %v1707 = vunpack.c.h.b16 %v1026
        %v1708 = vunpack.c.l.b16 %v1027
        %v1709 = vunpack.c.h.b16 %v1027
        %v1710 = vunpack.c.l.b16 %v1028
        %v1711 = vunpack.c.h.b16 %v1028
        %v1712 = vunpack.c.l.b16 %v1029
        %v1713 = vunpack.c.h.b16 %v1029
        %v1714 = vunpack.c.l.b16 %v1030
        %v1715 = vunpack.c.h.b16 %v1030
        %v1716 = vunpack.c.l.b16 %v1031
        %v1717 = vunpack.c.h.b16 %v1031
        %v1718 = vunpack.c.l.b16 %v1032
        %v1719 = vunpack.c.h.b16 %v1032
        %v1720 = vunpack.c.l.b16 %v1033
        %v1721 = vunpack.c.h.b16 %v1033
        %v1722 = vunpack.c.l.b16 %v1034
        %v1723 = vunpack.c.h.b16 %v1034
        %v1724 = vunpack.c.l.b16 %v1035
        %v1725 = vunpack.c.h.b16 %v1035
        %v1726 = vunpack.c.l.b16 %v1036
        %v1727 = vunpack.c.h.b16 %v1036
        %v1728 = vunpack.c.l.b16 %v1037
        %v1729 = vunpack.c.h.b16 %v1037
        %v1730 = vunpack.c.l.b16 %v1038
        %v1731 = vunpack.c.h.b16 %v1038
        %v1732 = vunpack.c.l.b16 %v1039
        %v1733 = vunpack.c.h.b16 %v1039
        %v1734 = vunpack.c.l.b16 %v1040
        %v1735 = vunpack.c.h.b16 %v1040
        %v1736 = vunpack.c.l.b16 %v1041
        %v1737 = vunpack.c.h.b16 %v1041
        %v1738 = vunpack.c.l.b16 %v1042
        %v1739 = vunpack.c.h.b16 %v1042
        %v1740 = vunpack.c.l.b16 %v1043
        %v1741 = vunpack.c.h.b16 %v1043
        %v1742 = vunpack.c.l.b16 %v1044
        %v1743 = vunpack.c.h.b16 %v1044
        %v1744 = vunpack.c.l.b16 %v1045
        %v1745 = vunpack.c.h.b16 %v1045
        %v1746 = vunpack.c.l.b16 %v1046
        %v1747 = vunpack.c.h.b16 %v1046
        %v1748 = vunpack.c.l.b16 %v1047
        %v1749 = vunpack.c.h.b16 %v1047
        %v1750 = vunpack.c.l.b16 %v1048
        %v1751 = vunpack.c.h.b16 %v1048
        %v1752 = vunpack.c.l.b16 %v1049
        %v1753 = vunpack.c.h.b16 %v1049
        %v1754 = vunpack.c.l.b16 %v1050
        %v1755 = vunpack.c.h.b16 %v1050
        %v1756 = vunpack.c.l.b16 %v1051
        %v1757 = vunpack.c.h.b16 %v1051
        %v1758 = vunpack.c.l.b16 %v1052
        %v1759 = vunpack.c.h.b16 %v1052
        %v1760 = vunpack.c.l.b16 %v1053
        %v1761 = vunpack.c.h.b16 %v1053
        %v1762 = vunpack.c.l.b16 %v1054
        %v1763 = vunpack.c.h.b16 %v1054
        %v1764 = vunpack.c.l.b16 %v1055
        %v1765 = vunpack.c.h.b16 %v1055
        %v1766 = vunpack.c.l.b16 %v1056
        %v1767 = vunpack.c.h.b16 %v1056
        %v1768 = vunpack.c.l.b16 %v1057
        %v1769 = vunpack.c.h.b16 %v1057
        %v1770 = vunpack.c.l.b16 %v1058
        %v1771 = vunpack.c.h.b16 %v1058
        %v1772 = vunpack.c.l.b16 %v1059
        %v1773 = vunpack.c.h.b16 %v1059
        %v1774 = vunpack.c.l.b16 %v1060
        %v1775 = vunpack.c.h.b16 %v1060
        %v1776 = vunpack.c.l.b16 %v1061
        %v1777 = vunpack.c.h.b16 %v1061
        %v1778 = vunpack.c.l.b16 %v1062
        %v1779 = vunpack.c.h.b16 %v1062
        %v1780 = vunpack.c.l.b16 %v1063
        %v1781 = vunpack.c.h.b16 %v1063
        %v1782 = vunpack.c.l.b16 %v1064
        %v1783 = vunpack.c.h.b16 %v1064
        %v1784 = vunpack.c.l.b16 %v1065
        %v1785 = vunpack.c.h.b16 %v1065
        %v1786 = vunpack.c.l.b16 %v1066
        %v1787 = vunpack.c.h.b16 %v1066
        %v1788 = vunpack.c.l.b16 %v1067
        %v1789 = vunpack.c.h.b16 %v1067
        %v1790 = vunpack.c.l.b16 %v1068
        %v1791 = vunpack.c.h.b16 %v1068
        %v1792 = vunpack.c.l.b16 %v1069
        %v1793 = vunpack.c.h.b16 %v1069
        %v1794 = vpack.c.b16 %v1670, %v1666
        %v1795 = vpack.c.b16 %v1671, %v1667
        %v1796 = vpack.c.b16 %v1672, %v1668
        %v1797 = vpack.c.b16 %v1673, %v1669
        %v1798 = vpack.c.b16 %v1678, %v1674
        %v1799 = vpack.c.b16 %v1679, %v1675
        %v1800 = vpack.c.b16 %v1680, %v1676
        %v1801 = vpack.c.b16 %v1681, %v1677
        %v1802 = vpack.c.b16 %v1686, %v1682
        %v1803 = vpack.c.b16 %v1687, %v1683
        %v1804 = vpack.c.b16 %v1688, %v1684
        %v1805 = vpack.c.b16 %v1689, %v1685
        %v1806 = vpack.c.b16 %v1694, %v1690
        %v1807 = vpack.c.b16 %v1695, %v1691
        %v1808 = vpack.c.b16 %v1696, %v1692
        %v1809 = vpack.c.b16 %v1697, %v1693
        %v1810 = vpack.c.b16 %v1702, %v1698
        %v1811 = vpack.c.b16 %v1703, %v1699
        %v1812 = vpack.c.b16 %v1704, %v1700
        %v1813 = vpack.c.b16 %v1705, %v1701
        %v1814 = vpack.c.b16 %v1710, %v1706
        %v1815 = vpack.c.b16 %v1711, %v1707
        %v1816 = vpack.c.b16 %v1712, %v1708
        %v1817 = vpack.c.b16 %v1713, %v1709
        %v1818 = vpack.c.b16 %v1718, %v1714
        %v1819 = vpack.c.b16 %v1719, %v1715
        %v1820 = vpack.c.b16 %v1720, %v1716
        %v1821 = vpack.c.b16 %v1721, %v1717
        %v1822 = vpack.c.b16 %v1726, %v1722
        %v1823 = vpack.c.b16 %v1727, %v1723
        %v1824 = vpack.c.b16 %v1728, %v1724
        %v1825 = vpack.c.b16 %v1729, %v1725
        %v1826 = vpack.c.b16 %v1734, %v1730
        %v1827 = vpack.c.b16 %v1735, %v1731
        %v1828 = vpack.c.b16 %v1736, %v1732
        %v1829 = vpack.c.b16 %v1737, %v1733
        %v1830 = vpack.c.b16 %v1742, %v1738
        %v1831 = vpack.c.b16 %v1743, %v1739
        %v1832 = vpack.c.b16 %v1744, %v1740
        %v1833 = vpack.c.b16 %v1745, %v1741
        %v1834 = vpack.c.b16 %v1750, %v1746
        %v1835 = vpack.c.b16 %v1751, %v1747
        %v1836 = vpack.c.b16 %v1752, %v1748
        %v1837 = vpack.c.b16 %v1753, %v1749
        %v1838 = vpack.c.b16 %v1758, %v1754
        %v1839 = vpack.c.b16 %v1759, %v1755
        %v1840 = vpack.c.b16 %v1760, %v1756
        %v1841 = vpack.c.b16 %v1761, %v1757
        %v1842 = vpack.c.b16 %v1766, %v1762
        %v1843 = vpack.c.b16 %v1767, %v1763
        %v1844 = vpack.c.b16 %v1768, %v1764
        %v1845 = vpack.c.b16 %v1769, %v1765
        %v1846 = vpack.c.b16 %v1774, %v1770
        %v1847 = vpack.c.b16 %v1775, %v1771
        %v1848 = vpack.c.b16 %v1776, %v1772
        %v1849 = vpack.c.b16 %v1777, %v1773
        %v1850 = vpack.c.b16 %v1782, %v1778
        %v1851 = vpack.c.b16 %v1783, %v1779
        %v1852 = vpack.c.b16 %v1784, %v1780
        %v1853 = vpack.c.b16 %v1785, %v1781
        %v1854 = vpack.c.b16 %v1790, %v1786
        %v1855 = vpack.c.b16 %v1791, %v1787
        %v1856 = vpack.c.b16 %v1792, %v1788
        %v1857 = vpack.c.b16 %v1793, %v1789
        %1922 = vmatpush.bf16.msra.mxu0 %v1822
        %1923 = vmatpush.bf16.msra.mxu0 %v1818
        %1924 = vmatpush.bf16.msra.mxu0 %v1814
        %1925 = vmatpush.bf16.msra.mxu0 %v1810
        %1926 = vmatpush.bf16.msra.mxu0 %v1806
        %1927 = vmatpush.bf16.msra.mxu0 %v1802
        %1928 = vmatpush.bf16.msra.mxu0 %v1798
        %1929 = vmatpush.bf16.msra.mxu0 %v1794
        %1930 = vmatmul.bf16.gmra.mxu0 %v1004
        %v1931 = vpop.f32.mrf.mxu0
        %v1932 = vadd.f32 %v1514, %v1931
        %v1933 = vpop.f32.mrf.mxu0
        %v1934 = vadd.f32 %v1516, %v1933
        %1935 = vdwg.mxu0
        %1936 = vmatpush.bf16.msra.mxu0 %v1854
        %1937 = vmatpush.bf16.msra.mxu0 %v1850
        %1938 = vmatpush.bf16.msra.mxu0 %v1846
        %1939 = vmatpush.bf16.msra.mxu0 %v1842
        %1940 = vmatpush.bf16.msra.mxu0 %v1838
        %1941 = vmatpush.bf16.msra.mxu0 %v1834
        %1942 = vmatpush.bf16.msra.mxu0 %v1830
        %1943 = vmatpush.bf16.msra.mxu0 %v1826
        %1944 = vmatmul.bf16.gmra.mxu0 %v1005
        %v1945 = vpop.f32.mrf.mxu0
        %v1946 = vadd.f32 %v1932, %v1945
        %v1947 = vpop.f32.mrf.mxu0
        %v1948 = vadd.f32 %v1934, %v1947
        %1949 = vdwg.mxu0
        %1950 = vmatpush.bf16.msra.mxu0 %v1823
        %1951 = vmatpush.bf16.msra.mxu0 %v1819
        %1952 = vmatpush.bf16.msra.mxu0 %v1815
        %1953 = vmatpush.bf16.msra.mxu0 %v1811
        %1954 = vmatpush.bf16.msra.mxu0 %v1807
        %1955 = vmatpush.bf16.msra.mxu0 %v1803
        %1956 = vmatpush.bf16.msra.mxu0 %v1799
        %1957 = vmatpush.bf16.msra.mxu0 %v1795
        %1958 = vmatmul.bf16.gmra.mxu0 %v1004
        %v1959 = vpop.f32.mrf.mxu0
        %v1960 = vadd.f32 %v1542, %v1959
        %v1961 = vpop.f32.mrf.mxu0
        %v1962 = vadd.f32 %v1544, %v1961
        %1963 = vdwg.mxu0
        %1964 = vmatpush.bf16.msra.mxu0 %v1855
        %1965 = vmatpush.bf16.msra.mxu0 %v1851
        %1966 = vmatpush.bf16.msra.mxu0 %v1847
        %1967 = vmatpush.bf16.msra.mxu0 %v1843
        %1968 = vmatpush.bf16.msra.mxu0 %v1839
        %1969 = vmatpush.bf16.msra.mxu0 %v1835
        %1970 = vmatpush.bf16.msra.mxu0 %v1831
        %1971 = vmatpush.bf16.msra.mxu0 %v1827
        %1972 = vmatmul.bf16.gmra.mxu0 %v1005
        %v1973 = vpop.f32.mrf.mxu0
        %v1974 = vadd.f32 %v1960, %v1973
        %v1975 = vpop.f32.mrf.mxu0
        %v1976 = vadd.f32 %v1962, %v1975
        %1977 = vdwg.mxu0
        %1978 = vmatpush.bf16.msra.mxu0 %v1824
        %1979 = vmatpush.bf16.msra.mxu0 %v1820
        %1980 = vmatpush.bf16.msra.mxu0 %v1816
        %1981 = vmatpush.bf16.msra.mxu0 %v1812
        %1982 = vmatpush.bf16.msra.mxu0 %v1808
        %1983 = vmatpush.bf16.msra.mxu0 %v1804
        %1984 = vmatpush.bf16.msra.mxu0 %v1800
        %1985 = vmatpush.bf16.msra.mxu0 %v1796
        %1986 = vmatmul.bf16.gmra.mxu0 %v1004
        %v1987 = vpop.f32.mrf.mxu0
        %v1988 = vadd.f32 %v1570, %v1987
        %v1989 = vpop.f32.mrf.mxu0
        %v1990 = vadd.f32 %v1572, %v1989
        %1991 = vdwg.mxu0
        %1992 = vmatpush.bf16.msra.mxu0 %v1856
        %1993 = vmatpush.bf16.msra.mxu0 %v1852
        %1994 = vmatpush.bf16.msra.mxu0 %v1848
        %1995 = vmatpush.bf16.msra.mxu0 %v1844
        %1996 = vmatpush.bf16.msra.mxu0 %v1840
        %1997 = vmatpush.bf16.msra.mxu0 %v1836
        %1998 = vmatpush.bf16.msra.mxu0 %v1832
        %1999 = vmatpush.bf16.msra.mxu0 %v1828
        %2000 = vmatmul.bf16.gmra.mxu0 %v1005
        %v2001 = vpop.f32.mrf.mxu0
        %v2002 = vadd.f32 %v1988, %v2001
        %v2003 = vpop.f32.mrf.mxu0
        %v2004 = vadd.f32 %v1990, %v2003
        %2005 = vdwg.mxu0
        %2006 = vmatpush.bf16.msra.mxu0 %v1825
        %2007 = vmatpush.bf16.msra.mxu0 %v1821
        %2008 = vmatpush.bf16.msra.mxu0 %v1817
        %2009 = vmatpush.bf16.msra.mxu0 %v1813
        %2010 = vmatpush.bf16.msra.mxu0 %v1809
        %2011 = vmatpush.bf16.msra.mxu0 %v1805
        %2012 = vmatpush.bf16.msra.mxu0 %v1801
        %2013 = vmatpush.bf16.msra.mxu0 %v1797
        %2014 = vmatmul.bf16.gmra.mxu0 %v1004
        %v2015 = vpop.f32.mrf.mxu0
        %v2016 = vadd.f32 %v1598, %v2015
        %v2017 = vpop.f32.mrf.mxu0
        %v2018 = vadd.f32 %v1600, %v2017
        %2019 = vdwg.mxu0
        %2020 = vmatpush.bf16.msra.mxu0 %v1857
        %2021 = vmatpush.bf16.msra.mxu0 %v1853
        %2022 = vmatpush.bf16.msra.mxu0 %v1849
        %2023 = vmatpush.bf16.msra.mxu0 %v1845
        %2024 = vmatpush.bf16.msra.mxu0 %v1841
        %2025 = vmatpush.bf16.msra.mxu0 %v1837
        %2026 = vmatpush.bf16.msra.mxu0 %v1833
        %2027 = vmatpush.bf16.msra.mxu0 %v1829
        %2028 = vmatmul.bf16.gmra.mxu0 %v1005
        %v2029 = vpop.f32.mrf.mxu0
        %v2030 = vadd.f32 %v2016, %v2029
        %v2031 = vpop.f32.mrf.mxu0
        %v2032 = vadd.f32 %v2018, %v2031
        %2033 = vdwg.mxu0
        %v2034 = vld [vmem:[%s6] sm:$0xf]
        %v2036 = vperm.slane %v2034, 0
        %v2037 = vperm.slane %v2034, 1
        %v2038 = vperm.slane %v2034, 2
        %v2039 = vperm.slane %v2034, 3
        %v2044 = vmul.f32 %v1946, %v2036
        %v2045 = vmul.f32 %v1974, %v2037
        %v2046 = vmul.f32 %v2002, %v2038
        %v2047 = vmul.f32 %v2030, %v2039
        %v2048 = vmul.f32 %v1948, %v2036
        %v2049 = vmul.f32 %v1976, %v2037
        %v2050 = vmul.f32 %v2004, %v2038
        %v2051 = vmul.f32 %v2032, %v2039
        %v2052 = vld [vmem:[%s7] sm:$0xf]
        %v2054 = vperm.slane %v2052, 0
        %v2055 = vperm.slane %v2052, 1
        %v2056 = vperm.slane %v2052, 2
        %v2057 = vperm.slane %v2052, 3
        %v2062 = vadd.f32 %v2044, %v2054
        %v2063 = vadd.f32 %v2045, %v2055
        %v2064 = vadd.f32 %v2046, %v2056
        %v2065 = vadd.f32 %v2047, %v2057
        %v2066 = vadd.f32 %v2048, %v2054
        %v2067 = vadd.f32 %v2049, %v2055
        %v2068 = vadd.f32 %v2050, %v2056
        %v2069 = vadd.f32 %v2051, %v2057
        %v2070 = vmax.f32 %v2062, 0.0
        %v2071 = vmax.f32 %v2063, 0.0
        %v2072 = vmax.f32 %v2064, 0.0
        %v2073 = vmax.f32 %v2065, 0.0
        %v2074 = vmax.f32 %v2066, 0.0
        %v2075 = vmax.f32 %v2067, 0.0
        %v2076 = vmax.f32 %v2068, 0.0
        %v2077 = vmax.f32 %v2069, 0.0
        %s2078 = scalar_lea.vmem [#allocation5], 1024
        %v2079 = vld [vmem:[%s2078] sm:$0xff]
        %v2080 = vld [vmem:[%s2078 + $0x8] sm:$0xff]
        %v2081 = vld [vmem:[%s2078 + $0x10] sm:$0xff]
        %v2082 = vld [vmem:[%s2078 + $0x18] sm:$0xff]
        %v2083 = vld [vmem:[%s2078 + $0x20] sm:$0xff]
        %v2084 = vld [vmem:[%s2078 + $0x28] sm:$0xff]
        %v2085 = vld [vmem:[%s2078 + $0x30] sm:$0xff]
        %v2086 = vld [vmem:[%s2078 + $0x38] sm:$0xff]
        %v2087 = vld [vmem:[%s2078 + $0x40] sm:$0xff]
        %v2088 = vld [vmem:[%s2078 + $0x48] sm:$0xff]
        %v2089 = vld [vmem:[%s2078 + $0x50] sm:$0xff]
        %v2090 = vld [vmem:[%s2078 + $0x58] sm:$0xff]
        %v2091 = vld [vmem:[%s2078 + $0x60] sm:$0xff]
        %v2092 = vld [vmem:[%s2078 + $0x68] sm:$0xff]
        %v2093 = vld [vmem:[%s2078 + $0x70] sm:$0xff]
        %v2094 = vld [vmem:[%s2078 + $0x78] sm:$0xff]
        %v2095 = vld [vmem:[%s2078 + $0x80] sm:$0xff]
        %v2096 = vld [vmem:[%s2078 + $0x88] sm:$0xff]
        %v2097 = vld [vmem:[%s2078 + $0x90] sm:$0xff]
        %v2098 = vld [vmem:[%s2078 + $0x98] sm:$0xff]
        %v2099 = vld [vmem:[%s2078 + $0xa0] sm:$0xff]
        %v2100 = vld [vmem:[%s2078 + $0xa8] sm:$0xff]
        %v2101 = vld [vmem:[%s2078 + $0xb0] sm:$0xff]
        %v2102 = vld [vmem:[%s2078 + $0xb8] sm:$0xff]
        %v2103 = vld [vmem:[%s2078 + $0xc0] sm:$0xff]
        %v2104 = vld [vmem:[%s2078 + $0xc8] sm:$0xff]
        %v2105 = vld [vmem:[%s2078 + $0xd0] sm:$0xff]
        %v2106 = vld [vmem:[%s2078 + $0xd8] sm:$0xff]
        %v2107 = vld [vmem:[%s2078 + $0xe0] sm:$0xff]
        %v2108 = vld [vmem:[%s2078 + $0xe8] sm:$0xff]
        %v2109 = vld [vmem:[%s2078 + $0xf0] sm:$0xff]
        %v2110 = vld [vmem:[%s2078 + $0xf8] sm:$0xff]
        %v2111 = vld [vmem:[%s2078 + $0x100] sm:$0xff]
        %v2112 = vld [vmem:[%s2078 + $0x108] sm:$0xff]
        %v2113 = vld [vmem:[%s2078 + $0x110] sm:$0xff]
        %v2114 = vld [vmem:[%s2078 + $0x118] sm:$0xff]
        %v2115 = vld [vmem:[%s2078 + $0x120] sm:$0xff]
        %v2116 = vld [vmem:[%s2078 + $0x128] sm:$0xff]
        %v2117 = vld [vmem:[%s2078 + $0x130] sm:$0xff]
        %v2118 = vld [vmem:[%s2078 + $0x138] sm:$0xff]
        %v2119 = vld [vmem:[%s2078 + $0x140] sm:$0xff]
        %v2120 = vld [vmem:[%s2078 + $0x148] sm:$0xff]
        %v2121 = vld [vmem:[%s2078 + $0x150] sm:$0xff]
        %v2122 = vld [vmem:[%s2078 + $0x158] sm:$0xff]
        %v2123 = vld [vmem:[%s2078 + $0x160] sm:$0xff]
        %v2124 = vld [vmem:[%s2078 + $0x168] sm:$0xff]
        %v2125 = vld [vmem:[%s2078 + $0x170] sm:$0xff]
        %v2126 = vld [vmem:[%s2078 + $0x178] sm:$0xff]
        %v2127 = vld [vmem:[%s2078 + $0x180] sm:$0xff]
        %v2128 = vld [vmem:[%s2078 + $0x188] sm:$0xff]
        %v2129 = vld [vmem:[%s2078 + $0x190] sm:$0xff]
        %v2130 = vld [vmem:[%s2078 + $0x198] sm:$0xff]
        %v2131 = vld [vmem:[%s2078 + $0x1a0] sm:$0xff]
        %v2132 = vld [vmem:[%s2078 + $0x1a8] sm:$0xff]
        %v2133 = vld [vmem:[%s2078 + $0x1b0] sm:$0xff]
        %v2134 = vld [vmem:[%s2078 + $0x1b8] sm:$0xff]
        %v2135 = vld [vmem:[%s2078 + $0x1c0] sm:$0xff]
        %v2136 = vld [vmem:[%s2078 + $0x1c8] sm:$0xff]
        %v2137 = vld [vmem:[%s2078 + $0x1d0] sm:$0xff]
        %v2138 = vld [vmem:[%s2078 + $0x1d8] sm:$0xff]
        %v2139 = vld [vmem:[%s2078 + $0x1e0] sm:$0xff]
        %v2140 = vld [vmem:[%s2078 + $0x1e8] sm:$0xff]
        %v2141 = vld [vmem:[%s2078 + $0x1f0] sm:$0xff]
        %v2142 = vld [vmem:[%s2078 + $0x1f8] sm:$0xff]
        %v2143 = vld [vmem:[#allocation3] sm:$0xfc]
        %v2144 = vld [vmem:[#allocation3 + $0x8] sm:$0xfc]
        %v2145 = vld [vmem:[#allocation3 + $0x20] sm:$0x3]
        %v2146 = vld [vmem:[#allocation3 + $0x28] sm:$0x3]
        %v2147 = vpack.c.bf16 %v1002, %v2143
        %v2148 = vpack.c.bf16 %v1003, %v2144
        %v2149 = vpack.c.bf16 %v2145, %v2145
        %v2150 = vpack.c.bf16 %v2146, %v2146
        %s2151 = scalar_lea.vmem [#allocation5], 1536
        %v2152 = vld [vmem:[%s2151] sm:$0xff]
        %v2153 = vld [vmem:[%s2151 + $0x8] sm:$0xff]
        %v2154 = vld [vmem:[%s2151 + $0x10] sm:$0xff]
        %v2155 = vld [vmem:[%s2151 + $0x18] sm:$0xff]
        %v2156 = vld [vmem:[%s2151 + $0x20] sm:$0xff]
        %v2157 = vld [vmem:[%s2151 + $0x28] sm:$0xff]
        %v2158 = vld [vmem:[%s2151 + $0x30] sm:$0xff]
        %v2159 = vld [vmem:[%s2151 + $0x38] sm:$0xff]
        %v2160 = vld [vmem:[%s2151 + $0x40] sm:$0xff]
        %v2161 = vld [vmem:[%s2151 + $0x48] sm:$0xff]
        %v2162 = vld [vmem:[%s2151 + $0x50] sm:$0xff]
        %v2163 = vld [vmem:[%s2151 + $0x58] sm:$0xff]
        %v2164 = vld [vmem:[%s2151 + $0x60] sm:$0xff]
        %v2165 = vld [vmem:[%s2151 + $0x68] sm:$0xff]
        %v2166 = vld [vmem:[%s2151 + $0x70] sm:$0xff]
        %v2167 = vld [vmem:[%s2151 + $0x78] sm:$0xff]
        %v2168 = vld [vmem:[%s2151 + $0x80] sm:$0xff]
        %v2169 = vld [vmem:[%s2151 + $0x88] sm:$0xff]
        %v2170 = vld [vmem:[%s2151 + $0x90] sm:$0xff]
        %v2171 = vld [vmem:[%s2151 + $0x98] sm:$0xff]
        %v2172 = vld [vmem:[%s2151 + $0xa0] sm:$0xff]
        %v2173 = vld [vmem:[%s2151 + $0xa8] sm:$0xff]
        %v2174 = vld [vmem:[%s2151 + $0xb0] sm:$0xff]
        %v2175 = vld [vmem:[%s2151 + $0xb8] sm:$0xff]
        %v2176 = vld [vmem:[%s2151 + $0xc0] sm:$0xff]
        %v2177 = vld [vmem:[%s2151 + $0xc8] sm:$0xff]
        %v2178 = vld [vmem:[%s2151 + $0xd0] sm:$0xff]
        %v2179 = vld [vmem:[%s2151 + $0xd8] sm:$0xff]
        %v2180 = vld [vmem:[%s2151 + $0xe0] sm:$0xff]
        %v2181 = vld [vmem:[%s2151 + $0xe8] sm:$0xff]
        %v2182 = vld [vmem:[%s2151 + $0xf0] sm:$0xff]
        %v2183 = vld [vmem:[%s2151 + $0xf8] sm:$0xff]
        %v2184 = vld [vmem:[%s2151 + $0x100] sm:$0xff]
        %v2185 = vld [vmem:[%s2151 + $0x108] sm:$0xff]
        %v2186 = vld [vmem:[%s2151 + $0x110] sm:$0xff]
        %v2187 = vld [vmem:[%s2151 + $0x118] sm:$0xff]
        %v2188 = vld [vmem:[%s2151 + $0x120] sm:$0xff]
        %v2189 = vld [vmem:[%s2151 + $0x128] sm:$0xff]
        %v2190 = vld [vmem:[%s2151 + $0x130] sm:$0xff]
        %v2191 = vld [vmem:[%s2151 + $0x138] sm:$0xff]
        %v2192 = vld [vmem:[%s2151 + $0x140] sm:$0xff]
        %v2193 = vld [vmem:[%s2151 + $0x148] sm:$0xff]
        %v2194 = vld [vmem:[%s2151 + $0x150] sm:$0xff]
        %v2195 = vld [vmem:[%s2151 + $0x158] sm:$0xff]
        %v2196 = vld [vmem:[%s2151 + $0x160] sm:$0xff]
        %v2197 = vld [vmem:[%s2151 + $0x168] sm:$0xff]
        %v2198 = vld [vmem:[%s2151 + $0x170] sm:$0xff]
        %v2199 = vld [vmem:[%s2151 + $0x178] sm:$0xff]
        %v2200 = vld [vmem:[%s2151 + $0x180] sm:$0xff]
        %v2201 = vld [vmem:[%s2151 + $0x188] sm:$0xff]
        %v2202 = vld [vmem:[%s2151 + $0x190] sm:$0xff]
        %v2203 = vld [vmem:[%s2151 + $0x198] sm:$0xff]
        %v2204 = vld [vmem:[%s2151 + $0x1a0] sm:$0xff]
        %v2205 = vld [vmem:[%s2151 + $0x1a8] sm:$0xff]
        %v2206 = vld [vmem:[%s2151 + $0x1b0] sm:$0xff]
        %v2207 = vld [vmem:[%s2151 + $0x1b8] sm:$0xff]
        %v2208 = vld [vmem:[%s2151 + $0x1c0] sm:$0xff]
        %v2209 = vld [vmem:[%s2151 + $0x1c8] sm:$0xff]
        %v2210 = vld [vmem:[%s2151 + $0x1d0] sm:$0xff]
        %v2211 = vld [vmem:[%s2151 + $0x1d8] sm:$0xff]
        %v2212 = vld [vmem:[%s2151 + $0x1e0] sm:$0xff]
        %v2213 = vld [vmem:[%s2151 + $0x1e8] sm:$0xff]
        %v2214 = vld [vmem:[%s2151 + $0x1f0] sm:$0xff]
        %v2215 = vld [vmem:[%s2151 + $0x1f8] sm:$0xff]
        %vm2220 = vcmask 1046528
        %v2221 = vrot.slane %v2147, 1
        %v2222 = vrot.slane %v2149, 1
        %v2223 = vsel %vm2220, %v2221, %v2222
        %v2224 = vrot.slane %v2148, 1
        %v2225 = vrot.slane %v2150, 1
        %v2226 = vsel %vm2220, %v2224, %v2225
        %v2293 = vunpack.c.l.b16 %v2152
        %v2294 = vunpack.c.h.b16 %v2152
        %v2295 = vunpack.c.l.b16 %v2153
        %v2296 = vunpack.c.h.b16 %v2153
        %v2297 = vunpack.c.l.b16 %v2154
        %v2298 = vunpack.c.h.b16 %v2154
        %v2299 = vunpack.c.l.b16 %v2155
        %v2300 = vunpack.c.h.b16 %v2155
        %v2301 = vunpack.c.l.b16 %v2156
        %v2302 = vunpack.c.h.b16 %v2156
        %v2303 = vunpack.c.l.b16 %v2157
        %v2304 = vunpack.c.h.b16 %v2157
        %v2305 = vunpack.c.l.b16 %v2158
        %v2306 = vunpack.c.h.b16 %v2158
        %v2307 = vunpack.c.l.b16 %v2159
        %v2308 = vunpack.c.h.b16 %v2159
        %v2309 = vunpack.c.l.b16 %v2160
        %v2310 = vunpack.c.h.b16 %v2160
        %v2311 = vunpack.c.l.b16 %v2161
        %v2312 = vunpack.c.h.b16 %v2161
        %v2313 = vunpack.c.l.b16 %v2162
        %v2314 = vunpack.c.h.b16 %v2162
        %v2315 = vunpack.c.l.b16 %v2163
        %v2316 = vunpack.c.h.b16 %v2163
        %v2317 = vunpack.c.l.b16 %v2164
        %v2318 = vunpack.c.h.b16 %v2164
        %v2319 = vunpack.c.l.b16 %v2165
        %v2320 = vunpack.c.h.b16 %v2165
        %v2321 = vunpack.c.l.b16 %v2166
        %v2322 = vunpack.c.h.b16 %v2166
        %v2323 = vunpack.c.l.b16 %v2167
        %v2324 = vunpack.c.h.b16 %v2167
        %v2325 = vunpack.c.l.b16 %v2168
        %v2326 = vunpack.c.h.b16 %v2168
        %v2327 = vunpack.c.l.b16 %v2169
        %v2328 = vunpack.c.h.b16 %v2169
        %v2329 = vunpack.c.l.b16 %v2170
        %v2330 = vunpack.c.h.b16 %v2170
        %v2331 = vunpack.c.l.b16 %v2171
        %v2332 = vunpack.c.h.b16 %v2171
        %v2333 = vunpack.c.l.b16 %v2172
        %v2334 = vunpack.c.h.b16 %v2172
        %v2335 = vunpack.c.l.b16 %v2173
        %v2336 = vunpack.c.h.b16 %v2173
        %v2337 = vunpack.c.l.b16 %v2174
        %v2338 = vunpack.c.h.b16 %v2174
        %v2339 = vunpack.c.l.b16 %v2175
        %v2340 = vunpack.c.h.b16 %v2175
        %v2341 = vunpack.c.l.b16 %v2176
        %v2342 = vunpack.c.h.b16 %v2176
        %v2343 = vunpack.c.l.b16 %v2177
        %v2344 = vunpack.c.h.b16 %v2177
        %v2345 = vunpack.c.l.b16 %v2178
        %v2346 = vunpack.c.h.b16 %v2178
        %v2347 = vunpack.c.l.b16 %v2179
        %v2348 = vunpack.c.h.b16 %v2179
        %v2349 = vunpack.c.l.b16 %v2180
        %v2350 = vunpack.c.h.b16 %v2180
        %v2351 = vunpack.c.l.b16 %v2181
        %v2352 = vunpack.c.h.b16 %v2181
        %v2353 = vunpack.c.l.b16 %v2182
        %v2354 = vunpack.c.h.b16 %v2182
        %v2355 = vunpack.c.l.b16 %v2183
        %v2356 = vunpack.c.h.b16 %v2183
        %v2357 = vunpack.c.l.b16 %v2184
        %v2358 = vunpack.c.h.b16 %v2184
        %v2359 = vunpack.c.l.b16 %v2185
        %v2360 = vunpack.c.h.b16 %v2185
        %v2361 = vunpack.c.l.b16 %v2186
        %v2362 = vunpack.c.h.b16 %v2186
        %v2363 = vunpack.c.l.b16 %v2187
        %v2364 = vunpack.c.h.b16 %v2187
        %v2365 = vunpack.c.l.b16 %v2188
        %v2366 = vunpack.c.h.b16 %v2188
        %v2367 = vunpack.c.l.b16 %v2189
        %v2368 = vunpack.c.h.b16 %v2189
        %v2369 = vunpack.c.l.b16 %v2190
        %v2370 = vunpack.c.h.b16 %v2190
        %v2371 = vunpack.c.l.b16 %v2191
        %v2372 = vunpack.c.h.b16 %v2191
        %v2373 = vunpack.c.l.b16 %v2192
        %v2374 = vunpack.c.h.b16 %v2192
        %v2375 = vunpack.c.l.b16 %v2193
        %v2376 = vunpack.c.h.b16 %v2193
        %v2377 = vunpack.c.l.b16 %v2194
        %v2378 = vunpack.c.h.b16 %v2194
        %v2379 = vunpack.c.l.b16 %v2195
        %v2380 = vunpack.c.h.b16 %v2195
        %v2381 = vunpack.c.l.b16 %v2196
        %v2382 = vunpack.c.h.b16 %v2196
        %v2383 = vunpack.c.l.b16 %v2197
        %v2384 = vunpack.c.h.b16 %v2197
        %v2385 = vunpack.c.l.b16 %v2198
        %v2386 = vunpack.c.h.b16 %v2198
        %v2387 = vunpack.c.l.b16 %v2199
        %v2388 = vunpack.c.h.b16 %v2199
        %v2389 = vunpack.c.l.b16 %v2200
        %v2390 = vunpack.c.h.b16 %v2200
        %v2391 = vunpack.c.l.b16 %v2201
        %v2392 = vunpack.c.h.b16 %v2201
        %v2393 = vunpack.c.l.b16 %v2202
        %v2394 = vunpack.c.h.b16 %v2202
        %v2395 = vunpack.c.l.b16 %v2203
        %v2396 = vunpack.c.h.b16 %v2203
        %v2397 = vunpack.c.l.b16 %v2204
        %v2398 = vunpack.c.h.b16 %v2204
        %v2399 = vunpack.c.l.b16 %v2205
        %v2400 = vunpack.c.h.b16 %v2205
        %v2401 = vunpack.c.l.b16 %v2206
        %v2402 = vunpack.c.h.b16 %v2206
        %v2403 = vunpack.c.l.b16 %v2207
        %v2404 = vunpack.c.h.b16 %v2207
        %v2405 = vunpack.c.l.b16 %v2208
        %v2406 = vunpack.c.h.b16 %v2208
        %v2407 = vunpack.c.l.b16 %v2209
        %v2408 = vunpack.c.h.b16 %v2209
        %v2409 = vunpack.c.l.b16 %v2210
        %v2410 = vunpack.c.h.b16 %v2210
        %v2411 = vunpack.c.l.b16 %v2211
        %v2412 = vunpack.c.h.b16 %v2211
        %v2413 = vunpack.c.l.b16 %v2212
        %v2414 = vunpack.c.h.b16 %v2212
        %v2415 = vunpack.c.l.b16 %v2213
        %v2416 = vunpack.c.h.b16 %v2213
        %v2417 = vunpack.c.l.b16 %v2214
        %v2418 = vunpack.c.h.b16 %v2214
        %v2419 = vunpack.c.l.b16 %v2215
        %v2420 = vunpack.c.h.b16 %v2215
        %v2421 = vpack.c.b16 %v2297, %v2293
        %v2422 = vpack.c.b16 %v2298, %v2294
        %v2423 = vpack.c.b16 %v2299, %v2295
        %v2424 = vpack.c.b16 %v2300, %v2296
        %v2425 = vpack.c.b16 %v2305, %v2301
        %v2426 = vpack.c.b16 %v2306, %v2302
        %v2427 = vpack.c.b16 %v2307, %v2303
        %v2428 = vpack.c.b16 %v2308, %v2304
        %v2429 = vpack.c.b16 %v2313, %v2309
        %v2430 = vpack.c.b16 %v2314, %v2310
        %v2431 = vpack.c.b16 %v2315, %v2311
        %v2432 = vpack.c.b16 %v2316, %v2312
        %v2433 = vpack.c.b16 %v2321, %v2317
        %v2434 = vpack.c.b16 %v2322, %v2318
        %v2435 = vpack.c.b16 %v2323, %v2319
        %v2436 = vpack.c.b16 %v2324, %v2320
        %v2437 = vpack.c.b16 %v2329, %v2325
        %v2438 = vpack.c.b16 %v2330, %v2326
        %v2439 = vpack.c.b16 %v2331, %v2327
        %v2440 = vpack.c.b16 %v2332, %v2328
        %v2441 = vpack.c.b16 %v2337, %v2333
        %v2442 = vpack.c.b16 %v2338, %v2334
        %v2443 = vpack.c.b16 %v2339, %v2335
        %v2444 = vpack.c.b16 %v2340, %v2336
        %v2445 = vpack.c.b16 %v2345, %v2341
        %v2446 = vpack.c.b16 %v2346, %v2342
        %v2447 = vpack.c.b16 %v2347, %v2343
        %v2448 = vpack.c.b16 %v2348, %v2344
        %v2449 = vpack.c.b16 %v2353, %v2349
        %v2450 = vpack.c.b16 %v2354, %v2350
        %v2451 = vpack.c.b16 %v2355, %v2351
        %v2452 = vpack.c.b16 %v2356, %v2352
        %v2453 = vpack.c.b16 %v2361, %v2357
        %v2454 = vpack.c.b16 %v2362, %v2358
        %v2455 = vpack.c.b16 %v2363, %v2359
        %v2456 = vpack.c.b16 %v2364, %v2360
        %v2457 = vpack.c.b16 %v2369, %v2365
        %v2458 = vpack.c.b16 %v2370, %v2366
        %v2459 = vpack.c.b16 %v2371, %v2367
        %v2460 = vpack.c.b16 %v2372, %v2368
        %v2461 = vpack.c.b16 %v2377, %v2373
        %v2462 = vpack.c.b16 %v2378, %v2374
        %v2463 = vpack.c.b16 %v2379, %v2375
        %v2464 = vpack.c.b16 %v2380, %v2376
        %v2465 = vpack.c.b16 %v2385, %v2381
        %v2466 = vpack.c.b16 %v2386, %v2382
        %v2467 = vpack.c.b16 %v2387, %v2383
        %v2468 = vpack.c.b16 %v2388, %v2384
        %v2469 = vpack.c.b16 %v2393, %v2389
        %v2470 = vpack.c.b16 %v2394, %v2390
        %v2471 = vpack.c.b16 %v2395, %v2391
        %v2472 = vpack.c.b16 %v2396, %v2392
        %v2473 = vpack.c.b16 %v2401, %v2397
        %v2474 = vpack.c.b16 %v2402, %v2398
        %v2475 = vpack.c.b16 %v2403, %v2399
        %v2476 = vpack.c.b16 %v2404, %v2400
        %v2477 = vpack.c.b16 %v2409, %v2405
        %v2478 = vpack.c.b16 %v2410, %v2406
        %v2479 = vpack.c.b16 %v2411, %v2407
        %v2480 = vpack.c.b16 %v2412, %v2408
        %v2481 = vpack.c.b16 %v2417, %v2413
        %v2482 = vpack.c.b16 %v2418, %v2414
        %v2483 = vpack.c.b16 %v2419, %v2415
        %v2484 = vpack.c.b16 %v2420, %v2416
        %2549 = vmatpush.bf16.msra.mxu0 %v2449
        %2550 = vmatpush.bf16.msra.mxu0 %v2445
        %2551 = vmatpush.bf16.msra.mxu0 %v2441
        %2552 = vmatpush.bf16.msra.mxu0 %v2437
        %2553 = vmatpush.bf16.msra.mxu0 %v2433
        %2554 = vmatpush.bf16.msra.mxu0 %v2429
        %2555 = vmatpush.bf16.msra.mxu0 %v2425
        %2556 = vmatpush.bf16.msra.mxu0 %v2421
        %2557 = vmatmul.bf16.gmra.mxu0 %v2223
        %v2558 = vpop.f32.mrf.mxu0
        %v2559 = vadd.f32 0.0, %v2558
        %v2560 = vpop.f32.mrf.mxu0
        %v2561 = vadd.f32 0.0, %v2560
        %2562 = vdwg.mxu0
        %2563 = vmatpush.bf16.msra.mxu0 %v2481
        %2564 = vmatpush.bf16.msra.mxu0 %v2477
        %2565 = vmatpush.bf16.msra.mxu0 %v2473
        %2566 = vmatpush.bf16.msra.mxu0 %v2469
        %2567 = vmatpush.bf16.msra.mxu0 %v2465
        %2568 = vmatpush.bf16.msra.mxu0 %v2461
        %2569 = vmatpush.bf16.msra.mxu0 %v2457
        %2570 = vmatpush.bf16.msra.mxu0 %v2453
        %2571 = vmatmul.bf16.gmra.mxu0 %v2226
        %v2572 = vpop.f32.mrf.mxu0
        %v2573 = vadd.f32 %v2559, %v2572
        %v2574 = vpop.f32.mrf.mxu0
        %v2575 = vadd.f32 %v2561, %v2574
        %2576 = vdwg.mxu0
        %2577 = vmatpush.bf16.msra.mxu0 %v2450
        %2578 = vmatpush.bf16.msra.mxu0 %v2446
        %2579 = vmatpush.bf16.msra.mxu0 %v2442
        %2580 = vmatpush.bf16.msra.mxu0 %v2438
        %2581 = vmatpush.bf16.msra.mxu0 %v2434
        %2582 = vmatpush.bf16.msra.mxu0 %v2430
        %2583 = vmatpush.bf16.msra.mxu0 %v2426
        %2584 = vmatpush.bf16.msra.mxu0 %v2422
        %2585 = vmatmul.bf16.gmra.mxu0 %v2223
        %v2586 = vpop.f32.mrf.mxu0
        %v2587 = vadd.f32 0.0, %v2586
        %v2588 = vpop.f32.mrf.mxu0
        %v2589 = vadd.f32 0.0, %v2588
        %2590 = vdwg.mxu0
        %2591 = vmatpush.bf16.msra.mxu0 %v2482
        %2592 = vmatpush.bf16.msra.mxu0 %v2478
        %2593 = vmatpush.bf16.msra.mxu0 %v2474
        %2594 = vmatpush.bf16.msra.mxu0 %v2470
        %2595 = vmatpush.bf16.msra.mxu0 %v2466
        %2596 = vmatpush.bf16.msra.mxu0 %v2462
        %2597 = vmatpush.bf16.msra.mxu0 %v2458
        %2598 = vmatpush.bf16.msra.mxu0 %v2454
        %2599 = vmatmul.bf16.gmra.mxu0 %v2226
        %v2600 = vpop.f32.mrf.mxu0
        %v2601 = vadd.f32 %v2587, %v2600
        %v2602 = vpop.f32.mrf.mxu0
        %v2603 = vadd.f32 %v2589, %v2602
        %2604 = vdwg.mxu0
        %2605 = vmatpush.bf16.msra.mxu0 %v2451
        %2606 = vmatpush.bf16.msra.mxu0 %v2447
        %2607 = vmatpush.bf16.msra.mxu0 %v2443
        %2608 = vmatpush.bf16.msra.mxu0 %v2439
        %2609 = vmatpush.bf16.msra.mxu0 %v2435
        %2610 = vmatpush.bf16.msra.mxu0 %v2431
        %2611 = vmatpush.bf16.msra.mxu0 %v2427
        %2612 = vmatpush.bf16.msra.mxu0 %v2423
        %2613 = vmatmul.bf16.gmra.mxu0 %v2223
        %v2614 = vpop.f32.mrf.mxu0
        %v2615 = vadd.f32 0.0, %v2614
        %v2616 = vpop.f32.mrf.mxu0
        %v2617 = vadd.f32 0.0, %v2616
        %2618 = vdwg.mxu0
        %2619 = vmatpush.bf16.msra.mxu0 %v2483
        %2620 = vmatpush.bf16.msra.mxu0 %v2479
        %2621 = vmatpush.bf16.msra.mxu0 %v2475
        %2622 = vmatpush.bf16.msra.mxu0 %v2471
        %2623 = vmatpush.bf16.msra.mxu0 %v2467
        %2624 = vmatpush.bf16.msra.mxu0 %v2463
        %2625 = vmatpush.bf16.msra.mxu0 %v2459
        %2626 = vmatpush.bf16.msra.mxu0 %v2455
        %2627 = vmatmul.bf16.gmra.mxu0 %v2226
        %v2628 = vpop.f32.mrf.mxu0
        %v2629 = vadd.f32 %v2615, %v2628
        %v2630 = vpop.f32.mrf.mxu0
        %v2631 = vadd.f32 %v2617, %v2630
        %2632 = vdwg.mxu0
        %2633 = vmatpush.bf16.msra.mxu0 %v2452
        %2634 = vmatpush.bf16.msra.mxu0 %v2448
        %2635 = vmatpush.bf16.msra.mxu0 %v2444
        %2636 = vmatpush.bf16.msra.mxu0 %v2440
        %2637 = vmatpush.bf16.msra.mxu0 %v2436
        %2638 = vmatpush.bf16.msra.mxu0 %v2432
        %2639 = vmatpush.bf16.msra.mxu0 %v2428
        %2640 = vmatpush.bf16.msra.mxu0 %v2424
        %2641 = vmatmul.bf16.gmra.mxu0 %v2223
        %v2642 = vpop.f32.mrf.mxu0
        %v2643 = vadd.f32 0.0, %v2642
        %v2644 = vpop.f32.mrf.mxu0
        %v2645 = vadd.f32 0.0, %v2644
        %2646 = vdwg.mxu0
        %2647 = vmatpush.bf16.msra.mxu0 %v2484
        %2648 = vmatpush.bf16.msra.mxu0 %v2480
        %2649 = vmatpush.bf16.msra.mxu0 %v2476
        %2650 = vmatpush.bf16.msra.mxu0 %v2472
        %2651 = vmatpush.bf16.msra.mxu0 %v2468
        %2652 = vmatpush.bf16.msra.mxu0 %v2464
        %2653 = vmatpush.bf16.msra.mxu0 %v2460
        %2654 = vmatpush.bf16.msra.mxu0 %v2456
        %2655 = vmatmul.bf16.gmra.mxu0 %v2226
        %v2656 = vpop.f32.mrf.mxu0
        %v2657 = vadd.f32 %v2643, %v2656
        %v2658 = vpop.f32.mrf.mxu0
        %v2659 = vadd.f32 %v2645, %v2658
        %2660 = vdwg.mxu0
        %v2725 = vunpack.c.l.b16 %v2079
        %v2726 = vunpack.c.h.b16 %v2079
        %v2727 = vunpack.c.l.b16 %v2080
        %v2728 = vunpack.c.h.b16 %v2080
        %v2729 = vunpack.c.l.b16 %v2081
        %v2730 = vunpack.c.h.b16 %v2081
        %v2731 = vunpack.c.l.b16 %v2082
        %v2732 = vunpack.c.h.b16 %v2082
        %v2733 = vunpack.c.l.b16 %v2083
        %v2734 = vunpack.c.h.b16 %v2083
        %v2735 = vunpack.c.l.b16 %v2084
        %v2736 = vunpack.c.h.b16 %v2084
        %v2737 = vunpack.c.l.b16 %v2085
        %v2738 = vunpack.c.h.b16 %v2085
        %v2739 = vunpack.c.l.b16 %v2086
        %v2740 = vunpack.c.h.b16 %v2086
        %v2741 = vunpack.c.l.b16 %v2087
        %v2742 = vunpack.c.h.b16 %v2087
        %v2743 = vunpack.c.l.b16 %v2088
        %v2744 = vunpack.c.h.b16 %v2088
        %v2745 = vunpack.c.l.b16 %v2089
        %v2746 = vunpack.c.h.b16 %v2089
        %v2747 = vunpack.c.l.b16 %v2090
        %v2748 = vunpack.c.h.b16 %v2090
        %v2749 = vunpack.c.l.b16 %v2091
        %v2750 = vunpack.c.h.b16 %v2091
        %v2751 = vunpack.c.l.b16 %v2092
        %v2752 = vunpack.c.h.b16 %v2092
        %v2753 = vunpack.c.l.b16 %v2093
        %v2754 = vunpack.c.h.b16 %v2093
        %v2755 = vunpack.c.l.b16 %v2094
        %v2756 = vunpack.c.h.b16 %v2094
        %v2757 = vunpack.c.l.b16 %v2095
        %v2758 = vunpack.c.h.b16 %v2095
        %v2759 = vunpack.c.l.b16 %v2096
        %v2760 = vunpack.c.h.b16 %v2096
        %v2761 = vunpack.c.l.b16 %v2097
        %v2762 = vunpack.c.h.b16 %v2097
        %v2763 = vunpack.c.l.b16 %v2098
        %v2764 = vunpack.c.h.b16 %v2098
        %v2765 = vunpack.c.l.b16 %v2099
        %v2766 = vunpack.c.h.b16 %v2099
        %v2767 = vunpack.c.l.b16 %v2100
        %v2768 = vunpack.c.h.b16 %v2100
        %v2769 = vunpack.c.l.b16 %v2101
        %v2770 = vunpack.c.h.b16 %v2101
        %v2771 = vunpack.c.l.b16 %v2102
        %v2772 = vunpack.c.h.b16 %v2102
        %v2773 = vunpack.c.l.b16 %v2103
        %v2774 = vunpack.c.h.b16 %v2103
        %v2775 = vunpack.c.l.b16 %v2104
        %v2776 = vunpack.c.h.b16 %v2104
        %v2777 = vunpack.c.l.b16 %v2105
        %v2778 = vunpack.c.h.b16 %v2105
        %v2779 = vunpack.c.l.b16 %v2106
        %v2780 = vunpack.c.h.b16 %v2106
        %v2781 = vunpack.c.l.b16 %v2107
        %v2782 = vunpack.c.h.b16 %v2107
        %v2783 = vunpack.c.l.b16 %v2108
        %v2784 = vunpack.c.h.b16 %v2108
        %v2785 = vunpack.c.l.b16 %v2109
        %v2786 = vunpack.c.h.b16 %v2109
        %v2787 = vunpack.c.l.b16 %v2110
        %v2788 = vunpack.c.h.b16 %v2110
        %v2789 = vunpack.c.l.b16 %v2111
        %v2790 = vunpack.c.h.b16 %v2111
        %v2791 = vunpack.c.l.b16 %v2112
        %v2792 = vunpack.c.h.b16 %v2112
        %v2793 = vunpack.c.l.b16 %v2113
        %v2794 = vunpack.c.h.b16 %v2113
        %v2795 = vunpack.c.l.b16 %v2114
        %v2796 = vunpack.c.h.b16 %v2114
        %v2797 = vunpack.c.l.b16 %v2115
        %v2798 = vunpack.c.h.b16 %v2115
        %v2799 = vunpack.c.l.b16 %v2116
        %v2800 = vunpack.c.h.b16 %v2116
        %v2801 = vunpack.c.l.b16 %v2117
        %v2802 = vunpack.c.h.b16 %v2117
        %v2803 = vunpack.c.l.b16 %v2118
        %v2804 = vunpack.c.h.b16 %v2118
        %v2805 = vunpack.c.l.b16 %v2119
        %v2806 = vunpack.c.h.b16 %v2119
        %v2807 = vunpack.c.l.b16 %v2120
        %v2808 = vunpack.c.h.b16 %v2120
        %v2809 = vunpack.c.l.b16 %v2121
        %v2810 = vunpack.c.h.b16 %v2121
        %v2811 = vunpack.c.l.b16 %v2122
        %v2812 = vunpack.c.h.b16 %v2122
        %v2813 = vunpack.c.l.b16 %v2123
        %v2814 = vunpack.c.h.b16 %v2123
        %v2815 = vunpack.c.l.b16 %v2124
        %v2816 = vunpack.c.h.b16 %v2124
        %v2817 = vunpack.c.l.b16 %v2125
        %v2818 = vunpack.c.h.b16 %v2125
        %v2819 = vunpack.c.l.b16 %v2126
        %v2820 = vunpack.c.h.b16 %v2126
        %v2821 = vunpack.c.l.b16 %v2127
        %v2822 = vunpack.c.h.b16 %v2127
        %v2823 = vunpack.c.l.b16 %v2128
        %v2824 = vunpack.c.h.b16 %v2128
        %v2825 = vunpack.c.l.b16 %v2129
        %v2826 = vunpack.c.h.b16 %v2129
        %v2827 = vunpack.c.l.b16 %v2130
        %v2828 = vunpack.c.h.b16 %v2130
        %v2829 = vunpack.c.l.b16 %v2131
        %v2830 = vunpack.c.h.b16 %v2131
        %v2831 = vunpack.c.l.b16 %v2132
        %v2832 = vunpack.c.h.b16 %v2132
        %v2833 = vunpack.c.l.b16 %v2133
        %v2834 = vunpack.c.h.b16 %v2133
        %v2835 = vunpack.c.l.b16 %v2134
        %v2836 = vunpack.c.h.b16 %v2134
        %v2837 = vunpack.c.l.b16 %v2135
        %v2838 = vunpack.c.h.b16 %v2135
        %v2839 = vunpack.c.l.b16 %v2136
        %v2840 = vunpack.c.h.b16 %v2136
        %v2841 = vunpack.c.l.b16 %v2137
        %v2842 = vunpack.c.h.b16 %v2137
        %v2843 = vunpack.c.l.b16 %v2138
        %v2844 = vunpack.c.h.b16 %v2138
        %v2845 = vunpack.c.l.b16 %v2139
        %v2846 = vunpack.c.h.b16 %v2139
        %v2847 = vunpack.c.l.b16 %v2140
        %v2848 = vunpack.c.h.b16 %v2140
        %v2849 = vunpack.c.l.b16 %v2141
        %v2850 = vunpack.c.h.b16 %v2141
        %v2851 = vunpack.c.l.b16 %v2142
        %v2852 = vunpack.c.h.b16 %v2142
        %v2853 = vpack.c.b16 %v2729, %v2725
        %v2854 = vpack.c.b16 %v2730, %v2726
        %v2855 = vpack.c.b16 %v2731, %v2727
        %v2856 = vpack.c.b16 %v2732, %v2728
        %v2857 = vpack.c.b16 %v2737, %v2733
        %v2858 = vpack.c.b16 %v2738, %v2734
        %v2859 = vpack.c.b16 %v2739, %v2735
        %v2860 = vpack.c.b16 %v2740, %v2736
        %v2861 = vpack.c.b16 %v2745, %v2741
        %v2862 = vpack.c.b16 %v2746, %v2742
        %v2863 = vpack.c.b16 %v2747, %v2743
        %v2864 = vpack.c.b16 %v2748, %v2744
        %v2865 = vpack.c.b16 %v2753, %v2749
        %v2866 = vpack.c.b16 %v2754, %v2750
        %v2867 = vpack.c.b16 %v2755, %v2751
        %v2868 = vpack.c.b16 %v2756, %v2752
        %v2869 = vpack.c.b16 %v2761, %v2757
        %v2870 = vpack.c.b16 %v2762, %v2758
        %v2871 = vpack.c.b16 %v2763, %v2759
        %v2872 = vpack.c.b16 %v2764, %v2760
        %v2873 = vpack.c.b16 %v2769, %v2765
        %v2874 = vpack.c.b16 %v2770, %v2766
        %v2875 = vpack.c.b16 %v2771, %v2767
        %v2876 = vpack.c.b16 %v2772, %v2768
        %v2877 = vpack.c.b16 %v2777, %v2773
        %v2878 = vpack.c.b16 %v2778, %v2774
        %v2879 = vpack.c.b16 %v2779, %v2775
        %v2880 = vpack.c.b16 %v2780, %v2776
        %v2881 = vpack.c.b16 %v2785, %v2781
        %v2882 = vpack.c.b16 %v2786, %v2782
        %v2883 = vpack.c.b16 %v2787, %v2783
        %v2884 = vpack.c.b16 %v2788, %v2784
        %v2885 = vpack.c.b16 %v2793, %v2789
        %v2886 = vpack.c.b16 %v2794, %v2790
        %v2887 = vpack.c.b16 %v2795, %v2791
        %v2888 = vpack.c.b16 %v2796, %v2792
        %v2889 = vpack.c.b16 %v2801, %v2797
        %v2890 = vpack.c.b16 %v2802, %v2798
        %v2891 = vpack.c.b16 %v2803, %v2799
        %v2892 = vpack.c.b16 %v2804, %v2800
        %v2893 = vpack.c.b16 %v2809, %v2805
        %v2894 = vpack.c.b16 %v2810, %v2806
        %v2895 = vpack.c.b16 %v2811, %v2807
        %v2896 = vpack.c.b16 %v2812, %v2808
        %v2897 = vpack.c.b16 %v2817, %v2813
        %v2898 = vpack.c.b16 %v2818, %v2814
        %v2899 = vpack.c.b16 %v2819, %v2815
        %v2900 = vpack.c.b16 %v2820, %v2816
        %v2901 = vpack.c.b16 %v2825, %v2821
        %v2902 = vpack.c.b16 %v2826, %v2822
        %v2903 = vpack.c.b16 %v2827, %v2823
        %v2904 = vpack.c.b16 %v2828, %v2824
        %v2905 = vpack.c.b16 %v2833, %v2829
        %v2906 = vpack.c.b16 %v2834, %v2830
        %v2907 = vpack.c.b16 %v2835, %v2831
        %v2908 = vpack.c.b16 %v2836, %v2832
        %v2909 = vpack.c.b16 %v2841, %v2837
        %v2910 = vpack.c.b16 %v2842, %v2838
        %v2911 = vpack.c.b16 %v2843, %v2839
        %v2912 = vpack.c.b16 %v2844, %v2840
        %v2913 = vpack.c.b16 %v2849, %v2845
        %v2914 = vpack.c.b16 %v2850, %v2846
        %v2915 = vpack.c.b16 %v2851, %v2847
        %v2916 = vpack.c.b16 %v2852, %v2848
        %2981 = vmatpush.bf16.msra.mxu0 %v2881
        %2982 = vmatpush.bf16.msra.mxu0 %v2877
        %2983 = vmatpush.bf16.msra.mxu0 %v2873
        %2984 = vmatpush.bf16.msra.mxu0 %v2869
        %2985 = vmatpush.bf16.msra.mxu0 %v2865
        %2986 = vmatpush.bf16.msra.mxu0 %v2861
        %2987 = vmatpush.bf16.msra.mxu0 %v2857
        %2988 = vmatpush.bf16.msra.mxu0 %v2853
        %2989 = vmatmul.bf16.gmra.mxu0 %v1155
        %v2990 = vpop.f32.mrf.mxu0
        %v2991 = vadd.f32 %v2573, %v2990
        %v2992 = vpop.f32.mrf.mxu0
        %v2993 = vadd.f32 %v2575, %v2992
        %2994 = vdwg.mxu0
        %2995 = vmatpush.bf16.msra.mxu0 %v2913
        %2996 = vmatpush.bf16.msra.mxu0 %v2909
        %2997 = vmatpush.bf16.msra.mxu0 %v2905
        %2998 = vmatpush.bf16.msra.mxu0 %v2901
        %2999 = vmatpush.bf16.msra.mxu0 %v2897
        %3000 = vmatpush.bf16.msra.mxu0 %v2893
        %3001 = vmatpush.bf16.msra.mxu0 %v2889
        %3002 = vmatpush.bf16.msra.mxu0 %v2885
        %3003 = vmatmul.bf16.gmra.mxu0 %v1167
        %v3004 = vpop.f32.mrf.mxu0
        %v3005 = vadd.f32 %v2991, %v3004
        %v3006 = vpop.f32.mrf.mxu0
        %v3007 = vadd.f32 %v2993, %v3006
        %3008 = vdwg.mxu0
        %3009 = vmatpush.bf16.msra.mxu0 %v2882
        %3010 = vmatpush.bf16.msra.mxu0 %v2878
        %3011 = vmatpush.bf16.msra.mxu0 %v2874
        %3012 = vmatpush.bf16.msra.mxu0 %v2870
        %3013 = vmatpush.bf16.msra.mxu0 %v2866
        %3014 = vmatpush.bf16.msra.mxu0 %v2862
        %3015 = vmatpush.bf16.msra.mxu0 %v2858
        %3016 = vmatpush.bf16.msra.mxu0 %v2854
        %3017 = vmatmul.bf16.gmra.mxu0 %v1155
        %v3018 = vpop.f32.mrf.mxu0
        %v3019 = vadd.f32 %v2601, %v3018
        %v3020 = vpop.f32.mrf.mxu0
        %v3021 = vadd.f32 %v2603, %v3020
        %3022 = vdwg.mxu0
        %3023 = vmatpush.bf16.msra.mxu0 %v2914
        %3024 = vmatpush.bf16.msra.mxu0 %v2910
        %3025 = vmatpush.bf16.msra.mxu0 %v2906
        %3026 = vmatpush.bf16.msra.mxu0 %v2902
        %3027 = vmatpush.bf16.msra.mxu0 %v2898
        %3028 = vmatpush.bf16.msra.mxu0 %v2894
        %3029 = vmatpush.bf16.msra.mxu0 %v2890
        %3030 = vmatpush.bf16.msra.mxu0 %v2886
        %3031 = vmatmul.bf16.gmra.mxu0 %v1167
        %v3032 = vpop.f32.mrf.mxu0
        %v3033 = vadd.f32 %v3019, %v3032
        %v3034 = vpop.f32.mrf.mxu0
        %v3035 = vadd.f32 %v3021, %v3034
        %3036 = vdwg.mxu0
        %3037 = vmatpush.bf16.msra.mxu0 %v2883
        %3038 = vmatpush.bf16.msra.mxu0 %v2879
        %3039 = vmatpush.bf16.msra.mxu0 %v2875
        %3040 = vmatpush.bf16.msra.mxu0 %v2871
        %3041 = vmatpush.bf16.msra.mxu0 %v2867
        %3042 = vmatpush.bf16.msra.mxu0 %v2863
        %3043 = vmatpush.bf16.msra.mxu0 %v2859
        %3044 = vmatpush.bf16.msra.mxu0 %v2855
        %3045 = vmatmul.bf16.gmra.mxu0 %v1155
        %v3046 = vpop.f32.mrf.mxu0
        %v3047 = vadd.f32 %v2629, %v3046
        %v3048 = vpop.f32.mrf.mxu0
        %v3049 = vadd.f32 %v2631, %v3048
        %3050 = vdwg.mxu0
        %3051 = vmatpush.bf16.msra.mxu0 %v2915
        %3052 = vmatpush.bf16.msra.mxu0 %v2911
        %3053 = vmatpush.bf16.msra.mxu0 %v2907
        %3054 = vmatpush.bf16.msra.mxu0 %v2903
        %3055 = vmatpush.bf16.msra.mxu0 %v2899
        %3056 = vmatpush.bf16.msra.mxu0 %v2895
        %3057 = vmatpush.bf16.msra.mxu0 %v2891
        %3058 = vmatpush.bf16.msra.mxu0 %v2887
        %3059 = vmatmul.bf16.gmra.mxu0 %v1167
        %v3060 = vpop.f32.mrf.mxu0
        %v3061 = vadd.f32 %v3047, %v3060
        %v3062 = vpop.f32.mrf.mxu0
        %v3063 = vadd.f32 %v3049, %v3062
        %3064 = vdwg.mxu0
        %3065 = vmatpush.bf16.msra.mxu0 %v2884
        %3066 = vmatpush.bf16.msra.mxu0 %v2880
        %3067 = vmatpush.bf16.msra.mxu0 %v2876
        %3068 = vmatpush.bf16.msra.mxu0 %v2872
        %3069 = vmatpush.bf16.msra.mxu0 %v2868
        %3070 = vmatpush.bf16.msra.mxu0 %v2864
        %3071 = vmatpush.bf16.msra.mxu0 %v2860
        %3072 = vmatpush.bf16.msra.mxu0 %v2856
        %3073 = vmatmul.bf16.gmra.mxu0 %v1155
        %v3074 = vpop.f32.mrf.mxu0
        %v3075 = vadd.f32 %v2657, %v3074
        %v3076 = vpop.f32.mrf.mxu0
        %v3077 = vadd.f32 %v2659, %v3076
        %3078 = vdwg.mxu0
        %3079 = vmatpush.bf16.msra.mxu0 %v2916
        %3080 = vmatpush.bf16.msra.mxu0 %v2912
        %3081 = vmatpush.bf16.msra.mxu0 %v2908
        %3082 = vmatpush.bf16.msra.mxu0 %v2904
        %3083 = vmatpush.bf16.msra.mxu0 %v2900
        %3084 = vmatpush.bf16.msra.mxu0 %v2896
        %3085 = vmatpush.bf16.msra.mxu0 %v2892
        %3086 = vmatpush.bf16.msra.mxu0 %v2888
        %3087 = vmatmul.bf16.gmra.mxu0 %v1167
        %v3088 = vpop.f32.mrf.mxu0
        %v3089 = vadd.f32 %v3075, %v3088
        %v3090 = vpop.f32.mrf.mxu0
        %v3091 = vadd.f32 %v3077, %v3090
        %3092 = vdwg.mxu0
        %v3093 = vmul.f32 %v3005, %v2036
        %v3094 = vmul.f32 %v3033, %v2037
        %v3095 = vmul.f32 %v3061, %v2038
        %v3096 = vmul.f32 %v3089, %v2039
        %v3097 = vmul.f32 %v3007, %v2036
        %v3098 = vmul.f32 %v3035, %v2037
        %v3099 = vmul.f32 %v3063, %v2038
        %v3100 = vmul.f32 %v3091, %v2039
        %v3101 = vadd.f32 %v3093, %v2054
        %v3102 = vadd.f32 %v3094, %v2055
        %v3103 = vadd.f32 %v3095, %v2056
        %v3104 = vadd.f32 %v3096, %v2057
        %v3105 = vadd.f32 %v3097, %v2054
        %v3106 = vadd.f32 %v3098, %v2055
        %v3107 = vadd.f32 %v3099, %v2056
        %v3108 = vadd.f32 %v3100, %v2057
        %v3109 = vmax.f32 %v3101, 0.0
        %v3110 = vmax.f32 %v3102, 0.0
        %v3111 = vmax.f32 %v3103, 0.0
        %v3112 = vmax.f32 %v3104, 0.0
        %v3113 = vmax.f32 %v3105, 0.0
        %v3114 = vmax.f32 %v3106, 0.0
        %v3115 = vmax.f32 %v3107, 0.0
        %v3116 = vmax.f32 %v3108, 0.0
        %v3117 = vld [vmem:[%s8] sm:$0xff]
        %v3118 = vld [vmem:[%s8 + $0x8] sm:$0xff]
        %v3119 = vld [vmem:[%s8 + $0x10] sm:$0xff]
        %v3120 = vld [vmem:[%s8 + $0x18] sm:$0xff]
        %s3121 = scalar_lea.vmem %s8, 32
        %v3122 = vld [vmem:[%s3121] sm:$0xff]
        %v3123 = vld [vmem:[%s3121 + $0x8] sm:$0xff]
        %v3124 = vld [vmem:[%s3121 + $0x10] sm:$0xff]
        %v3125 = vld [vmem:[%s3121 + $0x18] sm:$0xff]
        %vm3126 = vcmask 130048
        %v3128 = vsel %vm3126, %v3122, 0
        %v3131 = vsel %vm3126, %v3123, 0
        %v3134 = vsel %vm3126, %v3124, 0
        %v3137 = vsel %vm3126, %v3125, 0
        %3139 = vmatpush.msra.mxu0 0.0
        %3140 = vmatpush.msra.mxu0 0.0
        %3141 = vmatpush.msra.mxu0 0.0
        %3142 = vmatpush.msra.mxu0 0.0
        %3143 = vmatpush.msra.mxu0 0.0
        %3144 = vmatpush.msra.mxu0 0.0
        %3145 = vmatpush.msra.mxu0 0.0
        %3146 = vmatpush.msra.mxu0 0.0
        %3147 = vmatpush.msra.mxu0 0.0
        %3148 = vmatpush.msra.mxu0 0.0
        %3149 = vmatpush.msra.mxu0 0.0
        %3150 = vmatpush.msra.mxu0 0.0
        %3151 = vmatpush.msra.mxu0 0.0
        %3152 = vmatpush.msra.mxu0 0.0
        %3153 = vmatpush.msra.mxu0 %v3113
        %3154 = vmatpush.msra.mxu0 %v3109
        %3155 = vmatmul.f32.gmra.mxu0 %v3128
        %v3156 = vpop.f32.mrf.mxu0
        %v3157 = vadd.f32 0.0, %v3156
        %3158 = vmatmul.f32.gmra.mxu0 %v3131
        %v3159 = vpop.f32.mrf.mxu0
        %v3160 = vadd.f32 0.0, %v3159
        %3161 = vmatmul.f32.gmra.mxu0 %v3134
        %v3162 = vpop.f32.mrf.mxu0
        %v3163 = vadd.f32 0.0, %v3162
        %3164 = vmatmul.f32.gmra.mxu0 %v3137
        %v3165 = vpop.f32.mrf.mxu0
        %v3166 = vadd.f32 0.0, %v3165
        %3167 = vdwg.mxu0
        %3168 = vmatpush.msra.mxu0 0.0
        %3169 = vmatpush.msra.mxu0 0.0
        %3170 = vmatpush.msra.mxu0 0.0
        %3171 = vmatpush.msra.mxu0 0.0
        %3172 = vmatpush.msra.mxu0 0.0
        %3173 = vmatpush.msra.mxu0 0.0
        %3174 = vmatpush.msra.mxu0 0.0
        %3175 = vmatpush.msra.mxu0 0.0
        %3176 = vmatpush.msra.mxu0 0.0
        %3177 = vmatpush.msra.mxu0 0.0
        %3178 = vmatpush.msra.mxu0 0.0
        %3179 = vmatpush.msra.mxu0 0.0
        %3180 = vmatpush.msra.mxu0 0.0
        %3181 = vmatpush.msra.mxu0 0.0
        %3182 = vmatpush.msra.mxu0 %v3114
        %3183 = vmatpush.msra.mxu0 %v3110
        %3184 = vmatmul.f32.gmra.mxu0 %v3128
        %v3185 = vpop.f32.mrf.mxu0
        %v3186 = vadd.f32 0.0, %v3185
        %3187 = vmatmul.f32.gmra.mxu0 %v3131
        %v3188 = vpop.f32.mrf.mxu0
        %v3189 = vadd.f32 0.0, %v3188
        %3190 = vmatmul.f32.gmra.mxu0 %v3134
        %v3191 = vpop.f32.mrf.mxu0
        %v3192 = vadd.f32 0.0, %v3191
        %3193 = vmatmul.f32.gmra.mxu0 %v3137
        %v3194 = vpop.f32.mrf.mxu0
        %v3195 = vadd.f32 0.0, %v3194
        %3196 = vdwg.mxu0
        %3197 = vmatpush.msra.mxu0 0.0
        %3198 = vmatpush.msra.mxu0 0.0
        %3199 = vmatpush.msra.mxu0 0.0
        %3200 = vmatpush.msra.mxu0 0.0
        %3201 = vmatpush.msra.mxu0 0.0
        %3202 = vmatpush.msra.mxu0 0.0
        %3203 = vmatpush.msra.mxu0 0.0
        %3204 = vmatpush.msra.mxu0 0.0
        %3205 = vmatpush.msra.mxu0 0.0
        %3206 = vmatpush.msra.mxu0 0.0
        %3207 = vmatpush.msra.mxu0 0.0
        %3208 = vmatpush.msra.mxu0 0.0
        %3209 = vmatpush.msra.mxu0 0.0
        %3210 = vmatpush.msra.mxu0 0.0
        %3211 = vmatpush.msra.mxu0 %v3115
        %3212 = vmatpush.msra.mxu0 %v3111
        %3213 = vmatmul.f32.gmra.mxu0 %v3128
        %v3214 = vpop.f32.mrf.mxu0
        %v3215 = vadd.f32 0.0, %v3214
        %3216 = vmatmul.f32.gmra.mxu0 %v3131
        %v3217 = vpop.f32.mrf.mxu0
        %v3218 = vadd.f32 0.0, %v3217
        %3219 = vmatmul.f32.gmra.mxu0 %v3134
        %v3220 = vpop.f32.mrf.mxu0
        %v3221 = vadd.f32 0.0, %v3220
        %3222 = vmatmul.f32.gmra.mxu0 %v3137
        %v3223 = vpop.f32.mrf.mxu0
        %v3224 = vadd.f32 0.0, %v3223
        %3225 = vdwg.mxu0
        %3226 = vmatpush.msra.mxu0 0.0
        %3227 = vmatpush.msra.mxu0 0.0
        %3228 = vmatpush.msra.mxu0 0.0
        %3229 = vmatpush.msra.mxu0 0.0
        %3230 = vmatpush.msra.mxu0 0.0
        %3231 = vmatpush.msra.mxu0 0.0
        %3232 = vmatpush.msra.mxu0 0.0
        %3233 = vmatpush.msra.mxu0 0.0
        %3234 = vmatpush.msra.mxu0 0.0
        %3235 = vmatpush.msra.mxu0 0.0
        %3236 = vmatpush.msra.mxu0 0.0
        %3237 = vmatpush.msra.mxu0 0.0
        %3238 = vmatpush.msra.mxu0 0.0
        %3239 = vmatpush.msra.mxu0 0.0
        %3240 = vmatpush.msra.mxu0 %v3116
        %3241 = vmatpush.msra.mxu0 %v3112
        %3242 = vmatmul.f32.gmra.mxu0 %v3128
        %v3243 = vpop.f32.mrf.mxu0
        %v3244 = vadd.f32 0.0, %v3243
        %3245 = vmatmul.f32.gmra.mxu0 %v3131
        %v3246 = vpop.f32.mrf.mxu0
        %v3247 = vadd.f32 0.0, %v3246
        %3248 = vmatmul.f32.gmra.mxu0 %v3134
        %v3249 = vpop.f32.mrf.mxu0
        %v3250 = vadd.f32 0.0, %v3249
        %3251 = vmatmul.f32.gmra.mxu0 %v3137
        %v3252 = vpop.f32.mrf.mxu0
        %v3253 = vadd.f32 0.0, %v3252
        %3254 = vdwg.mxu0
        %v3256 = vsel %vm3126, %v3117, 0
        %v3259 = vsel %vm3126, %v3118, 0
        %v3262 = vsel %vm3126, %v3119, 0
        %v3265 = vsel %vm3126, %v3120, 0
        %3267 = vmatpush.msra.mxu0 0.0
        %3268 = vmatpush.msra.mxu0 0.0
        %3269 = vmatpush.msra.mxu0 0.0
        %3270 = vmatpush.msra.mxu0 0.0
        %3271 = vmatpush.msra.mxu0 0.0
        %3272 = vmatpush.msra.mxu0 0.0
        %3273 = vmatpush.msra.mxu0 0.0
        %3274 = vmatpush.msra.mxu0 0.0
        %3275 = vmatpush.msra.mxu0 0.0
        %3276 = vmatpush.msra.mxu0 0.0
        %3277 = vmatpush.msra.mxu0 0.0
        %3278 = vmatpush.msra.mxu0 0.0
        %3279 = vmatpush.msra.mxu0 0.0
        %3280 = vmatpush.msra.mxu0 0.0
        %3281 = vmatpush.msra.mxu0 %v2074
        %3282 = vmatpush.msra.mxu0 %v2070
        %3283 = vmatmul.f32.gmra.mxu0 %v3256
        %v3284 = vpop.f32.mrf.mxu0
        %v3285 = vadd.f32 %v3157, %v3284
        %3286 = vmatmul.f32.gmra.mxu0 %v3259
        %v3287 = vpop.f32.mrf.mxu0
        %v3288 = vadd.f32 %v3160, %v3287
        %3289 = vmatmul.f32.gmra.mxu0 %v3262
        %v3290 = vpop.f32.mrf.mxu0
        %v3291 = vadd.f32 %v3163, %v3290
        %3292 = vmatmul.f32.gmra.mxu0 %v3265
        %v3293 = vpop.f32.mrf.mxu0
        %v3294 = vadd.f32 %v3166, %v3293
        %3295 = vdwg.mxu0
        %3296 = vmatpush.msra.mxu0 0.0
        %3297 = vmatpush.msra.mxu0 0.0
        %3298 = vmatpush.msra.mxu0 0.0
        %3299 = vmatpush.msra.mxu0 0.0
        %3300 = vmatpush.msra.mxu0 0.0
        %3301 = vmatpush.msra.mxu0 0.0
        %3302 = vmatpush.msra.mxu0 0.0
        %3303 = vmatpush.msra.mxu0 0.0
        %3304 = vmatpush.msra.mxu0 0.0
        %3305 = vmatpush.msra.mxu0 0.0
        %3306 = vmatpush.msra.mxu0 0.0
        %3307 = vmatpush.msra.mxu0 0.0
        %3308 = vmatpush.msra.mxu0 0.0
        %3309 = vmatpush.msra.mxu0 0.0
        %3310 = vmatpush.msra.mxu0 %v2075
        %3311 = vmatpush.msra.mxu0 %v2071
        %3312 = vmatmul.f32.gmra.mxu0 %v3256
        %v3313 = vpop.f32.mrf.mxu0
        %v3314 = vadd.f32 %v3186, %v3313
        %3315 = vmatmul.f32.gmra.mxu0 %v3259
        %v3316 = vpop.f32.mrf.mxu0
        %v3317 = vadd.f32 %v3189, %v3316
        %3318 = vmatmul.f32.gmra.mxu0 %v3262
        %v3319 = vpop.f32.mrf.mxu0
        %v3320 = vadd.f32 %v3192, %v3319
        %3321 = vmatmul.f32.gmra.mxu0 %v3265
        %v3322 = vpop.f32.mrf.mxu0
        %v3323 = vadd.f32 %v3195, %v3322
        %3324 = vdwg.mxu0
        %3325 = vmatpush.msra.mxu0 0.0
        %3326 = vmatpush.msra.mxu0 0.0
        %3327 = vmatpush.msra.mxu0 0.0
        %3328 = vmatpush.msra.mxu0 0.0
        %3329 = vmatpush.msra.mxu0 0.0
        %3330 = vmatpush.msra.mxu0 0.0
        %3331 = vmatpush.msra.mxu0 0.0
        %3332 = vmatpush.msra.mxu0 0.0
        %3333 = vmatpush.msra.mxu0 0.0
        %3334 = vmatpush.msra.mxu0 0.0
        %3335 = vmatpush.msra.mxu0 0.0
        %3336 = vmatpush.msra.mxu0 0.0
        %3337 = vmatpush.msra.mxu0 0.0
        %3338 = vmatpush.msra.mxu0 0.0
        %3339 = vmatpush.msra.mxu0 %v2076
        %3340 = vmatpush.msra.mxu0 %v2072
        %3341 = vmatmul.f32.gmra.mxu0 %v3256
        %v3342 = vpop.f32.mrf.mxu0
        %v3343 = vadd.f32 %v3215, %v3342
        %3344 = vmatmul.f32.gmra.mxu0 %v3259
        %v3345 = vpop.f32.mrf.mxu0
        %v3346 = vadd.f32 %v3218, %v3345
        %3347 = vmatmul.f32.gmra.mxu0 %v3262
        %v3348 = vpop.f32.mrf.mxu0
        %v3349 = vadd.f32 %v3221, %v3348
        %3350 = vmatmul.f32.gmra.mxu0 %v3265
        %v3351 = vpop.f32.mrf.mxu0
        %v3352 = vadd.f32 %v3224, %v3351
        %3353 = vdwg.mxu0
        %3354 = vmatpush.msra.mxu0 0.0
        %3355 = vmatpush.msra.mxu0 0.0
        %3356 = vmatpush.msra.mxu0 0.0
        %3357 = vmatpush.msra.mxu0 0.0
        %3358 = vmatpush.msra.mxu0 0.0
        %3359 = vmatpush.msra.mxu0 0.0
        %3360 = vmatpush.msra.mxu0 0.0
        %3361 = vmatpush.msra.mxu0 0.0
        %3362 = vmatpush.msra.mxu0 0.0
        %3363 = vmatpush.msra.mxu0 0.0
        %3364 = vmatpush.msra.mxu0 0.0
        %3365 = vmatpush.msra.mxu0 0.0
        %3366 = vmatpush.msra.mxu0 0.0
        %3367 = vmatpush.msra.mxu0 0.0
        %3368 = vmatpush.msra.mxu0 %v2077
        %3369 = vmatpush.msra.mxu0 %v2073
        %3370 = vmatmul.f32.gmra.mxu0 %v3256
        %v3371 = vpop.f32.mrf.mxu0
        %v3372 = vadd.f32 %v3244, %v3371
        %3373 = vmatmul.f32.gmra.mxu0 %v3259
        %v3374 = vpop.f32.mrf.mxu0
        %v3375 = vadd.f32 %v3247, %v3374
        %3376 = vmatmul.f32.gmra.mxu0 %v3262
        %v3377 = vpop.f32.mrf.mxu0
        %v3378 = vadd.f32 %v3250, %v3377
        %3379 = vmatmul.f32.gmra.mxu0 %v3265
        %v3380 = vpop.f32.mrf.mxu0
        %v3381 = vadd.f32 %v3253, %v3380
        %3382 = vdwg.mxu0
        %vm3383 = vcmp.lt.s32.totalorder %v968, 512
        %vm3384 = vmand %vm969, %vm3383
        %3385 = vst.msk [vmem:[#allocation4] ss:$8 sm:$0xf] %vm3384, 0.0
        %3386 = vst.msk [vmem:[#allocation4] ss:$8 sm:$0x0] %vm3384, 0.0
        %s3387 = scalar_lea.vmem [#allocation4], 129
        %3388 = vst.msk [vmem:[%s3387] ss:$8 sm:$0xf] %vm3384, 0.0
        %3389 = vst.msk [vmem:[%s3387] ss:$8 sm:$0x0] %vm3384, 0.0
        %v3406 = vrot.slane %v3285, 7
        %v3407 = vrot.slane %v3314, 7
        %v3408 = vrot.slane %v3343, 7
        %v3409 = vrot.slane %v3372, 7
        %v3410 = vrot.slane %v3288, 7
        %v3411 = vsel %vm981, %v3406, %v3410
        %v3412 = vrot.slane %v3317, 7
        %v3413 = vsel %vm981, %v3407, %v3412
        %v3414 = vrot.slane %v3346, 7
        %v3415 = vsel %vm981, %v3408, %v3414
        %v3416 = vrot.slane %v3375, 7
        %v3417 = vsel %vm981, %v3409, %v3416
        %v3418 = vrot.slane %v3291, 7
        %v3419 = vsel %vm981, %v3410, %v3418
        %v3420 = vrot.slane %v3320, 7
        %v3421 = vsel %vm981, %v3412, %v3420
        %v3422 = vrot.slane %v3349, 7
        %v3423 = vsel %vm981, %v3414, %v3422
        %v3424 = vrot.slane %v3378, 7
        %v3425 = vsel %vm981, %v3416, %v3424
        %v3426 = vrot.slane %v3294, 7
        %v3427 = vsel %vm981, %v3418, %v3426
        %v3428 = vrot.slane %v3323, 7
        %v3429 = vsel %vm981, %v3420, %v3428
        %v3430 = vrot.slane %v3352, 7
        %v3431 = vsel %vm981, %v3422, %v3430
        %v3432 = vrot.slane %v3381, 7
        %v3433 = vsel %vm981, %v3424, %v3432
        %3454 = vst [vmem:[#allocation4] sm:$0xfe] %v3406
        %3455 = vst [vmem:[#allocation4 + $0x8] sm:$0xfe] %v3407
        %3456 = vst [vmem:[#allocation4 + $0x10] sm:$0xfe] %v3408
        %3457 = vst [vmem:[#allocation4 + $0x18] sm:$0xfe] %v3409
        %3458 = vst [vmem:[#allocation4 + $0x20] sm:$0xff] %v3411
        %3459 = vst [vmem:[#allocation4 + $0x28] sm:$0xff] %v3413
        %3460 = vst [vmem:[#allocation4 + $0x30] sm:$0xff] %v3415
        %3461 = vst [vmem:[#allocation4 + $0x38] sm:$0xff] %v3417
        %3462 = vst [vmem:[#allocation4 + $0x40] sm:$0xff] %v3419
        %3463 = vst [vmem:[#allocation4 + $0x48] sm:$0xff] %v3421
        %3464 = vst [vmem:[#allocation4 + $0x50] sm:$0xff] %v3423
        %3465 = vst [vmem:[#allocation4 + $0x58] sm:$0xff] %v3425
        %3466 = vst [vmem:[#allocation4 + $0x60] sm:$0xff] %v3427
        %3467 = vst [vmem:[#allocation4 + $0x68] sm:$0xff] %v3429
        %3468 = vst [vmem:[#allocation4 + $0x70] sm:$0xff] %v3431
        %3469 = vst [vmem:[#allocation4 + $0x78] sm:$0xff] %v3433
        %3470 = vst [vmem:[#allocation4 + $0x80] sm:$0x1] %v3426
        %3471 = vst [vmem:[#allocation4 + $0x88] sm:$0x1] %v3428
        %3472 = vst [vmem:[#allocation4 + $0x90] sm:$0x1] %v3430
        %3473 = vst [vmem:[#allocation4 + $0x98] sm:$0x1] %v3432
        %v3474 = vld [vmem:[#allocation4] sm:$0xff]
        %v3475 = vld [vmem:[#allocation4 + $0x8] sm:$0xff]
        %v3476 = vld [vmem:[#allocation4 + $0x10] sm:$0xff]
        %v3477 = vld [vmem:[#allocation4 + $0x18] sm:$0xff]
        %v3478 = vld [vmem:[#allocation4 + $0x20] sm:$0xff]
        %v3479 = vld [vmem:[#allocation4 + $0x28] sm:$0xff]
        %v3480 = vld [vmem:[#allocation4 + $0x30] sm:$0xff]
        %v3481 = vld [vmem:[#allocation4 + $0x38] sm:$0xff]
        %v3482 = vld [vmem:[#allocation4 + $0x40] sm:$0xff]
        %v3483 = vld [vmem:[#allocation4 + $0x48] sm:$0xff]
        %v3484 = vld [vmem:[#allocation4 + $0x50] sm:$0xff]
        %v3485 = vld [vmem:[#allocation4 + $0x58] sm:$0xff]
        %v3486 = vld [vmem:[#allocation4 + $0x60] sm:$0xff]
        %v3487 = vld [vmem:[#allocation4 + $0x68] sm:$0xff]
        %v3488 = vld [vmem:[#allocation4 + $0x70] sm:$0xff]
        %v3489 = vld [vmem:[#allocation4 + $0x78] sm:$0xff]
        %v3490 = vpack.c.bf16 %v3478, %v3474
        %v3491 = vpack.c.bf16 %v3479, %v3475
        %v3492 = vpack.c.bf16 %v3480, %v3476
        %v3493 = vpack.c.bf16 %v3481, %v3477
        %v3494 = vpack.c.bf16 %v3486, %v3482
        %v3495 = vpack.c.bf16 %v3487, %v3483
        %v3496 = vpack.c.bf16 %v3488, %v3484
        %v3497 = vpack.c.bf16 %v3489, %v3485
        %v3498 = vld [vmem:[#allocation8] sm:$0xff]
        %v3499 = vld [vmem:[#allocation8 + $0x8] sm:$0xff]
        %v3500 = vld [vmem:[#allocation8 + $0x10] sm:$0xff]
        %v3501 = vld [vmem:[#allocation8 + $0x18] sm:$0xff]
        %v3502 = vld [vmem:[#allocation8 + $0x20] sm:$0xff]
        %v3503 = vld [vmem:[#allocation8 + $0x28] sm:$0xff]
        %v3504 = vld [vmem:[#allocation8 + $0x30] sm:$0xff]
        %v3505 = vld [vmem:[#allocation8 + $0x38] sm:$0xff]
        %v3506 = vld [vmem:[#allocation8 + $0x40] sm:$0xff]
        %v3507 = vld [vmem:[#allocation8 + $0x48] sm:$0xff]
        %v3508 = vld [vmem:[#allocation8 + $0x50] sm:$0xff]
        %v3509 = vld [vmem:[#allocation8 + $0x58] sm:$0xff]
        %v3510 = vld [vmem:[#allocation8 + $0x60] sm:$0xff]
        %v3511 = vld [vmem:[#allocation8 + $0x68] sm:$0xff]
        %v3512 = vld [vmem:[#allocation8 + $0x70] sm:$0xff]
        %v3513 = vld [vmem:[#allocation8 + $0x78] sm:$0xff]
        %v3514 = vld [vmem:[#allocation8 + $0x80] sm:$0xff]
        %v3515 = vld [vmem:[#allocation8 + $0x88] sm:$0xff]
        %v3516 = vld [vmem:[#allocation8 + $0x90] sm:$0xff]
        %v3517 = vld [vmem:[#allocation8 + $0x98] sm:$0xff]
        %v3518 = vld [vmem:[#allocation8 + $0xa0] sm:$0xff]
        %v3519 = vld [vmem:[#allocation8 + $0xa8] sm:$0xff]
        %v3520 = vld [vmem:[#allocation8 + $0xb0] sm:$0xff]
        %v3521 = vld [vmem:[#allocation8 + $0xb8] sm:$0xff]
        %v3522 = vld [vmem:[#allocation8 + $0xc0] sm:$0xff]
        %v3523 = vld [vmem:[#allocation8 + $0xc8] sm:$0xff]
        %v3524 = vld [vmem:[#allocation8 + $0xd0] sm:$0xff]
        %v3525 = vld [vmem:[#allocation8 + $0xd8] sm:$0xff]
        %v3526 = vld [vmem:[#allocation8 + $0xe0] sm:$0xff]
        %v3527 = vld [vmem:[#allocation8 + $0xe8] sm:$0xff]
        %v3528 = vld [vmem:[#allocation8 + $0xf0] sm:$0xff]
        %v3529 = vld [vmem:[#allocation8 + $0xf8] sm:$0xff]
        %v3530 = vld [vmem:[#allocation8 + $0x100] sm:$0xff]
        %v3531 = vld [vmem:[#allocation8 + $0x108] sm:$0xff]
        %v3532 = vld [vmem:[#allocation8 + $0x110] sm:$0xff]
        %v3533 = vld [vmem:[#allocation8 + $0x118] sm:$0xff]
        %v3534 = vld [vmem:[#allocation8 + $0x120] sm:$0xff]
        %v3535 = vld [vmem:[#allocation8 + $0x128] sm:$0xff]
        %v3536 = vld [vmem:[#allocation8 + $0x130] sm:$0xff]
        %v3537 = vld [vmem:[#allocation8 + $0x138] sm:$0xff]
        %v3538 = vld [vmem:[#allocation8 + $0x140] sm:$0xff]
        %v3539 = vld [vmem:[#allocation8 + $0x148] sm:$0xff]
        %v3540 = vld [vmem:[#allocation8 + $0x150] sm:$0xff]
        %v3541 = vld [vmem:[#allocation8 + $0x158] sm:$0xff]
        %v3542 = vld [vmem:[#allocation8 + $0x160] sm:$0xff]
        %v3543 = vld [vmem:[#allocation8 + $0x168] sm:$0xff]
        %v3544 = vld [vmem:[#allocation8 + $0x170] sm:$0xff]
        %v3545 = vld [vmem:[#allocation8 + $0x178] sm:$0xff]
        %v3546 = vld [vmem:[#allocation8 + $0x180] sm:$0xff]
        %v3547 = vld [vmem:[#allocation8 + $0x188] sm:$0xff]
        %v3548 = vld [vmem:[#allocation8 + $0x190] sm:$0xff]
        %v3549 = vld [vmem:[#allocation8 + $0x198] sm:$0xff]
        %v3550 = vld [vmem:[#allocation8 + $0x1a0] sm:$0xff]
        %v3551 = vld [vmem:[#allocation8 + $0x1a8] sm:$0xff]
        %v3552 = vld [vmem:[#allocation8 + $0x1b0] sm:$0xff]
        %v3553 = vld [vmem:[#allocation8 + $0x1b8] sm:$0xff]
        %v3554 = vld [vmem:[#allocation8 + $0x1c0] sm:$0xff]
        %v3555 = vld [vmem:[#allocation8 + $0x1c8] sm:$0xff]
        %v3556 = vld [vmem:[#allocation8 + $0x1d0] sm:$0xff]
        %v3557 = vld [vmem:[#allocation8 + $0x1d8] sm:$0xff]
        %v3558 = vld [vmem:[#allocation8 + $0x1e0] sm:$0xff]
        %v3559 = vld [vmem:[#allocation8 + $0x1e8] sm:$0xff]
        %v3560 = vld [vmem:[#allocation8 + $0x1f0] sm:$0xff]
        %v3561 = vld [vmem:[#allocation8 + $0x1f8] sm:$0xff]
        %v3562 = vld [vmem:[#allocation4] sm:$0xfe]
        %v3563 = vld [vmem:[#allocation4 + $0x8] sm:$0xfe]
        %v3564 = vld [vmem:[#allocation4 + $0x10] sm:$0xfe]
        %v3565 = vld [vmem:[#allocation4 + $0x18] sm:$0xfe]
        %v3566 = vld [vmem:[#allocation4 + $0x80] sm:$0x1]
        %v3567 = vld [vmem:[#allocation4 + $0x88] sm:$0x1]
        %v3568 = vld [vmem:[#allocation4 + $0x90] sm:$0x1]
        %v3569 = vld [vmem:[#allocation4 + $0x98] sm:$0x1]
        %v3570 = vpack.c.bf16 %v3478, %v3562
        %v3571 = vpack.c.bf16 %v3479, %v3563
        %v3572 = vpack.c.bf16 %v3480, %v3564
        %v3573 = vpack.c.bf16 %v3481, %v3565
        %v3574 = vpack.c.bf16 %v3566, %v3566
        %v3575 = vpack.c.bf16 %v3567, %v3567
        %v3576 = vpack.c.bf16 %v3568, %v3568
        %v3577 = vpack.c.bf16 %v3569, %v3569
        %s3578 = scalar_lea.vmem [#allocation8], 512
        %v3579 = vld [vmem:[%s3578] sm:$0xff]
        %v3580 = vld [vmem:[%s3578 + $0x8] sm:$0xff]
        %v3581 = vld [vmem:[%s3578 + $0x10] sm:$0xff]
        %v3582 = vld [vmem:[%s3578 + $0x18] sm:$0xff]
        %v3583 = vld [vmem:[%s3578 + $0x20] sm:$0xff]
        %v3584 = vld [vmem:[%s3578 + $0x28] sm:$0xff]
        %v3585 = vld [vmem:[%s3578 + $0x30] sm:$0xff]
        %v3586 = vld [vmem:[%s3578 + $0x38] sm:$0xff]
        %v3587 = vld [vmem:[%s3578 + $0x40] sm:$0xff]
        %v3588 = vld [vmem:[%s3578 + $0x48] sm:$0xff]
        %v3589 = vld [vmem:[%s3578 + $0x50] sm:$0xff]
        %v3590 = vld [vmem:[%s3578 + $0x58] sm:$0xff]
        %v3591 = vld [vmem:[%s3578 + $0x60] sm:$0xff]
        %v3592 = vld [vmem:[%s3578 + $0x68] sm:$0xff]
        %v3593 = vld [vmem:[%s3578 + $0x70] sm:$0xff]
        %v3594 = vld [vmem:[%s3578 + $0x78] sm:$0xff]
        %v3595 = vld [vmem:[%s3578 + $0x80] sm:$0xff]
        %v3596 = vld [vmem:[%s3578 + $0x88] sm:$0xff]
        %v3597 = vld [vmem:[%s3578 + $0x90] sm:$0xff]
        %v3598 = vld [vmem:[%s3578 + $0x98] sm:$0xff]
        %v3599 = vld [vmem:[%s3578 + $0xa0] sm:$0xff]
        %v3600 = vld [vmem:[%s3578 + $0xa8] sm:$0xff]
        %v3601 = vld [vmem:[%s3578 + $0xb0] sm:$0xff]
        %v3602 = vld [vmem:[%s3578 + $0xb8] sm:$0xff]
        %v3603 = vld [vmem:[%s3578 + $0xc0] sm:$0xff]
        %v3604 = vld [vmem:[%s3578 + $0xc8] sm:$0xff]
        %v3605 = vld [vmem:[%s3578 + $0xd0] sm:$0xff]
        %v3606 = vld [vmem:[%s3578 + $0xd8] sm:$0xff]
        %v3607 = vld [vmem:[%s3578 + $0xe0] sm:$0xff]
        %v3608 = vld [vmem:[%s3578 + $0xe8] sm:$0xff]
        %v3609 = vld [vmem:[%s3578 + $0xf0] sm:$0xff]
        %v3610 = vld [vmem:[%s3578 + $0xf8] sm:$0xff]
        %v3611 = vld [vmem:[%s3578 + $0x100] sm:$0xff]
        %v3612 = vld [vmem:[%s3578 + $0x108] sm:$0xff]
        %v3613 = vld [vmem:[%s3578 + $0x110] sm:$0xff]
        %v3614 = vld [vmem:[%s3578 + $0x118] sm:$0xff]
        %v3615 = vld [vmem:[%s3578 + $0x120] sm:$0xff]
        %v3616 = vld [vmem:[%s3578 + $0x128] sm:$0xff]
        %v3617 = vld [vmem:[%s3578 + $0x130] sm:$0xff]
        %v3618 = vld [vmem:[%s3578 + $0x138] sm:$0xff]
        %v3619 = vld [vmem:[%s3578 + $0x140] sm:$0xff]
        %v3620 = vld [vmem:[%s3578 + $0x148] sm:$0xff]
        %v3621 = vld [vmem:[%s3578 + $0x150] sm:$0xff]
        %v3622 = vld [vmem:[%s3578 + $0x158] sm:$0xff]
        %v3623 = vld [vmem:[%s3578 + $0x160] sm:$0xff]
        %v3624 = vld [vmem:[%s3578 + $0x168] sm:$0xff]
        %v3625 = vld [vmem:[%s3578 + $0x170] sm:$0xff]
        %v3626 = vld [vmem:[%s3578 + $0x178] sm:$0xff]
        %v3627 = vld [vmem:[%s3578 + $0x180] sm:$0xff]
        %v3628 = vld [vmem:[%s3578 + $0x188] sm:$0xff]
        %v3629 = vld [vmem:[%s3578 + $0x190] sm:$0xff]
        %v3630 = vld [vmem:[%s3578 + $0x198] sm:$0xff]
        %v3631 = vld [vmem:[%s3578 + $0x1a0] sm:$0xff]
        %v3632 = vld [vmem:[%s3578 + $0x1a8] sm:$0xff]
        %v3633 = vld [vmem:[%s3578 + $0x1b0] sm:$0xff]
        %v3634 = vld [vmem:[%s3578 + $0x1b8] sm:$0xff]
        %v3635 = vld [vmem:[%s3578 + $0x1c0] sm:$0xff]
        %v3636 = vld [vmem:[%s3578 + $0x1c8] sm:$0xff]
        %v3637 = vld [vmem:[%s3578 + $0x1d0] sm:$0xff]
        %v3638 = vld [vmem:[%s3578 + $0x1d8] sm:$0xff]
        %v3639 = vld [vmem:[%s3578 + $0x1e0] sm:$0xff]
        %v3640 = vld [vmem:[%s3578 + $0x1e8] sm:$0xff]
        %v3641 = vld [vmem:[%s3578 + $0x1f0] sm:$0xff]
        %v3642 = vld [vmem:[%s3578 + $0x1f8] sm:$0xff]
        %v3644 = vshrl.u32 %v3570, 16
        %v3646 = vshll.u32 %v3570, 16
        %v3648 = vrot.slane %v3646, 1
        %v3649 = vor.u32 %v3644, %v3648
        %v3651 = vshll.u32 %v3494, 16
        %v3653 = vrot.slane %v3651, 1
        %v3654 = vsel %vm1143, %v3649, %v3653
        %v3656 = vshrl.u32 %v3571, 16
        %v3658 = vshll.u32 %v3571, 16
        %v3660 = vrot.slane %v3658, 1
        %v3661 = vor.u32 %v3656, %v3660
        %v3663 = vshll.u32 %v3495, 16
        %v3665 = vrot.slane %v3663, 1
        %v3666 = vsel %vm1143, %v3661, %v3665
        %v3668 = vshrl.u32 %v3572, 16
        %v3670 = vshll.u32 %v3572, 16
        %v3672 = vrot.slane %v3670, 1
        %v3673 = vor.u32 %v3668, %v3672
        %v3675 = vshll.u32 %v3496, 16
        %v3677 = vrot.slane %v3675, 1
        %v3678 = vsel %vm1143, %v3673, %v3677
        %v3680 = vshrl.u32 %v3573, 16
        %v3682 = vshll.u32 %v3573, 16
        %v3684 = vrot.slane %v3682, 1
        %v3685 = vor.u32 %v3680, %v3684
        %v3687 = vshll.u32 %v3497, 16
        %v3689 = vrot.slane %v3687, 1
        %v3690 = vsel %vm1143, %v3685, %v3689
        %v3691 = vshrl.u32 %v3494, 16
        %v3693 = vor.u32 %v3691, %v3653
        %v3695 = vshll.u32 %v3574, 16
        %v3697 = vrot.slane %v3695, 1
        %v3698 = vsel %vm1143, %v3693, %v3697
        %v3699 = vshrl.u32 %v3495, 16
        %v3701 = vor.u32 %v3699, %v3665
        %v3703 = vshll.u32 %v3575, 16
        %v3705 = vrot.slane %v3703, 1
        %v3706 = vsel %vm1143, %v3701, %v3705
        %v3707 = vshrl.u32 %v3496, 16
        %v3709 = vor.u32 %v3707, %v3677
        %v3711 = vshll.u32 %v3576, 16
        %v3713 = vrot.slane %v3711, 1
        %v3714 = vsel %vm1143, %v3709, %v3713
        %v3715 = vshrl.u32 %v3497, 16
        %v3717 = vor.u32 %v3715, %v3689
        %v3719 = vshll.u32 %v3577, 16
        %v3721 = vrot.slane %v3719, 1
        %v3722 = vsel %vm1143, %v3717, %v3721
        %v3795 = vunpack.c.l.b16 %v3579
        %v3796 = vunpack.c.h.b16 %v3579
        %v3797 = vunpack.c.l.b16 %v3580
        %v3798 = vunpack.c.h.b16 %v3580
        %v3799 = vunpack.c.l.b16 %v3581
        %v3800 = vunpack.c.h.b16 %v3581
        %v3801 = vunpack.c.l.b16 %v3582
        %v3802 = vunpack.c.h.b16 %v3582
        %v3803 = vunpack.c.l.b16 %v3583
        %v3804 = vunpack.c.h.b16 %v3583
        %v3805 = vunpack.c.l.b16 %v3584
        %v3806 = vunpack.c.h.b16 %v3584
        %v3807 = vunpack.c.l.b16 %v3585
        %v3808 = vunpack.c.h.b16 %v3585
        %v3809 = vunpack.c.l.b16 %v3586
        %v3810 = vunpack.c.h.b16 %v3586
        %v3811 = vunpack.c.l.b16 %v3587
        %v3812 = vunpack.c.h.b16 %v3587
        %v3813 = vunpack.c.l.b16 %v3588
        %v3814 = vunpack.c.h.b16 %v3588
        %v3815 = vunpack.c.l.b16 %v3589
        %v3816 = vunpack.c.h.b16 %v3589
        %v3817 = vunpack.c.l.b16 %v3590
        %v3818 = vunpack.c.h.b16 %v3590
        %v3819 = vunpack.c.l.b16 %v3591
        %v3820 = vunpack.c.h.b16 %v3591
        %v3821 = vunpack.c.l.b16 %v3592
        %v3822 = vunpack.c.h.b16 %v3592
        %v3823 = vunpack.c.l.b16 %v3593
        %v3824 = vunpack.c.h.b16 %v3593
        %v3825 = vunpack.c.l.b16 %v3594
        %v3826 = vunpack.c.h.b16 %v3594
        %v3827 = vunpack.c.l.b16 %v3595
        %v3828 = vunpack.c.h.b16 %v3595
        %v3829 = vunpack.c.l.b16 %v3596
        %v3830 = vunpack.c.h.b16 %v3596
        %v3831 = vunpack.c.l.b16 %v3597
        %v3832 = vunpack.c.h.b16 %v3597
        %v3833 = vunpack.c.l.b16 %v3598
        %v3834 = vunpack.c.h.b16 %v3598
        %v3835 = vunpack.c.l.b16 %v3599
        %v3836 = vunpack.c.h.b16 %v3599
        %v3837 = vunpack.c.l.b16 %v3600
        %v3838 = vunpack.c.h.b16 %v3600
        %v3839 = vunpack.c.l.b16 %v3601
        %v3840 = vunpack.c.h.b16 %v3601
        %v3841 = vunpack.c.l.b16 %v3602
        %v3842 = vunpack.c.h.b16 %v3602
        %v3843 = vunpack.c.l.b16 %v3603
        %v3844 = vunpack.c.h.b16 %v3603
        %v3845 = vunpack.c.l.b16 %v3604
        %v3846 = vunpack.c.h.b16 %v3604
        %v3847 = vunpack.c.l.b16 %v3605
        %v3848 = vunpack.c.h.b16 %v3605
        %v3849 = vunpack.c.l.b16 %v3606
        %v3850 = vunpack.c.h.b16 %v3606
        %v3851 = vunpack.c.l.b16 %v3607
        %v3852 = vunpack.c.h.b16 %v3607
        %v3853 = vunpack.c.l.b16 %v3608
        %v3854 = vunpack.c.h.b16 %v3608
        %v3855 = vunpack.c.l.b16 %v3609
        %v3856 = vunpack.c.h.b16 %v3609
        %v3857 = vunpack.c.l.b16 %v3610
        %v3858 = vunpack.c.h.b16 %v3610
        %v3859 = vunpack.c.l.b16 %v3611
        %v3860 = vunpack.c.h.b16 %v3611
        %v3861 = vunpack.c.l.b16 %v3612
        %v3862 = vunpack.c.h.b16 %v3612
        %v3863 = vunpack.c.l.b16 %v3613
        %v3864 = vunpack.c.h.b16 %v3613
        %v3865 = vunpack.c.l.b16 %v3614
        %v3866 = vunpack.c.h.b16 %v3614
        %v3867 = vunpack.c.l.b16 %v3615
        %v3868 = vunpack.c.h.b16 %v3615
        %v3869 = vunpack.c.l.b16 %v3616
        %v3870 = vunpack.c.h.b16 %v3616
        %v3871 = vunpack.c.l.b16 %v3617
        %v3872 = vunpack.c.h.b16 %v3617
        %v3873 = vunpack.c.l.b16 %v3618
        %v3874 = vunpack.c.h.b16 %v3618
        %v3875 = vunpack.c.l.b16 %v3619
        %v3876 = vunpack.c.h.b16 %v3619
        %v3877 = vunpack.c.l.b16 %v3620
        %v3878 = vunpack.c.h.b16 %v3620
        %v3879 = vunpack.c.l.b16 %v3621
        %v3880 = vunpack.c.h.b16 %v3621
        %v3881 = vunpack.c.l.b16 %v3622
        %v3882 = vunpack.c.h.b16 %v3622
        %v3883 = vunpack.c.l.b16 %v3623
        %v3884 = vunpack.c.h.b16 %v3623
        %v3885 = vunpack.c.l.b16 %v3624
        %v3886 = vunpack.c.h.b16 %v3624
        %v3887 = vunpack.c.l.b16 %v3625
        %v3888 = vunpack.c.h.b16 %v3625
        %v3889 = vunpack.c.l.b16 %v3626
        %v3890 = vunpack.c.h.b16 %v3626
        %v3891 = vunpack.c.l.b16 %v3627
        %v3892 = vunpack.c.h.b16 %v3627
        %v3893 = vunpack.c.l.b16 %v3628
        %v3894 = vunpack.c.h.b16 %v3628
        %v3895 = vunpack.c.l.b16 %v3629
        %v3896 = vunpack.c.h.b16 %v3629
        %v3897 = vunpack.c.l.b16 %v3630
        %v3898 = vunpack.c.h.b16 %v3630
        %v3899 = vunpack.c.l.b16 %v3631
        %v3900 = vunpack.c.h.b16 %v3631
        %v3901 = vunpack.c.l.b16 %v3632
        %v3902 = vunpack.c.h.b16 %v3632
        %v3903 = vunpack.c.l.b16 %v3633
        %v3904 = vunpack.c.h.b16 %v3633
        %v3905 = vunpack.c.l.b16 %v3634
        %v3906 = vunpack.c.h.b16 %v3634
        %v3907 = vunpack.c.l.b16 %v3635
        %v3908 = vunpack.c.h.b16 %v3635
        %v3909 = vunpack.c.l.b16 %v3636
        %v3910 = vunpack.c.h.b16 %v3636
        %v3911 = vunpack.c.l.b16 %v3637
        %v3912 = vunpack.c.h.b16 %v3637
        %v3913 = vunpack.c.l.b16 %v3638
        %v3914 = vunpack.c.h.b16 %v3638
        %v3915 = vunpack.c.l.b16 %v3639
        %v3916 = vunpack.c.h.b16 %v3639
        %v3917 = vunpack.c.l.b16 %v3640
        %v3918 = vunpack.c.h.b16 %v3640
        %v3919 = vunpack.c.l.b16 %v3641
        %v3920 = vunpack.c.h.b16 %v3641
        %v3921 = vunpack.c.l.b16 %v3642
        %v3922 = vunpack.c.h.b16 %v3642
        %v3923 = vpack.c.b16 %v3797, %v3795
        %v3924 = vpack.c.b16 %v3798, %v3796
        %v3925 = vpack.c.b16 %v3801, %v3799
        %v3926 = vpack.c.b16 %v3802, %v3800
        %v3927 = vpack.c.b16 %v3805, %v3803
        %v3928 = vpack.c.b16 %v3806, %v3804
        %v3929 = vpack.c.b16 %v3809, %v3807
        %v3930 = vpack.c.b16 %v3810, %v3808
        %v3931 = vpack.c.b16 %v3813, %v3811
        %v3932 = vpack.c.b16 %v3814, %v3812
        %v3933 = vpack.c.b16 %v3817, %v3815
        %v3934 = vpack.c.b16 %v3818, %v3816
        %v3935 = vpack.c.b16 %v3821, %v3819
        %v3936 = vpack.c.b16 %v3822, %v3820
        %v3937 = vpack.c.b16 %v3825, %v3823
        %v3938 = vpack.c.b16 %v3826, %v3824
        %v3939 = vpack.c.b16 %v3829, %v3827
        %v3940 = vpack.c.b16 %v3830, %v3828
        %v3941 = vpack.c.b16 %v3833, %v3831
        %v3942 = vpack.c.b16 %v3834, %v3832
        %v3943 = vpack.c.b16 %v3837, %v3835
        %v3944 = vpack.c.b16 %v3838, %v3836
        %v3945 = vpack.c.b16 %v3841, %v3839
        %v3946 = vpack.c.b16 %v3842, %v3840
        %v3947 = vpack.c.b16 %v3845, %v3843
        %v3948 = vpack.c.b16 %v3846, %v3844
        %v3949 = vpack.c.b16 %v3849, %v3847
        %v3950 = vpack.c.b16 %v3850, %v3848
        %v3951 = vpack.c.b16 %v3853, %v3851
        %v3952 = vpack.c.b16 %v3854, %v3852
        %v3953 = vpack.c.b16 %v3857, %v3855
        %v3954 = vpack.c.b16 %v3858, %v3856
        %v3955 = vpack.c.b16 %v3861, %v3859
        %v3956 = vpack.c.b16 %v3862, %v3860
        %v3957 = vpack.c.b16 %v3865, %v3863
        %v3958 = vpack.c.b16 %v3866, %v3864
        %v3959 = vpack.c.b16 %v3869, %v3867
        %v3960 = vpack.c.b16 %v3870, %v3868
        %v3961 = vpack.c.b16 %v3873, %v3871
        %v3962 = vpack.c.b16 %v3874, %v3872
        %v3963 = vpack.c.b16 %v3877, %v3875
        %v3964 = vpack.c.b16 %v3878, %v3876
        %v3965 = vpack.c.b16 %v3881, %v3879
        %v3966 = vpack.c.b16 %v3882, %v3880
        %v3967 = vpack.c.b16 %v3885, %v3883
        %v3968 = vpack.c.b16 %v3886, %v3884
        %v3969 = vpack.c.b16 %v3889, %v3887
        %v3970 = vpack.c.b16 %v3890, %v3888
        %v3971 = vpack.c.b16 %v3893, %v3891
        %v3972 = vpack.c.b16 %v3894, %v3892
        %v3973 = vpack.c.b16 %v3897, %v3895
        %v3974 = vpack.c.b16 %v3898, %v3896
        %v3975 = vpack.c.b16 %v3901, %v3899
        %v3976 = vpack.c.b16 %v3902, %v3900
        %v3977 = vpack.c.b16 %v3905, %v3903
        %v3978 = vpack.c.b16 %v3906, %v3904
        %v3979 = vpack.c.b16 %v3909, %v3907
        %v3980 = vpack.c.b16 %v3910, %v3908
        %v3981 = vpack.c.b16 %v3913, %v3911
        %v3982 = vpack.c.b16 %v3914, %v3912
        %v3983 = vpack.c.b16 %v3917, %v3915
        %v3984 = vpack.c.b16 %v3918, %v3916
        %v3985 = vpack.c.b16 %v3921, %v3919
        %v3986 = vpack.c.b16 %v3922, %v3920
        %4051 = vmatpush.bf16.msra.mxu0 %v3937
        %4052 = vmatpush.bf16.msra.mxu0 %v3935
        %4053 = vmatpush.bf16.msra.mxu0 %v3933
        %4054 = vmatpush.bf16.msra.mxu0 %v3931
        %4055 = vmatpush.bf16.msra.mxu0 %v3929
        %4056 = vmatpush.bf16.msra.mxu0 %v3927
        %4057 = vmatpush.bf16.msra.mxu0 %v3925
        %4058 = vmatpush.bf16.msra.mxu0 %v3923
        %4059 = vmatmul.bf16.gmra.mxu0 %v3654
        %v4060 = vpop.f32.mrf.mxu0
        %v4061 = vadd.f32 0.0, %v4060
        %v4062 = vpop.f32.mrf.mxu0
        %v4063 = vadd.f32 0.0, %v4062
        %4064 = vmatmul.bf16.gmra.mxu0 %v3698
        %v4065 = vpop.f32.mrf.mxu0
        %v4066 = vadd.f32 0.0, %v4065
        %v4067 = vpop.f32.mrf.mxu0
        %v4068 = vadd.f32 0.0, %v4067
        %4069 = vdwg.mxu0
        %4070 = vmatpush.bf16.msra.mxu0 %v3953
        %4071 = vmatpush.bf16.msra.mxu0 %v3951
        %4072 = vmatpush.bf16.msra.mxu0 %v3949
        %4073 = vmatpush.bf16.msra.mxu0 %v3947
        %4074 = vmatpush.bf16.msra.mxu0 %v3945
        %4075 = vmatpush.bf16.msra.mxu0 %v3943
        %4076 = vmatpush.bf16.msra.mxu0 %v3941
        %4077 = vmatpush.bf16.msra.mxu0 %v3939
        %4078 = vmatmul.bf16.gmra.mxu0 %v3666
        %v4079 = vpop.f32.mrf.mxu0
        %v4080 = vadd.f32 %v4061, %v4079
        %v4081 = vpop.f32.mrf.mxu0
        %v4082 = vadd.f32 %v4063, %v4081
        %4083 = vmatmul.bf16.gmra.mxu0 %v3706
        %v4084 = vpop.f32.mrf.mxu0
        %v4085 = vadd.f32 %v4066, %v4084
        %v4086 = vpop.f32.mrf.mxu0
        %v4087 = vadd.f32 %v4068, %v4086
        %4088 = vdwg.mxu0
        %4089 = vmatpush.bf16.msra.mxu0 %v3969
        %4090 = vmatpush.bf16.msra.mxu0 %v3967
        %4091 = vmatpush.bf16.msra.mxu0 %v3965
        %4092 = vmatpush.bf16.msra.mxu0 %v3963
        %4093 = vmatpush.bf16.msra.mxu0 %v3961
        %4094 = vmatpush.bf16.msra.mxu0 %v3959
        %4095 = vmatpush.bf16.msra.mxu0 %v3957
        %4096 = vmatpush.bf16.msra.mxu0 %v3955
        %4097 = vmatmul.bf16.gmra.mxu0 %v3678
        %v4098 = vpop.f32.mrf.mxu0
        %v4099 = vadd.f32 %v4080, %v4098
        %v4100 = vpop.f32.mrf.mxu0
        %v4101 = vadd.f32 %v4082, %v4100
        %4102 = vmatmul.bf16.gmra.mxu0 %v3714
        %v4103 = vpop.f32.mrf.mxu0
        %v4104 = vadd.f32 %v4085, %v4103
        %v4105 = vpop.f32.mrf.mxu0
        %v4106 = vadd.f32 %v4087, %v4105
        %4107 = vdwg.mxu0
        %4108 = vmatpush.bf16.msra.mxu0 %v3985
        %4109 = vmatpush.bf16.msra.mxu0 %v3983
        %4110 = vmatpush.bf16.msra.mxu0 %v3981
        %4111 = vmatpush.bf16.msra.mxu0 %v3979
        %4112 = vmatpush.bf16.msra.mxu0 %v3977
        %4113 = vmatpush.bf16.msra.mxu0 %v3975
        %4114 = vmatpush.bf16.msra.mxu0 %v3973
        %4115 = vmatpush.bf16.msra.mxu0 %v3971
        %4116 = vmatmul.bf16.gmra.mxu0 %v3690
        %v4117 = vpop.f32.mrf.mxu0
        %v4118 = vadd.f32 %v4099, %v4117
        %v4119 = vpop.f32.mrf.mxu0
        %v4120 = vadd.f32 %v4101, %v4119
        %4121 = vmatmul.bf16.gmra.mxu0 %v3722
        %v4122 = vpop.f32.mrf.mxu0
        %v4123 = vadd.f32 %v4104, %v4122
        %v4124 = vpop.f32.mrf.mxu0
        %v4125 = vadd.f32 %v4106, %v4124
        %4126 = vdwg.mxu0
        %4127 = vmatpush.bf16.msra.mxu0 %v3938
        %4128 = vmatpush.bf16.msra.mxu0 %v3936
        %4129 = vmatpush.bf16.msra.mxu0 %v3934
        %4130 = vmatpush.bf16.msra.mxu0 %v3932
        %4131 = vmatpush.bf16.msra.mxu0 %v3930
        %4132 = vmatpush.bf16.msra.mxu0 %v3928
        %4133 = vmatpush.bf16.msra.mxu0 %v3926
        %4134 = vmatpush.bf16.msra.mxu0 %v3924
        %4135 = vmatmul.bf16.gmra.mxu0 %v3654
        %v4136 = vpop.f32.mrf.mxu0
        %v4137 = vadd.f32 0.0, %v4136
        %v4138 = vpop.f32.mrf.mxu0
        %v4139 = vadd.f32 0.0, %v4138
        %4140 = vmatmul.bf16.gmra.mxu0 %v3698
        %v4141 = vpop.f32.mrf.mxu0
        %v4142 = vadd.f32 0.0, %v4141
        %v4143 = vpop.f32.mrf.mxu0
        %v4144 = vadd.f32 0.0, %v4143
        %4145 = vdwg.mxu0
        %4146 = vmatpush.bf16.msra.mxu0 %v3954
        %4147 = vmatpush.bf16.msra.mxu0 %v3952
        %4148 = vmatpush.bf16.msra.mxu0 %v3950
        %4149 = vmatpush.bf16.msra.mxu0 %v3948
        %4150 = vmatpush.bf16.msra.mxu0 %v3946
        %4151 = vmatpush.bf16.msra.mxu0 %v3944
        %4152 = vmatpush.bf16.msra.mxu0 %v3942
        %4153 = vmatpush.bf16.msra.mxu0 %v3940
        %4154 = vmatmul.bf16.gmra.mxu0 %v3666
        %v4155 = vpop.f32.mrf.mxu0
        %v4156 = vadd.f32 %v4137, %v4155
        %v4157 = vpop.f32.mrf.mxu0
        %v4158 = vadd.f32 %v4139, %v4157
        %4159 = vmatmul.bf16.gmra.mxu0 %v3706
        %v4160 = vpop.f32.mrf.mxu0
        %v4161 = vadd.f32 %v4142, %v4160
        %v4162 = vpop.f32.mrf.mxu0
        %v4163 = vadd.f32 %v4144, %v4162
        %4164 = vdwg.mxu0
        %4165 = vmatpush.bf16.msra.mxu0 %v3970
        %4166 = vmatpush.bf16.msra.mxu0 %v3968
        %4167 = vmatpush.bf16.msra.mxu0 %v3966
        %4168 = vmatpush.bf16.msra.mxu0 %v3964
        %4169 = vmatpush.bf16.msra.mxu0 %v3962
        %4170 = vmatpush.bf16.msra.mxu0 %v3960
        %4171 = vmatpush.bf16.msra.mxu0 %v3958
        %4172 = vmatpush.bf16.msra.mxu0 %v3956
        %4173 = vmatmul.bf16.gmra.mxu0 %v3678
        %v4174 = vpop.f32.mrf.mxu0
        %v4175 = vadd.f32 %v4156, %v4174
        %v4176 = vpop.f32.mrf.mxu0
        %v4177 = vadd.f32 %v4158, %v4176
        %4178 = vmatmul.bf16.gmra.mxu0 %v3714
        %v4179 = vpop.f32.mrf.mxu0
        %v4180 = vadd.f32 %v4161, %v4179
        %v4181 = vpop.f32.mrf.mxu0
        %v4182 = vadd.f32 %v4163, %v4181
        %4183 = vdwg.mxu0
        %4184 = vmatpush.bf16.msra.mxu0 %v3986
        %4185 = vmatpush.bf16.msra.mxu0 %v3984
        %4186 = vmatpush.bf16.msra.mxu0 %v3982
        %4187 = vmatpush.bf16.msra.mxu0 %v3980
        %4188 = vmatpush.bf16.msra.mxu0 %v3978
        %4189 = vmatpush.bf16.msra.mxu0 %v3976
        %4190 = vmatpush.bf16.msra.mxu0 %v3974
        %4191 = vmatpush.bf16.msra.mxu0 %v3972
        %4192 = vmatmul.bf16.gmra.mxu0 %v3690
        %v4193 = vpop.f32.mrf.mxu0
        %v4194 = vadd.f32 %v4175, %v4193
        %v4195 = vpop.f32.mrf.mxu0
        %v4196 = vadd.f32 %v4177, %v4195
        %4197 = vmatmul.bf16.gmra.mxu0 %v3722
        %v4198 = vpop.f32.mrf.mxu0
        %v4199 = vadd.f32 %v4180, %v4198
        %v4200 = vpop.f32.mrf.mxu0
        %v4201 = vadd.f32 %v4182, %v4200
        %4202 = vdwg.mxu0
        %v4267 = vunpack.c.l.b16 %v3498
        %v4268 = vunpack.c.h.b16 %v3498
        %v4269 = vunpack.c.l.b16 %v3499
        %v4270 = vunpack.c.h.b16 %v3499
        %v4271 = vunpack.c.l.b16 %v3500
        %v4272 = vunpack.c.h.b16 %v3500
        %v4273 = vunpack.c.l.b16 %v3501
        %v4274 = vunpack.c.h.b16 %v3501
        %v4275 = vunpack.c.l.b16 %v3502
        %v4276 = vunpack.c.h.b16 %v3502
        %v4277 = vunpack.c.l.b16 %v3503
        %v4278 = vunpack.c.h.b16 %v3503
        %v4279 = vunpack.c.l.b16 %v3504
        %v4280 = vunpack.c.h.b16 %v3504
        %v4281 = vunpack.c.l.b16 %v3505
        %v4282 = vunpack.c.h.b16 %v3505
        %v4283 = vunpack.c.l.b16 %v3506
        %v4284 = vunpack.c.h.b16 %v3506
        %v4285 = vunpack.c.l.b16 %v3507
        %v4286 = vunpack.c.h.b16 %v3507
        %v4287 = vunpack.c.l.b16 %v3508
        %v4288 = vunpack.c.h.b16 %v3508
        %v4289 = vunpack.c.l.b16 %v3509
        %v4290 = vunpack.c.h.b16 %v3509
        %v4291 = vunpack.c.l.b16 %v3510
        %v4292 = vunpack.c.h.b16 %v3510
        %v4293 = vunpack.c.l.b16 %v3511
        %v4294 = vunpack.c.h.b16 %v3511
        %v4295 = vunpack.c.l.b16 %v3512
        %v4296 = vunpack.c.h.b16 %v3512
        %v4297 = vunpack.c.l.b16 %v3513
        %v4298 = vunpack.c.h.b16 %v3513
        %v4299 = vunpack.c.l.b16 %v3514
        %v4300 = vunpack.c.h.b16 %v3514
        %v4301 = vunpack.c.l.b16 %v3515
        %v4302 = vunpack.c.h.b16 %v3515
        %v4303 = vunpack.c.l.b16 %v3516
        %v4304 = vunpack.c.h.b16 %v3516
        %v4305 = vunpack.c.l.b16 %v3517
        %v4306 = vunpack.c.h.b16 %v3517
        %v4307 = vunpack.c.l.b16 %v3518
        %v4308 = vunpack.c.h.b16 %v3518
        %v4309 = vunpack.c.l.b16 %v3519
        %v4310 = vunpack.c.h.b16 %v3519
        %v4311 = vunpack.c.l.b16 %v3520
        %v4312 = vunpack.c.h.b16 %v3520
        %v4313 = vunpack.c.l.b16 %v3521
        %v4314 = vunpack.c.h.b16 %v3521
        %v4315 = vunpack.c.l.b16 %v3522
        %v4316 = vunpack.c.h.b16 %v3522
        %v4317 = vunpack.c.l.b16 %v3523
        %v4318 = vunpack.c.h.b16 %v3523
        %v4319 = vunpack.c.l.b16 %v3524
        %v4320 = vunpack.c.h.b16 %v3524
        %v4321 = vunpack.c.l.b16 %v3525
        %v4322 = vunpack.c.h.b16 %v3525
        %v4323 = vunpack.c.l.b16 %v3526
        %v4324 = vunpack.c.h.b16 %v3526
        %v4325 = vunpack.c.l.b16 %v3527
        %v4326 = vunpack.c.h.b16 %v3527
        %v4327 = vunpack.c.l.b16 %v3528
        %v4328 = vunpack.c.h.b16 %v3528
        %v4329 = vunpack.c.l.b16 %v3529
        %v4330 = vunpack.c.h.b16 %v3529
        %v4331 = vunpack.c.l.b16 %v3530
        %v4332 = vunpack.c.h.b16 %v3530
        %v4333 = vunpack.c.l.b16 %v3531
        %v4334 = vunpack.c.h.b16 %v3531
        %v4335 = vunpack.c.l.b16 %v3532
        %v4336 = vunpack.c.h.b16 %v3532
        %v4337 = vunpack.c.l.b16 %v3533
        %v4338 = vunpack.c.h.b16 %v3533
        %v4339 = vunpack.c.l.b16 %v3534
        %v4340 = vunpack.c.h.b16 %v3534
        %v4341 = vunpack.c.l.b16 %v3535
        %v4342 = vunpack.c.h.b16 %v3535
        %v4343 = vunpack.c.l.b16 %v3536
        %v4344 = vunpack.c.h.b16 %v3536
        %v4345 = vunpack.c.l.b16 %v3537
        %v4346 = vunpack.c.h.b16 %v3537
        %v4347 = vunpack.c.l.b16 %v3538
        %v4348 = vunpack.c.h.b16 %v3538
        %v4349 = vunpack.c.l.b16 %v3539
        %v4350 = vunpack.c.h.b16 %v3539
        %v4351 = vunpack.c.l.b16 %v3540
        %v4352 = vunpack.c.h.b16 %v3540
        %v4353 = vunpack.c.l.b16 %v3541
        %v4354 = vunpack.c.h.b16 %v3541
        %v4355 = vunpack.c.l.b16 %v3542
        %v4356 = vunpack.c.h.b16 %v3542
        %v4357 = vunpack.c.l.b16 %v3543
        %v4358 = vunpack.c.h.b16 %v3543
        %v4359 = vunpack.c.l.b16 %v3544
        %v4360 = vunpack.c.h.b16 %v3544
        %v4361 = vunpack.c.l.b16 %v3545
        %v4362 = vunpack.c.h.b16 %v3545
        %v4363 = vunpack.c.l.b16 %v3546
        %v4364 = vunpack.c.h.b16 %v3546
        %v4365 = vunpack.c.l.b16 %v3547
        %v4366 = vunpack.c.h.b16 %v3547
        %v4367 = vunpack.c.l.b16 %v3548
        %v4368 = vunpack.c.h.b16 %v3548
        %v4369 = vunpack.c.l.b16 %v3549
        %v4370 = vunpack.c.h.b16 %v3549
        %v4371 = vunpack.c.l.b16 %v3550
        %v4372 = vunpack.c.h.b16 %v3550
        %v4373 = vunpack.c.l.b16 %v3551
        %v4374 = vunpack.c.h.b16 %v3551
        %v4375 = vunpack.c.l.b16 %v3552
        %v4376 = vunpack.c.h.b16 %v3552
        %v4377 = vunpack.c.l.b16 %v3553
        %v4378 = vunpack.c.h.b16 %v3553
        %v4379 = vunpack.c.l.b16 %v3554
        %v4380 = vunpack.c.h.b16 %v3554
        %v4381 = vunpack.c.l.b16 %v3555
        %v4382 = vunpack.c.h.b16 %v3555
        %v4383 = vunpack.c.l.b16 %v3556
        %v4384 = vunpack.c.h.b16 %v3556
        %v4385 = vunpack.c.l.b16 %v3557
        %v4386 = vunpack.c.h.b16 %v3557
        %v4387 = vunpack.c.l.b16 %v3558
        %v4388 = vunpack.c.h.b16 %v3558
        %v4389 = vunpack.c.l.b16 %v3559
        %v4390 = vunpack.c.h.b16 %v3559
        %v4391 = vunpack.c.l.b16 %v3560
        %v4392 = vunpack.c.h.b16 %v3560
        %v4393 = vunpack.c.l.b16 %v3561
        %v4394 = vunpack.c.h.b16 %v3561
        %v4395 = vpack.c.b16 %v4269, %v4267
        %v4396 = vpack.c.b16 %v4270, %v4268
        %v4397 = vpack.c.b16 %v4273, %v4271
        %v4398 = vpack.c.b16 %v4274, %v4272
        %v4399 = vpack.c.b16 %v4277, %v4275
        %v4400 = vpack.c.b16 %v4278, %v4276
        %v4401 = vpack.c.b16 %v4281, %v4279
        %v4402 = vpack.c.b16 %v4282, %v4280
        %v4403 = vpack.c.b16 %v4285, %v4283
        %v4404 = vpack.c.b16 %v4286, %v4284
        %v4405 = vpack.c.b16 %v4289, %v4287
        %v4406 = vpack.c.b16 %v4290, %v4288
        %v4407 = vpack.c.b16 %v4293, %v4291
        %v4408 = vpack.c.b16 %v4294, %v4292
        %v4409 = vpack.c.b16 %v4297, %v4295
        %v4410 = vpack.c.b16 %v4298, %v4296
        %v4411 = vpack.c.b16 %v4301, %v4299
        %v4412 = vpack.c.b16 %v4302, %v4300
        %v4413 = vpack.c.b16 %v4305, %v4303
        %v4414 = vpack.c.b16 %v4306, %v4304
        %v4415 = vpack.c.b16 %v4309, %v4307
        %v4416 = vpack.c.b16 %v4310, %v4308
        %v4417 = vpack.c.b16 %v4313, %v4311
        %v4418 = vpack.c.b16 %v4314, %v4312
        %v4419 = vpack.c.b16 %v4317, %v4315
        %v4420 = vpack.c.b16 %v4318, %v4316
        %v4421 = vpack.c.b16 %v4321, %v4319
        %v4422 = vpack.c.b16 %v4322, %v4320
        %v4423 = vpack.c.b16 %v4325, %v4323
        %v4424 = vpack.c.b16 %v4326, %v4324
        %v4425 = vpack.c.b16 %v4329, %v4327
        %v4426 = vpack.c.b16 %v4330, %v4328
        %v4427 = vpack.c.b16 %v4333, %v4331
        %v4428 = vpack.c.b16 %v4334, %v4332
        %v4429 = vpack.c.b16 %v4337, %v4335
        %v4430 = vpack.c.b16 %v4338, %v4336
        %v4431 = vpack.c.b16 %v4341, %v4339
        %v4432 = vpack.c.b16 %v4342, %v4340
        %v4433 = vpack.c.b16 %v4345, %v4343
        %v4434 = vpack.c.b16 %v4346, %v4344
        %v4435 = vpack.c.b16 %v4349, %v4347
        %v4436 = vpack.c.b16 %v4350, %v4348
        %v4437 = vpack.c.b16 %v4353, %v4351
        %v4438 = vpack.c.b16 %v4354, %v4352
        %v4439 = vpack.c.b16 %v4357, %v4355
        %v4440 = vpack.c.b16 %v4358, %v4356
        %v4441 = vpack.c.b16 %v4361, %v4359
        %v4442 = vpack.c.b16 %v4362, %v4360
        %v4443 = vpack.c.b16 %v4365, %v4363
        %v4444 = vpack.c.b16 %v4366, %v4364
        %v4445 = vpack.c.b16 %v4369, %v4367
        %v4446 = vpack.c.b16 %v4370, %v4368
        %v4447 = vpack.c.b16 %v4373, %v4371
        %v4448 = vpack.c.b16 %v4374, %v4372
        %v4449 = vpack.c.b16 %v4377, %v4375
        %v4450 = vpack.c.b16 %v4378, %v4376
        %v4451 = vpack.c.b16 %v4381, %v4379
        %v4452 = vpack.c.b16 %v4382, %v4380
        %v4453 = vpack.c.b16 %v4385, %v4383
        %v4454 = vpack.c.b16 %v4386, %v4384
        %v4455 = vpack.c.b16 %v4389, %v4387
        %v4456 = vpack.c.b16 %v4390, %v4388
        %v4457 = vpack.c.b16 %v4393, %v4391
        %v4458 = vpack.c.b16 %v4394, %v4392
        %4523 = vmatpush.bf16.msra.mxu0 %v4409
        %4524 = vmatpush.bf16.msra.mxu0 %v4407
        %4525 = vmatpush.bf16.msra.mxu0 %v4405
        %4526 = vmatpush.bf16.msra.mxu0 %v4403
        %4527 = vmatpush.bf16.msra.mxu0 %v4401
        %4528 = vmatpush.bf16.msra.mxu0 %v4399
        %4529 = vmatpush.bf16.msra.mxu0 %v4397
        %4530 = vmatpush.bf16.msra.mxu0 %v4395
        %4531 = vmatmul.bf16.gmra.mxu0 %v3490
        %v4532 = vpop.f32.mrf.mxu0
        %v4533 = vadd.f32 %v4118, %v4532
        %v4534 = vpop.f32.mrf.mxu0
        %v4535 = vadd.f32 %v4120, %v4534
        %4536 = vmatmul.bf16.gmra.mxu0 %v3494
        %v4537 = vpop.f32.mrf.mxu0
        %v4538 = vadd.f32 %v4123, %v4537
        %v4539 = vpop.f32.mrf.mxu0
        %v4540 = vadd.f32 %v4125, %v4539
        %4541 = vdwg.mxu0
        %4542 = vmatpush.bf16.msra.mxu0 %v4425
        %4543 = vmatpush.bf16.msra.mxu0 %v4423
        %4544 = vmatpush.bf16.msra.mxu0 %v4421
        %4545 = vmatpush.bf16.msra.mxu0 %v4419
        %4546 = vmatpush.bf16.msra.mxu0 %v4417
        %4547 = vmatpush.bf16.msra.mxu0 %v4415
        %4548 = vmatpush.bf16.msra.mxu0 %v4413
        %4549 = vmatpush.bf16.msra.mxu0 %v4411
        %4550 = vmatmul.bf16.gmra.mxu0 %v3491
        %v4551 = vpop.f32.mrf.mxu0
        %v4552 = vadd.f32 %v4533, %v4551
        %v4553 = vpop.f32.mrf.mxu0
        %v4554 = vadd.f32 %v4535, %v4553
        %4555 = vmatmul.bf16.gmra.mxu0 %v3495
        %v4556 = vpop.f32.mrf.mxu0
        %v4557 = vadd.f32 %v4538, %v4556
        %v4558 = vpop.f32.mrf.mxu0
        %v4559 = vadd.f32 %v4540, %v4558
        %4560 = vdwg.mxu0
        %4561 = vmatpush.bf16.msra.mxu0 %v4441
        %4562 = vmatpush.bf16.msra.mxu0 %v4439
        %4563 = vmatpush.bf16.msra.mxu0 %v4437
        %4564 = vmatpush.bf16.msra.mxu0 %v4435
        %4565 = vmatpush.bf16.msra.mxu0 %v4433
        %4566 = vmatpush.bf16.msra.mxu0 %v4431
        %4567 = vmatpush.bf16.msra.mxu0 %v4429
        %4568 = vmatpush.bf16.msra.mxu0 %v4427
        %4569 = vmatmul.bf16.gmra.mxu0 %v3492
        %v4570 = vpop.f32.mrf.mxu0
        %v4571 = vadd.f32 %v4552, %v4570
        %v4572 = vpop.f32.mrf.mxu0
        %v4573 = vadd.f32 %v4554, %v4572
        %4574 = vmatmul.bf16.gmra.mxu0 %v3496
        %v4575 = vpop.f32.mrf.mxu0
        %v4576 = vadd.f32 %v4557, %v4575
        %v4577 = vpop.f32.mrf.mxu0
        %v4578 = vadd.f32 %v4559, %v4577
        %4579 = vdwg.mxu0
        %4580 = vmatpush.bf16.msra.mxu0 %v4457
        %4581 = vmatpush.bf16.msra.mxu0 %v4455
        %4582 = vmatpush.bf16.msra.mxu0 %v4453
        %4583 = vmatpush.bf16.msra.mxu0 %v4451
        %4584 = vmatpush.bf16.msra.mxu0 %v4449
        %4585 = vmatpush.bf16.msra.mxu0 %v4447
        %4586 = vmatpush.bf16.msra.mxu0 %v4445
        %4587 = vmatpush.bf16.msra.mxu0 %v4443
        %4588 = vmatmul.bf16.gmra.mxu0 %v3493
        %v4589 = vpop.f32.mrf.mxu0
        %v4590 = vadd.f32 %v4571, %v4589
        %v4591 = vpop.f32.mrf.mxu0
        %v4592 = vadd.f32 %v4573, %v4591
        %4593 = vmatmul.bf16.gmra.mxu0 %v3497
        %v4594 = vpop.f32.mrf.mxu0
        %v4595 = vadd.f32 %v4576, %v4594
        %v4596 = vpop.f32.mrf.mxu0
        %v4597 = vadd.f32 %v4578, %v4596
        %4598 = vdwg.mxu0
        %4599 = vmatpush.bf16.msra.mxu0 %v4410
        %4600 = vmatpush.bf16.msra.mxu0 %v4408
        %4601 = vmatpush.bf16.msra.mxu0 %v4406
        %4602 = vmatpush.bf16.msra.mxu0 %v4404
        %4603 = vmatpush.bf16.msra.mxu0 %v4402
        %4604 = vmatpush.bf16.msra.mxu0 %v4400
        %4605 = vmatpush.bf16.msra.mxu0 %v4398
        %4606 = vmatpush.bf16.msra.mxu0 %v4396
        %4607 = vmatmul.bf16.gmra.mxu0 %v3490
        %v4608 = vpop.f32.mrf.mxu0
        %v4609 = vadd.f32 %v4194, %v4608
        %v4610 = vpop.f32.mrf.mxu0
        %v4611 = vadd.f32 %v4196, %v4610
        %4612 = vmatmul.bf16.gmra.mxu0 %v3494
        %v4613 = vpop.f32.mrf.mxu0
        %v4614 = vadd.f32 %v4199, %v4613
        %v4615 = vpop.f32.mrf.mxu0
        %v4616 = vadd.f32 %v4201, %v4615
        %4617 = vdwg.mxu0
        %4618 = vmatpush.bf16.msra.mxu0 %v4426
        %4619 = vmatpush.bf16.msra.mxu0 %v4424
        %4620 = vmatpush.bf16.msra.mxu0 %v4422
        %4621 = vmatpush.bf16.msra.mxu0 %v4420
        %4622 = vmatpush.bf16.msra.mxu0 %v4418
        %4623 = vmatpush.bf16.msra.mxu0 %v4416
        %4624 = vmatpush.bf16.msra.mxu0 %v4414
        %4625 = vmatpush.bf16.msra.mxu0 %v4412
        %4626 = vmatmul.bf16.gmra.mxu0 %v3491
        %v4627 = vpop.f32.mrf.mxu0
        %v4628 = vadd.f32 %v4609, %v4627
        %v4629 = vpop.f32.mrf.mxu0
        %v4630 = vadd.f32 %v4611, %v4629
        %4631 = vmatmul.bf16.gmra.mxu0 %v3495
        %v4632 = vpop.f32.mrf.mxu0
        %v4633 = vadd.f32 %v4614, %v4632
        %v4634 = vpop.f32.mrf.mxu0
        %v4635 = vadd.f32 %v4616, %v4634
        %4636 = vdwg.mxu0
        %4637 = vmatpush.bf16.msra.mxu0 %v4442
        %4638 = vmatpush.bf16.msra.mxu0 %v4440
        %4639 = vmatpush.bf16.msra.mxu0 %v4438
        %4640 = vmatpush.bf16.msra.mxu0 %v4436
        %4641 = vmatpush.bf16.msra.mxu0 %v4434
        %4642 = vmatpush.bf16.msra.mxu0 %v4432
        %4643 = vmatpush.bf16.msra.mxu0 %v4430
        %4644 = vmatpush.bf16.msra.mxu0 %v4428
        %4645 = vmatmul.bf16.gmra.mxu0 %v3492
        %v4646 = vpop.f32.mrf.mxu0
        %v4647 = vadd.f32 %v4628, %v4646
        %v4648 = vpop.f32.mrf.mxu0
        %v4649 = vadd.f32 %v4630, %v4648
        %4650 = vmatmul.bf16.gmra.mxu0 %v3496
        %v4651 = vpop.f32.mrf.mxu0
        %v4652 = vadd.f32 %v4633, %v4651
        %v4653 = vpop.f32.mrf.mxu0
        %v4654 = vadd.f32 %v4635, %v4653
        %4655 = vdwg.mxu0
        %4656 = vmatpush.bf16.msra.mxu0 %v4458
        %4657 = vmatpush.bf16.msra.mxu0 %v4456
        %4658 = vmatpush.bf16.msra.mxu0 %v4454
        %4659 = vmatpush.bf16.msra.mxu0 %v4452
        %4660 = vmatpush.bf16.msra.mxu0 %v4450
        %4661 = vmatpush.bf16.msra.mxu0 %v4448
        %4662 = vmatpush.bf16.msra.mxu0 %v4446
        %4663 = vmatpush.bf16.msra.mxu0 %v4444
        %4664 = vmatmul.bf16.gmra.mxu0 %v3493
        %v4665 = vpop.f32.mrf.mxu0
        %v4666 = vadd.f32 %v4647, %v4665
        %v4667 = vpop.f32.mrf.mxu0
        %v4668 = vadd.f32 %v4649, %v4667
        %4669 = vmatmul.bf16.gmra.mxu0 %v3497
        %v4670 = vpop.f32.mrf.mxu0
        %v4671 = vadd.f32 %v4652, %v4670
        %v4672 = vpop.f32.mrf.mxu0
        %v4673 = vadd.f32 %v4654, %v4672
        %4674 = vdwg.mxu0
        %v4675 = vld [vmem:[#allocation4] sm:$0xfc]
        %v4676 = vld [vmem:[#allocation4 + $0x8] sm:$0xfc]
        %v4677 = vld [vmem:[#allocation4 + $0x10] sm:$0xfc]
        %v4678 = vld [vmem:[#allocation4 + $0x18] sm:$0xfc]
        %v4679 = vld [vmem:[#allocation4 + $0x80] sm:$0x3]
        %v4680 = vld [vmem:[#allocation4 + $0x88] sm:$0x3]
        %v4681 = vld [vmem:[#allocation4 + $0x90] sm:$0x3]
        %v4682 = vld [vmem:[#allocation4 + $0x98] sm:$0x3]
        %v4683 = vpack.c.bf16 %v3478, %v4675
        %v4684 = vpack.c.bf16 %v3479, %v4676
        %v4685 = vpack.c.bf16 %v3480, %v4677
        %v4686 = vpack.c.bf16 %v3481, %v4678
        %v4687 = vpack.c.bf16 %v4679, %v4679
        %v4688 = vpack.c.bf16 %v4680, %v4680
        %v4689 = vpack.c.bf16 %v4681, %v4681
        %v4690 = vpack.c.bf16 %v4682, %v4682
        %s4691 = scalar_lea.vmem [#allocation8], 1024
        %v4692 = vld [vmem:[%s4691] sm:$0xff]
        %v4693 = vld [vmem:[%s4691 + $0x8] sm:$0xff]
        %v4694 = vld [vmem:[%s4691 + $0x10] sm:$0xff]
        %v4695 = vld [vmem:[%s4691 + $0x18] sm:$0xff]
        %v4696 = vld [vmem:[%s4691 + $0x20] sm:$0xff]
        %v4697 = vld [vmem:[%s4691 + $0x28] sm:$0xff]
        %v4698 = vld [vmem:[%s4691 + $0x30] sm:$0xff]
        %v4699 = vld [vmem:[%s4691 + $0x38] sm:$0xff]
        %v4700 = vld [vmem:[%s4691 + $0x40] sm:$0xff]
        %v4701 = vld [vmem:[%s4691 + $0x48] sm:$0xff]
        %v4702 = vld [vmem:[%s4691 + $0x50] sm:$0xff]
        %v4703 = vld [vmem:[%s4691 + $0x58] sm:$0xff]
        %v4704 = vld [vmem:[%s4691 + $0x60] sm:$0xff]
        %v4705 = vld [vmem:[%s4691 + $0x68] sm:$0xff]
        %v4706 = vld [vmem:[%s4691 + $0x70] sm:$0xff]
        %v4707 = vld [vmem:[%s4691 + $0x78] sm:$0xff]
        %v4708 = vld [vmem:[%s4691 + $0x80] sm:$0xff]
        %v4709 = vld [vmem:[%s4691 + $0x88] sm:$0xff]
        %v4710 = vld [vmem:[%s4691 + $0x90] sm:$0xff]
        %v4711 = vld [vmem:[%s4691 + $0x98] sm:$0xff]
        %v4712 = vld [vmem:[%s4691 + $0xa0] sm:$0xff]
        %v4713 = vld [vmem:[%s4691 + $0xa8] sm:$0xff]
        %v4714 = vld [vmem:[%s4691 + $0xb0] sm:$0xff]
        %v4715 = vld [vmem:[%s4691 + $0xb8] sm:$0xff]
        %v4716 = vld [vmem:[%s4691 + $0xc0] sm:$0xff]
        %v4717 = vld [vmem:[%s4691 + $0xc8] sm:$0xff]
        %v4718 = vld [vmem:[%s4691 + $0xd0] sm:$0xff]
        %v4719 = vld [vmem:[%s4691 + $0xd8] sm:$0xff]
        %v4720 = vld [vmem:[%s4691 + $0xe0] sm:$0xff]
        %v4721 = vld [vmem:[%s4691 + $0xe8] sm:$0xff]
        %v4722 = vld [vmem:[%s4691 + $0xf0] sm:$0xff]
        %v4723 = vld [vmem:[%s4691 + $0xf8] sm:$0xff]
        %v4724 = vld [vmem:[%s4691 + $0x100] sm:$0xff]
        %v4725 = vld [vmem:[%s4691 + $0x108] sm:$0xff]
        %v4726 = vld [vmem:[%s4691 + $0x110] sm:$0xff]
        %v4727 = vld [vmem:[%s4691 + $0x118] sm:$0xff]
        %v4728 = vld [vmem:[%s4691 + $0x120] sm:$0xff]
        %v4729 = vld [vmem:[%s4691 + $0x128] sm:$0xff]
        %v4730 = vld [vmem:[%s4691 + $0x130] sm:$0xff]
        %v4731 = vld [vmem:[%s4691 + $0x138] sm:$0xff]
        %v4732 = vld [vmem:[%s4691 + $0x140] sm:$0xff]
        %v4733 = vld [vmem:[%s4691 + $0x148] sm:$0xff]
        %v4734 = vld [vmem:[%s4691 + $0x150] sm:$0xff]
        %v4735 = vld [vmem:[%s4691 + $0x158] sm:$0xff]
        %v4736 = vld [vmem:[%s4691 + $0x160] sm:$0xff]
        %v4737 = vld [vmem:[%s4691 + $0x168] sm:$0xff]
        %v4738 = vld [vmem:[%s4691 + $0x170] sm:$0xff]
        %v4739 = vld [vmem:[%s4691 + $0x178] sm:$0xff]
        %v4740 = vld [vmem:[%s4691 + $0x180] sm:$0xff]
        %v4741 = vld [vmem:[%s4691 + $0x188] sm:$0xff]
        %v4742 = vld [vmem:[%s4691 + $0x190] sm:$0xff]
        %v4743 = vld [vmem:[%s4691 + $0x198] sm:$0xff]
        %v4744 = vld [vmem:[%s4691 + $0x1a0] sm:$0xff]
        %v4745 = vld [vmem:[%s4691 + $0x1a8] sm:$0xff]
        %v4746 = vld [vmem:[%s4691 + $0x1b0] sm:$0xff]
        %v4747 = vld [vmem:[%s4691 + $0x1b8] sm:$0xff]
        %v4748 = vld [vmem:[%s4691 + $0x1c0] sm:$0xff]
        %v4749 = vld [vmem:[%s4691 + $0x1c8] sm:$0xff]
        %v4750 = vld [vmem:[%s4691 + $0x1d0] sm:$0xff]
        %v4751 = vld [vmem:[%s4691 + $0x1d8] sm:$0xff]
        %v4752 = vld [vmem:[%s4691 + $0x1e0] sm:$0xff]
        %v4753 = vld [vmem:[%s4691 + $0x1e8] sm:$0xff]
        %v4754 = vld [vmem:[%s4691 + $0x1f0] sm:$0xff]
        %v4755 = vld [vmem:[%s4691 + $0x1f8] sm:$0xff]
        %v4768 = vrot.slane %v4683, 1
        %v4769 = vrot.slane %v3494, 1
        %v4770 = vsel %vm2220, %v4768, %v4769
        %v4771 = vrot.slane %v4684, 1
        %v4772 = vrot.slane %v3495, 1
        %v4773 = vsel %vm2220, %v4771, %v4772
        %v4774 = vrot.slane %v4685, 1
        %v4775 = vrot.slane %v3496, 1
        %v4776 = vsel %vm2220, %v4774, %v4775
        %v4777 = vrot.slane %v4686, 1
        %v4778 = vrot.slane %v3497, 1
        %v4779 = vsel %vm2220, %v4777, %v4778
        %v4780 = vrot.slane %v4687, 1
        %v4781 = vsel %vm2220, %v4769, %v4780
        %v4782 = vrot.slane %v4688, 1
        %v4783 = vsel %vm2220, %v4772, %v4782
        %v4784 = vrot.slane %v4689, 1
        %v4785 = vsel %vm2220, %v4775, %v4784
        %v4786 = vrot.slane %v4690, 1
        %v4787 = vsel %vm2220, %v4778, %v4786
        %v4860 = vunpack.c.l.b16 %v4692
        %v4861 = vunpack.c.h.b16 %v4692
        %v4862 = vunpack.c.l.b16 %v4693
        %v4863 = vunpack.c.h.b16 %v4693
        %v4864 = vunpack.c.l.b16 %v4694
        %v4865 = vunpack.c.h.b16 %v4694
        %v4866 = vunpack.c.l.b16 %v4695
        %v4867 = vunpack.c.h.b16 %v4695
        %v4868 = vunpack.c.l.b16 %v4696
        %v4869 = vunpack.c.h.b16 %v4696
        %v4870 = vunpack.c.l.b16 %v4697
        %v4871 = vunpack.c.h.b16 %v4697
        %v4872 = vunpack.c.l.b16 %v4698
        %v4873 = vunpack.c.h.b16 %v4698
        %v4874 = vunpack.c.l.b16 %v4699
        %v4875 = vunpack.c.h.b16 %v4699
        %v4876 = vunpack.c.l.b16 %v4700
        %v4877 = vunpack.c.h.b16 %v4700
        %v4878 = vunpack.c.l.b16 %v4701
        %v4879 = vunpack.c.h.b16 %v4701
        %v4880 = vunpack.c.l.b16 %v4702
        %v4881 = vunpack.c.h.b16 %v4702
        %v4882 = vunpack.c.l.b16 %v4703
        %v4883 = vunpack.c.h.b16 %v4703
        %v4884 = vunpack.c.l.b16 %v4704
        %v4885 = vunpack.c.h.b16 %v4704
        %v4886 = vunpack.c.l.b16 %v4705
        %v4887 = vunpack.c.h.b16 %v4705
        %v4888 = vunpack.c.l.b16 %v4706
        %v4889 = vunpack.c.h.b16 %v4706
        %v4890 = vunpack.c.l.b16 %v4707
        %v4891 = vunpack.c.h.b16 %v4707
        %v4892 = vunpack.c.l.b16 %v4708
        %v4893 = vunpack.c.h.b16 %v4708
        %v4894 = vunpack.c.l.b16 %v4709
        %v4895 = vunpack.c.h.b16 %v4709
        %v4896 = vunpack.c.l.b16 %v4710
        %v4897 = vunpack.c.h.b16 %v4710
        %v4898 = vunpack.c.l.b16 %v4711
        %v4899 = vunpack.c.h.b16 %v4711
        %v4900 = vunpack.c.l.b16 %v4712
        %v4901 = vunpack.c.h.b16 %v4712
        %v4902 = vunpack.c.l.b16 %v4713
        %v4903 = vunpack.c.h.b16 %v4713
        %v4904 = vunpack.c.l.b16 %v4714
        %v4905 = vunpack.c.h.b16 %v4714
        %v4906 = vunpack.c.l.b16 %v4715
        %v4907 = vunpack.c.h.b16 %v4715
        %v4908 = vunpack.c.l.b16 %v4716
        %v4909 = vunpack.c.h.b16 %v4716
        %v4910 = vunpack.c.l.b16 %v4717
        %v4911 = vunpack.c.h.b16 %v4717
        %v4912 = vunpack.c.l.b16 %v4718
        %v4913 = vunpack.c.h.b16 %v4718
        %v4914 = vunpack.c.l.b16 %v4719
        %v4915 = vunpack.c.h.b16 %v4719
        %v4916 = vunpack.c.l.b16 %v4720
        %v4917 = vunpack.c.h.b16 %v4720
        %v4918 = vunpack.c.l.b16 %v4721
        %v4919 = vunpack.c.h.b16 %v4721
        %v4920 = vunpack.c.l.b16 %v4722
        %v4921 = vunpack.c.h.b16 %v4722
        %v4922 = vunpack.c.l.b16 %v4723
        %v4923 = vunpack.c.h.b16 %v4723
        %v4924 = vunpack.c.l.b16 %v4724
        %v4925 = vunpack.c.h.b16 %v4724
        %v4926 = vunpack.c.l.b16 %v4725
        %v4927 = vunpack.c.h.b16 %v4725
        %v4928 = vunpack.c.l.b16 %v4726
        %v4929 = vunpack.c.h.b16 %v4726
        %v4930 = vunpack.c.l.b16 %v4727
        %v4931 = vunpack.c.h.b16 %v4727
        %v4932 = vunpack.c.l.b16 %v4728
        %v4933 = vunpack.c.h.b16 %v4728
        %v4934 = vunpack.c.l.b16 %v4729
        %v4935 = vunpack.c.h.b16 %v4729
        %v4936 = vunpack.c.l.b16 %v4730
        %v4937 = vunpack.c.h.b16 %v4730
        %v4938 = vunpack.c.l.b16 %v4731
        %v4939 = vunpack.c.h.b16 %v4731
        %v4940 = vunpack.c.l.b16 %v4732
        %v4941 = vunpack.c.h.b16 %v4732
        %v4942 = vunpack.c.l.b16 %v4733
        %v4943 = vunpack.c.h.b16 %v4733
        %v4944 = vunpack.c.l.b16 %v4734
        %v4945 = vunpack.c.h.b16 %v4734
        %v4946 = vunpack.c.l.b16 %v4735
        %v4947 = vunpack.c.h.b16 %v4735
        %v4948 = vunpack.c.l.b16 %v4736
        %v4949 = vunpack.c.h.b16 %v4736
        %v4950 = vunpack.c.l.b16 %v4737
        %v4951 = vunpack.c.h.b16 %v4737
        %v4952 = vunpack.c.l.b16 %v4738
        %v4953 = vunpack.c.h.b16 %v4738
        %v4954 = vunpack.c.l.b16 %v4739
        %v4955 = vunpack.c.h.b16 %v4739
        %v4956 = vunpack.c.l.b16 %v4740
        %v4957 = vunpack.c.h.b16 %v4740
        %v4958 = vunpack.c.l.b16 %v4741
        %v4959 = vunpack.c.h.b16 %v4741
        %v4960 = vunpack.c.l.b16 %v4742
        %v4961 = vunpack.c.h.b16 %v4742
        %v4962 = vunpack.c.l.b16 %v4743
        %v4963 = vunpack.c.h.b16 %v4743
        %v4964 = vunpack.c.l.b16 %v4744
        %v4965 = vunpack.c.h.b16 %v4744
        %v4966 = vunpack.c.l.b16 %v4745
        %v4967 = vunpack.c.h.b16 %v4745
        %v4968 = vunpack.c.l.b16 %v4746
        %v4969 = vunpack.c.h.b16 %v4746
        %v4970 = vunpack.c.l.b16 %v4747
        %v4971 = vunpack.c.h.b16 %v4747
        %v4972 = vunpack.c.l.b16 %v4748
        %v4973 = vunpack.c.h.b16 %v4748
        %v4974 = vunpack.c.l.b16 %v4749
        %v4975 = vunpack.c.h.b16 %v4749
        %v4976 = vunpack.c.l.b16 %v4750
        %v4977 = vunpack.c.h.b16 %v4750
        %v4978 = vunpack.c.l.b16 %v4751
        %v4979 = vunpack.c.h.b16 %v4751
        %v4980 = vunpack.c.l.b16 %v4752
        %v4981 = vunpack.c.h.b16 %v4752
        %v4982 = vunpack.c.l.b16 %v4753
        %v4983 = vunpack.c.h.b16 %v4753
        %v4984 = vunpack.c.l.b16 %v4754
        %v4985 = vunpack.c.h.b16 %v4754
        %v4986 = vunpack.c.l.b16 %v4755
        %v4987 = vunpack.c.h.b16 %v4755
        %v4988 = vpack.c.b16 %v4862, %v4860
        %v4989 = vpack.c.b16 %v4863, %v4861
        %v4990 = vpack.c.b16 %v4866, %v4864
        %v4991 = vpack.c.b16 %v4867, %v4865
        %v4992 = vpack.c.b16 %v4870, %v4868
        %v4993 = vpack.c.b16 %v4871, %v4869
        %v4994 = vpack.c.b16 %v4874, %v4872
        %v4995 = vpack.c.b16 %v4875, %v4873
        %v4996 = vpack.c.b16 %v4878, %v4876
        %v4997 = vpack.c.b16 %v4879, %v4877
        %v4998 = vpack.c.b16 %v4882, %v4880
        %v4999 = vpack.c.b16 %v4883, %v4881
        %v5000 = vpack.c.b16 %v4886, %v4884
        %v5001 = vpack.c.b16 %v4887, %v4885
        %v5002 = vpack.c.b16 %v4890, %v4888
        %v5003 = vpack.c.b16 %v4891, %v4889
        %v5004 = vpack.c.b16 %v4894, %v4892
        %v5005 = vpack.c.b16 %v4895, %v4893
        %v5006 = vpack.c.b16 %v4898, %v4896
        %v5007 = vpack.c.b16 %v4899, %v4897
        %v5008 = vpack.c.b16 %v4902, %v4900
        %v5009 = vpack.c.b16 %v4903, %v4901
        %v5010 = vpack.c.b16 %v4906, %v4904
        %v5011 = vpack.c.b16 %v4907, %v4905
        %v5012 = vpack.c.b16 %v4910, %v4908
        %v5013 = vpack.c.b16 %v4911, %v4909
        %v5014 = vpack.c.b16 %v4914, %v4912
        %v5015 = vpack.c.b16 %v4915, %v4913
        %v5016 = vpack.c.b16 %v4918, %v4916
        %v5017 = vpack.c.b16 %v4919, %v4917
        %v5018 = vpack.c.b16 %v4922, %v4920
        %v5019 = vpack.c.b16 %v4923, %v4921
        %v5020 = vpack.c.b16 %v4926, %v4924
        %v5021 = vpack.c.b16 %v4927, %v4925
        %v5022 = vpack.c.b16 %v4930, %v4928
        %v5023 = vpack.c.b16 %v4931, %v4929
        %v5024 = vpack.c.b16 %v4934, %v4932
        %v5025 = vpack.c.b16 %v4935, %v4933
        %v5026 = vpack.c.b16 %v4938, %v4936
        %v5027 = vpack.c.b16 %v4939, %v4937
        %v5028 = vpack.c.b16 %v4942, %v4940
        %v5029 = vpack.c.b16 %v4943, %v4941
        %v5030 = vpack.c.b16 %v4946, %v4944
        %v5031 = vpack.c.b16 %v4947, %v4945
        %v5032 = vpack.c.b16 %v4950, %v4948
        %v5033 = vpack.c.b16 %v4951, %v4949
        %v5034 = vpack.c.b16 %v4954, %v4952
        %v5035 = vpack.c.b16 %v4955, %v4953
        %v5036 = vpack.c.b16 %v4958, %v4956
        %v5037 = vpack.c.b16 %v4959, %v4957
        %v5038 = vpack.c.b16 %v4962, %v4960
        %v5039 = vpack.c.b16 %v4963, %v4961
        %v5040 = vpack.c.b16 %v4966, %v4964
        %v5041 = vpack.c.b16 %v4967, %v4965
        %v5042 = vpack.c.b16 %v4970, %v4968
        %v5043 = vpack.c.b16 %v4971, %v4969
        %v5044 = vpack.c.b16 %v4974, %v4972
        %v5045 = vpack.c.b16 %v4975, %v4973
        %v5046 = vpack.c.b16 %v4978, %v4976
        %v5047 = vpack.c.b16 %v4979, %v4977
        %v5048 = vpack.c.b16 %v4982, %v4980
        %v5049 = vpack.c.b16 %v4983, %v4981
        %v5050 = vpack.c.b16 %v4986, %v4984
        %v5051 = vpack.c.b16 %v4987, %v4985
        %5116 = vmatpush.bf16.msra.mxu0 %v5002
        %5117 = vmatpush.bf16.msra.mxu0 %v5000
        %5118 = vmatpush.bf16.msra.mxu0 %v4998
        %5119 = vmatpush.bf16.msra.mxu0 %v4996
        %5120 = vmatpush.bf16.msra.mxu0 %v4994
        %5121 = vmatpush.bf16.msra.mxu0 %v4992
        %5122 = vmatpush.bf16.msra.mxu0 %v4990
        %5123 = vmatpush.bf16.msra.mxu0 %v4988
        %5124 = vmatmul.bf16.gmra.mxu0 %v4770
        %v5125 = vpop.f32.mrf.mxu0
        %v5126 = vadd.f32 0.0, %v5125
        %v5127 = vpop.f32.mrf.mxu0
        %v5128 = vadd.f32 0.0, %v5127
        %5129 = vmatmul.bf16.gmra.mxu0 %v4781
        %v5130 = vpop.f32.mrf.mxu0
        %v5131 = vadd.f32 0.0, %v5130
        %v5132 = vpop.f32.mrf.mxu0
        %v5133 = vadd.f32 0.0, %v5132
        %5134 = vdwg.mxu0
        %5135 = vmatpush.bf16.msra.mxu0 %v5018
        %5136 = vmatpush.bf16.msra.mxu0 %v5016
        %5137 = vmatpush.bf16.msra.mxu0 %v5014
        %5138 = vmatpush.bf16.msra.mxu0 %v5012
        %5139 = vmatpush.bf16.msra.mxu0 %v5010
        %5140 = vmatpush.bf16.msra.mxu0 %v5008
        %5141 = vmatpush.bf16.msra.mxu0 %v5006
        %5142 = vmatpush.bf16.msra.mxu0 %v5004
        %5143 = vmatmul.bf16.gmra.mxu0 %v4773
        %v5144 = vpop.f32.mrf.mxu0
        %v5145 = vadd.f32 %v5126, %v5144
        %v5146 = vpop.f32.mrf.mxu0
        %v5147 = vadd.f32 %v5128, %v5146
        %5148 = vmatmul.bf16.gmra.mxu0 %v4783
        %v5149 = vpop.f32.mrf.mxu0
        %v5150 = vadd.f32 %v5131, %v5149
        %v5151 = vpop.f32.mrf.mxu0
        %v5152 = vadd.f32 %v5133, %v5151
        %5153 = vdwg.mxu0
        %5154 = vmatpush.bf16.msra.mxu0 %v5034
        %5155 = vmatpush.bf16.msra.mxu0 %v5032
        %5156 = vmatpush.bf16.msra.mxu0 %v5030
        %5157 = vmatpush.bf16.msra.mxu0 %v5028
        %5158 = vmatpush.bf16.msra.mxu0 %v5026
        %5159 = vmatpush.bf16.msra.mxu0 %v5024
        %5160 = vmatpush.bf16.msra.mxu0 %v5022
        %5161 = vmatpush.bf16.msra.mxu0 %v5020
        %5162 = vmatmul.bf16.gmra.mxu0 %v4776
        %v5163 = vpop.f32.mrf.mxu0
        %v5164 = vadd.f32 %v5145, %v5163
        %v5165 = vpop.f32.mrf.mxu0
        %v5166 = vadd.f32 %v5147, %v5165
        %5167 = vmatmul.bf16.gmra.mxu0 %v4785
        %v5168 = vpop.f32.mrf.mxu0
        %v5169 = vadd.f32 %v5150, %v5168
        %v5170 = vpop.f32.mrf.mxu0
        %v5171 = vadd.f32 %v5152, %v5170
        %5172 = vdwg.mxu0
        %5173 = vmatpush.bf16.msra.mxu0 %v5050
        %5174 = vmatpush.bf16.msra.mxu0 %v5048
        %5175 = vmatpush.bf16.msra.mxu0 %v5046
        %5176 = vmatpush.bf16.msra.mxu0 %v5044
        %5177 = vmatpush.bf16.msra.mxu0 %v5042
        %5178 = vmatpush.bf16.msra.mxu0 %v5040
        %5179 = vmatpush.bf16.msra.mxu0 %v5038
        %5180 = vmatpush.bf16.msra.mxu0 %v5036
        %5181 = vmatmul.bf16.gmra.mxu0 %v4779
        %v5182 = vpop.f32.mrf.mxu0
        %v5183 = vadd.f32 %v5164, %v5182
        %v5184 = vpop.f32.mrf.mxu0
        %v5185 = vadd.f32 %v5166, %v5184
        %5186 = vmatmul.bf16.gmra.mxu0 %v4787
        %v5187 = vpop.f32.mrf.mxu0
        %v5188 = vadd.f32 %v5169, %v5187
        %v5189 = vpop.f32.mrf.mxu0
        %v5190 = vadd.f32 %v5171, %v5189
        %5191 = vdwg.mxu0
        %5192 = vmatpush.bf16.msra.mxu0 %v5003
        %5193 = vmatpush.bf16.msra.mxu0 %v5001
        %5194 = vmatpush.bf16.msra.mxu0 %v4999
        %5195 = vmatpush.bf16.msra.mxu0 %v4997
        %5196 = vmatpush.bf16.msra.mxu0 %v4995
        %5197 = vmatpush.bf16.msra.mxu0 %v4993
        %5198 = vmatpush.bf16.msra.mxu0 %v4991
        %5199 = vmatpush.bf16.msra.mxu0 %v4989
        %5200 = vmatmul.bf16.gmra.mxu0 %v4770
        %v5201 = vpop.f32.mrf.mxu0
        %v5202 = vadd.f32 0.0, %v5201
        %v5203 = vpop.f32.mrf.mxu0
        %v5204 = vadd.f32 0.0, %v5203
        %5205 = vmatmul.bf16.gmra.mxu0 %v4781
        %v5206 = vpop.f32.mrf.mxu0
        %v5207 = vadd.f32 0.0, %v5206
        %v5208 = vpop.f32.mrf.mxu0
        %v5209 = vadd.f32 0.0, %v5208
        %5210 = vdwg.mxu0
        %5211 = vmatpush.bf16.msra.mxu0 %v5019
        %5212 = vmatpush.bf16.msra.mxu0 %v5017
        %5213 = vmatpush.bf16.msra.mxu0 %v5015
        %5214 = vmatpush.bf16.msra.mxu0 %v5013
        %5215 = vmatpush.bf16.msra.mxu0 %v5011
        %5216 = vmatpush.bf16.msra.mxu0 %v5009
        %5217 = vmatpush.bf16.msra.mxu0 %v5007
        %5218 = vmatpush.bf16.msra.mxu0 %v5005
        %5219 = vmatmul.bf16.gmra.mxu0 %v4773
        %v5220 = vpop.f32.mrf.mxu0
        %v5221 = vadd.f32 %v5202, %v5220
        %v5222 = vpop.f32.mrf.mxu0
        %v5223 = vadd.f32 %v5204, %v5222
        %5224 = vmatmul.bf16.gmra.mxu0 %v4783
        %v5225 = vpop.f32.mrf.mxu0
        %v5226 = vadd.f32 %v5207, %v5225
        %v5227 = vpop.f32.mrf.mxu0
        %v5228 = vadd.f32 %v5209, %v5227
        %5229 = vdwg.mxu0
        %5230 = vmatpush.bf16.msra.mxu0 %v5035
        %5231 = vmatpush.bf16.msra.mxu0 %v5033
        %5232 = vmatpush.bf16.msra.mxu0 %v5031
        %5233 = vmatpush.bf16.msra.mxu0 %v5029
        %5234 = vmatpush.bf16.msra.mxu0 %v5027
        %5235 = vmatpush.bf16.msra.mxu0 %v5025
        %5236 = vmatpush.bf16.msra.mxu0 %v5023
        %5237 = vmatpush.bf16.msra.mxu0 %v5021
        %5238 = vmatmul.bf16.gmra.mxu0 %v4776
        %v5239 = vpop.f32.mrf.mxu0
        %v5240 = vadd.f32 %v5221, %v5239
        %v5241 = vpop.f32.mrf.mxu0
        %v5242 = vadd.f32 %v5223, %v5241
        %5243 = vmatmul.bf16.gmra.mxu0 %v4785
        %v5244 = vpop.f32.mrf.mxu0
        %v5245 = vadd.f32 %v5226, %v5244
        %v5246 = vpop.f32.mrf.mxu0
        %v5247 = vadd.f32 %v5228, %v5246
        %5248 = vdwg.mxu0
        %5249 = vmatpush.bf16.msra.mxu0 %v5051
        %5250 = vmatpush.bf16.msra.mxu0 %v5049
        %5251 = vmatpush.bf16.msra.mxu0 %v5047
        %5252 = vmatpush.bf16.msra.mxu0 %v5045
        %5253 = vmatpush.bf16.msra.mxu0 %v5043
        %5254 = vmatpush.bf16.msra.mxu0 %v5041
        %5255 = vmatpush.bf16.msra.mxu0 %v5039
        %5256 = vmatpush.bf16.msra.mxu0 %v5037
        %5257 = vmatmul.bf16.gmra.mxu0 %v4779
        %v5258 = vpop.f32.mrf.mxu0
        %v5259 = vadd.f32 %v5240, %v5258
        %v5260 = vpop.f32.mrf.mxu0
        %v5261 = vadd.f32 %v5242, %v5260
        %5262 = vmatmul.bf16.gmra.mxu0 %v4787
        %v5263 = vpop.f32.mrf.mxu0
        %v5264 = vadd.f32 %v5245, %v5263
        %v5265 = vpop.f32.mrf.mxu0
        %v5266 = vadd.f32 %v5247, %v5265
        %5267 = vdwg.mxu0
        %v5268 = vadd.f32 %v4590, %v5183
        %v5269 = vadd.f32 %v4666, %v5259
        %v5270 = vadd.f32 %v4592, %v5185
        %v5271 = vadd.f32 %v4668, %v5261
        %v5272 = vadd.f32 %v4595, %v5188
        %v5273 = vadd.f32 %v4671, %v5264
        %v5274 = vadd.f32 %v4597, %v5190
        %v5275 = vadd.f32 %v4673, %v5266
        %v5276 = vld [vmem:[%s10] sm:$0x3]
        %v5278 = vperm.slane %v5276, 0
        %v5279 = vperm.slane %v5276, 1
        %v5282 = vmul.f32 %v5268, %v5278
        %v5283 = vmul.f32 %v5269, %v5279
        %v5284 = vmul.f32 %v5270, %v5278
        %v5285 = vmul.f32 %v5271, %v5279
        %v5286 = vmul.f32 %v5272, %v5278
        %v5287 = vmul.f32 %v5273, %v5279
        %v5288 = vmul.f32 %v5274, %v5278
        %v5289 = vmul.f32 %v5275, %v5279
        %v5290 = vld [vmem:[%s11] sm:$0x3]
        %v5292 = vperm.slane %v5290, 0
        %v5293 = vperm.slane %v5290, 1
        %v5296 = vadd.f32 %v5282, %v5292
        %v5297 = vadd.f32 %v5283, %v5293
        %v5298 = vadd.f32 %v5284, %v5292
        %v5299 = vadd.f32 %v5285, %v5293
        %v5300 = vadd.f32 %v5286, %v5292
        %v5301 = vadd.f32 %v5287, %v5293
        %v5302 = vadd.f32 %v5288, %v5292
        %v5303 = vadd.f32 %v5289, %v5293
        %v5304 = vmax.f32 %v5296, 0.0
        %v5305 = vmax.f32 %v5297, 0.0
        %v5306 = vmax.f32 %v5298, 0.0
        %v5307 = vmax.f32 %v5299, 0.0
        %v5308 = vmax.f32 %v5300, 0.0
        %v5309 = vmax.f32 %v5301, 0.0
        %v5310 = vmax.f32 %v5302, 0.0
        %v5311 = vmax.f32 %v5303, 0.0
        %v5312 = vld [vmem:[%s12] sm:$0xff]
        %v5313 = vld [vmem:[%s12 + $0x8] sm:$0xff]
        %v5314 = vld [vmem:[%s12 + $0x10] sm:$0xff]
        %v5315 = vld [vmem:[%s12 + $0x18] sm:$0xff]
        %v5316 = vld [vmem:[%s12 + $0x20] sm:$0xff]
        %v5317 = vld [vmem:[%s12 + $0x28] sm:$0xff]
        %v5318 = vld [vmem:[%s12 + $0x30] sm:$0xff]
        %v5319 = vld [vmem:[%s12 + $0x38] sm:$0xff]
        %v5320 = vld [vmem:[%s12 + $0x40] sm:$0xff]
        %v5321 = vld [vmem:[%s12 + $0x48] sm:$0xff]
        %v5322 = vld [vmem:[%s12 + $0x50] sm:$0xff]
        %v5323 = vld [vmem:[%s12 + $0x58] sm:$0xff]
        %v5324 = vld [vmem:[%s12 + $0x60] sm:$0xff]
        %v5325 = vld [vmem:[%s12 + $0x68] sm:$0xff]
        %v5326 = vld [vmem:[%s12 + $0x70] sm:$0xff]
        %v5327 = vld [vmem:[%s12 + $0x78] sm:$0xff]
        %vm5328 = vcmask 261120
        %v5330 = vsel %vm5328, %v5312, 0
        %v5333 = vsel %vm5328, %v5313, 0
        %v5336 = vsel %vm5328, %v5314, 0
        %v5339 = vsel %vm5328, %v5315, 0
        %v5342 = vsel %vm5328, %v5316, 0
        %v5345 = vsel %vm5328, %v5317, 0
        %v5348 = vsel %vm5328, %v5318, 0
        %v5351 = vsel %vm5328, %v5319, 0
        %v5354 = vsel %vm5328, %v5320, 0
        %v5357 = vsel %vm5328, %v5321, 0
        %v5360 = vsel %vm5328, %v5322, 0
        %v5363 = vsel %vm5328, %v5323, 0
        %v5366 = vsel %vm5328, %v5324, 0
        %v5369 = vsel %vm5328, %v5325, 0
        %v5372 = vsel %vm5328, %v5326, 0
        %v5375 = vsel %vm5328, %v5327, 0
        %5377 = vmatpush.msra.mxu0 0.0
        %5378 = vmatpush.msra.mxu0 0.0
        %5379 = vmatpush.msra.mxu0 0.0
        %5380 = vmatpush.msra.mxu0 0.0
        %5381 = vmatpush.msra.mxu0 0.0
        %5382 = vmatpush.msra.mxu0 0.0
        %5383 = vmatpush.msra.mxu0 0.0
        %5384 = vmatpush.msra.mxu0 0.0
        %5385 = vmatpush.msra.mxu0 0.0
        %5386 = vmatpush.msra.mxu0 0.0
        %5387 = vmatpush.msra.mxu0 0.0
        %5388 = vmatpush.msra.mxu0 0.0
        %5389 = vmatpush.msra.mxu0 %v5310
        %5390 = vmatpush.msra.mxu0 %v5308
        %5391 = vmatpush.msra.mxu0 %v5306
        %5392 = vmatpush.msra.mxu0 %v5304
        %5393 = vmatmul.f32.gmra.mxu0 %v5330
        %v5394 = vpop.f32.mrf.mxu0
        %v5395 = vadd.f32 0.0, %v5394
        %5396 = vmatmul.f32.gmra.mxu0 %v5333
        %v5397 = vpop.f32.mrf.mxu0
        %v5398 = vadd.f32 0.0, %v5397
        %5399 = vmatmul.f32.gmra.mxu0 %v5336
        %v5400 = vpop.f32.mrf.mxu0
        %v5401 = vadd.f32 0.0, %v5400
        %5402 = vmatmul.f32.gmra.mxu0 %v5339
        %v5403 = vpop.f32.mrf.mxu0
        %v5404 = vadd.f32 0.0, %v5403
        %5405 = vmatmul.f32.gmra.mxu0 %v5342
        %v5406 = vpop.f32.mrf.mxu0
        %v5407 = vadd.f32 0.0, %v5406
        %5408 = vmatmul.f32.gmra.mxu0 %v5345
        %v5409 = vpop.f32.mrf.mxu0
        %v5410 = vadd.f32 0.0, %v5409
        %5411 = vmatmul.f32.gmra.mxu0 %v5348
        %v5412 = vpop.f32.mrf.mxu0
        %v5413 = vadd.f32 0.0, %v5412
        %5414 = vmatmul.f32.gmra.mxu0 %v5351
        %v5415 = vpop.f32.mrf.mxu0
        %v5416 = vadd.f32 0.0, %v5415
        %5417 = vmatmul.f32.gmra.mxu0 %v5354
        %v5418 = vpop.f32.mrf.mxu0
        %v5419 = vadd.f32 0.0, %v5418
        %5420 = vmatmul.f32.gmra.mxu0 %v5357
        %v5421 = vpop.f32.mrf.mxu0
        %v5422 = vadd.f32 0.0, %v5421
        %5423 = vmatmul.f32.gmra.mxu0 %v5360
        %v5424 = vpop.f32.mrf.mxu0
        %v5425 = vadd.f32 0.0, %v5424
        %5426 = vmatmul.f32.gmra.mxu0 %v5363
        %v5427 = vpop.f32.mrf.mxu0
        %v5428 = vadd.f32 0.0, %v5427
        %5429 = vmatmul.f32.gmra.mxu0 %v5366
        %v5430 = vpop.f32.mrf.mxu0
        %v5431 = vadd.f32 0.0, %v5430
        %5432 = vmatmul.f32.gmra.mxu0 %v5369
        %v5433 = vpop.f32.mrf.mxu0
        %v5434 = vadd.f32 0.0, %v5433
        %5435 = vmatmul.f32.gmra.mxu0 %v5372
        %v5436 = vpop.f32.mrf.mxu0
        %v5437 = vadd.f32 0.0, %v5436
        %5438 = vmatmul.f32.gmra.mxu0 %v5375
        %v5439 = vpop.f32.mrf.mxu0
        %v5440 = vadd.f32 0.0, %v5439
        %5441 = vdwg.mxu0
        %5442 = vmatpush.msra.mxu0 0.0
        %5443 = vmatpush.msra.mxu0 0.0
        %5444 = vmatpush.msra.mxu0 0.0
        %5445 = vmatpush.msra.mxu0 0.0
        %5446 = vmatpush.msra.mxu0 0.0
        %5447 = vmatpush.msra.mxu0 0.0
        %5448 = vmatpush.msra.mxu0 0.0
        %5449 = vmatpush.msra.mxu0 0.0
        %5450 = vmatpush.msra.mxu0 0.0
        %5451 = vmatpush.msra.mxu0 0.0
        %5452 = vmatpush.msra.mxu0 0.0
        %5453 = vmatpush.msra.mxu0 0.0
        %5454 = vmatpush.msra.mxu0 %v5311
        %5455 = vmatpush.msra.mxu0 %v5309
        %5456 = vmatpush.msra.mxu0 %v5307
        %5457 = vmatpush.msra.mxu0 %v5305
        %5458 = vmatmul.f32.gmra.mxu0 %v5330
        %v5459 = vpop.f32.mrf.mxu0
        %v5460 = vadd.f32 0.0, %v5459
        %5461 = vmatmul.f32.gmra.mxu0 %v5333
        %v5462 = vpop.f32.mrf.mxu0
        %v5463 = vadd.f32 0.0, %v5462
        %5464 = vmatmul.f32.gmra.mxu0 %v5336
        %v5465 = vpop.f32.mrf.mxu0
        %v5466 = vadd.f32 0.0, %v5465
        %5467 = vmatmul.f32.gmra.mxu0 %v5339
        %v5468 = vpop.f32.mrf.mxu0
        %v5469 = vadd.f32 0.0, %v5468
        %5470 = vmatmul.f32.gmra.mxu0 %v5342
        %v5471 = vpop.f32.mrf.mxu0
        %v5472 = vadd.f32 0.0, %v5471
        %5473 = vmatmul.f32.gmra.mxu0 %v5345
        %v5474 = vpop.f32.mrf.mxu0
        %v5475 = vadd.f32 0.0, %v5474
        %5476 = vmatmul.f32.gmra.mxu0 %v5348
        %v5477 = vpop.f32.mrf.mxu0
        %v5478 = vadd.f32 0.0, %v5477
        %5479 = vmatmul.f32.gmra.mxu0 %v5351
        %v5480 = vpop.f32.mrf.mxu0
        %v5481 = vadd.f32 0.0, %v5480
        %5482 = vmatmul.f32.gmra.mxu0 %v5354
        %v5483 = vpop.f32.mrf.mxu0
        %v5484 = vadd.f32 0.0, %v5483
        %5485 = vmatmul.f32.gmra.mxu0 %v5357
        %v5486 = vpop.f32.mrf.mxu0
        %v5487 = vadd.f32 0.0, %v5486
        %5488 = vmatmul.f32.gmra.mxu0 %v5360
        %v5489 = vpop.f32.mrf.mxu0
        %v5490 = vadd.f32 0.0, %v5489
        %5491 = vmatmul.f32.gmra.mxu0 %v5363
        %v5492 = vpop.f32.mrf.mxu0
        %v5493 = vadd.f32 0.0, %v5492
        %5494 = vmatmul.f32.gmra.mxu0 %v5366
        %v5495 = vpop.f32.mrf.mxu0
        %v5496 = vadd.f32 0.0, %v5495
        %5497 = vmatmul.f32.gmra.mxu0 %v5369
        %v5498 = vpop.f32.mrf.mxu0
        %v5499 = vadd.f32 0.0, %v5498
        %5500 = vmatmul.f32.gmra.mxu0 %v5372
        %v5501 = vpop.f32.mrf.mxu0
        %v5502 = vadd.f32 0.0, %v5501
        %5503 = vmatmul.f32.gmra.mxu0 %v5375
        %v5504 = vpop.f32.mrf.mxu0
        %v5505 = vadd.f32 0.0, %v5504
        %5506 = vdwg.mxu0
        %v5507 = vld [vmem:[#allocation10] sm:$0xff]
        %v5508 = vld [vmem:[#allocation10 + $0x40] sm:$0xff]
        %v5509 = vld [vmem:[#allocation10 + $0x80] sm:$0xff]
        %v5510 = vld [vmem:[#allocation10 + $0xc0] sm:$0xff]
        %v5511 = vld [vmem:[#allocation10 + $0x100] sm:$0xff]
        %v5512 = vld [vmem:[#allocation10 + $0x140] sm:$0xff]
        %v5513 = vld [vmem:[#allocation10 + $0x180] sm:$0xff]
        %v5514 = vld [vmem:[#allocation10 + $0x1c0] sm:$0xff]
        %v5515 = vld [vmem:[#allocation10 + $0x200] sm:$0xff]
        %v5516 = vld [vmem:[#allocation10 + $0x240] sm:$0xff]
        %v5517 = vld [vmem:[#allocation10 + $0x280] sm:$0xff]
        %v5518 = vld [vmem:[#allocation10 + $0x2c0] sm:$0xff]
        %v5519 = vld [vmem:[#allocation10 + $0x300] sm:$0xff]
        %v5520 = vld [vmem:[#allocation10 + $0x340] sm:$0xff]
        %v5521 = vld [vmem:[#allocation10 + $0x380] sm:$0xff]
        %v5522 = vld [vmem:[#allocation10 + $0x3c0] sm:$0xff]
        %v5523 = vld [vmem:[#allocation10 + $0x400] sm:$0xff]
        %v5524 = vld [vmem:[#allocation10 + $0x440] sm:$0xff]
        %v5525 = vld [vmem:[#allocation10 + $0x480] sm:$0xff]
        %v5526 = vld [vmem:[#allocation10 + $0x4c0] sm:$0xff]
        %v5527 = vld [vmem:[#allocation10 + $0x500] sm:$0xff]
        %v5528 = vld [vmem:[#allocation10 + $0x540] sm:$0xff]
        %v5529 = vld [vmem:[#allocation10 + $0x580] sm:$0xff]
        %v5530 = vld [vmem:[#allocation10 + $0x5c0] sm:$0xff]
        %v5531 = vld [vmem:[#allocation10 + $0x600] sm:$0xff]
        %v5532 = vld [vmem:[#allocation10 + $0x640] sm:$0xff]
        %v5533 = vld [vmem:[#allocation10 + $0x680] sm:$0xff]
        %v5534 = vld [vmem:[#allocation10 + $0x6c0] sm:$0xff]
        %v5535 = vld [vmem:[#allocation10 + $0x700] sm:$0xff]
        %v5536 = vld [vmem:[#allocation10 + $0x740] sm:$0xff]
        %v5537 = vld [vmem:[#allocation10 + $0x780] sm:$0xff]
        %v5538 = vld [vmem:[#allocation10 + $0x7c0] sm:$0xff]
        %5539 = vmatpush.msra.mxu0 %v5522
        %5540 = vmatpush.msra.mxu0 %v5521
        %5541 = vmatpush.msra.mxu0 %v5520
        %5542 = vmatpush.msra.mxu0 %v5519
        %5543 = vmatpush.msra.mxu0 %v5518
        %5544 = vmatpush.msra.mxu0 %v5517
        %5545 = vmatpush.msra.mxu0 %v5516
        %5546 = vmatpush.msra.mxu0 %v5515
        %5547 = vmatpush.msra.mxu0 %v5514
        %5548 = vmatpush.msra.mxu0 %v5513
        %5549 = vmatpush.msra.mxu0 %v5512
        %5550 = vmatpush.msra.mxu0 %v5511
        %5551 = vmatpush.msra.mxu0 %v5510
        %5552 = vmatpush.msra.mxu0 %v5509
        %5553 = vmatpush.msra.mxu0 %v5508
        %5554 = vmatpush.msra.mxu0 %v5507
        %5555 = vmatmul.f32.gmra.mxu0 %v5395
        %v5556 = vpop.f32.mrf.mxu0
        %v5557 = vadd.f32 0.0, %v5556
        %5558 = vmatmul.f32.gmra.mxu0 %v5398
        %v5559 = vpop.f32.mrf.mxu0
        %v5560 = vadd.f32 0.0, %v5559
        %5561 = vmatmul.f32.gmra.mxu0 %v5401
        %v5562 = vpop.f32.mrf.mxu0
        %v5563 = vadd.f32 0.0, %v5562
        %5564 = vmatmul.f32.gmra.mxu0 %v5404
        %v5565 = vpop.f32.mrf.mxu0
        %v5566 = vadd.f32 0.0, %v5565
        %5567 = vmatmul.f32.gmra.mxu0 %v5407
        %v5568 = vpop.f32.mrf.mxu0
        %v5569 = vadd.f32 0.0, %v5568
        %5570 = vmatmul.f32.gmra.mxu0 %v5410
        %v5571 = vpop.f32.mrf.mxu0
        %v5572 = vadd.f32 0.0, %v5571
        %5573 = vmatmul.f32.gmra.mxu0 %v5413
        %v5574 = vpop.f32.mrf.mxu0
        %v5575 = vadd.f32 0.0, %v5574
        %5576 = vmatmul.f32.gmra.mxu0 %v5416
        %v5577 = vpop.f32.mrf.mxu0
        %v5578 = vadd.f32 0.0, %v5577
        %5579 = vmatmul.f32.gmra.mxu0 %v5419
        %v5580 = vpop.f32.mrf.mxu0
        %v5581 = vadd.f32 0.0, %v5580
        %5582 = vmatmul.f32.gmra.mxu0 %v5422
        %v5583 = vpop.f32.mrf.mxu0
        %v5584 = vadd.f32 0.0, %v5583
        %5585 = vmatmul.f32.gmra.mxu0 %v5425
        %v5586 = vpop.f32.mrf.mxu0
        %v5587 = vadd.f32 0.0, %v5586
        %5588 = vmatmul.f32.gmra.mxu0 %v5428
        %v5589 = vpop.f32.mrf.mxu0
        %v5590 = vadd.f32 0.0, %v5589
        %5591 = vmatmul.f32.gmra.mxu0 %v5431
        %v5592 = vpop.f32.mrf.mxu0
        %v5593 = vadd.f32 0.0, %v5592
        %5594 = vmatmul.f32.gmra.mxu0 %v5434
        %v5595 = vpop.f32.mrf.mxu0
        %v5596 = vadd.f32 0.0, %v5595
        %5597 = vmatmul.f32.gmra.mxu0 %v5437
        %v5598 = vpop.f32.mrf.mxu0
        %v5599 = vadd.f32 0.0, %v5598
        %5600 = vmatmul.f32.gmra.mxu0 %v5440
        %v5601 = vpop.f32.mrf.mxu0
        %v5602 = vadd.f32 0.0, %v5601
        %5603 = vdwg.mxu0
        %5604 = vmatpush.msra.mxu0 %v5538
        %5605 = vmatpush.msra.mxu0 %v5537
        %5606 = vmatpush.msra.mxu0 %v5536
        %5607 = vmatpush.msra.mxu0 %v5535
        %5608 = vmatpush.msra.mxu0 %v5534
        %5609 = vmatpush.msra.mxu0 %v5533
        %5610 = vmatpush.msra.mxu0 %v5532
        %5611 = vmatpush.msra.mxu0 %v5531
        %5612 = vmatpush.msra.mxu0 %v5530
        %5613 = vmatpush.msra.mxu0 %v5529
        %5614 = vmatpush.msra.mxu0 %v5528
        %5615 = vmatpush.msra.mxu0 %v5527
        %5616 = vmatpush.msra.mxu0 %v5526
        %5617 = vmatpush.msra.mxu0 %v5525
        %5618 = vmatpush.msra.mxu0 %v5524
        %5619 = vmatpush.msra.mxu0 %v5523
        %5620 = vmatmul.f32.gmra.mxu0 %v5460
        %v5621 = vpop.f32.mrf.mxu0
        %v5622 = vadd.f32 %v5557, %v5621
        %5623 = vmatmul.f32.gmra.mxu0 %v5463
        %v5624 = vpop.f32.mrf.mxu0
        %v5625 = vadd.f32 %v5560, %v5624
        %5626 = vmatmul.f32.gmra.mxu0 %v5466
        %v5627 = vpop.f32.mrf.mxu0
        %v5628 = vadd.f32 %v5563, %v5627
        %5629 = vmatmul.f32.gmra.mxu0 %v5469
        %v5630 = vpop.f32.mrf.mxu0
        %v5631 = vadd.f32 %v5566, %v5630
        %5632 = vmatmul.f32.gmra.mxu0 %v5472
        %v5633 = vpop.f32.mrf.mxu0
        %v5634 = vadd.f32 %v5569, %v5633
        %5635 = vmatmul.f32.gmra.mxu0 %v5475
        %v5636 = vpop.f32.mrf.mxu0
        %v5637 = vadd.f32 %v5572, %v5636
        %5638 = vmatmul.f32.gmra.mxu0 %v5478
        %v5639 = vpop.f32.mrf.mxu0
        %v5640 = vadd.f32 %v5575, %v5639
        %5641 = vmatmul.f32.gmra.mxu0 %v5481
        %v5642 = vpop.f32.mrf.mxu0
        %v5643 = vadd.f32 %v5578, %v5642
        %5644 = vmatmul.f32.gmra.mxu0 %v5484
        %v5645 = vpop.f32.mrf.mxu0
        %v5646 = vadd.f32 %v5581, %v5645
        %5647 = vmatmul.f32.gmra.mxu0 %v5487
        %v5648 = vpop.f32.mrf.mxu0
        %v5649 = vadd.f32 %v5584, %v5648
        %5650 = vmatmul.f32.gmra.mxu0 %v5490
        %v5651 = vpop.f32.mrf.mxu0
        %v5652 = vadd.f32 %v5587, %v5651
        %5653 = vmatmul.f32.gmra.mxu0 %v5493
        %v5654 = vpop.f32.mrf.mxu0
        %v5655 = vadd.f32 %v5590, %v5654
        %5656 = vmatmul.f32.gmra.mxu0 %v5496
        %v5657 = vpop.f32.mrf.mxu0
        %v5658 = vadd.f32 %v5593, %v5657
        %5659 = vmatmul.f32.gmra.mxu0 %v5499
        %v5660 = vpop.f32.mrf.mxu0
        %v5661 = vadd.f32 %v5596, %v5660
        %5662 = vmatmul.f32.gmra.mxu0 %v5502
        %v5663 = vpop.f32.mrf.mxu0
        %v5664 = vadd.f32 %v5599, %v5663
        %5665 = vmatmul.f32.gmra.mxu0 %v5505
        %v5666 = vpop.f32.mrf.mxu0
        %v5667 = vadd.f32 %v5602, %v5666
        %5668 = vdwg.mxu0
        %5669 = vst [vmem:[%s508] sm:$0xff] %v5622
        %5670 = vst [vmem:[%s508 + $0x8] sm:$0xff] %v5625
        %5671 = vst [vmem:[%s508 + $0x10] sm:$0xff] %v5628
        %5672 = vst [vmem:[%s508 + $0x18] sm:$0xff] %v5631
        %5673 = vst [vmem:[%s508 + $0x20] sm:$0xff] %v5634
        %5674 = vst [vmem:[%s508 + $0x28] sm:$0xff] %v5637
        %5675 = vst [vmem:[%s508 + $0x30] sm:$0xff] %v5640
        %5676 = vst [vmem:[%s508 + $0x38] sm:$0xff] %v5643
        %5677 = vst [vmem:[%s508 + $0x40] sm:$0xff] %v5646
        %5678 = vst [vmem:[%s508 + $0x48] sm:$0xff] %v5649
        %5679 = vst [vmem:[%s508 + $0x50] sm:$0xff] %v5652
        %5680 = vst [vmem:[%s508 + $0x58] sm:$0xff] %v5655
        %5681 = vst [vmem:[%s508 + $0x60] sm:$0xff] %v5658
        %5682 = vst [vmem:[%s508 + $0x68] sm:$0xff] %v5661
        %5683 = vst [vmem:[%s508 + $0x70] sm:$0xff] %v5664
        %5684 = vst [vmem:[%s508 + $0x78] sm:$0xff] %v5667
        %v5685 = vld [vmem:[#allocation10 + $0x8] sm:$0xff]
        %v5686 = vld [vmem:[#allocation10 + $0x48] sm:$0xff]
        %v5687 = vld [vmem:[#allocation10 + $0x88] sm:$0xff]
        %v5688 = vld [vmem:[#allocation10 + $0xc8] sm:$0xff]
        %v5689 = vld [vmem:[#allocation10 + $0x108] sm:$0xff]
        %v5690 = vld [vmem:[#allocation10 + $0x148] sm:$0xff]
        %v5691 = vld [vmem:[#allocation10 + $0x188] sm:$0xff]
        %v5692 = vld [vmem:[#allocation10 + $0x1c8] sm:$0xff]
        %v5693 = vld [vmem:[#allocation10 + $0x208] sm:$0xff]
        %v5694 = vld [vmem:[#allocation10 + $0x248] sm:$0xff]
        %v5695 = vld [vmem:[#allocation10 + $0x288] sm:$0xff]
        %v5696 = vld [vmem:[#allocation10 + $0x2c8] sm:$0xff]
        %v5697 = vld [vmem:[#allocation10 + $0x308] sm:$0xff]
        %v5698 = vld [vmem:[#allocation10 + $0x348] sm:$0xff]
        %v5699 = vld [vmem:[#allocation10 + $0x388] sm:$0xff]
        %v5700 = vld [vmem:[#allocation10 + $0x3c8] sm:$0xff]
        %v5701 = vld [vmem:[#allocation10 + $0x408] sm:$0xff]
        %v5702 = vld [vmem:[#allocation10 + $0x448] sm:$0xff]
        %v5703 = vld [vmem:[#allocation10 + $0x488] sm:$0xff]
        %v5704 = vld [vmem:[#allocation10 + $0x4c8] sm:$0xff]
        %v5705 = vld [vmem:[#allocation10 + $0x508] sm:$0xff]
        %v5706 = vld [vmem:[#allocation10 + $0x548] sm:$0xff]
        %v5707 = vld [vmem:[#allocation10 + $0x588] sm:$0xff]
        %v5708 = vld [vmem:[#allocation10 + $0x5c8] sm:$0xff]
        %v5709 = vld [vmem:[#allocation10 + $0x608] sm:$0xff]
        %v5710 = vld [vmem:[#allocation10 + $0x648] sm:$0xff]
        %v5711 = vld [vmem:[#allocation10 + $0x688] sm:$0xff]
        %v5712 = vld [vmem:[#allocation10 + $0x6c8] sm:$0xff]
        %v5713 = vld [vmem:[#allocation10 + $0x708] sm:$0xff]
        %v5714 = vld [vmem:[#allocation10 + $0x748] sm:$0xff]
        %v5715 = vld [vmem:[#allocation10 + $0x788] sm:$0xff]
        %v5716 = vld [vmem:[#allocation10 + $0x7c8] sm:$0xff]
        %5717 = vmatpush.msra.mxu0 %v5700
        %5718 = vmatpush.msra.mxu0 %v5699
        %5719 = vmatpush.msra.mxu0 %v5698
        %5720 = vmatpush.msra.mxu0 %v5697
        %5721 = vmatpush.msra.mxu0 %v5696
        %5722 = vmatpush.msra.mxu0 %v5695
        %5723 = vmatpush.msra.mxu0 %v5694
        %5724 = vmatpush.msra.mxu0 %v5693
        %5725 = vmatpush.msra.mxu0 %v5692
        %5726 = vmatpush.msra.mxu0 %v5691
        %5727 = vmatpush.msra.mxu0 %v5690
        %5728 = vmatpush.msra.mxu0 %v5689
        %5729 = vmatpush.msra.mxu0 %v5688
        %5730 = vmatpush.msra.mxu0 %v5687
        %5731 = vmatpush.msra.mxu0 %v5686
        %5732 = vmatpush.msra.mxu0 %v5685
        %5733 = vmatmul.f32.gmra.mxu0 %v5395
        %v5734 = vpop.f32.mrf.mxu0
        %v5735 = vadd.f32 0.0, %v5734
        %5736 = vmatmul.f32.gmra.mxu0 %v5398
        %v5737 = vpop.f32.mrf.mxu0
        %v5738 = vadd.f32 0.0, %v5737
        %5739 = vmatmul.f32.gmra.mxu0 %v5401
        %v5740 = vpop.f32.mrf.mxu0
        %v5741 = vadd.f32 0.0, %v5740
        %5742 = vmatmul.f32.gmra.mxu0 %v5404
        %v5743 = vpop.f32.mrf.mxu0
        %v5744 = vadd.f32 0.0, %v5743
        %5745 = vmatmul.f32.gmra.mxu0 %v5407
        %v5746 = vpop.f32.mrf.mxu0
        %v5747 = vadd.f32 0.0, %v5746
        %5748 = vmatmul.f32.gmra.mxu0 %v5410
        %v5749 = vpop.f32.mrf.mxu0
        %v5750 = vadd.f32 0.0, %v5749
        %5751 = vmatmul.f32.gmra.mxu0 %v5413
        %v5752 = vpop.f32.mrf.mxu0
        %v5753 = vadd.f32 0.0, %v5752
        %5754 = vmatmul.f32.gmra.mxu0 %v5416
        %v5755 = vpop.f32.mrf.mxu0
        %v5756 = vadd.f32 0.0, %v5755
        %5757 = vmatmul.f32.gmra.mxu0 %v5419
        %v5758 = vpop.f32.mrf.mxu0
        %v5759 = vadd.f32 0.0, %v5758
        %5760 = vmatmul.f32.gmra.mxu0 %v5422
        %v5761 = vpop.f32.mrf.mxu0
        %v5762 = vadd.f32 0.0, %v5761
        %5763 = vmatmul.f32.gmra.mxu0 %v5425
        %v5764 = vpop.f32.mrf.mxu0
        %v5765 = vadd.f32 0.0, %v5764
        %5766 = vmatmul.f32.gmra.mxu0 %v5428
        %v5767 = vpop.f32.mrf.mxu0
        %v5768 = vadd.f32 0.0, %v5767
        %5769 = vmatmul.f32.gmra.mxu0 %v5431
        %v5770 = vpop.f32.mrf.mxu0
        %v5771 = vadd.f32 0.0, %v5770
        %5772 = vmatmul.f32.gmra.mxu0 %v5434
        %v5773 = vpop.f32.mrf.mxu0
        %v5774 = vadd.f32 0.0, %v5773
        %5775 = vmatmul.f32.gmra.mxu0 %v5437
        %v5776 = vpop.f32.mrf.mxu0
        %v5777 = vadd.f32 0.0, %v5776
        %5778 = vmatmul.f32.gmra.mxu0 %v5440
        %v5779 = vpop.f32.mrf.mxu0
        %v5780 = vadd.f32 0.0, %v5779
        %5781 = vdwg.mxu0
        %5782 = vmatpush.msra.mxu0 %v5716
        %5783 = vmatpush.msra.mxu0 %v5715
        %5784 = vmatpush.msra.mxu0 %v5714
        %5785 = vmatpush.msra.mxu0 %v5713
        %5786 = vmatpush.msra.mxu0 %v5712
        %5787 = vmatpush.msra.mxu0 %v5711
        %5788 = vmatpush.msra.mxu0 %v5710
        %5789 = vmatpush.msra.mxu0 %v5709
        %5790 = vmatpush.msra.mxu0 %v5708
        %5791 = vmatpush.msra.mxu0 %v5707
        %5792 = vmatpush.msra.mxu0 %v5706
        %5793 = vmatpush.msra.mxu0 %v5705
        %5794 = vmatpush.msra.mxu0 %v5704
        %5795 = vmatpush.msra.mxu0 %v5703
        %5796 = vmatpush.msra.mxu0 %v5702
        %5797 = vmatpush.msra.mxu0 %v5701
        %5798 = vmatmul.f32.gmra.mxu0 %v5460
        %v5799 = vpop.f32.mrf.mxu0
        %v5800 = vadd.f32 %v5735, %v5799
        %5801 = vmatmul.f32.gmra.mxu0 %v5463
        %v5802 = vpop.f32.mrf.mxu0
        %v5803 = vadd.f32 %v5738, %v5802
        %5804 = vmatmul.f32.gmra.mxu0 %v5466
        %v5805 = vpop.f32.mrf.mxu0
        %v5806 = vadd.f32 %v5741, %v5805
        %5807 = vmatmul.f32.gmra.mxu0 %v5469
        %v5808 = vpop.f32.mrf.mxu0
        %v5809 = vadd.f32 %v5744, %v5808
        %5810 = vmatmul.f32.gmra.mxu0 %v5472
        %v5811 = vpop.f32.mrf.mxu0
        %v5812 = vadd.f32 %v5747, %v5811
        %5813 = vmatmul.f32.gmra.mxu0 %v5475
        %v5814 = vpop.f32.mrf.mxu0
        %v5815 = vadd.f32 %v5750, %v5814
        %5816 = vmatmul.f32.gmra.mxu0 %v5478
        %v5817 = vpop.f32.mrf.mxu0
        %v5818 = vadd.f32 %v5753, %v5817
        %5819 = vmatmul.f32.gmra.mxu0 %v5481
        %v5820 = vpop.f32.mrf.mxu0
        %v5821 = vadd.f32 %v5756, %v5820
        %5822 = vmatmul.f32.gmra.mxu0 %v5484
        %v5823 = vpop.f32.mrf.mxu0
        %v5824 = vadd.f32 %v5759, %v5823
        %5825 = vmatmul.f32.gmra.mxu0 %v5487
        %v5826 = vpop.f32.mrf.mxu0
        %v5827 = vadd.f32 %v5762, %v5826
        %5828 = vmatmul.f32.gmra.mxu0 %v5490
        %v5829 = vpop.f32.mrf.mxu0
        %v5830 = vadd.f32 %v5765, %v5829
        %5831 = vmatmul.f32.gmra.mxu0 %v5493
        %v5832 = vpop.f32.mrf.mxu0
        %v5833 = vadd.f32 %v5768, %v5832
        %5834 = vmatmul.f32.gmra.mxu0 %v5496
        %v5835 = vpop.f32.mrf.mxu0
        %v5836 = vadd.f32 %v5771, %v5835
        %5837 = vmatmul.f32.gmra.mxu0 %v5499
        %v5838 = vpop.f32.mrf.mxu0
        %v5839 = vadd.f32 %v5774, %v5838
        %5840 = vmatmul.f32.gmra.mxu0 %v5502
        %v5841 = vpop.f32.mrf.mxu0
        %v5842 = vadd.f32 %v5777, %v5841
        %5843 = vmatmul.f32.gmra.mxu0 %v5505
        %v5844 = vpop.f32.mrf.mxu0
        %v5845 = vadd.f32 %v5780, %v5844
        %5846 = vdwg.mxu0
        %s5847 = scalar_lea.vmem %s508, 128 [#allocation11]
        %5848 = vst [vmem:[%s5847] sm:$0xff] %v5800
        %5849 = vst [vmem:[%s5847 + $0x8] sm:$0xff] %v5803
        %5850 = vst [vmem:[%s5847 + $0x10] sm:$0xff] %v5806
        %5851 = vst [vmem:[%s5847 + $0x18] sm:$0xff] %v5809
        %5852 = vst [vmem:[%s5847 + $0x20] sm:$0xff] %v5812
        %5853 = vst [vmem:[%s5847 + $0x28] sm:$0xff] %v5815
        %5854 = vst [vmem:[%s5847 + $0x30] sm:$0xff] %v5818
        %5855 = vst [vmem:[%s5847 + $0x38] sm:$0xff] %v5821
        %5856 = vst [vmem:[%s5847 + $0x40] sm:$0xff] %v5824
        %5857 = vst [vmem:[%s5847 + $0x48] sm:$0xff] %v5827
        %5858 = vst [vmem:[%s5847 + $0x50] sm:$0xff] %v5830
        %5859 = vst [vmem:[%s5847 + $0x58] sm:$0xff] %v5833
        %5860 = vst [vmem:[%s5847 + $0x60] sm:$0xff] %v5836
        %5861 = vst [vmem:[%s5847 + $0x68] sm:$0xff] %v5839
        %5862 = vst [vmem:[%s5847 + $0x70] sm:$0xff] %v5842
        %5863 = vst [vmem:[%s5847 + $0x78] sm:$0xff] %v5845
        %v5864 = vld [vmem:[#allocation10 + $0x10] sm:$0xff]
        %v5865 = vld [vmem:[#allocation10 + $0x50] sm:$0xff]
        %v5866 = vld [vmem:[#allocation10 + $0x90] sm:$0xff]
        %v5867 = vld [vmem:[#allocation10 + $0xd0] sm:$0xff]
        %v5868 = vld [vmem:[#allocation10 + $0x110] sm:$0xff]
        %v5869 = vld [vmem:[#allocation10 + $0x150] sm:$0xff]
        %v5870 = vld [vmem:[#allocation10 + $0x190] sm:$0xff]
        %v5871 = vld [vmem:[#allocation10 + $0x1d0] sm:$0xff]
        %v5872 = vld [vmem:[#allocation10 + $0x210] sm:$0xff]
        %v5873 = vld [vmem:[#allocation10 + $0x250] sm:$0xff]
        %v5874 = vld [vmem:[#allocation10 + $0x290] sm:$0xff]
        %v5875 = vld [vmem:[#allocation10 + $0x2d0] sm:$0xff]
        %v5876 = vld [vmem:[#allocation10 + $0x310] sm:$0xff]
        %v5877 = vld [vmem:[#allocation10 + $0x350] sm:$0xff]
        %v5878 = vld [vmem:[#allocation10 + $0x390] sm:$0xff]
        %v5879 = vld [vmem:[#allocation10 + $0x3d0] sm:$0xff]
        %v5880 = vld [vmem:[#allocation10 + $0x410] sm:$0xff]
        %v5881 = vld [vmem:[#allocation10 + $0x450] sm:$0xff]
        %v5882 = vld [vmem:[#allocation10 + $0x490] sm:$0xff]
        %v5883 = vld [vmem:[#allocation10 + $0x4d0] sm:$0xff]
        %v5884 = vld [vmem:[#allocation10 + $0x510] sm:$0xff]
        %v5885 = vld [vmem:[#allocation10 + $0x550] sm:$0xff]
        %v5886 = vld [vmem:[#allocation10 + $0x590] sm:$0xff]
        %v5887 = vld [vmem:[#allocation10 + $0x5d0] sm:$0xff]
        %v5888 = vld [vmem:[#allocation10 + $0x610] sm:$0xff]
        %v5889 = vld [vmem:[#allocation10 + $0x650] sm:$0xff]
        %v5890 = vld [vmem:[#allocation10 + $0x690] sm:$0xff]
        %v5891 = vld [vmem:[#allocation10 + $0x6d0] sm:$0xff]
        %v5892 = vld [vmem:[#allocation10 + $0x710] sm:$0xff]
        %v5893 = vld [vmem:[#allocation10 + $0x750] sm:$0xff]
        %v5894 = vld [vmem:[#allocation10 + $0x790] sm:$0xff]
        %v5895 = vld [vmem:[#allocation10 + $0x7d0] sm:$0xff]
        %5896 = vmatpush.msra.mxu0 %v5879
        %5897 = vmatpush.msra.mxu0 %v5878
        %5898 = vmatpush.msra.mxu0 %v5877
        %5899 = vmatpush.msra.mxu0 %v5876
        %5900 = vmatpush.msra.mxu0 %v5875
        %5901 = vmatpush.msra.mxu0 %v5874
        %5902 = vmatpush.msra.mxu0 %v5873
        %5903 = vmatpush.msra.mxu0 %v5872
        %5904 = vmatpush.msra.mxu0 %v5871
        %5905 = vmatpush.msra.mxu0 %v5870
        %5906 = vmatpush.msra.mxu0 %v5869
        %5907 = vmatpush.msra.mxu0 %v5868
        %5908 = vmatpush.msra.mxu0 %v5867
        %5909 = vmatpush.msra.mxu0 %v5866
        %5910 = vmatpush.msra.mxu0 %v5865
        %5911 = vmatpush.msra.mxu0 %v5864
        %5912 = vmatmul.f32.gmra.mxu0 %v5395
        %v5913 = vpop.f32.mrf.mxu0
        %v5914 = vadd.f32 0.0, %v5913
        %5915 = vmatmul.f32.gmra.mxu0 %v5398
        %v5916 = vpop.f32.mrf.mxu0
        %v5917 = vadd.f32 0.0, %v5916
        %5918 = vmatmul.f32.gmra.mxu0 %v5401
        %v5919 = vpop.f32.mrf.mxu0
        %v5920 = vadd.f32 0.0, %v5919
        %5921 = vmatmul.f32.gmra.mxu0 %v5404
        %v5922 = vpop.f32.mrf.mxu0
        %v5923 = vadd.f32 0.0, %v5922
        %5924 = vmatmul.f32.gmra.mxu0 %v5407
        %v5925 = vpop.f32.mrf.mxu0
        %v5926 = vadd.f32 0.0, %v5925
        %5927 = vmatmul.f32.gmra.mxu0 %v5410
        %v5928 = vpop.f32.mrf.mxu0
        %v5929 = vadd.f32 0.0, %v5928
        %5930 = vmatmul.f32.gmra.mxu0 %v5413
        %v5931 = vpop.f32.mrf.mxu0
        %v5932 = vadd.f32 0.0, %v5931
        %5933 = vmatmul.f32.gmra.mxu0 %v5416
        %v5934 = vpop.f32.mrf.mxu0
        %v5935 = vadd.f32 0.0, %v5934
        %5936 = vmatmul.f32.gmra.mxu0 %v5419
        %v5937 = vpop.f32.mrf.mxu0
        %v5938 = vadd.f32 0.0, %v5937
        %5939 = vmatmul.f32.gmra.mxu0 %v5422
        %v5940 = vpop.f32.mrf.mxu0
        %v5941 = vadd.f32 0.0, %v5940
        %5942 = vmatmul.f32.gmra.mxu0 %v5425
        %v5943 = vpop.f32.mrf.mxu0
        %v5944 = vadd.f32 0.0, %v5943
        %5945 = vmatmul.f32.gmra.mxu0 %v5428
        %v5946 = vpop.f32.mrf.mxu0
        %v5947 = vadd.f32 0.0, %v5946
        %5948 = vmatmul.f32.gmra.mxu0 %v5431
        %v5949 = vpop.f32.mrf.mxu0
        %v5950 = vadd.f32 0.0, %v5949
        %5951 = vmatmul.f32.gmra.mxu0 %v5434
        %v5952 = vpop.f32.mrf.mxu0
        %v5953 = vadd.f32 0.0, %v5952
        %5954 = vmatmul.f32.gmra.mxu0 %v5437
        %v5955 = vpop.f32.mrf.mxu0
        %v5956 = vadd.f32 0.0, %v5955
        %5957 = vmatmul.f32.gmra.mxu0 %v5440
        %v5958 = vpop.f32.mrf.mxu0
        %v5959 = vadd.f32 0.0, %v5958
        %5960 = vdwg.mxu0
        %5961 = vmatpush.msra.mxu0 %v5895
        %5962 = vmatpush.msra.mxu0 %v5894
        %5963 = vmatpush.msra.mxu0 %v5893
        %5964 = vmatpush.msra.mxu0 %v5892
        %5965 = vmatpush.msra.mxu0 %v5891
        %5966 = vmatpush.msra.mxu0 %v5890
        %5967 = vmatpush.msra.mxu0 %v5889
        %5968 = vmatpush.msra.mxu0 %v5888
        %5969 = vmatpush.msra.mxu0 %v5887
        %5970 = vmatpush.msra.mxu0 %v5886
        %5971 = vmatpush.msra.mxu0 %v5885
        %5972 = vmatpush.msra.mxu0 %v5884
        %5973 = vmatpush.msra.mxu0 %v5883
        %5974 = vmatpush.msra.mxu0 %v5882
        %5975 = vmatpush.msra.mxu0 %v5881
        %5976 = vmatpush.msra.mxu0 %v5880
        %5977 = vmatmul.f32.gmra.mxu0 %v5460
        %v5978 = vpop.f32.mrf.mxu0
        %v5979 = vadd.f32 %v5914, %v5978
        %5980 = vmatmul.f32.gmra.mxu0 %v5463
        %v5981 = vpop.f32.mrf.mxu0
        %v5982 = vadd.f32 %v5917, %v5981
        %5983 = vmatmul.f32.gmra.mxu0 %v5466
        %v5984 = vpop.f32.mrf.mxu0
        %v5985 = vadd.f32 %v5920, %v5984
        %5986 = vmatmul.f32.gmra.mxu0 %v5469
        %v5987 = vpop.f32.mrf.mxu0
        %v5988 = vadd.f32 %v5923, %v5987
        %5989 = vmatmul.f32.gmra.mxu0 %v5472
        %v5990 = vpop.f32.mrf.mxu0
        %v5991 = vadd.f32 %v5926, %v5990
        %5992 = vmatmul.f32.gmra.mxu0 %v5475
        %v5993 = vpop.f32.mrf.mxu0
        %v5994 = vadd.f32 %v5929, %v5993
        %5995 = vmatmul.f32.gmra.mxu0 %v5478
        %v5996 = vpop.f32.mrf.mxu0
        %v5997 = vadd.f32 %v5932, %v5996
        %5998 = vmatmul.f32.gmra.mxu0 %v5481
        %v5999 = vpop.f32.mrf.mxu0
        %v6000 = vadd.f32 %v5935, %v5999
        %6001 = vmatmul.f32.gmra.mxu0 %v5484
        %v6002 = vpop.f32.mrf.mxu0
        %v6003 = vadd.f32 %v5938, %v6002
        %6004 = vmatmul.f32.gmra.mxu0 %v5487
        %v6005 = vpop.f32.mrf.mxu0
        %v6006 = vadd.f32 %v5941, %v6005
        %6007 = vmatmul.f32.gmra.mxu0 %v5490
        %v6008 = vpop.f32.mrf.mxu0
        %v6009 = vadd.f32 %v5944, %v6008
        %6010 = vmatmul.f32.gmra.mxu0 %v5493
        %v6011 = vpop.f32.mrf.mxu0
        %v6012 = vadd.f32 %v5947, %v6011
        %6013 = vmatmul.f32.gmra.mxu0 %v5496
        %v6014 = vpop.f32.mrf.mxu0
        %v6015 = vadd.f32 %v5950, %v6014
        %6016 = vmatmul.f32.gmra.mxu0 %v5499
        %v6017 = vpop.f32.mrf.mxu0
        %v6018 = vadd.f32 %v5953, %v6017
        %6019 = vmatmul.f32.gmra.mxu0 %v5502
        %v6020 = vpop.f32.mrf.mxu0
        %v6021 = vadd.f32 %v5956, %v6020
        %6022 = vmatmul.f32.gmra.mxu0 %v5505
        %v6023 = vpop.f32.mrf.mxu0
        %v6024 = vadd.f32 %v5959, %v6023
        %6025 = vdwg.mxu0
        %s6026 = scalar_lea.vmem %s508, 256 [#allocation11]
        %6027 = vst [vmem:[%s6026] sm:$0xff] %v5979
        %6028 = vst [vmem:[%s6026 + $0x8] sm:$0xff] %v5982
        %6029 = vst [vmem:[%s6026 + $0x10] sm:$0xff] %v5985
        %6030 = vst [vmem:[%s6026 + $0x18] sm:$0xff] %v5988
        %6031 = vst [vmem:[%s6026 + $0x20] sm:$0xff] %v5991
        %6032 = vst [vmem:[%s6026 + $0x28] sm:$0xff] %v5994
        %6033 = vst [vmem:[%s6026 + $0x30] sm:$0xff] %v5997
        %6034 = vst [vmem:[%s6026 + $0x38] sm:$0xff] %v6000
        %6035 = vst [vmem:[%s6026 + $0x40] sm:$0xff] %v6003
        %6036 = vst [vmem:[%s6026 + $0x48] sm:$0xff] %v6006
        %6037 = vst [vmem:[%s6026 + $0x50] sm:$0xff] %v6009
        %6038 = vst [vmem:[%s6026 + $0x58] sm:$0xff] %v6012
        %6039 = vst [vmem:[%s6026 + $0x60] sm:$0xff] %v6015
        %6040 = vst [vmem:[%s6026 + $0x68] sm:$0xff] %v6018
        %6041 = vst [vmem:[%s6026 + $0x70] sm:$0xff] %v6021
        %6042 = vst [vmem:[%s6026 + $0x78] sm:$0xff] %v6024
        %v6043 = vld [vmem:[#allocation10 + $0x18] sm:$0xff]
        %v6044 = vld [vmem:[#allocation10 + $0x58] sm:$0xff]
        %v6045 = vld [vmem:[#allocation10 + $0x98] sm:$0xff]
        %v6046 = vld [vmem:[#allocation10 + $0xd8] sm:$0xff]
        %v6047 = vld [vmem:[#allocation10 + $0x118] sm:$0xff]
        %v6048 = vld [vmem:[#allocation10 + $0x158] sm:$0xff]
        %v6049 = vld [vmem:[#allocation10 + $0x198] sm:$0xff]
        %v6050 = vld [vmem:[#allocation10 + $0x1d8] sm:$0xff]
        %v6051 = vld [vmem:[#allocation10 + $0x218] sm:$0xff]
        %v6052 = vld [vmem:[#allocation10 + $0x258] sm:$0xff]
        %v6053 = vld [vmem:[#allocation10 + $0x298] sm:$0xff]
        %v6054 = vld [vmem:[#allocation10 + $0x2d8] sm:$0xff]
        %v6055 = vld [vmem:[#allocation10 + $0x318] sm:$0xff]
        %v6056 = vld [vmem:[#allocation10 + $0x358] sm:$0xff]
        %v6057 = vld [vmem:[#allocation10 + $0x398] sm:$0xff]
        %v6058 = vld [vmem:[#allocation10 + $0x3d8] sm:$0xff]
        %v6059 = vld [vmem:[#allocation10 + $0x418] sm:$0xff]
        %v6060 = vld [vmem:[#allocation10 + $0x458] sm:$0xff]
        %v6061 = vld [vmem:[#allocation10 + $0x498] sm:$0xff]
        %v6062 = vld [vmem:[#allocation10 + $0x4d8] sm:$0xff]
        %v6063 = vld [vmem:[#allocation10 + $0x518] sm:$0xff]
        %v6064 = vld [vmem:[#allocation10 + $0x558] sm:$0xff]
        %v6065 = vld [vmem:[#allocation10 + $0x598] sm:$0xff]
        %v6066 = vld [vmem:[#allocation10 + $0x5d8] sm:$0xff]
        %v6067 = vld [vmem:[#allocation10 + $0x618] sm:$0xff]
        %v6068 = vld [vmem:[#allocation10 + $0x658] sm:$0xff]
        %v6069 = vld [vmem:[#allocation10 + $0x698] sm:$0xff]
        %v6070 = vld [vmem:[#allocation10 + $0x6d8] sm:$0xff]
        %v6071 = vld [vmem:[#allocation10 + $0x718] sm:$0xff]
        %v6072 = vld [vmem:[#allocation10 + $0x758] sm:$0xff]
        %v6073 = vld [vmem:[#allocation10 + $0x798] sm:$0xff]
        %v6074 = vld [vmem:[#allocation10 + $0x7d8] sm:$0xff]
        %6075 = vmatpush.msra.mxu0 %v6058
        %6076 = vmatpush.msra.mxu0 %v6057
        %6077 = vmatpush.msra.mxu0 %v6056
        %6078 = vmatpush.msra.mxu0 %v6055
        %6079 = vmatpush.msra.mxu0 %v6054
        %6080 = vmatpush.msra.mxu0 %v6053
        %6081 = vmatpush.msra.mxu0 %v6052
        %6082 = vmatpush.msra.mxu0 %v6051
        %6083 = vmatpush.msra.mxu0 %v6050
        %6084 = vmatpush.msra.mxu0 %v6049
        %6085 = vmatpush.msra.mxu0 %v6048
        %6086 = vmatpush.msra.mxu0 %v6047
        %6087 = vmatpush.msra.mxu0 %v6046
        %6088 = vmatpush.msra.mxu0 %v6045
        %6089 = vmatpush.msra.mxu0 %v6044
        %6090 = vmatpush.msra.mxu0 %v6043
        %6091 = vmatmul.f32.gmra.mxu0 %v5395
        %v6092 = vpop.f32.mrf.mxu0
        %v6093 = vadd.f32 0.0, %v6092
        %6094 = vmatmul.f32.gmra.mxu0 %v5398
        %v6095 = vpop.f32.mrf.mxu0
        %v6096 = vadd.f32 0.0, %v6095
        %6097 = vmatmul.f32.gmra.mxu0 %v5401
        %v6098 = vpop.f32.mrf.mxu0
        %v6099 = vadd.f32 0.0, %v6098
        %6100 = vmatmul.f32.gmra.mxu0 %v5404
        %v6101 = vpop.f32.mrf.mxu0
        %v6102 = vadd.f32 0.0, %v6101
        %6103 = vmatmul.f32.gmra.mxu0 %v5407
        %v6104 = vpop.f32.mrf.mxu0
        %v6105 = vadd.f32 0.0, %v6104
        %6106 = vmatmul.f32.gmra.mxu0 %v5410
        %v6107 = vpop.f32.mrf.mxu0
        %v6108 = vadd.f32 0.0, %v6107
        %6109 = vmatmul.f32.gmra.mxu0 %v5413
        %v6110 = vpop.f32.mrf.mxu0
        %v6111 = vadd.f32 0.0, %v6110
        %6112 = vmatmul.f32.gmra.mxu0 %v5416
        %v6113 = vpop.f32.mrf.mxu0
        %v6114 = vadd.f32 0.0, %v6113
        %6115 = vmatmul.f32.gmra.mxu0 %v5419
        %v6116 = vpop.f32.mrf.mxu0
        %v6117 = vadd.f32 0.0, %v6116
        %6118 = vmatmul.f32.gmra.mxu0 %v5422
        %v6119 = vpop.f32.mrf.mxu0
        %v6120 = vadd.f32 0.0, %v6119
        %6121 = vmatmul.f32.gmra.mxu0 %v5425
        %v6122 = vpop.f32.mrf.mxu0
        %v6123 = vadd.f32 0.0, %v6122
        %6124 = vmatmul.f32.gmra.mxu0 %v5428
        %v6125 = vpop.f32.mrf.mxu0
        %v6126 = vadd.f32 0.0, %v6125
        %6127 = vmatmul.f32.gmra.mxu0 %v5431
        %v6128 = vpop.f32.mrf.mxu0
        %v6129 = vadd.f32 0.0, %v6128
        %6130 = vmatmul.f32.gmra.mxu0 %v5434
        %v6131 = vpop.f32.mrf.mxu0
        %v6132 = vadd.f32 0.0, %v6131
        %6133 = vmatmul.f32.gmra.mxu0 %v5437
        %v6134 = vpop.f32.mrf.mxu0
        %v6135 = vadd.f32 0.0, %v6134
        %6136 = vmatmul.f32.gmra.mxu0 %v5440
        %v6137 = vpop.f32.mrf.mxu0
        %v6138 = vadd.f32 0.0, %v6137
        %6139 = vdwg.mxu0
        %6140 = vmatpush.msra.mxu0 %v6074
        %6141 = vmatpush.msra.mxu0 %v6073
        %6142 = vmatpush.msra.mxu0 %v6072
        %6143 = vmatpush.msra.mxu0 %v6071
        %6144 = vmatpush.msra.mxu0 %v6070
        %6145 = vmatpush.msra.mxu0 %v6069
        %6146 = vmatpush.msra.mxu0 %v6068
        %6147 = vmatpush.msra.mxu0 %v6067
        %6148 = vmatpush.msra.mxu0 %v6066
        %6149 = vmatpush.msra.mxu0 %v6065
        %6150 = vmatpush.msra.mxu0 %v6064
        %6151 = vmatpush.msra.mxu0 %v6063
        %6152 = vmatpush.msra.mxu0 %v6062
        %6153 = vmatpush.msra.mxu0 %v6061
        %6154 = vmatpush.msra.mxu0 %v6060
        %6155 = vmatpush.msra.mxu0 %v6059
        %6156 = vmatmul.f32.gmra.mxu0 %v5460
        %v6157 = vpop.f32.mrf.mxu0
        %v6158 = vadd.f32 %v6093, %v6157
        %6159 = vmatmul.f32.gmra.mxu0 %v5463
        %v6160 = vpop.f32.mrf.mxu0
        %v6161 = vadd.f32 %v6096, %v6160
        %6162 = vmatmul.f32.gmra.mxu0 %v5466
        %v6163 = vpop.f32.mrf.mxu0
        %v6164 = vadd.f32 %v6099, %v6163
        %6165 = vmatmul.f32.gmra.mxu0 %v5469
        %v6166 = vpop.f32.mrf.mxu0
        %v6167 = vadd.f32 %v6102, %v6166
        %6168 = vmatmul.f32.gmra.mxu0 %v5472
        %v6169 = vpop.f32.mrf.mxu0
        %v6170 = vadd.f32 %v6105, %v6169
        %6171 = vmatmul.f32.gmra.mxu0 %v5475
        %v6172 = vpop.f32.mrf.mxu0
        %v6173 = vadd.f32 %v6108, %v6172
        %6174 = vmatmul.f32.gmra.mxu0 %v5478
        %v6175 = vpop.f32.mrf.mxu0
        %v6176 = vadd.f32 %v6111, %v6175
        %6177 = vmatmul.f32.gmra.mxu0 %v5481
        %v6178 = vpop.f32.mrf.mxu0
        %v6179 = vadd.f32 %v6114, %v6178
        %6180 = vmatmul.f32.gmra.mxu0 %v5484
        %v6181 = vpop.f32.mrf.mxu0
        %v6182 = vadd.f32 %v6117, %v6181
        %6183 = vmatmul.f32.gmra.mxu0 %v5487
        %v6184 = vpop.f32.mrf.mxu0
        %v6185 = vadd.f32 %v6120, %v6184
        %6186 = vmatmul.f32.gmra.mxu0 %v5490
        %v6187 = vpop.f32.mrf.mxu0
        %v6188 = vadd.f32 %v6123, %v6187
        %6189 = vmatmul.f32.gmra.mxu0 %v5493
        %v6190 = vpop.f32.mrf.mxu0
        %v6191 = vadd.f32 %v6126, %v6190
        %6192 = vmatmul.f32.gmra.mxu0 %v5496
        %v6193 = vpop.f32.mrf.mxu0
        %v6194 = vadd.f32 %v6129, %v6193
        %6195 = vmatmul.f32.gmra.mxu0 %v5499
        %v6196 = vpop.f32.mrf.mxu0
        %v6197 = vadd.f32 %v6132, %v6196
        %6198 = vmatmul.f32.gmra.mxu0 %v5502
        %v6199 = vpop.f32.mrf.mxu0
        %v6200 = vadd.f32 %v6135, %v6199
        %6201 = vmatmul.f32.gmra.mxu0 %v5505
        %v6202 = vpop.f32.mrf.mxu0
        %v6203 = vadd.f32 %v6138, %v6202
        %6204 = vdwg.mxu0
        %s6205 = scalar_lea.vmem %s508, 384 [#allocation11]
        %6206 = vst [vmem:[%s6205] sm:$0xff] %v6158
        %6207 = vst [vmem:[%s6205 + $0x8] sm:$0xff] %v6161
        %6208 = vst [vmem:[%s6205 + $0x10] sm:$0xff] %v6164
        %6209 = vst [vmem:[%s6205 + $0x18] sm:$0xff] %v6167
        %6210 = vst [vmem:[%s6205 + $0x20] sm:$0xff] %v6170
        %6211 = vst [vmem:[%s6205 + $0x28] sm:$0xff] %v6173
        %6212 = vst [vmem:[%s6205 + $0x30] sm:$0xff] %v6176
        %6213 = vst [vmem:[%s6205 + $0x38] sm:$0xff] %v6179
        %6214 = vst [vmem:[%s6205 + $0x40] sm:$0xff] %v6182
        %6215 = vst [vmem:[%s6205 + $0x48] sm:$0xff] %v6185
        %6216 = vst [vmem:[%s6205 + $0x50] sm:$0xff] %v6188
        %6217 = vst [vmem:[%s6205 + $0x58] sm:$0xff] %v6191
        %6218 = vst [vmem:[%s6205 + $0x60] sm:$0xff] %v6194
        %6219 = vst [vmem:[%s6205 + $0x68] sm:$0xff] %v6197
        %6220 = vst [vmem:[%s6205 + $0x70] sm:$0xff] %v6200
        %6221 = vst [vmem:[%s6205 + $0x78] sm:$0xff] %v6203
        %v6222 = vld [vmem:[#allocation10 + $0x20] sm:$0xff]
        %v6223 = vld [vmem:[#allocation10 + $0x60] sm:$0xff]
        %v6224 = vld [vmem:[#allocation10 + $0xa0] sm:$0xff]
        %v6225 = vld [vmem:[#allocation10 + $0xe0] sm:$0xff]
        %v6226 = vld [vmem:[#allocation10 + $0x120] sm:$0xff]
        %v6227 = vld [vmem:[#allocation10 + $0x160] sm:$0xff]
        %v6228 = vld [vmem:[#allocation10 + $0x1a0] sm:$0xff]
        %v6229 = vld [vmem:[#allocation10 + $0x1e0] sm:$0xff]
        %v6230 = vld [vmem:[#allocation10 + $0x220] sm:$0xff]
        %v6231 = vld [vmem:[#allocation10 + $0x260] sm:$0xff]
        %v6232 = vld [vmem:[#allocation10 + $0x2a0] sm:$0xff]
        %v6233 = vld [vmem:[#allocation10 + $0x2e0] sm:$0xff]
        %v6234 = vld [vmem:[#allocation10 + $0x320] sm:$0xff]
        %v6235 = vld [vmem:[#allocation10 + $0x360] sm:$0xff]
        %v6236 = vld [vmem:[#allocation10 + $0x3a0] sm:$0xff]
        %v6237 = vld [vmem:[#allocation10 + $0x3e0] sm:$0xff]
        %v6238 = vld [vmem:[#allocation10 + $0x420] sm:$0xff]
        %v6239 = vld [vmem:[#allocation10 + $0x460] sm:$0xff]
        %v6240 = vld [vmem:[#allocation10 + $0x4a0] sm:$0xff]
        %v6241 = vld [vmem:[#allocation10 + $0x4e0] sm:$0xff]
        %v6242 = vld [vmem:[#allocation10 + $0x520] sm:$0xff]
        %v6243 = vld [vmem:[#allocation10 + $0x560] sm:$0xff]
        %v6244 = vld [vmem:[#allocation10 + $0x5a0] sm:$0xff]
        %v6245 = vld [vmem:[#allocation10 + $0x5e0] sm:$0xff]
        %v6246 = vld [vmem:[#allocation10 + $0x620] sm:$0xff]
        %v6247 = vld [vmem:[#allocation10 + $0x660] sm:$0xff]
        %v6248 = vld [vmem:[#allocation10 + $0x6a0] sm:$0xff]
        %v6249 = vld [vmem:[#allocation10 + $0x6e0] sm:$0xff]
        %v6250 = vld [vmem:[#allocation10 + $0x720] sm:$0xff]
        %v6251 = vld [vmem:[#allocation10 + $0x760] sm:$0xff]
        %v6252 = vld [vmem:[#allocation10 + $0x7a0] sm:$0xff]
        %v6253 = vld [vmem:[#allocation10 + $0x7e0] sm:$0xff]
        %6254 = vmatpush.msra.mxu0 %v6237
        %6255 = vmatpush.msra.mxu0 %v6236
        %6256 = vmatpush.msra.mxu0 %v6235
        %6257 = vmatpush.msra.mxu0 %v6234
        %6258 = vmatpush.msra.mxu0 %v6233
        %6259 = vmatpush.msra.mxu0 %v6232
        %6260 = vmatpush.msra.mxu0 %v6231
        %6261 = vmatpush.msra.mxu0 %v6230
        %6262 = vmatpush.msra.mxu0 %v6229
        %6263 = vmatpush.msra.mxu0 %v6228
        %6264 = vmatpush.msra.mxu0 %v6227
        %6265 = vmatpush.msra.mxu0 %v6226
        %6266 = vmatpush.msra.mxu0 %v6225
        %6267 = vmatpush.msra.mxu0 %v6224
        %6268 = vmatpush.msra.mxu0 %v6223
        %6269 = vmatpush.msra.mxu0 %v6222
        %6270 = vmatmul.f32.gmra.mxu0 %v5395
        %v6271 = vpop.f32.mrf.mxu0
        %v6272 = vadd.f32 0.0, %v6271
        %6273 = vmatmul.f32.gmra.mxu0 %v5398
        %v6274 = vpop.f32.mrf.mxu0
        %v6275 = vadd.f32 0.0, %v6274
        %6276 = vmatmul.f32.gmra.mxu0 %v5401
        %v6277 = vpop.f32.mrf.mxu0
        %v6278 = vadd.f32 0.0, %v6277
        %6279 = vmatmul.f32.gmra.mxu0 %v5404
        %v6280 = vpop.f32.mrf.mxu0
        %v6281 = vadd.f32 0.0, %v6280
        %6282 = vmatmul.f32.gmra.mxu0 %v5407
        %v6283 = vpop.f32.mrf.mxu0
        %v6284 = vadd.f32 0.0, %v6283
        %6285 = vmatmul.f32.gmra.mxu0 %v5410
        %v6286 = vpop.f32.mrf.mxu0
        %v6287 = vadd.f32 0.0, %v6286
        %6288 = vmatmul.f32.gmra.mxu0 %v5413
        %v6289 = vpop.f32.mrf.mxu0
        %v6290 = vadd.f32 0.0, %v6289
        %6291 = vmatmul.f32.gmra.mxu0 %v5416
        %v6292 = vpop.f32.mrf.mxu0
        %v6293 = vadd.f32 0.0, %v6292
        %6294 = vmatmul.f32.gmra.mxu0 %v5419
        %v6295 = vpop.f32.mrf.mxu0
        %v6296 = vadd.f32 0.0, %v6295
        %6297 = vmatmul.f32.gmra.mxu0 %v5422
        %v6298 = vpop.f32.mrf.mxu0
        %v6299 = vadd.f32 0.0, %v6298
        %6300 = vmatmul.f32.gmra.mxu0 %v5425
        %v6301 = vpop.f32.mrf.mxu0
        %v6302 = vadd.f32 0.0, %v6301
        %6303 = vmatmul.f32.gmra.mxu0 %v5428
        %v6304 = vpop.f32.mrf.mxu0
        %v6305 = vadd.f32 0.0, %v6304
        %6306 = vmatmul.f32.gmra.mxu0 %v5431
        %v6307 = vpop.f32.mrf.mxu0
        %v6308 = vadd.f32 0.0, %v6307
        %6309 = vmatmul.f32.gmra.mxu0 %v5434
        %v6310 = vpop.f32.mrf.mxu0
        %v6311 = vadd.f32 0.0, %v6310
        %6312 = vmatmul.f32.gmra.mxu0 %v5437
        %v6313 = vpop.f32.mrf.mxu0
        %v6314 = vadd.f32 0.0, %v6313
        %6315 = vmatmul.f32.gmra.mxu0 %v5440
        %v6316 = vpop.f32.mrf.mxu0
        %v6317 = vadd.f32 0.0, %v6316
        %6318 = vdwg.mxu0
        %6319 = vmatpush.msra.mxu0 %v6253
        %6320 = vmatpush.msra.mxu0 %v6252
        %6321 = vmatpush.msra.mxu0 %v6251
        %6322 = vmatpush.msra.mxu0 %v6250
        %6323 = vmatpush.msra.mxu0 %v6249
        %6324 = vmatpush.msra.mxu0 %v6248
        %6325 = vmatpush.msra.mxu0 %v6247
        %6326 = vmatpush.msra.mxu0 %v6246
        %6327 = vmatpush.msra.mxu0 %v6245
        %6328 = vmatpush.msra.mxu0 %v6244
        %6329 = vmatpush.msra.mxu0 %v6243
        %6330 = vmatpush.msra.mxu0 %v6242
        %6331 = vmatpush.msra.mxu0 %v6241
        %6332 = vmatpush.msra.mxu0 %v6240
        %6333 = vmatpush.msra.mxu0 %v6239
        %6334 = vmatpush.msra.mxu0 %v6238
        %6335 = vmatmul.f32.gmra.mxu0 %v5460
        %v6336 = vpop.f32.mrf.mxu0
        %v6337 = vadd.f32 %v6272, %v6336
        %6338 = vmatmul.f32.gmra.mxu0 %v5463
        %v6339 = vpop.f32.mrf.mxu0
        %v6340 = vadd.f32 %v6275, %v6339
        %6341 = vmatmul.f32.gmra.mxu0 %v5466
        %v6342 = vpop.f32.mrf.mxu0
        %v6343 = vadd.f32 %v6278, %v6342
        %6344 = vmatmul.f32.gmra.mxu0 %v5469
        %v6345 = vpop.f32.mrf.mxu0
        %v6346 = vadd.f32 %v6281, %v6345
        %6347 = vmatmul.f32.gmra.mxu0 %v5472
        %v6348 = vpop.f32.mrf.mxu0
        %v6349 = vadd.f32 %v6284, %v6348
        %6350 = vmatmul.f32.gmra.mxu0 %v5475
        %v6351 = vpop.f32.mrf.mxu0
        %v6352 = vadd.f32 %v6287, %v6351
        %6353 = vmatmul.f32.gmra.mxu0 %v5478
        %v6354 = vpop.f32.mrf.mxu0
        %v6355 = vadd.f32 %v6290, %v6354
        %6356 = vmatmul.f32.gmra.mxu0 %v5481
        %v6357 = vpop.f32.mrf.mxu0
        %v6358 = vadd.f32 %v6293, %v6357
        %6359 = vmatmul.f32.gmra.mxu0 %v5484
        %v6360 = vpop.f32.mrf.mxu0
        %v6361 = vadd.f32 %v6296, %v6360
        %6362 = vmatmul.f32.gmra.mxu0 %v5487
        %v6363 = vpop.f32.mrf.mxu0
        %v6364 = vadd.f32 %v6299, %v6363
        %6365 = vmatmul.f32.gmra.mxu0 %v5490
        %v6366 = vpop.f32.mrf.mxu0
        %v6367 = vadd.f32 %v6302, %v6366
        %6368 = vmatmul.f32.gmra.mxu0 %v5493
        %v6369 = vpop.f32.mrf.mxu0
        %v6370 = vadd.f32 %v6305, %v6369
        %6371 = vmatmul.f32.gmra.mxu0 %v5496
        %v6372 = vpop.f32.mrf.mxu0
        %v6373 = vadd.f32 %v6308, %v6372
        %6374 = vmatmul.f32.gmra.mxu0 %v5499
        %v6375 = vpop.f32.mrf.mxu0
        %v6376 = vadd.f32 %v6311, %v6375
        %6377 = vmatmul.f32.gmra.mxu0 %v5502
        %v6378 = vpop.f32.mrf.mxu0
        %v6379 = vadd.f32 %v6314, %v6378
        %6380 = vmatmul.f32.gmra.mxu0 %v5505
        %v6381 = vpop.f32.mrf.mxu0
        %v6382 = vadd.f32 %v6317, %v6381
        %6383 = vdwg.mxu0
        %s6384 = scalar_lea.vmem %s508, 512 [#allocation11]
        %6385 = vst [vmem:[%s6384] sm:$0xff] %v6337
        %6386 = vst [vmem:[%s6384 + $0x8] sm:$0xff] %v6340
        %6387 = vst [vmem:[%s6384 + $0x10] sm:$0xff] %v6343
        %6388 = vst [vmem:[%s6384 + $0x18] sm:$0xff] %v6346
        %6389 = vst [vmem:[%s6384 + $0x20] sm:$0xff] %v6349
        %6390 = vst [vmem:[%s6384 + $0x28] sm:$0xff] %v6352
        %6391 = vst [vmem:[%s6384 + $0x30] sm:$0xff] %v6355
        %6392 = vst [vmem:[%s6384 + $0x38] sm:$0xff] %v6358
        %6393 = vst [vmem:[%s6384 + $0x40] sm:$0xff] %v6361
        %6394 = vst [vmem:[%s6384 + $0x48] sm:$0xff] %v6364
        %6395 = vst [vmem:[%s6384 + $0x50] sm:$0xff] %v6367
        %6396 = vst [vmem:[%s6384 + $0x58] sm:$0xff] %v6370
        %6397 = vst [vmem:[%s6384 + $0x60] sm:$0xff] %v6373
        %6398 = vst [vmem:[%s6384 + $0x68] sm:$0xff] %v6376
        %6399 = vst [vmem:[%s6384 + $0x70] sm:$0xff] %v6379
        %6400 = vst [vmem:[%s6384 + $0x78] sm:$0xff] %v6382
        %v6401 = vld [vmem:[#allocation10 + $0x28] sm:$0xff]
        %v6402 = vld [vmem:[#allocation10 + $0x68] sm:$0xff]
        %v6403 = vld [vmem:[#allocation10 + $0xa8] sm:$0xff]
        %v6404 = vld [vmem:[#allocation10 + $0xe8] sm:$0xff]
        %v6405 = vld [vmem:[#allocation10 + $0x128] sm:$0xff]
        %v6406 = vld [vmem:[#allocation10 + $0x168] sm:$0xff]
        %v6407 = vld [vmem:[#allocation10 + $0x1a8] sm:$0xff]
        %v6408 = vld [vmem:[#allocation10 + $0x1e8] sm:$0xff]
        %v6409 = vld [vmem:[#allocation10 + $0x228] sm:$0xff]
        %v6410 = vld [vmem:[#allocation10 + $0x268] sm:$0xff]
        %v6411 = vld [vmem:[#allocation10 + $0x2a8] sm:$0xff]
        %v6412 = vld [vmem:[#allocation10 + $0x2e8] sm:$0xff]
        %v6413 = vld [vmem:[#allocation10 + $0x328] sm:$0xff]
        %v6414 = vld [vmem:[#allocation10 + $0x368] sm:$0xff]
        %v6415 = vld [vmem:[#allocation10 + $0x3a8] sm:$0xff]
        %v6416 = vld [vmem:[#allocation10 + $0x3e8] sm:$0xff]
        %v6417 = vld [vmem:[#allocation10 + $0x428] sm:$0xff]
        %v6418 = vld [vmem:[#allocation10 + $0x468] sm:$0xff]
        %v6419 = vld [vmem:[#allocation10 + $0x4a8] sm:$0xff]
        %v6420 = vld [vmem:[#allocation10 + $0x4e8] sm:$0xff]
        %v6421 = vld [vmem:[#allocation10 + $0x528] sm:$0xff]
        %v6422 = vld [vmem:[#allocation10 + $0x568] sm:$0xff]
        %v6423 = vld [vmem:[#allocation10 + $0x5a8] sm:$0xff]
        %v6424 = vld [vmem:[#allocation10 + $0x5e8] sm:$0xff]
        %v6425 = vld [vmem:[#allocation10 + $0x628] sm:$0xff]
        %v6426 = vld [vmem:[#allocation10 + $0x668] sm:$0xff]
        %v6427 = vld [vmem:[#allocation10 + $0x6a8] sm:$0xff]
        %v6428 = vld [vmem:[#allocation10 + $0x6e8] sm:$0xff]
        %v6429 = vld [vmem:[#allocation10 + $0x728] sm:$0xff]
        %v6430 = vld [vmem:[#allocation10 + $0x768] sm:$0xff]
        %v6431 = vld [vmem:[#allocation10 + $0x7a8] sm:$0xff]
        %v6432 = vld [vmem:[#allocation10 + $0x7e8] sm:$0xff]
        %6433 = vmatpush.msra.mxu0 %v6416
        %6434 = vmatpush.msra.mxu0 %v6415
        %6435 = vmatpush.msra.mxu0 %v6414
        %6436 = vmatpush.msra.mxu0 %v6413
        %6437 = vmatpush.msra.mxu0 %v6412
        %6438 = vmatpush.msra.mxu0 %v6411
        %6439 = vmatpush.msra.mxu0 %v6410
        %6440 = vmatpush.msra.mxu0 %v6409
        %6441 = vmatpush.msra.mxu0 %v6408
        %6442 = vmatpush.msra.mxu0 %v6407
        %6443 = vmatpush.msra.mxu0 %v6406
        %6444 = vmatpush.msra.mxu0 %v6405
        %6445 = vmatpush.msra.mxu0 %v6404
        %6446 = vmatpush.msra.mxu0 %v6403
        %6447 = vmatpush.msra.mxu0 %v6402
        %6448 = vmatpush.msra.mxu0 %v6401
        %6449 = vmatmul.f32.gmra.mxu0 %v5395
        %v6450 = vpop.f32.mrf.mxu0
        %v6451 = vadd.f32 0.0, %v6450
        %6452 = vmatmul.f32.gmra.mxu0 %v5398
        %v6453 = vpop.f32.mrf.mxu0
        %v6454 = vadd.f32 0.0, %v6453
        %6455 = vmatmul.f32.gmra.mxu0 %v5401
        %v6456 = vpop.f32.mrf.mxu0
        %v6457 = vadd.f32 0.0, %v6456
        %6458 = vmatmul.f32.gmra.mxu0 %v5404
        %v6459 = vpop.f32.mrf.mxu0
        %v6460 = vadd.f32 0.0, %v6459
        %6461 = vmatmul.f32.gmra.mxu0 %v5407
        %v6462 = vpop.f32.mrf.mxu0
        %v6463 = vadd.f32 0.0, %v6462
        %6464 = vmatmul.f32.gmra.mxu0 %v5410
        %v6465 = vpop.f32.mrf.mxu0
        %v6466 = vadd.f32 0.0, %v6465
        %6467 = vmatmul.f32.gmra.mxu0 %v5413
        %v6468 = vpop.f32.mrf.mxu0
        %v6469 = vadd.f32 0.0, %v6468
        %6470 = vmatmul.f32.gmra.mxu0 %v5416
        %v6471 = vpop.f32.mrf.mxu0
        %v6472 = vadd.f32 0.0, %v6471
        %6473 = vmatmul.f32.gmra.mxu0 %v5419
        %v6474 = vpop.f32.mrf.mxu0
        %v6475 = vadd.f32 0.0, %v6474
        %6476 = vmatmul.f32.gmra.mxu0 %v5422
        %v6477 = vpop.f32.mrf.mxu0
        %v6478 = vadd.f32 0.0, %v6477
        %6479 = vmatmul.f32.gmra.mxu0 %v5425
        %v6480 = vpop.f32.mrf.mxu0
        %v6481 = vadd.f32 0.0, %v6480
        %6482 = vmatmul.f32.gmra.mxu0 %v5428
        %v6483 = vpop.f32.mrf.mxu0
        %v6484 = vadd.f32 0.0, %v6483
        %6485 = vmatmul.f32.gmra.mxu0 %v5431
        %v6486 = vpop.f32.mrf.mxu0
        %v6487 = vadd.f32 0.0, %v6486
        %6488 = vmatmul.f32.gmra.mxu0 %v5434
        %v6489 = vpop.f32.mrf.mxu0
        %v6490 = vadd.f32 0.0, %v6489
        %6491 = vmatmul.f32.gmra.mxu0 %v5437
        %v6492 = vpop.f32.mrf.mxu0
        %v6493 = vadd.f32 0.0, %v6492
        %6494 = vmatmul.f32.gmra.mxu0 %v5440
        %v6495 = vpop.f32.mrf.mxu0
        %v6496 = vadd.f32 0.0, %v6495
        %6497 = vdwg.mxu0
        %6498 = vmatpush.msra.mxu0 %v6432
        %6499 = vmatpush.msra.mxu0 %v6431
        %6500 = vmatpush.msra.mxu0 %v6430
        %6501 = vmatpush.msra.mxu0 %v6429
        %6502 = vmatpush.msra.mxu0 %v6428
        %6503 = vmatpush.msra.mxu0 %v6427
        %6504 = vmatpush.msra.mxu0 %v6426
        %6505 = vmatpush.msra.mxu0 %v6425
        %6506 = vmatpush.msra.mxu0 %v6424
        %6507 = vmatpush.msra.mxu0 %v6423
        %6508 = vmatpush.msra.mxu0 %v6422
        %6509 = vmatpush.msra.mxu0 %v6421
        %6510 = vmatpush.msra.mxu0 %v6420
        %6511 = vmatpush.msra.mxu0 %v6419
        %6512 = vmatpush.msra.mxu0 %v6418
        %6513 = vmatpush.msra.mxu0 %v6417
        %6514 = vmatmul.f32.gmra.mxu0 %v5460
        %v6515 = vpop.f32.mrf.mxu0
        %v6516 = vadd.f32 %v6451, %v6515
        %6517 = vmatmul.f32.gmra.mxu0 %v5463
        %v6518 = vpop.f32.mrf.mxu0
        %v6519 = vadd.f32 %v6454, %v6518
        %6520 = vmatmul.f32.gmra.mxu0 %v5466
        %v6521 = vpop.f32.mrf.mxu0
        %v6522 = vadd.f32 %v6457, %v6521
        %6523 = vmatmul.f32.gmra.mxu0 %v5469
        %v6524 = vpop.f32.mrf.mxu0
        %v6525 = vadd.f32 %v6460, %v6524
        %6526 = vmatmul.f32.gmra.mxu0 %v5472
        %v6527 = vpop.f32.mrf.mxu0
        %v6528 = vadd.f32 %v6463, %v6527
        %6529 = vmatmul.f32.gmra.mxu0 %v5475
        %v6530 = vpop.f32.mrf.mxu0
        %v6531 = vadd.f32 %v6466, %v6530
        %6532 = vmatmul.f32.gmra.mxu0 %v5478
        %v6533 = vpop.f32.mrf.mxu0
        %v6534 = vadd.f32 %v6469, %v6533
        %6535 = vmatmul.f32.gmra.mxu0 %v5481
        %v6536 = vpop.f32.mrf.mxu0
        %v6537 = vadd.f32 %v6472, %v6536
        %6538 = vmatmul.f32.gmra.mxu0 %v5484
        %v6539 = vpop.f32.mrf.mxu0
        %v6540 = vadd.f32 %v6475, %v6539
        %6541 = vmatmul.f32.gmra.mxu0 %v5487
        %v6542 = vpop.f32.mrf.mxu0
        %v6543 = vadd.f32 %v6478, %v6542
        %6544 = vmatmul.f32.gmra.mxu0 %v5490
        %v6545 = vpop.f32.mrf.mxu0
        %v6546 = vadd.f32 %v6481, %v6545
        %6547 = vmatmul.f32.gmra.mxu0 %v5493
        %v6548 = vpop.f32.mrf.mxu0
        %v6549 = vadd.f32 %v6484, %v6548
        %6550 = vmatmul.f32.gmra.mxu0 %v5496
        %v6551 = vpop.f32.mrf.mxu0
        %v6552 = vadd.f32 %v6487, %v6551
        %6553 = vmatmul.f32.gmra.mxu0 %v5499
        %v6554 = vpop.f32.mrf.mxu0
        %v6555 = vadd.f32 %v6490, %v6554
        %6556 = vmatmul.f32.gmra.mxu0 %v5502
        %v6557 = vpop.f32.mrf.mxu0
        %v6558 = vadd.f32 %v6493, %v6557
        %6559 = vmatmul.f32.gmra.mxu0 %v5505
        %v6560 = vpop.f32.mrf.mxu0
        %v6561 = vadd.f32 %v6496, %v6560
        %6562 = vdwg.mxu0
        %s6563 = scalar_lea.vmem %s508, 640 [#allocation11]
        %6564 = vst [vmem:[%s6563] sm:$0xff] %v6516
        %6565 = vst [vmem:[%s6563 + $0x8] sm:$0xff] %v6519
        %6566 = vst [vmem:[%s6563 + $0x10] sm:$0xff] %v6522
        %6567 = vst [vmem:[%s6563 + $0x18] sm:$0xff] %v6525
        %6568 = vst [vmem:[%s6563 + $0x20] sm:$0xff] %v6528
        %6569 = vst [vmem:[%s6563 + $0x28] sm:$0xff] %v6531
        %6570 = vst [vmem:[%s6563 + $0x30] sm:$0xff] %v6534
        %6571 = vst [vmem:[%s6563 + $0x38] sm:$0xff] %v6537
        %6572 = vst [vmem:[%s6563 + $0x40] sm:$0xff] %v6540
        %6573 = vst [vmem:[%s6563 + $0x48] sm:$0xff] %v6543
        %6574 = vst [vmem:[%s6563 + $0x50] sm:$0xff] %v6546
        %6575 = vst [vmem:[%s6563 + $0x58] sm:$0xff] %v6549
        %6576 = vst [vmem:[%s6563 + $0x60] sm:$0xff] %v6552
        %6577 = vst [vmem:[%s6563 + $0x68] sm:$0xff] %v6555
        %6578 = vst [vmem:[%s6563 + $0x70] sm:$0xff] %v6558
        %6579 = vst [vmem:[%s6563 + $0x78] sm:$0xff] %v6561
        %v6580 = vld [vmem:[#allocation10 + $0x30] sm:$0xff]
        %v6581 = vld [vmem:[#allocation10 + $0x70] sm:$0xff]
        %v6582 = vld [vmem:[#allocation10 + $0xb0] sm:$0xff]
        %v6583 = vld [vmem:[#allocation10 + $0xf0] sm:$0xff]
        %v6584 = vld [vmem:[#allocation10 + $0x130] sm:$0xff]
        %v6585 = vld [vmem:[#allocation10 + $0x170] sm:$0xff]
        %v6586 = vld [vmem:[#allocation10 + $0x1b0] sm:$0xff]
        %v6587 = vld [vmem:[#allocation10 + $0x1f0] sm:$0xff]
        %v6588 = vld [vmem:[#allocation10 + $0x230] sm:$0xff]
        %v6589 = vld [vmem:[#allocation10 + $0x270] sm:$0xff]
        %v6590 = vld [vmem:[#allocation10 + $0x2b0] sm:$0xff]
        %v6591 = vld [vmem:[#allocation10 + $0x2f0] sm:$0xff]
        %v6592 = vld [vmem:[#allocation10 + $0x330] sm:$0xff]
        %v6593 = vld [vmem:[#allocation10 + $0x370] sm:$0xff]
        %v6594 = vld [vmem:[#allocation10 + $0x3b0] sm:$0xff]
        %v6595 = vld [vmem:[#allocation10 + $0x3f0] sm:$0xff]
        %v6596 = vld [vmem:[#allocation10 + $0x430] sm:$0xff]
        %v6597 = vld [vmem:[#allocation10 + $0x470] sm:$0xff]
        %v6598 = vld [vmem:[#allocation10 + $0x4b0] sm:$0xff]
        %v6599 = vld [vmem:[#allocation10 + $0x4f0] sm:$0xff]
        %v6600 = vld [vmem:[#allocation10 + $0x530] sm:$0xff]
        %v6601 = vld [vmem:[#allocation10 + $0x570] sm:$0xff]
        %v6602 = vld [vmem:[#allocation10 + $0x5b0] sm:$0xff]
        %v6603 = vld [vmem:[#allocation10 + $0x5f0] sm:$0xff]
        %v6604 = vld [vmem:[#allocation10 + $0x630] sm:$0xff]
        %v6605 = vld [vmem:[#allocation10 + $0x670] sm:$0xff]
        %v6606 = vld [vmem:[#allocation10 + $0x6b0] sm:$0xff]
        %v6607 = vld [vmem:[#allocation10 + $0x6f0] sm:$0xff]
        %v6608 = vld [vmem:[#allocation10 + $0x730] sm:$0xff]
        %v6609 = vld [vmem:[#allocation10 + $0x770] sm:$0xff]
        %v6610 = vld [vmem:[#allocation10 + $0x7b0] sm:$0xff]
        %v6611 = vld [vmem:[#allocation10 + $0x7f0] sm:$0xff]
        %6612 = vmatpush.msra.mxu0 %v6595
        %6613 = vmatpush.msra.mxu0 %v6594
        %6614 = vmatpush.msra.mxu0 %v6593
        %6615 = vmatpush.msra.mxu0 %v6592
        %6616 = vmatpush.msra.mxu0 %v6591
        %6617 = vmatpush.msra.mxu0 %v6590
        %6618 = vmatpush.msra.mxu0 %v6589
        %6619 = vmatpush.msra.mxu0 %v6588
        %6620 = vmatpush.msra.mxu0 %v6587
        %6621 = vmatpush.msra.mxu0 %v6586
        %6622 = vmatpush.msra.mxu0 %v6585
        %6623 = vmatpush.msra.mxu0 %v6584
        %6624 = vmatpush.msra.mxu0 %v6583
        %6625 = vmatpush.msra.mxu0 %v6582
        %6626 = vmatpush.msra.mxu0 %v6581
        %6627 = vmatpush.msra.mxu0 %v6580
        %6628 = vmatmul.f32.gmra.mxu0 %v5395
        %v6629 = vpop.f32.mrf.mxu0
        %v6630 = vadd.f32 0.0, %v6629
        %6631 = vmatmul.f32.gmra.mxu0 %v5398
        %v6632 = vpop.f32.mrf.mxu0
        %v6633 = vadd.f32 0.0, %v6632
        %6634 = vmatmul.f32.gmra.mxu0 %v5401
        %v6635 = vpop.f32.mrf.mxu0
        %v6636 = vadd.f32 0.0, %v6635
        %6637 = vmatmul.f32.gmra.mxu0 %v5404
        %v6638 = vpop.f32.mrf.mxu0
        %v6639 = vadd.f32 0.0, %v6638
        %6640 = vmatmul.f32.gmra.mxu0 %v5407
        %v6641 = vpop.f32.mrf.mxu0
        %v6642 = vadd.f32 0.0, %v6641
        %6643 = vmatmul.f32.gmra.mxu0 %v5410
        %v6644 = vpop.f32.mrf.mxu0
        %v6645 = vadd.f32 0.0, %v6644
        %6646 = vmatmul.f32.gmra.mxu0 %v5413
        %v6647 = vpop.f32.mrf.mxu0
        %v6648 = vadd.f32 0.0, %v6647
        %6649 = vmatmul.f32.gmra.mxu0 %v5416
        %v6650 = vpop.f32.mrf.mxu0
        %v6651 = vadd.f32 0.0, %v6650
        %6652 = vmatmul.f32.gmra.mxu0 %v5419
        %v6653 = vpop.f32.mrf.mxu0
        %v6654 = vadd.f32 0.0, %v6653
        %6655 = vmatmul.f32.gmra.mxu0 %v5422
        %v6656 = vpop.f32.mrf.mxu0
        %v6657 = vadd.f32 0.0, %v6656
        %6658 = vmatmul.f32.gmra.mxu0 %v5425
        %v6659 = vpop.f32.mrf.mxu0
        %v6660 = vadd.f32 0.0, %v6659
        %6661 = vmatmul.f32.gmra.mxu0 %v5428
        %v6662 = vpop.f32.mrf.mxu0
        %v6663 = vadd.f32 0.0, %v6662
        %6664 = vmatmul.f32.gmra.mxu0 %v5431
        %v6665 = vpop.f32.mrf.mxu0
        %v6666 = vadd.f32 0.0, %v6665
        %6667 = vmatmul.f32.gmra.mxu0 %v5434
        %v6668 = vpop.f32.mrf.mxu0
        %v6669 = vadd.f32 0.0, %v6668
        %6670 = vmatmul.f32.gmra.mxu0 %v5437
        %v6671 = vpop.f32.mrf.mxu0
        %v6672 = vadd.f32 0.0, %v6671
        %6673 = vmatmul.f32.gmra.mxu0 %v5440
        %v6674 = vpop.f32.mrf.mxu0
        %v6675 = vadd.f32 0.0, %v6674
        %6676 = vdwg.mxu0
        %6677 = vmatpush.msra.mxu0 %v6611
        %6678 = vmatpush.msra.mxu0 %v6610
        %6679 = vmatpush.msra.mxu0 %v6609
        %6680 = vmatpush.msra.mxu0 %v6608
        %6681 = vmatpush.msra.mxu0 %v6607
        %6682 = vmatpush.msra.mxu0 %v6606
        %6683 = vmatpush.msra.mxu0 %v6605
        %6684 = vmatpush.msra.mxu0 %v6604
        %6685 = vmatpush.msra.mxu0 %v6603
        %6686 = vmatpush.msra.mxu0 %v6602
        %6687 = vmatpush.msra.mxu0 %v6601
        %6688 = vmatpush.msra.mxu0 %v6600
        %6689 = vmatpush.msra.mxu0 %v6599
        %6690 = vmatpush.msra.mxu0 %v6598
        %6691 = vmatpush.msra.mxu0 %v6597
        %6692 = vmatpush.msra.mxu0 %v6596
        %6693 = vmatmul.f32.gmra.mxu0 %v5460
        %v6694 = vpop.f32.mrf.mxu0
        %v6695 = vadd.f32 %v6630, %v6694
        %6696 = vmatmul.f32.gmra.mxu0 %v5463
        %v6697 = vpop.f32.mrf.mxu0
        %v6698 = vadd.f32 %v6633, %v6697
        %6699 = vmatmul.f32.gmra.mxu0 %v5466
        %v6700 = vpop.f32.mrf.mxu0
        %v6701 = vadd.f32 %v6636, %v6700
        %6702 = vmatmul.f32.gmra.mxu0 %v5469
        %v6703 = vpop.f32.mrf.mxu0
        %v6704 = vadd.f32 %v6639, %v6703
        %6705 = vmatmul.f32.gmra.mxu0 %v5472
        %v6706 = vpop.f32.mrf.mxu0
        %v6707 = vadd.f32 %v6642, %v6706
        %6708 = vmatmul.f32.gmra.mxu0 %v5475
        %v6709 = vpop.f32.mrf.mxu0
        %v6710 = vadd.f32 %v6645, %v6709
        %6711 = vmatmul.f32.gmra.mxu0 %v5478
        %v6712 = vpop.f32.mrf.mxu0
        %v6713 = vadd.f32 %v6648, %v6712
        %6714 = vmatmul.f32.gmra.mxu0 %v5481
        %v6715 = vpop.f32.mrf.mxu0
        %v6716 = vadd.f32 %v6651, %v6715
        %6717 = vmatmul.f32.gmra.mxu0 %v5484
        %v6718 = vpop.f32.mrf.mxu0
        %v6719 = vadd.f32 %v6654, %v6718
        %6720 = vmatmul.f32.gmra.mxu0 %v5487
        %v6721 = vpop.f32.mrf.mxu0
        %v6722 = vadd.f32 %v6657, %v6721
        %6723 = vmatmul.f32.gmra.mxu0 %v5490
        %v6724 = vpop.f32.mrf.mxu0
        %v6725 = vadd.f32 %v6660, %v6724
        %6726 = vmatmul.f32.gmra.mxu0 %v5493
        %v6727 = vpop.f32.mrf.mxu0
        %v6728 = vadd.f32 %v6663, %v6727
        %6729 = vmatmul.f32.gmra.mxu0 %v5496
        %v6730 = vpop.f32.mrf.mxu0
        %v6731 = vadd.f32 %v6666, %v6730
        %6732 = vmatmul.f32.gmra.mxu0 %v5499
        %v6733 = vpop.f32.mrf.mxu0
        %v6734 = vadd.f32 %v6669, %v6733
        %6735 = vmatmul.f32.gmra.mxu0 %v5502
        %v6736 = vpop.f32.mrf.mxu0
        %v6737 = vadd.f32 %v6672, %v6736
        %6738 = vmatmul.f32.gmra.mxu0 %v5505
        %v6739 = vpop.f32.mrf.mxu0
        %v6740 = vadd.f32 %v6675, %v6739
        %6741 = vdwg.mxu0
        %s6742 = scalar_lea.vmem %s508, 768 [#allocation11]
        %6743 = vst [vmem:[%s6742] sm:$0xff] %v6695
        %6744 = vst [vmem:[%s6742 + $0x8] sm:$0xff] %v6698
        %6745 = vst [vmem:[%s6742 + $0x10] sm:$0xff] %v6701
        %6746 = vst [vmem:[%s6742 + $0x18] sm:$0xff] %v6704
        %6747 = vst [vmem:[%s6742 + $0x20] sm:$0xff] %v6707
        %6748 = vst [vmem:[%s6742 + $0x28] sm:$0xff] %v6710
        %6749 = vst [vmem:[%s6742 + $0x30] sm:$0xff] %v6713
        %6750 = vst [vmem:[%s6742 + $0x38] sm:$0xff] %v6716
        %6751 = vst [vmem:[%s6742 + $0x40] sm:$0xff] %v6719
        %6752 = vst [vmem:[%s6742 + $0x48] sm:$0xff] %v6722
        %6753 = vst [vmem:[%s6742 + $0x50] sm:$0xff] %v6725
        %6754 = vst [vmem:[%s6742 + $0x58] sm:$0xff] %v6728
        %6755 = vst [vmem:[%s6742 + $0x60] sm:$0xff] %v6731
        %6756 = vst [vmem:[%s6742 + $0x68] sm:$0xff] %v6734
        %6757 = vst [vmem:[%s6742 + $0x70] sm:$0xff] %v6737
        %6758 = vst [vmem:[%s6742 + $0x78] sm:$0xff] %v6740
        %v6759 = vld [vmem:[#allocation10 + $0x38] sm:$0xff]
        %v6760 = vld [vmem:[#allocation10 + $0x78] sm:$0xff]
        %v6761 = vld [vmem:[#allocation10 + $0xb8] sm:$0xff]
        %v6762 = vld [vmem:[#allocation10 + $0xf8] sm:$0xff]
        %v6763 = vld [vmem:[#allocation10 + $0x138] sm:$0xff]
        %v6764 = vld [vmem:[#allocation10 + $0x178] sm:$0xff]
        %v6765 = vld [vmem:[#allocation10 + $0x1b8] sm:$0xff]
        %v6766 = vld [vmem:[#allocation10 + $0x1f8] sm:$0xff]
        %v6767 = vld [vmem:[#allocation10 + $0x238] sm:$0xff]
        %v6768 = vld [vmem:[#allocation10 + $0x278] sm:$0xff]
        %v6769 = vld [vmem:[#allocation10 + $0x2b8] sm:$0xff]
        %v6770 = vld [vmem:[#allocation10 + $0x2f8] sm:$0xff]
        %v6771 = vld [vmem:[#allocation10 + $0x338] sm:$0xff]
        %v6772 = vld [vmem:[#allocation10 + $0x378] sm:$0xff]
        %v6773 = vld [vmem:[#allocation10 + $0x3b8] sm:$0xff]
        %v6774 = vld [vmem:[#allocation10 + $0x3f8] sm:$0xff]
        %v6775 = vld [vmem:[#allocation10 + $0x438] sm:$0xff]
        %v6776 = vld [vmem:[#allocation10 + $0x478] sm:$0xff]
        %v6777 = vld [vmem:[#allocation10 + $0x4b8] sm:$0xff]
        %v6778 = vld [vmem:[#allocation10 + $0x4f8] sm:$0xff]
        %v6779 = vld [vmem:[#allocation10 + $0x538] sm:$0xff]
        %v6780 = vld [vmem:[#allocation10 + $0x578] sm:$0xff]
        %v6781 = vld [vmem:[#allocation10 + $0x5b8] sm:$0xff]
        %v6782 = vld [vmem:[#allocation10 + $0x5f8] sm:$0xff]
        %v6783 = vld [vmem:[#allocation10 + $0x638] sm:$0xff]
        %v6784 = vld [vmem:[#allocation10 + $0x678] sm:$0xff]
        %v6785 = vld [vmem:[#allocation10 + $0x6b8] sm:$0xff]
        %v6786 = vld [vmem:[#allocation10 + $0x6f8] sm:$0xff]
        %v6787 = vld [vmem:[#allocation10 + $0x738] sm:$0xff]
        %v6788 = vld [vmem:[#allocation10 + $0x778] sm:$0xff]
        %v6789 = vld [vmem:[#allocation10 + $0x7b8] sm:$0xff]
        %v6790 = vld [vmem:[#allocation10 + $0x7f8] sm:$0xff]
        %6791 = vmatpush.msra.mxu0 %v6774
        %6792 = vmatpush.msra.mxu0 %v6773
        %6793 = vmatpush.msra.mxu0 %v6772
        %6794 = vmatpush.msra.mxu0 %v6771
        %6795 = vmatpush.msra.mxu0 %v6770
        %6796 = vmatpush.msra.mxu0 %v6769
        %6797 = vmatpush.msra.mxu0 %v6768
        %6798 = vmatpush.msra.mxu0 %v6767
        %6799 = vmatpush.msra.mxu0 %v6766
        %6800 = vmatpush.msra.mxu0 %v6765
        %6801 = vmatpush.msra.mxu0 %v6764
        %6802 = vmatpush.msra.mxu0 %v6763
        %6803 = vmatpush.msra.mxu0 %v6762
        %6804 = vmatpush.msra.mxu0 %v6761
        %6805 = vmatpush.msra.mxu0 %v6760
        %6806 = vmatpush.msra.mxu0 %v6759
        %6807 = vmatmul.f32.gmra.mxu0 %v5395
        %v6808 = vpop.f32.mrf.mxu0
        %v6809 = vadd.f32 0.0, %v6808
        %6810 = vmatmul.f32.gmra.mxu0 %v5398
        %v6811 = vpop.f32.mrf.mxu0
        %v6812 = vadd.f32 0.0, %v6811
        %6813 = vmatmul.f32.gmra.mxu0 %v5401
        %v6814 = vpop.f32.mrf.mxu0
        %v6815 = vadd.f32 0.0, %v6814
        %6816 = vmatmul.f32.gmra.mxu0 %v5404
        %v6817 = vpop.f32.mrf.mxu0
        %v6818 = vadd.f32 0.0, %v6817
        %6819 = vmatmul.f32.gmra.mxu0 %v5407
        %v6820 = vpop.f32.mrf.mxu0
        %v6821 = vadd.f32 0.0, %v6820
        %6822 = vmatmul.f32.gmra.mxu0 %v5410
        %v6823 = vpop.f32.mrf.mxu0
        %v6824 = vadd.f32 0.0, %v6823
        %6825 = vmatmul.f32.gmra.mxu0 %v5413
        %v6826 = vpop.f32.mrf.mxu0
        %v6827 = vadd.f32 0.0, %v6826
        %6828 = vmatmul.f32.gmra.mxu0 %v5416
        %v6829 = vpop.f32.mrf.mxu0
        %v6830 = vadd.f32 0.0, %v6829
        %6831 = vmatmul.f32.gmra.mxu0 %v5419
        %v6832 = vpop.f32.mrf.mxu0
        %v6833 = vadd.f32 0.0, %v6832
        %6834 = vmatmul.f32.gmra.mxu0 %v5422
        %v6835 = vpop.f32.mrf.mxu0
        %v6836 = vadd.f32 0.0, %v6835
        %6837 = vmatmul.f32.gmra.mxu0 %v5425
        %v6838 = vpop.f32.mrf.mxu0
        %v6839 = vadd.f32 0.0, %v6838
        %6840 = vmatmul.f32.gmra.mxu0 %v5428
        %v6841 = vpop.f32.mrf.mxu0
        %v6842 = vadd.f32 0.0, %v6841
        %6843 = vmatmul.f32.gmra.mxu0 %v5431
        %v6844 = vpop.f32.mrf.mxu0
        %v6845 = vadd.f32 0.0, %v6844
        %6846 = vmatmul.f32.gmra.mxu0 %v5434
        %v6847 = vpop.f32.mrf.mxu0
        %v6848 = vadd.f32 0.0, %v6847
        %6849 = vmatmul.f32.gmra.mxu0 %v5437
        %v6850 = vpop.f32.mrf.mxu0
        %v6851 = vadd.f32 0.0, %v6850
        %6852 = vmatmul.f32.gmra.mxu0 %v5440
        %v6853 = vpop.f32.mrf.mxu0
        %v6854 = vadd.f32 0.0, %v6853
        %6855 = vdwg.mxu0
        %6856 = vmatpush.msra.mxu0 %v6790
        %6857 = vmatpush.msra.mxu0 %v6789
        %6858 = vmatpush.msra.mxu0 %v6788
        %6859 = vmatpush.msra.mxu0 %v6787
        %6860 = vmatpush.msra.mxu0 %v6786
        %6861 = vmatpush.msra.mxu0 %v6785
        %6862 = vmatpush.msra.mxu0 %v6784
        %6863 = vmatpush.msra.mxu0 %v6783
        %6864 = vmatpush.msra.mxu0 %v6782
        %6865 = vmatpush.msra.mxu0 %v6781
        %6866 = vmatpush.msra.mxu0 %v6780
        %6867 = vmatpush.msra.mxu0 %v6779
        %6868 = vmatpush.msra.mxu0 %v6778
        %6869 = vmatpush.msra.mxu0 %v6777
        %6870 = vmatpush.msra.mxu0 %v6776
        %6871 = vmatpush.msra.mxu0 %v6775
        %6872 = vmatmul.f32.gmra.mxu0 %v5460
        %v6873 = vpop.f32.mrf.mxu0
        %v6874 = vadd.f32 %v6809, %v6873
        %6875 = vmatmul.f32.gmra.mxu0 %v5463
        %v6876 = vpop.f32.mrf.mxu0
        %v6877 = vadd.f32 %v6812, %v6876
        %6878 = vmatmul.f32.gmra.mxu0 %v5466
        %v6879 = vpop.f32.mrf.mxu0
        %v6880 = vadd.f32 %v6815, %v6879
        %6881 = vmatmul.f32.gmra.mxu0 %v5469
        %v6882 = vpop.f32.mrf.mxu0
        %v6883 = vadd.f32 %v6818, %v6882
        %6884 = vmatmul.f32.gmra.mxu0 %v5472
        %v6885 = vpop.f32.mrf.mxu0
        %v6886 = vadd.f32 %v6821, %v6885
        %6887 = vmatmul.f32.gmra.mxu0 %v5475
        %v6888 = vpop.f32.mrf.mxu0
        %v6889 = vadd.f32 %v6824, %v6888
        %6890 = vmatmul.f32.gmra.mxu0 %v5478
        %v6891 = vpop.f32.mrf.mxu0
        %v6892 = vadd.f32 %v6827, %v6891
        %6893 = vmatmul.f32.gmra.mxu0 %v5481
        %v6894 = vpop.f32.mrf.mxu0
        %v6895 = vadd.f32 %v6830, %v6894
        %6896 = vmatmul.f32.gmra.mxu0 %v5484
        %v6897 = vpop.f32.mrf.mxu0
        %v6898 = vadd.f32 %v6833, %v6897
        %6899 = vmatmul.f32.gmra.mxu0 %v5487
        %v6900 = vpop.f32.mrf.mxu0
        %v6901 = vadd.f32 %v6836, %v6900
        %6902 = vmatmul.f32.gmra.mxu0 %v5490
        %v6903 = vpop.f32.mrf.mxu0
        %v6904 = vadd.f32 %v6839, %v6903
        %6905 = vmatmul.f32.gmra.mxu0 %v5493
        %v6906 = vpop.f32.mrf.mxu0
        %v6907 = vadd.f32 %v6842, %v6906
        %6908 = vmatmul.f32.gmra.mxu0 %v5496
        %v6909 = vpop.f32.mrf.mxu0
        %v6910 = vadd.f32 %v6845, %v6909
        %6911 = vmatmul.f32.gmra.mxu0 %v5499
        %v6912 = vpop.f32.mrf.mxu0
        %v6913 = vadd.f32 %v6848, %v6912
        %6914 = vmatmul.f32.gmra.mxu0 %v5502
        %v6915 = vpop.f32.mrf.mxu0
        %v6916 = vadd.f32 %v6851, %v6915
        %6917 = vmatmul.f32.gmra.mxu0 %v5505
        %v6918 = vpop.f32.mrf.mxu0
        %v6919 = vadd.f32 %v6854, %v6918
        %6920 = vdwg.mxu0
        %s6921 = scalar_lea.vmem %s508, 896 [#allocation11]
        %6922 = vst [vmem:[%s6921] sm:$0xff] %v6874
        %6923 = vst [vmem:[%s6921 + $0x8] sm:$0xff] %v6877
        %6924 = vst [vmem:[%s6921 + $0x10] sm:$0xff] %v6880
        %6925 = vst [vmem:[%s6921 + $0x18] sm:$0xff] %v6883
        %6926 = vst [vmem:[%s6921 + $0x20] sm:$0xff] %v6886
        %6927 = vst [vmem:[%s6921 + $0x28] sm:$0xff] %v6889
        %6928 = vst [vmem:[%s6921 + $0x30] sm:$0xff] %v6892
        %6929 = vst [vmem:[%s6921 + $0x38] sm:$0xff] %v6895
        %6930 = vst [vmem:[%s6921 + $0x40] sm:$0xff] %v6898
        %6931 = vst [vmem:[%s6921 + $0x48] sm:$0xff] %v6901
        %6932 = vst [vmem:[%s6921 + $0x50] sm:$0xff] %v6904
        %6933 = vst [vmem:[%s6921 + $0x58] sm:$0xff] %v6907
        %6934 = vst [vmem:[%s6921 + $0x60] sm:$0xff] %v6910
        %6935 = vst [vmem:[%s6921 + $0x68] sm:$0xff] %v6913
        %6936 = vst [vmem:[%s6921 + $0x70] sm:$0xff] %v6916
        %6937 = vst [vmem:[%s6921 + $0x78] sm:$0xff] %v6919
        %s6938 = sand.u32 %s337, 1
        %s6939 = scalar_lea.sflag [#allocation7], %s6938
        %s6940 = sand.u32 %s337, 1
        %s6941 = smul.addr %s6940, 1024
        %s6942 = scalar_lea.vmem [#allocation11], %s6941
        // Predicated region
        $region89: #{decoder_forward.1} parent=75 // pred_check
          %p6943 = pneg %p347
        $region90: #{decoder_forward.1} parent=75 // pred_check_branch
          %6945 = sbr.rel (%p6943) target = $region92
        $region91: #{decoder_forward.1} parent=75 // pred_region
          %6947 = vsyncadd %s6939, 0
          %s6948 = smul.addr %s30, 128
          %s6949 = smul.addr %s6948, 8
          %s6950 = scalar_lea.hbm %s14, %s6949
          %s6951 = sshll.u32 %s6942, 4
          %s6952 = int_to_ptr.vmem [resolvable:$true] %s6951
          %s6953 = sshll.u32 %s6950, 4
          %s6954 = int_to_ptr.hbm [resolvable:$true] %s6953
          %6959 = dma.vmem_to_hbm [thread:$0]  %s6952, 16384, %s6954, %s6939, 128, 128, 8
        $region92: #{decoder_forward.1} parent=75 // pred_fallthru
          _
      $region76: #{decoder_forward.1} parent=5 // pred_fallthru
        _
      %p6960 = scmp.le.s32.totalorder 2, %s25
      // Predicated region
      $region93: #{decoder_forward.1} parent=5 // pred_check
        %p6961 = pneg %p6960
      $region94: #{decoder_forward.1} parent=5 // pred_check_branch
        %6963 = sbr.rel (%p6961) target = $region96
      $region95: #{decoder_forward.1} parent=5 // pred_region
        %s6964 = ssub.s32 %s25, 2
        // Predicated region
        $region97: #{decoder_forward.1} parent=95 // pred_check
          %p6965 = pneg %p353
        $region98: #{decoder_forward.1} parent=95 // pred_check_branch
          %6967 = sbr.rel (%p6965) target = $region100
        $region99: #{decoder_forward.1} parent=95 // pred_region
          %s6968 = sand.u32 %s338, 1
          %s6969 = scalar_lea.sflag [#allocation7], %s6968
          %s6970 = sand.u32 %s338, 1
          %s6971 = smul.addr %s6970, 1024
          %s6972 = scalar_lea.vmem [#allocation11], %s6971
          %6974 = dma.done %s6969, 16384
        $region100: #{decoder_forward.1} parent=95 // pred_fallthru
          _
      $region96: #{decoder_forward.1} parent=5 // pred_fallthru
        _
    $region6: #{decoder_forward.1} parent=1 // loop_footer
      %s29 = sadd.s32 1, %s25
    $region7: #{decoder_forward.1} parent=1 // loop_footer_branch
      %24 = sbr.rel target = $region3
    $region8: #{decoder_forward.1} parent=1 // loop_exit
      _
    %6975 = vsyncpa [#allocation6], 1
    %s6976 = scalar_lea.sflag [#allocation6], 1
    %6977 = vsyncpa %s6976, 1
    %6978 = vsyncpa [#allocation9], 1
    %6979 = vsyncpa [#allocation7], 1
    %s6980 = scalar_lea.sflag [#allocation7], 1
    %6981 = vsyncpa %s6980, 1

</llo_original>
